<compile_context>
chip_gen: v7x
topology: tpu7x:2x2x1
jax: 0.10.0
libtpu: 0.0.40
codegen_flags: <defaults>
</compile_context>

<pallas_src>
import jax
import jax.numpy as jnp
import numpy as np
from jax.experimental import pallas as pl
from jax.experimental.pallas import tpu as pltpu

WINDOW_SIZE = 5
SIGMA = 1.5
MAX_VAL = 1.0
C1 = (0.01 * MAX_VAL) ** 2
C2 = (0.03 * MAX_VAL) ** 2
PAD = (WINDOW_SIZE - 1) // 2

# Use the single dense kron filter matrix while (H*W)^2 * 4B stays small (<= 4 MiB) and the
# dense-MXU overwork (H*W MACs/elem vs ~H+W for separable) stays bounded.
_KRON_MAX_HW = 1024


def _gaussian_1d(ksize: int, sigma: float) -> np.ndarray:
    xs = np.arange(ksize, dtype=np.float64)
    g = np.exp(-((xs - ksize // 2) ** 2) / (2.0 * sigma ** 2))
    return g / g.sum()


_WINDOW_1D = _gaussian_1d(WINDOW_SIZE, SIGMA).astype(np.float32)
_WINDOW_2D = np.outer(_WINDOW_1D, _WINDOW_1D).astype(np.float32)


def _banded_matrix(n: int) -> np.ndarray:
    """A[j, i] = k1[j - i + PAD]:  (x @ A)[i] == zero-padded 'same' correlation of x with k1."""
    a = np.zeros((n, n), dtype=np.float32)
    for i in range(n):
        for t in range(WINDOW_SIZE):
            j = i - PAD + t
            if 0 <= j < n:
                a[j, i] = _WINDOW_1D[t]
    return a


# ---------------------------------------------------------------------------------------------
# Shared SSIM -> DSSIM math (pure f32; sigma = E[x^2] - mu^2 must NOT be downcast to bf16).
# ---------------------------------------------------------------------------------------------
def _dssim_from_inputs(x1, x2, filt):
    mu1 = filt(x1)
    mu2 = filt(x2)
    mu1_sq = mu1 * mu1
    mu2_sq = mu2 * mu2
    mu1_mu2 = mu1 * mu2
    # Consume filtered maps as they are produced to keep the live set small.
    sigma12 = filt(x1 * x2) - mu1_mu2
    num = (2.0 * mu1_mu2 + C1) * (2.0 * sigma12 + C2)
    sigma1_sq = filt(x1 * x1) - mu1_sq
    sigma2_sq = filt(x2 * x2) - mu2_sq
    den = (mu1_sq + mu2_sq + C1) * (sigma1_sq + sigma2_sq + C2)

    # Reciprocal on the EUP slot (free w.r.t. the VALU) + 2 Newton-Raphson refinement steps
    # (second step is cheap insurance: keeps the result at ~f32 divide accuracy regardless of
    # the hardware approx-rcp precision).
    r = pl.reciprocal(den, approx=True)
    r = r * (2.0 - den * r)
    r = r * (2.0 - den * r)
    ssim_map = num * r

    # SSIM module (reduction='none'): clamp(1 - ssim, 0, 1) / 2 ; DSSIMLoss: (1 - that) / 2.
    ssim_loss = jnp.clip(1.0 - ssim_map, 0.0, 1.0) * 0.5
    return (1.0 - ssim_loss) * 0.5


# ---------------------------------------------------------------------------------------------
# Kernels
# ---------------------------------------------------------------------------------------------
def _dssim_kernel_flat(m_ref, x1_ref, x2_ref, o_ref):
    """Small-spatial path.  x*_ref: (TN, H*W) flattened planes; m_ref: (H*W, H*W) kron filter."""
    mfilt = m_ref[...]

    def filt(z):
        # Full 2-D zero-padded Gaussian filter as a single lane-dense MXU matmul.
        return jnp.dot(z, mfilt, preferred_element_type=jnp.float32,
                       precision=jax.lax.Precision.HIGHEST)

    out = _dssim_from_inputs(x1_ref[...], x2_ref[...], filt)
    o_ref[...] = out.astype(o_ref.dtype)


def _dssim_kernel_sep(r_ref, c_ref, x1_ref, x2_ref, o_ref):
    """General path.  x*_ref: (TN, H, W); r_ref: (H, H) vertical band; c_ref: (W, W) horizontal."""
    tn, h, w = x1_ref.shape
    rmat = jnp.broadcast_to(r_ref[...], (tn, h, h))   # hoisted once per grid step
    cmat = c_ref[...]

    def filt(z):
        # Vertical (sublane-dim) pass: batched MXU matmul, zero-pad boundary baked into rmat.
        zv = jnp.einsum('nij,njw->niw', rmat, z,
                        preferred_element_type=jnp.float32,
                        precision=jax.lax.Precision.HIGHEST)
        # Horizontal (lane-dim) pass: plain MXU matmul against the banded (W, W) matrix.
        zh = jnp.dot(zv.reshape(tn * h, w), cmat,
                     preferred_element_type=jnp.float32,
                     precision=jax.lax.Precision.HIGHEST)
        return zh.reshape(tn, h, w)

    out = _dssim_from_inputs(x1_ref[...], x2_ref[...], filt)
    o_ref[...] = out.astype(o_ref.dtype)


# ---------------------------------------------------------------------------------------------
# Generation-aware tiling policy
# ---------------------------------------------------------------------------------------------
def _tpu_vmem_capacity_bytes() -> int:
    try:
        return int(pltpu.get_tpu_info().vmem_capacity_bytes)
    except Exception:
        return 64 * 1024 * 1024   # conservative (v7x-sized) fallback; safe on all generations


def _vmem_limit_bytes(vmem_cap: int) -> int:
    # v5e/v6e (128 MiB physical) -> ~100 MiB scoped; v7x-like (64 MiB) -> ~42 MiB.
    return int(min(100 * 2 ** 20, max(32 * 2 ** 20, vmem_cap - 22 * 2 ** 20)))


def _pick_block_planes(n_planes, per_plane_bytes, fixed_bytes, vmem_limit, multi_core,
                       multiple_of=1):
    budget = int(0.70 * vmem_limit) - fixed_bytes
    cap = max(1, budget // max(1, per_plane_bytes))
    cap = min(cap, n_planes)
    if multi_core and n_planes >= 2:
        # Keep >= 2 grid steps so v7x's two TensorCores both get work (dropped on single-TC
        # v5e/v6e, where the grid is a serial loop and halving only adds per-step overhead).
        cap = min(cap, max(1, n_planes // 2))
    # Largest divisor of n_planes <= cap; when the plane dim is the block's second-to-last dim
    # it must also be a multiple of 8 (sublane tiling / (8,128) BlockSpec rule).
    for t in range(min(cap, n_planes), 0, -1):
        if n_planes % t == 0 and (t % multiple_of == 0 or t == n_planes):
            return t
    return n_planes


# ---------------------------------------------------------------------------------------------
# Wrapper
# ---------------------------------------------------------------------------------------------
def dssim_loss(pred: jax.Array, target: jax.Array) -> jax.Array:
    """DSSIMLoss forward. pred/target: (B, C, H, W) -> (B, C, H, W) float32."""
    assert pred.shape == target.shape and pred.ndim == 4
    B, C_, H, W = pred.shape
    N = B * C_
    HW = H * W

    pred = pred.astype(jnp.float32)
    target = target.astype(jnp.float32)

    vmem_cap = _tpu_vmem_capacity_bytes()
    vmem_limit = _vmem_limit_bytes(vmem_cap)
    multi_core = vmem_cap <= 64 * 2 ** 20   # v7x-like (2 TensorCores / 64 MiB VMEM per TC)

    if HW <= _KRON_MAX_HW:
        # ---- Small-spatial path: flattened planes, one dense kron filter matmul. ----
        a_h = _banded_matrix(H)
        a_w = _banded_matrix(W)
        mfilt = jnp.asarray(np.kron(a_h, a_w))          # (HW, HW) f32, trace-time constant
        x1 = pred.reshape(N, HW)                        # free (contiguous) reshape
        x2 = target.reshape(N, HW)

        # Pad the plane count to a multiple of 8 so the block's sublane dim stays unmasked.
        n_pad = ((N + 7) // 8) * 8
        if n_pad != N:
            x1 = jnp.pad(x1, ((0, n_pad - N), (0, 0)))
            x2 = jnp.pad(x2, ((0, n_pad - N), (0, 0)))

        per_plane = 26 * HW * 4                         # pipelined IO + live intermediates
        fixed = 2 * HW * HW * 4                         # resident filter matrix (+ buffering)
        tn = _pick_block_planes(n_pad, per_plane, fixed, vmem_limit, multi_core, multiple_of=8)

        out = pl.pallas_call(
            _dssim_kernel_flat,
            out_shape=jax.ShapeDtypeStruct((n_pad, HW), jnp.float32),
            grid_spec=pltpu.PrefetchScalarGridSpec(
                num_scalar_prefetch=0,
                grid=(n_pad // tn,),
                in_specs=[
                    pl.BlockSpec((HW, HW), lambda n: (0, 0)),   # filter matrix, stays resident
                    pl.BlockSpec((tn, HW), lambda n: (n, 0)),
                    pl.BlockSpec((tn, HW), lambda n: (n, 0)),
                ],
                out_specs=pl.BlockSpec((tn, HW), lambda n: (n, 0)),
            ),
            compiler_params=pltpu.CompilerParams(
                dimension_semantics=("parallel",),
                vmem_limit_bytes=vmem_limit,
            ),
        )(mfilt, x1, x2)
        return out[:N].reshape(B, C_, H, W)

    # ---- General path: separable filter, both passes on the MXU. ----
    r_v = jnp.asarray(_banded_matrix(H).T)              # (H, H) vertical band (symmetric)
    c_h = jnp.asarray(_banded_matrix(W))                # (W, W) horizontal band
    x1 = pred.reshape(N, H, W)
    x2 = target.reshape(N, H, W)

    per_plane = (24 * HW + 2 * H * H) * 4               # live maps + broadcast vertical band
    fixed = 2 * (H * H + W * W) * 4
    tn = _pick_block_planes(N, per_plane, fixed, vmem_limit, multi_core, multiple_of=1)

    out = pl.pallas_call(
        _dssim_kernel_sep,
        out_shape=jax.ShapeDtypeStruct((N, H, W), jnp.float32),
        grid_spec=pltpu.PrefetchScalarGridSpec(
            num_scalar_prefetch=0,
            grid=(N // tn,),
            in_specs=[
                pl.BlockSpec((H, H), lambda n: (0, 0)),
                pl.BlockSpec((W, W), lambda n: (0, 0)),
                pl.BlockSpec((tn, H, W), lambda n: (n, 0, 0)),
                pl.BlockSpec((tn, H, W), lambda n: (n, 0, 0)),
            ],
            out_specs=pl.BlockSpec((tn, H, W), lambda n: (n, 0, 0)),
        ),
        compiler_params=pltpu.CompilerParams(
            dimension_semantics=("parallel",),
            vmem_limit_bytes=vmem_limit,
        ),
    )(r_v, c_h, x1, x2)
    return out.reshape(B, C_, H, W)


# ---------------------------------------------------------------------------------------------
# Pure-JAX reference (depthwise 2-D conv, mirrors the PyTorch DSSIMLoss module)
# ---------------------------------------------------------------------------------------------
def _dssim_loss_ref(pred, target):
    B, C_, H, W = pred.shape
    k = jnp.asarray(_WINDOW_2D)[None, None]
    k = jnp.tile(k, (C_, 1, 1, 1))

    def filt(x):
        return jax.lax.conv_general_dilated(
            x, k, window_strides=(1, 1), padding=[(PAD, PAD), (PAD, PAD)],
            dimension_numbers=("NCHW", "OIHW", "NCHW"), feature_group_count=C_,
            precision=jax.lax.Precision.HIGHEST)

    mu1 = filt(pred)
    mu2 = filt(target)
    mu1_sq, mu2_sq, mu1_mu2 = mu1 * mu1, mu2 * mu2, mu1 * mu2
    s1 = filt(pred * pred) - mu1_sq
    s2 = filt(target * target) - mu2_sq
    s12 = filt(pred * target) - mu1_mu2
    ssim_map = (2 * mu1_mu2 + C1) * (2 * s12 + C2) / ((mu1_sq + mu2_sq + C1) * (s1 + s2 + C2))
    ssim_loss = jnp.clip(1.0 - ssim_map, 0.0, 1.0) / 2.0
    return (1.0 - ssim_loss) / 2.0


if __name__ == "__main__":
    key = jax.random.PRNGKey(0)
    k1, k2 = jax.random.split(key)
    B, C_, H, W = 2, 4, 16, 16
    pred = jax.random.uniform(k1, (B, C_, H, W), dtype=jnp.float32)
    target = jax.random.uniform(k2, (B, C_, H, W), dtype=jnp.float32)

    out = jax.block_until_ready(dssim_loss(pred, target))
    ref = jax.block_until_ready(_dssim_loss_ref(pred, target))

    assert out.shape == (B, C_, H, W)
    np.testing.assert_allclose(np.asarray(out), np.asarray(ref), rtol=2e-5, atol=2e-5)
    print("KERNEL_OK")
</pallas_src>

<mosaic_0001>
module attributes {stable_mosaic.version = 11 : i64} {
  func.func @_dssim_kernel_flat(%arg0: i32, %arg1: memref<256x256xf32, #tpu.memory_space<vmem>>, %arg2: memref<8x256xf32, #tpu.memory_space<vmem>>, %arg3: memref<8x256xf32, #tpu.memory_space<vmem>>, %arg4: memref<8x256xf32, #tpu.memory_space<vmem>>) attributes {dimension_semantics = [#tpu.dimension_semantics<parallel>], iteration_bounds = array<i64: 1>, scalar_prefetch = 0 : i64, scratch_operands = 0 : i64, tpu.core_type = #tpu.core_type<tc>, window_params = [{pipeline_mode = #tpu.pipeline_mode<synchronous>, transform_indices = @transform_0, window_bounds = array<i64: 256, 256>}, {transform_indices = @transform_1, window_bounds = array<i64: 8, 256>}, {transform_indices = @transform_2, window_bounds = array<i64: 8, 256>}, {transform_indices = @transform_3, window_bounds = array<i64: 8, 256>}]} {
    %c0 = arith.constant 0 : index
    %c0_0 = arith.constant 0 : index
    %0 = vector.load %arg1[%c0, %c0_0] : memref<256x256xf32, #tpu.memory_space<vmem>>, vector<256x256xf32>
    %c0_1 = arith.constant 0 : index
    %c0_2 = arith.constant 0 : index
    %1 = vector.load %arg2[%c0_1, %c0_2] : memref<8x256xf32, #tpu.memory_space<vmem>>, vector<8x256xf32>
    %c0_3 = arith.constant 0 : index
    %c0_4 = arith.constant 0 : index
    %2 = vector.load %arg3[%c0_3, %c0_4] : memref<8x256xf32, #tpu.memory_space<vmem>>, vector<8x256xf32>
    %cst = arith.constant dense<0.000000e+00> : vector<8x256xf32>
    %3 = tpu.matmul %1, %0, %cst {dimension_numbers = #tpu.dot_dimension_numbers<[1], [0], [0], [1], [0, 0, 1, 1], [], []>, precision = #tpu.contract_precision<fp32>} : vector<8x256xf32>, vector<256x256xf32>, vector<8x256xf32> -> vector<8x256xf32>
    %cst_5 = arith.constant dense<0.000000e+00> : vector<8x256xf32>
    %4 = tpu.matmul %2, %0, %cst_5 {dimension_numbers = #tpu.dot_dimension_numbers<[1], [0], [0], [1], [0, 0, 1, 1], [], []>, precision = #tpu.contract_precision<fp32>} : vector<8x256xf32>, vector<256x256xf32>, vector<8x256xf32> -> vector<8x256xf32>
    %5 = arith.mulf %3, %3 : vector<8x256xf32>
    %6 = arith.mulf %4, %4 : vector<8x256xf32>
    %7 = arith.mulf %3, %4 : vector<8x256xf32>
    %8 = arith.mulf %1, %2 : vector<8x256xf32>
    %cst_6 = arith.constant dense<0.000000e+00> : vector<8x256xf32>
    %9 = tpu.matmul %8, %0, %cst_6 {dimension_numbers = #tpu.dot_dimension_numbers<[1], [0], [0], [1], [0, 0, 1, 1], [], []>, precision = #tpu.contract_precision<fp32>} : vector<8x256xf32>, vector<256x256xf32>, vector<8x256xf32> -> vector<8x256xf32>
    %10 = arith.subf %9, %7 : vector<8x256xf32>
    %cst_7 = arith.constant 2.000000e+00 : f32
    %11 = vector.broadcast %cst_7 : f32 to vector<8x256xf32>
    %12 = arith.mulf %11, %7 : vector<8x256xf32>
    %cst_8 = arith.constant 9.99999974E-5 : f32
    %13 = vector.broadcast %cst_8 : f32 to vector<8x256xf32>
    %14 = arith.addf %12, %13 : vector<8x256xf32>
    %cst_9 = arith.constant 2.000000e+00 : f32
    %15 = vector.broadcast %cst_9 : f32 to vector<8x256xf32>
    %16 = arith.mulf %15, %10 : vector<8x256xf32>
    %cst_10 = arith.constant 8.99999984E-4 : f32
    %17 = vector.broadcast %cst_10 : f32 to vector<8x256xf32>
    %18 = arith.addf %16, %17 : vector<8x256xf32>
    %19 = arith.mulf %14, %18 : vector<8x256xf32>
    %20 = arith.mulf %1, %1 : vector<8x256xf32>
    %cst_11 = arith.constant dense<0.000000e+00> : vector<8x256xf32>
    %21 = tpu.matmul %20, %0, %cst_11 {dimension_numbers = #tpu.dot_dimension_numbers<[1], [0], [0], [1], [0, 0, 1, 1], [], []>, precision = #tpu.contract_precision<fp32>} : vector<8x256xf32>, vector<256x256xf32>, vector<8x256xf32> -> vector<8x256xf32>
    %22 = arith.subf %21, %5 : vector<8x256xf32>
    %23 = arith.mulf %2, %2 : vector<8x256xf32>
    %cst_12 = arith.constant dense<0.000000e+00> : vector<8x256xf32>
    %24 = tpu.matmul %23, %0, %cst_12 {dimension_numbers = #tpu.dot_dimension_numbers<[1], [0], [0], [1], [0, 0, 1, 1], [], []>, precision = #tpu.contract_precision<fp32>} : vector<8x256xf32>, vector<256x256xf32>, vector<8x256xf32> -> vector<8x256xf32>
    %25 = arith.subf %24, %6 : vector<8x256xf32>
    %26 = arith.addf %5, %6 : vector<8x256xf32>
    %cst_13 = arith.constant 9.99999974E-5 : f32
    %27 = vector.broadcast %cst_13 : f32 to vector<8x256xf32>
    %28 = arith.addf %26, %27 : vector<8x256xf32>
    %29 = arith.addf %22, %25 : vector<8x256xf32>
    %cst_14 = arith.constant 8.99999984E-4 : f32
    %30 = vector.broadcast %cst_14 : f32 to vector<8x256xf32>
    %31 = arith.addf %29, %30 : vector<8x256xf32>
    %32 = arith.mulf %28, %31 : vector<8x256xf32>
    %33 = tpu.reciprocal %32 {approx = true} : vector<8x256xf32> -> vector<8x256xf32>
    %34 = arith.mulf %32, %33 : vector<8x256xf32>
    %cst_15 = arith.constant 2.000000e+00 : f32
    %35 = vector.broadcast %cst_15 : f32 to vector<8x256xf32>
    %36 = arith.subf %35, %34 : vector<8x256xf32>
    %37 = arith.mulf %33, %36 : vector<8x256xf32>
    %38 = arith.mulf %32, %37 : vector<8x256xf32>
    %cst_16 = arith.constant 2.000000e+00 : f32
    %39 = vector.broadcast %cst_16 : f32 to vector<8x256xf32>
    %40 = arith.subf %39, %38 : vector<8x256xf32>
    %41 = arith.mulf %37, %40 : vector<8x256xf32>
    %42 = arith.mulf %19, %41 : vector<8x256xf32>
    %cst_17 = arith.constant 1.000000e+00 : f32
    %43 = vector.broadcast %cst_17 : f32 to vector<8x256xf32>
    %44 = arith.subf %43, %42 : vector<8x256xf32>
    %cst_18 = arith.constant 0.000000e+00 : f32
    %cst_19 = arith.constant 1.000000e+00 : f32
    %45 = vector.broadcast %cst_18 : f32 to vector<8x256xf32>
    %46 = arith.maximumf %45, %44 : vector<8x256xf32>
    %47 = vector.broadcast %cst_19 : f32 to vector<8x256xf32>
    %48 = arith.minimumf %47, %46 : vector<8x256xf32>
    %cst_20 = arith.constant 5.000000e-01 : f32
    %49 = vector.broadcast %cst_20 : f32 to vector<8x256xf32>
    %50 = arith.mulf %48, %49 : vector<8x256xf32>
    %cst_21 = arith.constant 1.000000e+00 : f32
    %51 = vector.broadcast %cst_21 : f32 to vector<8x256xf32>
    %52 = arith.subf %51, %50 : vector<8x256xf32>
    %cst_22 = arith.constant 5.000000e-01 : f32
    %53 = vector.broadcast %cst_22 : f32 to vector<8x256xf32>
    %54 = arith.mulf %52, %53 : vector<8x256xf32>
    %c0_23 = arith.constant 0 : index
    %c0_24 = arith.constant 0 : index
    %55 = vector.load %arg4[%c0_23, %c0_24] : memref<8x256xf32, #tpu.memory_space<vmem>>, vector<8x256xf32>
    tpu.vector_store %arg4[%c0_23, %c0_24], %54 {strides = array<i32>} : memref<8x256xf32, #tpu.memory_space<vmem>>, vector<8x256xf32>,
    return
  }
  func.func @transform_0(%arg0: i32) -> (i32, i32) {
    %c0_i32 = arith.constant 0 : i32
    %c0_i32_0 = arith.constant 0 : i32
    %c0_i32_1 = arith.constant 0 : i32
    return %c0_i32, %c0_i32_0 : i32, i32
  }
  func.func @transform_1(%arg0: i32) -> (i32, i32) {
    %c0_i32 = arith.constant 0 : i32
    %c0_i32_0 = arith.constant 0 : i32
    return %arg0, %c0_i32 : i32, i32
  }
  func.func @transform_2(%arg0: i32) -> (i32, i32) {
    %c0_i32 = arith.constant 0 : i32
    %c0_i32_0 = arith.constant 0 : i32
    return %arg0, %c0_i32 : i32, i32
  }
  func.func @transform_3(%arg0: i32) -> (i32, i32) {
    %c0_i32 = arith.constant 0 : i32
    %c0_i32_0 = arith.constant 0 : i32
    return %arg0, %c0_i32 : i32, i32
  }
}

</mosaic_0001>

<llo_original>
// kernel: tpu_custom_call.1
$region0: #{tpu_custom_call.1}
  #allocation0 [shape = 'u32[]', space=smem, size = 0x4, offset = 0x4, fixed_abs, tag = 'smem constant byte address 0x4 - core index']
  #allocation1 [shape = 'u32[144,128]{1,0:T(1,128)}', space=vmem, size = 0x12000, scoped, tag = 'internal scratch']
  %s0 = inlined_call_operand.hbm [shape: f32[256,256], index: 0, kind: input, shape index: {}]
  %s1 = inlined_call_operand.hbm [shape: f32[8,256], index: 1, kind: input, shape index: {}]
  %s2 = inlined_call_operand.hbm [shape: f32[8,256], index: 2, kind: input, shape index: {}]
  %s3 = inlined_call_operand.hbm [shape: f32[8,256], index: 3, kind: output, shape index: {}]
  %s4 = sld [smem:[#allocation0]]
  $region34: #{tpu_custom_call.1} parent=0
    _
  %s6 = ssub.s32 1, %s4
  %s7 = scalar_select 0, %s6, %s4
  $region1: #{tpu_custom_call.1} parent=0
    #allocation2 [shape = 'u8[262144]{0}', space=vmem, size = 0x40000, scoped, tag = 'input window, operand 0, single buffered']
    #allocation3 [shape = 's32[1]{0}', space=sflag, size = 0x4, scoped, tag = 'scoped memory for tpu_custom_call.1']
    #allocation4 [shape = 's32[1]{0}', space=sflag, size = 0x4, scoped, tag = 'scoped memory for tpu_custom_call.1']
    #allocation5 [shape = 'u8[8192]{0}', space=vmem, size = 0x2000, scoped, tag = 'input window, operand 1, single buffered']
    #allocation6 [shape = 's32[1]{0}', space=sflag, size = 0x4, scoped, tag = 'scoped memory for tpu_custom_call.1']
    #allocation7 [shape = 'u8[8192]{0}', space=vmem, size = 0x2000, scoped, tag = 'input window, operand 2, single buffered']
    #allocation8 [shape = 'u8[8192]{0}', space=vmem, size = 0x2000, scoped, tag = 'output window, operand 0, single buffered']
    %8 = vsyncpa [#allocation3], 0
    %9 = vsyncpa [#allocation6], 0
    %10 = vsyncpa [#allocation4], 0
    // Predicated region
    $region2: #{tpu_custom_call.1} parent=1 // pred_check
      _
    $region3: #{tpu_custom_call.1} parent=1 // pred_check_branch
      %12 = sbr.rel (0) target = $region5
    $region4: #{tpu_custom_call.1} parent=1 // pred_region
      %s14 = ssub.s32 8192, 8192
      %15 = vsyncadd [#allocation3], %s14
      %s16 = sshll.u32 [#allocation2], 4
      %s17 = int_to_ptr.vmem [resolvable:$true] %s16
      %22 = dma.hbm_to_vmem [thread:$0]  %s0, 8192, %s17, [#allocation3], 256, 256, 16
    $region5: #{tpu_custom_call.1} parent=1 // pred_fallthru
      _
    // Predicated region
    $region6: #{tpu_custom_call.1} parent=1 // pred_check
      _
    $region7: #{tpu_custom_call.1} parent=1 // pred_check_branch
      %24 = sbr.rel (0) target = $region9
    $region8: #{tpu_custom_call.1} parent=1 // pred_region
      %s26 = ssub.s32 256, 256
      %27 = vsyncadd [#allocation6], %s26
      %s29 = sshll.u32 [#allocation5], 4
      %s30 = int_to_ptr.vmem [resolvable:$true] %s29
      %32 = dma.hbm_to_vmem [thread:$0]  %s1, 256, %s30, [#allocation6]
    $region9: #{tpu_custom_call.1} parent=1 // pred_fallthru
      _
    // Predicated region
    $region10: #{tpu_custom_call.1} parent=1 // pred_check
      _
    $region11: #{tpu_custom_call.1} parent=1 // pred_check_branch
      %34 = sbr.rel (0) target = $region13
    $region12: #{tpu_custom_call.1} parent=1 // pred_region
      %s36 = ssub.s32 256, 256
      %37 = vsyncadd [#allocation6], %s36
      %s39 = sshll.u32 [#allocation7], 4
      %s40 = int_to_ptr.vmem [resolvable:$true] %s39
      %42 = dma.hbm_to_vmem [thread:$0]  %s2, 256, %s40, [#allocation6]
    $region13: #{tpu_custom_call.1} parent=1 // pred_fallthru
      _
    // Predicated region
    $region14: #{tpu_custom_call.1} parent=1 // pred_check
      _
    $region15: #{tpu_custom_call.1} parent=1 // pred_check_branch
      %44 = sbr.rel (0) target = $region17
    $region16: #{tpu_custom_call.1} parent=1 // pred_region
      %45 = dma.done [#allocation3], 8192
    $region17: #{tpu_custom_call.1} parent=1 // pred_fallthru
      _
    // Predicated region
    $region18: #{tpu_custom_call.1} parent=1 // pred_check
      _
    $region19: #{tpu_custom_call.1} parent=1 // pred_check_branch
      %47 = sbr.rel (0) target = $region21
    $region20: #{tpu_custom_call.1} parent=1 // pred_region
      %48 = dma.done [#allocation6], 256
    $region21: #{tpu_custom_call.1} parent=1 // pred_fallthru
      _
    // Predicated region
    $region22: #{tpu_custom_call.1} parent=1 // pred_check
      _
    $region23: #{tpu_custom_call.1} parent=1 // pred_check_branch
      %50 = sbr.rel (0) target = $region25
    $region24: #{tpu_custom_call.1} parent=1 // pred_region
      %51 = dma.done [#allocation6], 256
    $region25: #{tpu_custom_call.1} parent=1 // pred_fallthru
      _
    %v52 = vld [vmem:[#allocation2] sm:$0xff]
    %v53 = vld [vmem:[#allocation2 + $0x8] sm:$0xff]
    %v54 = vld [vmem:[#allocation2 + $0x10] sm:$0xff]
    %v55 = vld [vmem:[#allocation2 + $0x18] sm:$0xff]
    %v56 = vld [vmem:[#allocation2 + $0x20] sm:$0xff]
    %v57 = vld [vmem:[#allocation2 + $0x28] sm:$0xff]
    %v58 = vld [vmem:[#allocation2 + $0x30] sm:$0xff]
    %v59 = vld [vmem:[#allocation2 + $0x38] sm:$0xff]
    %v60 = vld [vmem:[#allocation2 + $0x40] sm:$0xff]
    %v61 = vld [vmem:[#allocation2 + $0x48] sm:$0xff]
    %v62 = vld [vmem:[#allocation2 + $0x50] sm:$0xff]
    %v63 = vld [vmem:[#allocation2 + $0x58] sm:$0xff]
    %v64 = vld [vmem:[#allocation2 + $0x60] sm:$0xff]
    %v65 = vld [vmem:[#allocation2 + $0x68] sm:$0xff]
    %v66 = vld [vmem:[#allocation2 + $0x70] sm:$0xff]
    %v67 = vld [vmem:[#allocation2 + $0x78] sm:$0xff]
    %v68 = vld [vmem:[#allocation2 + $0x80] sm:$0xff]
    %v69 = vld [vmem:[#allocation2 + $0x88] sm:$0xff]
    %v70 = vld [vmem:[#allocation2 + $0x90] sm:$0xff]
    %v71 = vld [vmem:[#allocation2 + $0x98] sm:$0xff]
    %v72 = vld [vmem:[#allocation2 + $0xa0] sm:$0xff]
    %v73 = vld [vmem:[#allocation2 + $0xa8] sm:$0xff]
    %v74 = vld [vmem:[#allocation2 + $0xb0] sm:$0xff]
    %v75 = vld [vmem:[#allocation2 + $0xb8] sm:$0xff]
    %v76 = vld [vmem:[#allocation2 + $0xc0] sm:$0xff]
    %v77 = vld [vmem:[#allocation2 + $0xc8] sm:$0xff]
    %v78 = vld [vmem:[#allocation2 + $0xd0] sm:$0xff]
    %v79 = vld [vmem:[#allocation2 + $0xd8] sm:$0xff]
    %v80 = vld [vmem:[#allocation2 + $0xe0] sm:$0xff]
    %v81 = vld [vmem:[#allocation2 + $0xe8] sm:$0xff]
    %v82 = vld [vmem:[#allocation2 + $0xf0] sm:$0xff]
    %v83 = vld [vmem:[#allocation2 + $0xf8] sm:$0xff]
    %v84 = vld [vmem:[#allocation2 + $0x100] sm:$0xff]
    %v85 = vld [vmem:[#allocation2 + $0x108] sm:$0xff]
    %v86 = vld [vmem:[#allocation2 + $0x110] sm:$0xff]
    %v87 = vld [vmem:[#allocation2 + $0x118] sm:$0xff]
    %v88 = vld [vmem:[#allocation2 + $0x120] sm:$0xff]
    %v89 = vld [vmem:[#allocation2 + $0x128] sm:$0xff]
    %v90 = vld [vmem:[#allocation2 + $0x130] sm:$0xff]
    %v91 = vld [vmem:[#allocation2 + $0x138] sm:$0xff]
    %v92 = vld [vmem:[#allocation2 + $0x140] sm:$0xff]
    %v93 = vld [vmem:[#allocation2 + $0x148] sm:$0xff]
    %v94 = vld [vmem:[#allocation2 + $0x150] sm:$0xff]
    %v95 = vld [vmem:[#allocation2 + $0x158] sm:$0xff]
    %v96 = vld [vmem:[#allocation2 + $0x160] sm:$0xff]
    %v97 = vld [vmem:[#allocation2 + $0x168] sm:$0xff]
    %v98 = vld [vmem:[#allocation2 + $0x170] sm:$0xff]
    %v99 = vld [vmem:[#allocation2 + $0x178] sm:$0xff]
    %v100 = vld [vmem:[#allocation2 + $0x180] sm:$0xff]
    %v101 = vld [vmem:[#allocation2 + $0x188] sm:$0xff]
    %v102 = vld [vmem:[#allocation2 + $0x190] sm:$0xff]
    %v103 = vld [vmem:[#allocation2 + $0x198] sm:$0xff]
    %v104 = vld [vmem:[#allocation2 + $0x1a0] sm:$0xff]
    %v105 = vld [vmem:[#allocation2 + $0x1a8] sm:$0xff]
    %v106 = vld [vmem:[#allocation2 + $0x1b0] sm:$0xff]
    %v107 = vld [vmem:[#allocation2 + $0x1b8] sm:$0xff]
    %v108 = vld [vmem:[#allocation2 + $0x1c0] sm:$0xff]
    %v109 = vld [vmem:[#allocation2 + $0x1c8] sm:$0xff]
    %v110 = vld [vmem:[#allocation2 + $0x1d0] sm:$0xff]
    %v111 = vld [vmem:[#allocation2 + $0x1d8] sm:$0xff]
    %v112 = vld [vmem:[#allocation2 + $0x1e0] sm:$0xff]
    %v113 = vld [vmem:[#allocation2 + $0x1e8] sm:$0xff]
    %v114 = vld [vmem:[#allocation2 + $0x1f0] sm:$0xff]
    %v115 = vld [vmem:[#allocation2 + $0x1f8] sm:$0xff]
    %v116 = vld [vmem:[#allocation5] sm:$0xff]
    %v117 = vld [vmem:[#allocation5 + $0x8] sm:$0xff]
    %v118 = vld [vmem:[#allocation7] sm:$0xff]
    %v119 = vld [vmem:[#allocation7 + $0x8] sm:$0xff]
    %v120 = vand.u32 %v53, 4294901760
    %121 = vmatprep.subr.mxu0 %v120
    %v122 = vand.u32 %v52, 4294901760
    %123 = vmatpush1.msra.mxu0 %v122
    %v124 = vand.u32 %v55, 4294901760
    %125 = vmatprep.subr.mxu0 %v124
    %v126 = vand.u32 %v54, 4294901760
    %127 = vmatpush1.msra.mxu0 %v126
    %v128 = vand.u32 %v57, 4294901760
    %129 = vmatprep.subr.mxu0 %v128
    %v130 = vand.u32 %v56, 4294901760
    %131 = vmatpush1.msra.mxu0 %v130
    %v132 = vand.u32 %v59, 4294901760
    %133 = vmatprep.subr.mxu0 %v132
    %v134 = vand.u32 %v58, 4294901760
    %135 = vmatpush1.msra.mxu0 %v134
    %v136 = vand.u32 %v61, 4294901760
    %137 = vmatprep.subr.mxu0 %v136
    %v138 = vand.u32 %v60, 4294901760
    %139 = vmatpush1.msra.mxu0 %v138
    %v140 = vand.u32 %v63, 4294901760
    %141 = vmatprep.subr.mxu0 %v140
    %v142 = vand.u32 %v62, 4294901760
    %143 = vmatpush1.msra.mxu0 %v142
    %v144 = vand.u32 %v65, 4294901760
    %145 = vmatprep.subr.mxu0 %v144
    %v146 = vand.u32 %v64, 4294901760
    %147 = vmatpush1.msra.mxu0 %v146
    %v148 = vand.u32 %v67, 4294901760
    %149 = vmatprep.subr.mxu0 %v148
    %v150 = vand.u32 %v66, 4294901760
    %151 = vmatpush1.msra.mxu0 %v150
    %v152 = vand.u32 %v69, 4294901760
    %153 = vmatprep.subr.mxu0 %v152
    %v154 = vand.u32 %v68, 4294901760
    %155 = vmatpush1.msra.mxu0 %v154
    %v156 = vand.u32 %v71, 4294901760
    %157 = vmatprep.subr.mxu0 %v156
    %v158 = vand.u32 %v70, 4294901760
    %159 = vmatpush1.msra.mxu0 %v158
    %v160 = vand.u32 %v73, 4294901760
    %161 = vmatprep.subr.mxu0 %v160
    %v162 = vand.u32 %v72, 4294901760
    %163 = vmatpush1.msra.mxu0 %v162
    %v164 = vand.u32 %v75, 4294901760
    %165 = vmatprep.subr.mxu0 %v164
    %v166 = vand.u32 %v74, 4294901760
    %167 = vmatpush1.msra.mxu0 %v166
    %v168 = vand.u32 %v77, 4294901760
    %169 = vmatprep.subr.mxu0 %v168
    %v170 = vand.u32 %v76, 4294901760
    %171 = vmatpush1.msra.mxu0 %v170
    %v172 = vand.u32 %v79, 4294901760
    %173 = vmatprep.subr.mxu0 %v172
    %v174 = vand.u32 %v78, 4294901760
    %175 = vmatpush1.msra.mxu0 %v174
    %v176 = vand.u32 %v81, 4294901760
    %177 = vmatprep.subr.mxu0 %v176
    %v178 = vand.u32 %v80, 4294901760
    %179 = vmatpush1.msra.mxu0 %v178
    %v180 = vand.u32 %v83, 4294901760
    %181 = vmatprep.subr.mxu0 %v180
    %v182 = vand.u32 %v82, 4294901760
    %183 = vmatpush1.msra.mxu0 %v182
    %v184 = vand.u32 %v85, 4294901760
    %185 = vmatprep.subr.mxu0 %v184
    %v186 = vand.u32 %v84, 4294901760
    %187 = vmatpush1.msra.mxu0 %v186
    %v188 = vand.u32 %v87, 4294901760
    %189 = vmatprep.subr.mxu0 %v188
    %v190 = vand.u32 %v86, 4294901760
    %191 = vmatpush1.msra.mxu0 %v190
    %v192 = vand.u32 %v89, 4294901760
    %193 = vmatprep.subr.mxu0 %v192
    %v194 = vand.u32 %v88, 4294901760
    %195 = vmatpush1.msra.mxu0 %v194
    %v196 = vand.u32 %v91, 4294901760
    %197 = vmatprep.subr.mxu0 %v196
    %v198 = vand.u32 %v90, 4294901760
    %199 = vmatpush1.msra.mxu0 %v198
    %v200 = vand.u32 %v93, 4294901760
    %201 = vmatprep.subr.mxu0 %v200
    %v202 = vand.u32 %v92, 4294901760
    %203 = vmatpush1.msra.mxu0 %v202
    %v204 = vand.u32 %v95, 4294901760
    %205 = vmatprep.subr.mxu0 %v204
    %v206 = vand.u32 %v94, 4294901760
    %207 = vmatpush1.msra.mxu0 %v206
    %v208 = vand.u32 %v97, 4294901760
    %209 = vmatprep.subr.mxu0 %v208
    %v210 = vand.u32 %v96, 4294901760
    %211 = vmatpush1.msra.mxu0 %v210
    %v212 = vand.u32 %v99, 4294901760
    %213 = vmatprep.subr.mxu0 %v212
    %v214 = vand.u32 %v98, 4294901760
    %215 = vmatpush1.msra.mxu0 %v214
    %v216 = vand.u32 %v101, 4294901760
    %217 = vmatprep.subr.mxu0 %v216
    %v218 = vand.u32 %v100, 4294901760
    %219 = vmatpush1.msra.mxu0 %v218
    %v220 = vand.u32 %v103, 4294901760
    %221 = vmatprep.subr.mxu0 %v220
    %v222 = vand.u32 %v102, 4294901760
    %223 = vmatpush1.msra.mxu0 %v222
    %v224 = vand.u32 %v105, 4294901760
    %225 = vmatprep.subr.mxu0 %v224
    %v226 = vand.u32 %v104, 4294901760
    %227 = vmatpush1.msra.mxu0 %v226
    %v228 = vand.u32 %v107, 4294901760
    %229 = vmatprep.subr.mxu0 %v228
    %v230 = vand.u32 %v106, 4294901760
    %231 = vmatpush1.msra.mxu0 %v230
    %v232 = vand.u32 %v109, 4294901760
    %233 = vmatprep.subr.mxu0 %v232
    %v234 = vand.u32 %v108, 4294901760
    %235 = vmatpush1.msra.mxu0 %v234
    %v236 = vand.u32 %v111, 4294901760
    %237 = vmatprep.subr.mxu0 %v236
    %v238 = vand.u32 %v110, 4294901760
    %239 = vmatpush1.msra.mxu0 %v238
    %v240 = vand.u32 %v113, 4294901760
    %241 = vmatprep.subr.mxu0 %v240
    %v242 = vand.u32 %v112, 4294901760
    %243 = vmatpush1.msra.mxu0 %v242
    %v244 = vand.u32 %v115, 4294901760
    %245 = vmatprep.subr.mxu0 %v244
    %v246 = vand.u32 %v114, 4294901760
    %247 = vmatpush1.msra.mxu0 %v246
    %v248 = vand.u32 %v117, 4294901760
    %v249 = vsub.f32 %v117, %v248
    %v250 = vand.u32 %v249, 4294901760
    %v251 = vsub.f32 %v249, %v250
    %v252 = vand.u32 %v251, 4294901760
    %253 = vmatprep.mubr.f32.mxu0 %v252
    %v254 = vand.u32 %v116, 4294901760
    %v255 = vsub.f32 %v116, %v254
    %v256 = vand.u32 %v255, 4294901760
    %v257 = vsub.f32 %v255, %v256
    %v258 = vand.u32 %v257, 4294901760
    %259 = vmatmul.mubr.f32.gmra.mrb[0].mxu0 %v258
    %v260 = vpop.f32.mrb[0].mxu0
    %v261 = vadd.f32 0.0, %v260
    %v262 = vpop.f32.mrb[0].mxu0
    %v263 = vadd.f32 0.0, %v262
    %264 = vdwg.mxu0
    %v265 = vand.u32 %v53, 4294901760
    %v266 = vsub.f32 %v53, %v265
    %v267 = vand.u32 %v266, 4294901760
    %v268 = vsub.f32 %v266, %v267
    %v269 = vand.u32 %v268, 4294901760
    %270 = vmatprep.subr.mxu0 %v269
    %v271 = vand.u32 %v52, 4294901760
    %v272 = vsub.f32 %v52, %v271
    %v273 = vand.u32 %v272, 4294901760
    %v274 = vsub.f32 %v272, %v273
    %v275 = vand.u32 %v274, 4294901760
    %276 = vmatpush1.msra.mxu0 %v275
    %v277 = vand.u32 %v55, 4294901760
    %v278 = vsub.f32 %v55, %v277
    %v279 = vand.u32 %v278, 4294901760
    %v280 = vsub.f32 %v278, %v279
    %v281 = vand.u32 %v280, 4294901760
    %282 = vmatprep.subr.mxu0 %v281
    %v283 = vand.u32 %v54, 4294901760
    %v284 = vsub.f32 %v54, %v283
    %v285 = vand.u32 %v284, 4294901760
    %v286 = vsub.f32 %v284, %v285
    %v287 = vand.u32 %v286, 4294901760
    %288 = vmatpush1.msra.mxu0 %v287
    %v289 = vand.u32 %v57, 4294901760
    %v290 = vsub.f32 %v57, %v289
    %v291 = vand.u32 %v290, 4294901760
    %v292 = vsub.f32 %v290, %v291
    %v293 = vand.u32 %v292, 4294901760
    %294 = vmatprep.subr.mxu0 %v293
    %v295 = vand.u32 %v56, 4294901760
    %v296 = vsub.f32 %v56, %v295
    %v297 = vand.u32 %v296, 4294901760
    %v298 = vsub.f32 %v296, %v297
    %v299 = vand.u32 %v298, 4294901760
    %300 = vmatpush1.msra.mxu0 %v299
    %v301 = vand.u32 %v59, 4294901760
    %v302 = vsub.f32 %v59, %v301
    %v303 = vand.u32 %v302, 4294901760
    %v304 = vsub.f32 %v302, %v303
    %v305 = vand.u32 %v304, 4294901760
    %306 = vmatprep.subr.mxu0 %v305
    %v307 = vand.u32 %v58, 4294901760
    %v308 = vsub.f32 %v58, %v307
    %v309 = vand.u32 %v308, 4294901760
    %v310 = vsub.f32 %v308, %v309
    %v311 = vand.u32 %v310, 4294901760
    %312 = vmatpush1.msra.mxu0 %v311
    %v313 = vand.u32 %v61, 4294901760
    %v314 = vsub.f32 %v61, %v313
    %v315 = vand.u32 %v314, 4294901760
    %v316 = vsub.f32 %v314, %v315
    %v317 = vand.u32 %v316, 4294901760
    %318 = vmatprep.subr.mxu0 %v317
    %v319 = vand.u32 %v60, 4294901760
    %v320 = vsub.f32 %v60, %v319
    %v321 = vand.u32 %v320, 4294901760
    %v322 = vsub.f32 %v320, %v321
    %v323 = vand.u32 %v322, 4294901760
    %324 = vmatpush1.msra.mxu0 %v323
    %v325 = vand.u32 %v63, 4294901760
    %v326 = vsub.f32 %v63, %v325
    %v327 = vand.u32 %v326, 4294901760
    %v328 = vsub.f32 %v326, %v327
    %v329 = vand.u32 %v328, 4294901760
    %330 = vmatprep.subr.mxu0 %v329
    %v331 = vand.u32 %v62, 4294901760
    %v332 = vsub.f32 %v62, %v331
    %v333 = vand.u32 %v332, 4294901760
    %v334 = vsub.f32 %v332, %v333
    %v335 = vand.u32 %v334, 4294901760
    %336 = vmatpush1.msra.mxu0 %v335
    %v337 = vand.u32 %v65, 4294901760
    %v338 = vsub.f32 %v65, %v337
    %v339 = vand.u32 %v338, 4294901760
    %v340 = vsub.f32 %v338, %v339
    %v341 = vand.u32 %v340, 4294901760
    %342 = vmatprep.subr.mxu0 %v341
    %v343 = vand.u32 %v64, 4294901760
    %v344 = vsub.f32 %v64, %v343
    %v345 = vand.u32 %v344, 4294901760
    %v346 = vsub.f32 %v344, %v345
    %v347 = vand.u32 %v346, 4294901760
    %348 = vmatpush1.msra.mxu0 %v347
    %v349 = vand.u32 %v67, 4294901760
    %v350 = vsub.f32 %v67, %v349
    %v351 = vand.u32 %v350, 4294901760
    %v352 = vsub.f32 %v350, %v351
    %v353 = vand.u32 %v352, 4294901760
    %354 = vmatprep.subr.mxu0 %v353
    %v355 = vand.u32 %v66, 4294901760
    %v356 = vsub.f32 %v66, %v355
    %v357 = vand.u32 %v356, 4294901760
    %v358 = vsub.f32 %v356, %v357
    %v359 = vand.u32 %v358, 4294901760
    %360 = vmatpush1.msra.mxu0 %v359
    %v361 = vand.u32 %v69, 4294901760
    %v362 = vsub.f32 %v69, %v361
    %v363 = vand.u32 %v362, 4294901760
    %v364 = vsub.f32 %v362, %v363
    %v365 = vand.u32 %v364, 4294901760
    %366 = vmatprep.subr.mxu0 %v365
    %v367 = vand.u32 %v68, 4294901760
    %v368 = vsub.f32 %v68, %v367
    %v369 = vand.u32 %v368, 4294901760
    %v370 = vsub.f32 %v368, %v369
    %v371 = vand.u32 %v370, 4294901760
    %372 = vmatpush1.msra.mxu0 %v371
    %v373 = vand.u32 %v71, 4294901760
    %v374 = vsub.f32 %v71, %v373
    %v375 = vand.u32 %v374, 4294901760
    %v376 = vsub.f32 %v374, %v375
    %v377 = vand.u32 %v376, 4294901760
    %378 = vmatprep.subr.mxu0 %v377
    %v379 = vand.u32 %v70, 4294901760
    %v380 = vsub.f32 %v70, %v379
    %v381 = vand.u32 %v380, 4294901760
    %v382 = vsub.f32 %v380, %v381
    %v383 = vand.u32 %v382, 4294901760
    %384 = vmatpush1.msra.mxu0 %v383
    %v385 = vand.u32 %v73, 4294901760
    %v386 = vsub.f32 %v73, %v385
    %v387 = vand.u32 %v386, 4294901760
    %v388 = vsub.f32 %v386, %v387
    %v389 = vand.u32 %v388, 4294901760
    %390 = vmatprep.subr.mxu0 %v389
    %v391 = vand.u32 %v72, 4294901760
    %v392 = vsub.f32 %v72, %v391
    %v393 = vand.u32 %v392, 4294901760
    %v394 = vsub.f32 %v392, %v393
    %v395 = vand.u32 %v394, 4294901760
    %396 = vmatpush1.msra.mxu0 %v395
    %v397 = vand.u32 %v75, 4294901760
    %v398 = vsub.f32 %v75, %v397
    %v399 = vand.u32 %v398, 4294901760
    %v400 = vsub.f32 %v398, %v399
    %v401 = vand.u32 %v400, 4294901760
    %402 = vmatprep.subr.mxu0 %v401
    %v403 = vand.u32 %v74, 4294901760
    %v404 = vsub.f32 %v74, %v403
    %v405 = vand.u32 %v404, 4294901760
    %v406 = vsub.f32 %v404, %v405
    %v407 = vand.u32 %v406, 4294901760
    %408 = vmatpush1.msra.mxu0 %v407
    %v409 = vand.u32 %v77, 4294901760
    %v410 = vsub.f32 %v77, %v409
    %v411 = vand.u32 %v410, 4294901760
    %v412 = vsub.f32 %v410, %v411
    %v413 = vand.u32 %v412, 4294901760
    %414 = vmatprep.subr.mxu0 %v413
    %v415 = vand.u32 %v76, 4294901760
    %v416 = vsub.f32 %v76, %v415
    %v417 = vand.u32 %v416, 4294901760
    %v418 = vsub.f32 %v416, %v417
    %v419 = vand.u32 %v418, 4294901760
    %420 = vmatpush1.msra.mxu0 %v419
    %v421 = vand.u32 %v79, 4294901760
    %v422 = vsub.f32 %v79, %v421
    %v423 = vand.u32 %v422, 4294901760
    %v424 = vsub.f32 %v422, %v423
    %v425 = vand.u32 %v424, 4294901760
    %426 = vmatprep.subr.mxu0 %v425
    %v427 = vand.u32 %v78, 4294901760
    %v428 = vsub.f32 %v78, %v427
    %v429 = vand.u32 %v428, 4294901760
    %v430 = vsub.f32 %v428, %v429
    %v431 = vand.u32 %v430, 4294901760
    %432 = vmatpush1.msra.mxu0 %v431
    %v433 = vand.u32 %v81, 4294901760
    %v434 = vsub.f32 %v81, %v433
    %v435 = vand.u32 %v434, 4294901760
    %v436 = vsub.f32 %v434, %v435
    %v437 = vand.u32 %v436, 4294901760
    %438 = vmatprep.subr.mxu0 %v437
    %v439 = vand.u32 %v80, 4294901760
    %v440 = vsub.f32 %v80, %v439
    %v441 = vand.u32 %v440, 4294901760
    %v442 = vsub.f32 %v440, %v441
    %v443 = vand.u32 %v442, 4294901760
    %444 = vmatpush1.msra.mxu0 %v443
    %v445 = vand.u32 %v83, 4294901760
    %v446 = vsub.f32 %v83, %v445
    %v447 = vand.u32 %v446, 4294901760
    %v448 = vsub.f32 %v446, %v447
    %v449 = vand.u32 %v448, 4294901760
    %450 = vmatprep.subr.mxu0 %v449
    %v451 = vand.u32 %v82, 4294901760
    %v452 = vsub.f32 %v82, %v451
    %v453 = vand.u32 %v452, 4294901760
    %v454 = vsub.f32 %v452, %v453
    %v455 = vand.u32 %v454, 4294901760
    %456 = vmatpush1.msra.mxu0 %v455
    %v457 = vand.u32 %v85, 4294901760
    %v458 = vsub.f32 %v85, %v457
    %v459 = vand.u32 %v458, 4294901760
    %v460 = vsub.f32 %v458, %v459
    %v461 = vand.u32 %v460, 4294901760
    %462 = vmatprep.subr.mxu0 %v461
    %v463 = vand.u32 %v84, 4294901760
    %v464 = vsub.f32 %v84, %v463
    %v465 = vand.u32 %v464, 4294901760
    %v466 = vsub.f32 %v464, %v465
    %v467 = vand.u32 %v466, 4294901760
    %468 = vmatpush1.msra.mxu0 %v467
    %v469 = vand.u32 %v87, 4294901760
    %v470 = vsub.f32 %v87, %v469
    %v471 = vand.u32 %v470, 4294901760
    %v472 = vsub.f32 %v470, %v471
    %v473 = vand.u32 %v472, 4294901760
    %474 = vmatprep.subr.mxu0 %v473
    %v475 = vand.u32 %v86, 4294901760
    %v476 = vsub.f32 %v86, %v475
    %v477 = vand.u32 %v476, 4294901760
    %v478 = vsub.f32 %v476, %v477
    %v479 = vand.u32 %v478, 4294901760
    %480 = vmatpush1.msra.mxu0 %v479
    %v481 = vand.u32 %v89, 4294901760
    %v482 = vsub.f32 %v89, %v481
    %v483 = vand.u32 %v482, 4294901760
    %v484 = vsub.f32 %v482, %v483
    %v485 = vand.u32 %v484, 4294901760
    %486 = vmatprep.subr.mxu0 %v485
    %v487 = vand.u32 %v88, 4294901760
    %v488 = vsub.f32 %v88, %v487
    %v489 = vand.u32 %v488, 4294901760
    %v490 = vsub.f32 %v488, %v489
    %v491 = vand.u32 %v490, 4294901760
    %492 = vmatpush1.msra.mxu0 %v491
    %v493 = vand.u32 %v91, 4294901760
    %v494 = vsub.f32 %v91, %v493
    %v495 = vand.u32 %v494, 4294901760
    %v496 = vsub.f32 %v494, %v495
    %v497 = vand.u32 %v496, 4294901760
    %498 = vmatprep.subr.mxu0 %v497
    %v499 = vand.u32 %v90, 4294901760
    %v500 = vsub.f32 %v90, %v499
    %v501 = vand.u32 %v500, 4294901760
    %v502 = vsub.f32 %v500, %v501
    %v503 = vand.u32 %v502, 4294901760
    %504 = vmatpush1.msra.mxu0 %v503
    %v505 = vand.u32 %v93, 4294901760
    %v506 = vsub.f32 %v93, %v505
    %v507 = vand.u32 %v506, 4294901760
    %v508 = vsub.f32 %v506, %v507
    %v509 = vand.u32 %v508, 4294901760
    %510 = vmatprep.subr.mxu0 %v509
    %v511 = vand.u32 %v92, 4294901760
    %v512 = vsub.f32 %v92, %v511
    %v513 = vand.u32 %v512, 4294901760
    %v514 = vsub.f32 %v512, %v513
    %v515 = vand.u32 %v514, 4294901760
    %516 = vmatpush1.msra.mxu0 %v515
    %v517 = vand.u32 %v95, 4294901760
    %v518 = vsub.f32 %v95, %v517
    %v519 = vand.u32 %v518, 4294901760
    %v520 = vsub.f32 %v518, %v519
    %v521 = vand.u32 %v520, 4294901760
    %522 = vmatprep.subr.mxu0 %v521
    %v523 = vand.u32 %v94, 4294901760
    %v524 = vsub.f32 %v94, %v523
    %v525 = vand.u32 %v524, 4294901760
    %v526 = vsub.f32 %v524, %v525
    %v527 = vand.u32 %v526, 4294901760
    %528 = vmatpush1.msra.mxu0 %v527
    %v529 = vand.u32 %v97, 4294901760
    %v530 = vsub.f32 %v97, %v529
    %v531 = vand.u32 %v530, 4294901760
    %v532 = vsub.f32 %v530, %v531
    %v533 = vand.u32 %v532, 4294901760
    %534 = vmatprep.subr.mxu0 %v533
    %v535 = vand.u32 %v96, 4294901760
    %v536 = vsub.f32 %v96, %v535
    %v537 = vand.u32 %v536, 4294901760
    %v538 = vsub.f32 %v536, %v537
    %v539 = vand.u32 %v538, 4294901760
    %540 = vmatpush1.msra.mxu0 %v539
    %v541 = vand.u32 %v99, 4294901760
    %v542 = vsub.f32 %v99, %v541
    %v543 = vand.u32 %v542, 4294901760
    %v544 = vsub.f32 %v542, %v543
    %v545 = vand.u32 %v544, 4294901760
    %546 = vmatprep.subr.mxu0 %v545
    %v547 = vand.u32 %v98, 4294901760
    %v548 = vsub.f32 %v98, %v547
    %v549 = vand.u32 %v548, 4294901760
    %v550 = vsub.f32 %v548, %v549
    %v551 = vand.u32 %v550, 4294901760
    %552 = vmatpush1.msra.mxu0 %v551
    %v553 = vand.u32 %v101, 4294901760
    %v554 = vsub.f32 %v101, %v553
    %v555 = vand.u32 %v554, 4294901760
    %v556 = vsub.f32 %v554, %v555
    %v557 = vand.u32 %v556, 4294901760
    %558 = vmatprep.subr.mxu0 %v557
    %v559 = vand.u32 %v100, 4294901760
    %v560 = vsub.f32 %v100, %v559
    %v561 = vand.u32 %v560, 4294901760
    %v562 = vsub.f32 %v560, %v561
    %v563 = vand.u32 %v562, 4294901760
    %564 = vmatpush1.msra.mxu0 %v563
    %v565 = vand.u32 %v103, 4294901760
    %v566 = vsub.f32 %v103, %v565
    %v567 = vand.u32 %v566, 4294901760
    %v568 = vsub.f32 %v566, %v567
    %v569 = vand.u32 %v568, 4294901760
    %570 = vmatprep.subr.mxu0 %v569
    %v571 = vand.u32 %v102, 4294901760
    %v572 = vsub.f32 %v102, %v571
    %v573 = vand.u32 %v572, 4294901760
    %v574 = vsub.f32 %v572, %v573
    %v575 = vand.u32 %v574, 4294901760
    %576 = vmatpush1.msra.mxu0 %v575
    %v577 = vand.u32 %v105, 4294901760
    %v578 = vsub.f32 %v105, %v577
    %v579 = vand.u32 %v578, 4294901760
    %v580 = vsub.f32 %v578, %v579
    %v581 = vand.u32 %v580, 4294901760
    %582 = vmatprep.subr.mxu0 %v581
    %v583 = vand.u32 %v104, 4294901760
    %v584 = vsub.f32 %v104, %v583
    %v585 = vand.u32 %v584, 4294901760
    %v586 = vsub.f32 %v584, %v585
    %v587 = vand.u32 %v586, 4294901760
    %588 = vmatpush1.msra.mxu0 %v587
    %v589 = vand.u32 %v107, 4294901760
    %v590 = vsub.f32 %v107, %v589
    %v591 = vand.u32 %v590, 4294901760
    %v592 = vsub.f32 %v590, %v591
    %v593 = vand.u32 %v592, 4294901760
    %594 = vmatprep.subr.mxu0 %v593
    %v595 = vand.u32 %v106, 4294901760
    %v596 = vsub.f32 %v106, %v595
    %v597 = vand.u32 %v596, 4294901760
    %v598 = vsub.f32 %v596, %v597
    %v599 = vand.u32 %v598, 4294901760
    %600 = vmatpush1.msra.mxu0 %v599
    %v601 = vand.u32 %v109, 4294901760
    %v602 = vsub.f32 %v109, %v601
    %v603 = vand.u32 %v602, 4294901760
    %v604 = vsub.f32 %v602, %v603
    %v605 = vand.u32 %v604, 4294901760
    %606 = vmatprep.subr.mxu0 %v605
    %v607 = vand.u32 %v108, 4294901760
    %v608 = vsub.f32 %v108, %v607
    %v609 = vand.u32 %v608, 4294901760
    %v610 = vsub.f32 %v608, %v609
    %v611 = vand.u32 %v610, 4294901760
    %612 = vmatpush1.msra.mxu0 %v611
    %v613 = vand.u32 %v111, 4294901760
    %v614 = vsub.f32 %v111, %v613
    %v615 = vand.u32 %v614, 4294901760
    %v616 = vsub.f32 %v614, %v615
    %v617 = vand.u32 %v616, 4294901760
    %618 = vmatprep.subr.mxu0 %v617
    %v619 = vand.u32 %v110, 4294901760
    %v620 = vsub.f32 %v110, %v619
    %v621 = vand.u32 %v620, 4294901760
    %v622 = vsub.f32 %v620, %v621
    %v623 = vand.u32 %v622, 4294901760
    %624 = vmatpush1.msra.mxu0 %v623
    %v625 = vand.u32 %v113, 4294901760
    %v626 = vsub.f32 %v113, %v625
    %v627 = vand.u32 %v626, 4294901760
    %v628 = vsub.f32 %v626, %v627
    %v629 = vand.u32 %v628, 4294901760
    %630 = vmatprep.subr.mxu0 %v629
    %v631 = vand.u32 %v112, 4294901760
    %v632 = vsub.f32 %v112, %v631
    %v633 = vand.u32 %v632, 4294901760
    %v634 = vsub.f32 %v632, %v633
    %v635 = vand.u32 %v634, 4294901760
    %636 = vmatpush1.msra.mxu0 %v635
    %v637 = vand.u32 %v115, 4294901760
    %v638 = vsub.f32 %v115, %v637
    %v639 = vand.u32 %v638, 4294901760
    %v640 = vsub.f32 %v638, %v639
    %v641 = vand.u32 %v640, 4294901760
    %642 = vmatprep.subr.mxu0 %v641
    %v643 = vand.u32 %v114, 4294901760
    %v644 = vsub.f32 %v114, %v643
    %v645 = vand.u32 %v644, 4294901760
    %v646 = vsub.f32 %v644, %v645
    %v647 = vand.u32 %v646, 4294901760
    %648 = vmatpush1.msra.mxu0 %v647
    %v649 = vand.u32 %v117, 4294901760
    %650 = vmatprep.mubr.f32.mxu0 %v649
    %v651 = vand.u32 %v116, 4294901760
    %652 = vmatmul.mubr.f32.gmra.mrb[0].mxu0 %v651
    %v653 = vpop.f32.mrb[0].mxu0
    %v654 = vadd.f32 %v261, %v653
    %v655 = vpop.f32.mrb[0].mxu0
    %v656 = vadd.f32 %v263, %v655
    %657 = vdwg.mxu0
    %v658 = vand.u32 %v53, 4294901760
    %v659 = vsub.f32 %v53, %v658
    %660 = vmatprep.subr.mxu0 %v659
    %v661 = vand.u32 %v52, 4294901760
    %v662 = vsub.f32 %v52, %v661
    %663 = vmatpush1.msra.mxu0 %v662
    %v664 = vand.u32 %v55, 4294901760
    %v665 = vsub.f32 %v55, %v664
    %666 = vmatprep.subr.mxu0 %v665
    %v667 = vand.u32 %v54, 4294901760
    %v668 = vsub.f32 %v54, %v667
    %669 = vmatpush1.msra.mxu0 %v668
    %v670 = vand.u32 %v57, 4294901760
    %v671 = vsub.f32 %v57, %v670
    %672 = vmatprep.subr.mxu0 %v671
    %v673 = vand.u32 %v56, 4294901760
    %v674 = vsub.f32 %v56, %v673
    %675 = vmatpush1.msra.mxu0 %v674
    %v676 = vand.u32 %v59, 4294901760
    %v677 = vsub.f32 %v59, %v676
    %678 = vmatprep.subr.mxu0 %v677
    %v679 = vand.u32 %v58, 4294901760
    %v680 = vsub.f32 %v58, %v679
    %681 = vmatpush1.msra.mxu0 %v680
    %v682 = vand.u32 %v61, 4294901760
    %v683 = vsub.f32 %v61, %v682
    %684 = vmatprep.subr.mxu0 %v683
    %v685 = vand.u32 %v60, 4294901760
    %v686 = vsub.f32 %v60, %v685
    %687 = vmatpush1.msra.mxu0 %v686
    %v688 = vand.u32 %v63, 4294901760
    %v689 = vsub.f32 %v63, %v688
    %690 = vmatprep.subr.mxu0 %v689
    %v691 = vand.u32 %v62, 4294901760
    %v692 = vsub.f32 %v62, %v691
    %693 = vmatpush1.msra.mxu0 %v692
    %v694 = vand.u32 %v65, 4294901760
    %v695 = vsub.f32 %v65, %v694
    %696 = vmatprep.subr.mxu0 %v695
    %v697 = vand.u32 %v64, 4294901760
    %v698 = vsub.f32 %v64, %v697
    %699 = vmatpush1.msra.mxu0 %v698
    %v700 = vand.u32 %v67, 4294901760
    %v701 = vsub.f32 %v67, %v700
    %702 = vmatprep.subr.mxu0 %v701
    %v703 = vand.u32 %v66, 4294901760
    %v704 = vsub.f32 %v66, %v703
    %705 = vmatpush1.msra.mxu0 %v704
    %v706 = vand.u32 %v69, 4294901760
    %v707 = vsub.f32 %v69, %v706
    %708 = vmatprep.subr.mxu0 %v707
    %v709 = vand.u32 %v68, 4294901760
    %v710 = vsub.f32 %v68, %v709
    %711 = vmatpush1.msra.mxu0 %v710
    %v712 = vand.u32 %v71, 4294901760
    %v713 = vsub.f32 %v71, %v712
    %714 = vmatprep.subr.mxu0 %v713
    %v715 = vand.u32 %v70, 4294901760
    %v716 = vsub.f32 %v70, %v715
    %717 = vmatpush1.msra.mxu0 %v716
    %v718 = vand.u32 %v73, 4294901760
    %v719 = vsub.f32 %v73, %v718
    %720 = vmatprep.subr.mxu0 %v719
    %v721 = vand.u32 %v72, 4294901760
    %v722 = vsub.f32 %v72, %v721
    %723 = vmatpush1.msra.mxu0 %v722
    %v724 = vand.u32 %v75, 4294901760
    %v725 = vsub.f32 %v75, %v724
    %726 = vmatprep.subr.mxu0 %v725
    %v727 = vand.u32 %v74, 4294901760
    %v728 = vsub.f32 %v74, %v727
    %729 = vmatpush1.msra.mxu0 %v728
    %v730 = vand.u32 %v77, 4294901760
    %v731 = vsub.f32 %v77, %v730
    %732 = vmatprep.subr.mxu0 %v731
    %v733 = vand.u32 %v76, 4294901760
    %v734 = vsub.f32 %v76, %v733
    %735 = vmatpush1.msra.mxu0 %v734
    %v736 = vand.u32 %v79, 4294901760
    %v737 = vsub.f32 %v79, %v736
    %738 = vmatprep.subr.mxu0 %v737
    %v739 = vand.u32 %v78, 4294901760
    %v740 = vsub.f32 %v78, %v739
    %741 = vmatpush1.msra.mxu0 %v740
    %v742 = vand.u32 %v81, 4294901760
    %v743 = vsub.f32 %v81, %v742
    %744 = vmatprep.subr.mxu0 %v743
    %v745 = vand.u32 %v80, 4294901760
    %v746 = vsub.f32 %v80, %v745
    %747 = vmatpush1.msra.mxu0 %v746
    %v748 = vand.u32 %v83, 4294901760
    %v749 = vsub.f32 %v83, %v748
    %750 = vmatprep.subr.mxu0 %v749
    %v751 = vand.u32 %v82, 4294901760
    %v752 = vsub.f32 %v82, %v751
    %753 = vmatpush1.msra.mxu0 %v752
    %v754 = vand.u32 %v85, 4294901760
    %v755 = vsub.f32 %v85, %v754
    %756 = vmatprep.subr.mxu0 %v755
    %v757 = vand.u32 %v84, 4294901760
    %v758 = vsub.f32 %v84, %v757
    %759 = vmatpush1.msra.mxu0 %v758
    %v760 = vand.u32 %v87, 4294901760
    %v761 = vsub.f32 %v87, %v760
    %762 = vmatprep.subr.mxu0 %v761
    %v763 = vand.u32 %v86, 4294901760
    %v764 = vsub.f32 %v86, %v763
    %765 = vmatpush1.msra.mxu0 %v764
    %v766 = vand.u32 %v89, 4294901760
    %v767 = vsub.f32 %v89, %v766
    %768 = vmatprep.subr.mxu0 %v767
    %v769 = vand.u32 %v88, 4294901760
    %v770 = vsub.f32 %v88, %v769
    %771 = vmatpush1.msra.mxu0 %v770
    %v772 = vand.u32 %v91, 4294901760
    %v773 = vsub.f32 %v91, %v772
    %774 = vmatprep.subr.mxu0 %v773
    %v775 = vand.u32 %v90, 4294901760
    %v776 = vsub.f32 %v90, %v775
    %777 = vmatpush1.msra.mxu0 %v776
    %v778 = vand.u32 %v93, 4294901760
    %v779 = vsub.f32 %v93, %v778
    %780 = vmatprep.subr.mxu0 %v779
    %v781 = vand.u32 %v92, 4294901760
    %v782 = vsub.f32 %v92, %v781
    %783 = vmatpush1.msra.mxu0 %v782
    %v784 = vand.u32 %v95, 4294901760
    %v785 = vsub.f32 %v95, %v784
    %786 = vmatprep.subr.mxu0 %v785
    %v787 = vand.u32 %v94, 4294901760
    %v788 = vsub.f32 %v94, %v787
    %789 = vmatpush1.msra.mxu0 %v788
    %v790 = vand.u32 %v97, 4294901760
    %v791 = vsub.f32 %v97, %v790
    %792 = vmatprep.subr.mxu0 %v791
    %v793 = vand.u32 %v96, 4294901760
    %v794 = vsub.f32 %v96, %v793
    %795 = vmatpush1.msra.mxu0 %v794
    %v796 = vand.u32 %v99, 4294901760
    %v797 = vsub.f32 %v99, %v796
    %798 = vmatprep.subr.mxu0 %v797
    %v799 = vand.u32 %v98, 4294901760
    %v800 = vsub.f32 %v98, %v799
    %801 = vmatpush1.msra.mxu0 %v800
    %v802 = vand.u32 %v101, 4294901760
    %v803 = vsub.f32 %v101, %v802
    %804 = vmatprep.subr.mxu0 %v803
    %v805 = vand.u32 %v100, 4294901760
    %v806 = vsub.f32 %v100, %v805
    %807 = vmatpush1.msra.mxu0 %v806
    %v808 = vand.u32 %v103, 4294901760
    %v809 = vsub.f32 %v103, %v808
    %810 = vmatprep.subr.mxu0 %v809
    %v811 = vand.u32 %v102, 4294901760
    %v812 = vsub.f32 %v102, %v811
    %813 = vmatpush1.msra.mxu0 %v812
    %v814 = vand.u32 %v105, 4294901760
    %v815 = vsub.f32 %v105, %v814
    %816 = vmatprep.subr.mxu0 %v815
    %v817 = vand.u32 %v104, 4294901760
    %v818 = vsub.f32 %v104, %v817
    %819 = vmatpush1.msra.mxu0 %v818
    %v820 = vand.u32 %v107, 4294901760
    %v821 = vsub.f32 %v107, %v820
    %822 = vmatprep.subr.mxu0 %v821
    %v823 = vand.u32 %v106, 4294901760
    %v824 = vsub.f32 %v106, %v823
    %825 = vmatpush1.msra.mxu0 %v824
    %v826 = vand.u32 %v109, 4294901760
    %v827 = vsub.f32 %v109, %v826
    %828 = vmatprep.subr.mxu0 %v827
    %v829 = vand.u32 %v108, 4294901760
    %v830 = vsub.f32 %v108, %v829
    %831 = vmatpush1.msra.mxu0 %v830
    %v832 = vand.u32 %v111, 4294901760
    %v833 = vsub.f32 %v111, %v832
    %834 = vmatprep.subr.mxu0 %v833
    %v835 = vand.u32 %v110, 4294901760
    %v836 = vsub.f32 %v110, %v835
    %837 = vmatpush1.msra.mxu0 %v836
    %v838 = vand.u32 %v113, 4294901760
    %v839 = vsub.f32 %v113, %v838
    %840 = vmatprep.subr.mxu0 %v839
    %v841 = vand.u32 %v112, 4294901760
    %v842 = vsub.f32 %v112, %v841
    %843 = vmatpush1.msra.mxu0 %v842
    %v844 = vand.u32 %v115, 4294901760
    %v845 = vsub.f32 %v115, %v844
    %846 = vmatprep.subr.mxu0 %v845
    %v847 = vand.u32 %v114, 4294901760
    %v848 = vsub.f32 %v114, %v847
    %849 = vmatpush1.msra.mxu0 %v848
    %v850 = vand.u32 %v117, 4294901760
    %v851 = vsub.f32 %v117, %v850
    %852 = vmatprep.mubr.f32.mxu0 %v851
    %v853 = vand.u32 %v116, 4294901760
    %v854 = vsub.f32 %v116, %v853
    %855 = vmatmul.mubr.f32.gmra.mrb[0].mxu0 %v854
    %v856 = vpop.f32.mrb[0].mxu0
    %v857 = vadd.f32 %v654, %v856
    %v858 = vpop.f32.mrb[0].mxu0
    %v859 = vadd.f32 %v656, %v858
    %860 = vdwg.mxu0
    %v861 = vand.u32 %v53, 4294901760
    %862 = vmatprep.subr.mxu0 %v861
    %v863 = vand.u32 %v52, 4294901760
    %864 = vmatpush1.msra.mxu0 %v863
    %v865 = vand.u32 %v55, 4294901760
    %866 = vmatprep.subr.mxu0 %v865
    %v867 = vand.u32 %v54, 4294901760
    %868 = vmatpush1.msra.mxu0 %v867
    %v869 = vand.u32 %v57, 4294901760
    %870 = vmatprep.subr.mxu0 %v869
    %v871 = vand.u32 %v56, 4294901760
    %872 = vmatpush1.msra.mxu0 %v871
    %v873 = vand.u32 %v59, 4294901760
    %874 = vmatprep.subr.mxu0 %v873
    %v875 = vand.u32 %v58, 4294901760
    %876 = vmatpush1.msra.mxu0 %v875
    %v877 = vand.u32 %v61, 4294901760
    %878 = vmatprep.subr.mxu0 %v877
    %v879 = vand.u32 %v60, 4294901760
    %880 = vmatpush1.msra.mxu0 %v879
    %v881 = vand.u32 %v63, 4294901760
    %882 = vmatprep.subr.mxu0 %v881
    %v883 = vand.u32 %v62, 4294901760
    %884 = vmatpush1.msra.mxu0 %v883
    %v885 = vand.u32 %v65, 4294901760
    %886 = vmatprep.subr.mxu0 %v885
    %v887 = vand.u32 %v64, 4294901760
    %888 = vmatpush1.msra.mxu0 %v887
    %v889 = vand.u32 %v67, 4294901760
    %890 = vmatprep.subr.mxu0 %v889
    %v891 = vand.u32 %v66, 4294901760
    %892 = vmatpush1.msra.mxu0 %v891
    %v893 = vand.u32 %v69, 4294901760
    %894 = vmatprep.subr.mxu0 %v893
    %v895 = vand.u32 %v68, 4294901760
    %896 = vmatpush1.msra.mxu0 %v895
    %v897 = vand.u32 %v71, 4294901760
    %898 = vmatprep.subr.mxu0 %v897
    %v899 = vand.u32 %v70, 4294901760
    %900 = vmatpush1.msra.mxu0 %v899
    %v901 = vand.u32 %v73, 4294901760
    %902 = vmatprep.subr.mxu0 %v901
    %v903 = vand.u32 %v72, 4294901760
    %904 = vmatpush1.msra.mxu0 %v903
    %v905 = vand.u32 %v75, 4294901760
    %906 = vmatprep.subr.mxu0 %v905
    %v907 = vand.u32 %v74, 4294901760
    %908 = vmatpush1.msra.mxu0 %v907
    %v909 = vand.u32 %v77, 4294901760
    %910 = vmatprep.subr.mxu0 %v909
    %v911 = vand.u32 %v76, 4294901760
    %912 = vmatpush1.msra.mxu0 %v911
    %v913 = vand.u32 %v79, 4294901760
    %914 = vmatprep.subr.mxu0 %v913
    %v915 = vand.u32 %v78, 4294901760
    %916 = vmatpush1.msra.mxu0 %v915
    %v917 = vand.u32 %v81, 4294901760
    %918 = vmatprep.subr.mxu0 %v917
    %v919 = vand.u32 %v80, 4294901760
    %920 = vmatpush1.msra.mxu0 %v919
    %v921 = vand.u32 %v83, 4294901760
    %922 = vmatprep.subr.mxu0 %v921
    %v923 = vand.u32 %v82, 4294901760
    %924 = vmatpush1.msra.mxu0 %v923
    %v925 = vand.u32 %v85, 4294901760
    %926 = vmatprep.subr.mxu0 %v925
    %v927 = vand.u32 %v84, 4294901760
    %928 = vmatpush1.msra.mxu0 %v927
    %v929 = vand.u32 %v87, 4294901760
    %930 = vmatprep.subr.mxu0 %v929
    %v931 = vand.u32 %v86, 4294901760
    %932 = vmatpush1.msra.mxu0 %v931
    %v933 = vand.u32 %v89, 4294901760
    %934 = vmatprep.subr.mxu0 %v933
    %v935 = vand.u32 %v88, 4294901760
    %936 = vmatpush1.msra.mxu0 %v935
    %v937 = vand.u32 %v91, 4294901760
    %938 = vmatprep.subr.mxu0 %v937
    %v939 = vand.u32 %v90, 4294901760
    %940 = vmatpush1.msra.mxu0 %v939
    %v941 = vand.u32 %v93, 4294901760
    %942 = vmatprep.subr.mxu0 %v941
    %v943 = vand.u32 %v92, 4294901760
    %944 = vmatpush1.msra.mxu0 %v943
    %v945 = vand.u32 %v95, 4294901760
    %946 = vmatprep.subr.mxu0 %v945
    %v947 = vand.u32 %v94, 4294901760
    %948 = vmatpush1.msra.mxu0 %v947
    %v949 = vand.u32 %v97, 4294901760
    %950 = vmatprep.subr.mxu0 %v949
    %v951 = vand.u32 %v96, 4294901760
    %952 = vmatpush1.msra.mxu0 %v951
    %v953 = vand.u32 %v99, 4294901760
    %954 = vmatprep.subr.mxu0 %v953
    %v955 = vand.u32 %v98, 4294901760
    %956 = vmatpush1.msra.mxu0 %v955
    %v957 = vand.u32 %v101, 4294901760
    %958 = vmatprep.subr.mxu0 %v957
    %v959 = vand.u32 %v100, 4294901760
    %960 = vmatpush1.msra.mxu0 %v959
    %v961 = vand.u32 %v103, 4294901760
    %962 = vmatprep.subr.mxu0 %v961
    %v963 = vand.u32 %v102, 4294901760
    %964 = vmatpush1.msra.mxu0 %v963
    %v965 = vand.u32 %v105, 4294901760
    %966 = vmatprep.subr.mxu0 %v965
    %v967 = vand.u32 %v104, 4294901760
    %968 = vmatpush1.msra.mxu0 %v967
    %v969 = vand.u32 %v107, 4294901760
    %970 = vmatprep.subr.mxu0 %v969
    %v971 = vand.u32 %v106, 4294901760
    %972 = vmatpush1.msra.mxu0 %v971
    %v973 = vand.u32 %v109, 4294901760
    %974 = vmatprep.subr.mxu0 %v973
    %v975 = vand.u32 %v108, 4294901760
    %976 = vmatpush1.msra.mxu0 %v975
    %v977 = vand.u32 %v111, 4294901760
    %978 = vmatprep.subr.mxu0 %v977
    %v979 = vand.u32 %v110, 4294901760
    %980 = vmatpush1.msra.mxu0 %v979
    %v981 = vand.u32 %v113, 4294901760
    %982 = vmatprep.subr.mxu0 %v981
    %v983 = vand.u32 %v112, 4294901760
    %984 = vmatpush1.msra.mxu0 %v983
    %v985 = vand.u32 %v115, 4294901760
    %986 = vmatprep.subr.mxu0 %v985
    %v987 = vand.u32 %v114, 4294901760
    %988 = vmatpush1.msra.mxu0 %v987
    %v989 = vand.u32 %v117, 4294901760
    %v990 = vsub.f32 %v117, %v989
    %v991 = vand.u32 %v990, 4294901760
    %992 = vmatprep.mubr.f32.mxu0 %v991
    %v993 = vand.u32 %v116, 4294901760
    %v994 = vsub.f32 %v116, %v993
    %v995 = vand.u32 %v994, 4294901760
    %996 = vmatmul.mubr.f32.gmra.mrb[0].mxu0 %v995
    %v997 = vpop.f32.mrb[0].mxu0
    %v998 = vadd.f32 %v857, %v997
    %v999 = vpop.f32.mrb[0].mxu0
    %v1000 = vadd.f32 %v859, %v999
    %1001 = vdwg.mxu0
    %v1002 = vand.u32 %v53, 4294901760
    %v1003 = vsub.f32 %v53, %v1002
    %v1004 = vand.u32 %v1003, 4294901760
    %1005 = vmatprep.subr.mxu0 %v1004
    %v1006 = vand.u32 %v52, 4294901760
    %v1007 = vsub.f32 %v52, %v1006
    %v1008 = vand.u32 %v1007, 4294901760
    %1009 = vmatpush1.msra.mxu0 %v1008
    %v1010 = vand.u32 %v55, 4294901760
    %v1011 = vsub.f32 %v55, %v1010
    %v1012 = vand.u32 %v1011, 4294901760
    %1013 = vmatprep.subr.mxu0 %v1012
    %v1014 = vand.u32 %v54, 4294901760
    %v1015 = vsub.f32 %v54, %v1014
    %v1016 = vand.u32 %v1015, 4294901760
    %1017 = vmatpush1.msra.mxu0 %v1016
    %v1018 = vand.u32 %v57, 4294901760
    %v1019 = vsub.f32 %v57, %v1018
    %v1020 = vand.u32 %v1019, 4294901760
    %1021 = vmatprep.subr.mxu0 %v1020
    %v1022 = vand.u32 %v56, 4294901760
    %v1023 = vsub.f32 %v56, %v1022
    %v1024 = vand.u32 %v1023, 4294901760
    %1025 = vmatpush1.msra.mxu0 %v1024
    %v1026 = vand.u32 %v59, 4294901760
    %v1027 = vsub.f32 %v59, %v1026
    %v1028 = vand.u32 %v1027, 4294901760
    %1029 = vmatprep.subr.mxu0 %v1028
    %v1030 = vand.u32 %v58, 4294901760
    %v1031 = vsub.f32 %v58, %v1030
    %v1032 = vand.u32 %v1031, 4294901760
    %1033 = vmatpush1.msra.mxu0 %v1032
    %v1034 = vand.u32 %v61, 4294901760
    %v1035 = vsub.f32 %v61, %v1034
    %v1036 = vand.u32 %v1035, 4294901760
    %1037 = vmatprep.subr.mxu0 %v1036
    %v1038 = vand.u32 %v60, 4294901760
    %v1039 = vsub.f32 %v60, %v1038
    %v1040 = vand.u32 %v1039, 4294901760
    %1041 = vmatpush1.msra.mxu0 %v1040
    %v1042 = vand.u32 %v63, 4294901760
    %v1043 = vsub.f32 %v63, %v1042
    %v1044 = vand.u32 %v1043, 4294901760
    %1045 = vmatprep.subr.mxu0 %v1044
    %v1046 = vand.u32 %v62, 4294901760
    %v1047 = vsub.f32 %v62, %v1046
    %v1048 = vand.u32 %v1047, 4294901760
    %1049 = vmatpush1.msra.mxu0 %v1048
    %v1050 = vand.u32 %v65, 4294901760
    %v1051 = vsub.f32 %v65, %v1050
    %v1052 = vand.u32 %v1051, 4294901760
    %1053 = vmatprep.subr.mxu0 %v1052
    %v1054 = vand.u32 %v64, 4294901760
    %v1055 = vsub.f32 %v64, %v1054
    %v1056 = vand.u32 %v1055, 4294901760
    %1057 = vmatpush1.msra.mxu0 %v1056
    %v1058 = vand.u32 %v67, 4294901760
    %v1059 = vsub.f32 %v67, %v1058
    %v1060 = vand.u32 %v1059, 4294901760
    %1061 = vmatprep.subr.mxu0 %v1060
    %v1062 = vand.u32 %v66, 4294901760
    %v1063 = vsub.f32 %v66, %v1062
    %v1064 = vand.u32 %v1063, 4294901760
    %1065 = vmatpush1.msra.mxu0 %v1064
    %v1066 = vand.u32 %v69, 4294901760
    %v1067 = vsub.f32 %v69, %v1066
    %v1068 = vand.u32 %v1067, 4294901760
    %1069 = vmatprep.subr.mxu0 %v1068
    %v1070 = vand.u32 %v68, 4294901760
    %v1071 = vsub.f32 %v68, %v1070
    %v1072 = vand.u32 %v1071, 4294901760
    %1073 = vmatpush1.msra.mxu0 %v1072
    %v1074 = vand.u32 %v71, 4294901760
    %v1075 = vsub.f32 %v71, %v1074
    %v1076 = vand.u32 %v1075, 4294901760
    %1077 = vmatprep.subr.mxu0 %v1076
    %v1078 = vand.u32 %v70, 4294901760
    %v1079 = vsub.f32 %v70, %v1078
    %v1080 = vand.u32 %v1079, 4294901760
    %1081 = vmatpush1.msra.mxu0 %v1080
    %v1082 = vand.u32 %v73, 4294901760
    %v1083 = vsub.f32 %v73, %v1082
    %v1084 = vand.u32 %v1083, 4294901760
    %1085 = vmatprep.subr.mxu0 %v1084
    %v1086 = vand.u32 %v72, 4294901760
    %v1087 = vsub.f32 %v72, %v1086
    %v1088 = vand.u32 %v1087, 4294901760
    %1089 = vmatpush1.msra.mxu0 %v1088
    %v1090 = vand.u32 %v75, 4294901760
    %v1091 = vsub.f32 %v75, %v1090
    %v1092 = vand.u32 %v1091, 4294901760
    %1093 = vmatprep.subr.mxu0 %v1092
    %v1094 = vand.u32 %v74, 4294901760
    %v1095 = vsub.f32 %v74, %v1094
    %v1096 = vand.u32 %v1095, 4294901760
    %1097 = vmatpush1.msra.mxu0 %v1096
    %v1098 = vand.u32 %v77, 4294901760
    %v1099 = vsub.f32 %v77, %v1098
    %v1100 = vand.u32 %v1099, 4294901760
    %1101 = vmatprep.subr.mxu0 %v1100
    %v1102 = vand.u32 %v76, 4294901760
    %v1103 = vsub.f32 %v76, %v1102
    %v1104 = vand.u32 %v1103, 4294901760
    %1105 = vmatpush1.msra.mxu0 %v1104
    %v1106 = vand.u32 %v79, 4294901760
    %v1107 = vsub.f32 %v79, %v1106
    %v1108 = vand.u32 %v1107, 4294901760
    %1109 = vmatprep.subr.mxu0 %v1108
    %v1110 = vand.u32 %v78, 4294901760
    %v1111 = vsub.f32 %v78, %v1110
    %v1112 = vand.u32 %v1111, 4294901760
    %1113 = vmatpush1.msra.mxu0 %v1112
    %v1114 = vand.u32 %v81, 4294901760
    %v1115 = vsub.f32 %v81, %v1114
    %v1116 = vand.u32 %v1115, 4294901760
    %1117 = vmatprep.subr.mxu0 %v1116
    %v1118 = vand.u32 %v80, 4294901760
    %v1119 = vsub.f32 %v80, %v1118
    %v1120 = vand.u32 %v1119, 4294901760
    %1121 = vmatpush1.msra.mxu0 %v1120
    %v1122 = vand.u32 %v83, 4294901760
    %v1123 = vsub.f32 %v83, %v1122
    %v1124 = vand.u32 %v1123, 4294901760
    %1125 = vmatprep.subr.mxu0 %v1124
    %v1126 = vand.u32 %v82, 4294901760
    %v1127 = vsub.f32 %v82, %v1126
    %v1128 = vand.u32 %v1127, 4294901760
    %1129 = vmatpush1.msra.mxu0 %v1128
    %v1130 = vand.u32 %v85, 4294901760
    %v1131 = vsub.f32 %v85, %v1130
    %v1132 = vand.u32 %v1131, 4294901760
    %1133 = vmatprep.subr.mxu0 %v1132
    %v1134 = vand.u32 %v84, 4294901760
    %v1135 = vsub.f32 %v84, %v1134
    %v1136 = vand.u32 %v1135, 4294901760
    %1137 = vmatpush1.msra.mxu0 %v1136
    %v1138 = vand.u32 %v87, 4294901760
    %v1139 = vsub.f32 %v87, %v1138
    %v1140 = vand.u32 %v1139, 4294901760
    %1141 = vmatprep.subr.mxu0 %v1140
    %v1142 = vand.u32 %v86, 4294901760
    %v1143 = vsub.f32 %v86, %v1142
    %v1144 = vand.u32 %v1143, 4294901760
    %1145 = vmatpush1.msra.mxu0 %v1144
    %v1146 = vand.u32 %v89, 4294901760
    %v1147 = vsub.f32 %v89, %v1146
    %v1148 = vand.u32 %v1147, 4294901760
    %1149 = vmatprep.subr.mxu0 %v1148
    %v1150 = vand.u32 %v88, 4294901760
    %v1151 = vsub.f32 %v88, %v1150
    %v1152 = vand.u32 %v1151, 4294901760
    %1153 = vmatpush1.msra.mxu0 %v1152
    %v1154 = vand.u32 %v91, 4294901760
    %v1155 = vsub.f32 %v91, %v1154
    %v1156 = vand.u32 %v1155, 4294901760
    %1157 = vmatprep.subr.mxu0 %v1156
    %v1158 = vand.u32 %v90, 4294901760
    %v1159 = vsub.f32 %v90, %v1158
    %v1160 = vand.u32 %v1159, 4294901760
    %1161 = vmatpush1.msra.mxu0 %v1160
    %v1162 = vand.u32 %v93, 4294901760
    %v1163 = vsub.f32 %v93, %v1162
    %v1164 = vand.u32 %v1163, 4294901760
    %1165 = vmatprep.subr.mxu0 %v1164
    %v1166 = vand.u32 %v92, 4294901760
    %v1167 = vsub.f32 %v92, %v1166
    %v1168 = vand.u32 %v1167, 4294901760
    %1169 = vmatpush1.msra.mxu0 %v1168
    %v1170 = vand.u32 %v95, 4294901760
    %v1171 = vsub.f32 %v95, %v1170
    %v1172 = vand.u32 %v1171, 4294901760
    %1173 = vmatprep.subr.mxu0 %v1172
    %v1174 = vand.u32 %v94, 4294901760
    %v1175 = vsub.f32 %v94, %v1174
    %v1176 = vand.u32 %v1175, 4294901760
    %1177 = vmatpush1.msra.mxu0 %v1176
    %v1178 = vand.u32 %v97, 4294901760
    %v1179 = vsub.f32 %v97, %v1178
    %v1180 = vand.u32 %v1179, 4294901760
    %1181 = vmatprep.subr.mxu0 %v1180
    %v1182 = vand.u32 %v96, 4294901760
    %v1183 = vsub.f32 %v96, %v1182
    %v1184 = vand.u32 %v1183, 4294901760
    %1185 = vmatpush1.msra.mxu0 %v1184
    %v1186 = vand.u32 %v99, 4294901760
    %v1187 = vsub.f32 %v99, %v1186
    %v1188 = vand.u32 %v1187, 4294901760
    %1189 = vmatprep.subr.mxu0 %v1188
    %v1190 = vand.u32 %v98, 4294901760
    %v1191 = vsub.f32 %v98, %v1190
    %v1192 = vand.u32 %v1191, 4294901760
    %1193 = vmatpush1.msra.mxu0 %v1192
    %v1194 = vand.u32 %v101, 4294901760
    %v1195 = vsub.f32 %v101, %v1194
    %v1196 = vand.u32 %v1195, 4294901760
    %1197 = vmatprep.subr.mxu0 %v1196
    %v1198 = vand.u32 %v100, 4294901760
    %v1199 = vsub.f32 %v100, %v1198
    %v1200 = vand.u32 %v1199, 4294901760
    %1201 = vmatpush1.msra.mxu0 %v1200
    %v1202 = vand.u32 %v103, 4294901760
    %v1203 = vsub.f32 %v103, %v1202
    %v1204 = vand.u32 %v1203, 4294901760
    %1205 = vmatprep.subr.mxu0 %v1204
    %v1206 = vand.u32 %v102, 4294901760
    %v1207 = vsub.f32 %v102, %v1206
    %v1208 = vand.u32 %v1207, 4294901760
    %1209 = vmatpush1.msra.mxu0 %v1208
    %v1210 = vand.u32 %v105, 4294901760
    %v1211 = vsub.f32 %v105, %v1210
    %v1212 = vand.u32 %v1211, 4294901760
    %1213 = vmatprep.subr.mxu0 %v1212
    %v1214 = vand.u32 %v104, 4294901760
    %v1215 = vsub.f32 %v104, %v1214
    %v1216 = vand.u32 %v1215, 4294901760
    %1217 = vmatpush1.msra.mxu0 %v1216
    %v1218 = vand.u32 %v107, 4294901760
    %v1219 = vsub.f32 %v107, %v1218
    %v1220 = vand.u32 %v1219, 4294901760
    %1221 = vmatprep.subr.mxu0 %v1220
    %v1222 = vand.u32 %v106, 4294901760
    %v1223 = vsub.f32 %v106, %v1222
    %v1224 = vand.u32 %v1223, 4294901760
    %1225 = vmatpush1.msra.mxu0 %v1224
    %v1226 = vand.u32 %v109, 4294901760
    %v1227 = vsub.f32 %v109, %v1226
    %v1228 = vand.u32 %v1227, 4294901760
    %1229 = vmatprep.subr.mxu0 %v1228
    %v1230 = vand.u32 %v108, 4294901760
    %v1231 = vsub.f32 %v108, %v1230
    %v1232 = vand.u32 %v1231, 4294901760
    %1233 = vmatpush1.msra.mxu0 %v1232
    %v1234 = vand.u32 %v111, 4294901760
    %v1235 = vsub.f32 %v111, %v1234
    %v1236 = vand.u32 %v1235, 4294901760
    %1237 = vmatprep.subr.mxu0 %v1236
    %v1238 = vand.u32 %v110, 4294901760
    %v1239 = vsub.f32 %v110, %v1238
    %v1240 = vand.u32 %v1239, 4294901760
    %1241 = vmatpush1.msra.mxu0 %v1240
    %v1242 = vand.u32 %v113, 4294901760
    %v1243 = vsub.f32 %v113, %v1242
    %v1244 = vand.u32 %v1243, 4294901760
    %1245 = vmatprep.subr.mxu0 %v1244
    %v1246 = vand.u32 %v112, 4294901760
    %v1247 = vsub.f32 %v112, %v1246
    %v1248 = vand.u32 %v1247, 4294901760
    %1249 = vmatpush1.msra.mxu0 %v1248
    %v1250 = vand.u32 %v115, 4294901760
    %v1251 = vsub.f32 %v115, %v1250
    %v1252 = vand.u32 %v1251, 4294901760
    %1253 = vmatprep.subr.mxu0 %v1252
    %v1254 = vand.u32 %v114, 4294901760
    %v1255 = vsub.f32 %v114, %v1254
    %v1256 = vand.u32 %v1255, 4294901760
    %1257 = vmatpush1.msra.mxu0 %v1256
    %v1258 = vand.u32 %v117, 4294901760
    %1259 = vmatprep.mubr.f32.mxu0 %v1258
    %v1260 = vand.u32 %v116, 4294901760
    %1261 = vmatmul.mubr.f32.gmra.mrb[0].mxu0 %v1260
    %v1262 = vpop.f32.mrb[0].mxu0
    %v1263 = vadd.f32 %v998, %v1262
    %v1264 = vpop.f32.mrb[0].mxu0
    %v1265 = vadd.f32 %v1000, %v1264
    %1266 = vdwg.mxu0
    %v1267 = vand.u32 %v53, 4294901760
    %1268 = vmatprep.subr.mxu0 %v1267
    %v1269 = vand.u32 %v52, 4294901760
    %1270 = vmatpush1.msra.mxu0 %v1269
    %v1271 = vand.u32 %v55, 4294901760
    %1272 = vmatprep.subr.mxu0 %v1271
    %v1273 = vand.u32 %v54, 4294901760
    %1274 = vmatpush1.msra.mxu0 %v1273
    %v1275 = vand.u32 %v57, 4294901760
    %1276 = vmatprep.subr.mxu0 %v1275
    %v1277 = vand.u32 %v56, 4294901760
    %1278 = vmatpush1.msra.mxu0 %v1277
    %v1279 = vand.u32 %v59, 4294901760
    %1280 = vmatprep.subr.mxu0 %v1279
    %v1281 = vand.u32 %v58, 4294901760
    %1282 = vmatpush1.msra.mxu0 %v1281
    %v1283 = vand.u32 %v61, 4294901760
    %1284 = vmatprep.subr.mxu0 %v1283
    %v1285 = vand.u32 %v60, 4294901760
    %1286 = vmatpush1.msra.mxu0 %v1285
    %v1287 = vand.u32 %v63, 4294901760
    %1288 = vmatprep.subr.mxu0 %v1287
    %v1289 = vand.u32 %v62, 4294901760
    %1290 = vmatpush1.msra.mxu0 %v1289
    %v1291 = vand.u32 %v65, 4294901760
    %1292 = vmatprep.subr.mxu0 %v1291
    %v1293 = vand.u32 %v64, 4294901760
    %1294 = vmatpush1.msra.mxu0 %v1293
    %v1295 = vand.u32 %v67, 4294901760
    %1296 = vmatprep.subr.mxu0 %v1295
    %v1297 = vand.u32 %v66, 4294901760
    %1298 = vmatpush1.msra.mxu0 %v1297
    %v1299 = vand.u32 %v69, 4294901760
    %1300 = vmatprep.subr.mxu0 %v1299
    %v1301 = vand.u32 %v68, 4294901760
    %1302 = vmatpush1.msra.mxu0 %v1301
    %v1303 = vand.u32 %v71, 4294901760
    %1304 = vmatprep.subr.mxu0 %v1303
    %v1305 = vand.u32 %v70, 4294901760
    %1306 = vmatpush1.msra.mxu0 %v1305
    %v1307 = vand.u32 %v73, 4294901760
    %1308 = vmatprep.subr.mxu0 %v1307
    %v1309 = vand.u32 %v72, 4294901760
    %1310 = vmatpush1.msra.mxu0 %v1309
    %v1311 = vand.u32 %v75, 4294901760
    %1312 = vmatprep.subr.mxu0 %v1311
    %v1313 = vand.u32 %v74, 4294901760
    %1314 = vmatpush1.msra.mxu0 %v1313
    %v1315 = vand.u32 %v77, 4294901760
    %1316 = vmatprep.subr.mxu0 %v1315
    %v1317 = vand.u32 %v76, 4294901760
    %1318 = vmatpush1.msra.mxu0 %v1317
    %v1319 = vand.u32 %v79, 4294901760
    %1320 = vmatprep.subr.mxu0 %v1319
    %v1321 = vand.u32 %v78, 4294901760
    %1322 = vmatpush1.msra.mxu0 %v1321
    %v1323 = vand.u32 %v81, 4294901760
    %1324 = vmatprep.subr.mxu0 %v1323
    %v1325 = vand.u32 %v80, 4294901760
    %1326 = vmatpush1.msra.mxu0 %v1325
    %v1327 = vand.u32 %v83, 4294901760
    %1328 = vmatprep.subr.mxu0 %v1327
    %v1329 = vand.u32 %v82, 4294901760
    %1330 = vmatpush1.msra.mxu0 %v1329
    %v1331 = vand.u32 %v85, 4294901760
    %1332 = vmatprep.subr.mxu0 %v1331
    %v1333 = vand.u32 %v84, 4294901760
    %1334 = vmatpush1.msra.mxu0 %v1333
    %v1335 = vand.u32 %v87, 4294901760
    %1336 = vmatprep.subr.mxu0 %v1335
    %v1337 = vand.u32 %v86, 4294901760
    %1338 = vmatpush1.msra.mxu0 %v1337
    %v1339 = vand.u32 %v89, 4294901760
    %1340 = vmatprep.subr.mxu0 %v1339
    %v1341 = vand.u32 %v88, 4294901760
    %1342 = vmatpush1.msra.mxu0 %v1341
    %v1343 = vand.u32 %v91, 4294901760
    %1344 = vmatprep.subr.mxu0 %v1343
    %v1345 = vand.u32 %v90, 4294901760
    %1346 = vmatpush1.msra.mxu0 %v1345
    %v1347 = vand.u32 %v93, 4294901760
    %1348 = vmatprep.subr.mxu0 %v1347
    %v1349 = vand.u32 %v92, 4294901760
    %1350 = vmatpush1.msra.mxu0 %v1349
    %v1351 = vand.u32 %v95, 4294901760
    %1352 = vmatprep.subr.mxu0 %v1351
    %v1353 = vand.u32 %v94, 4294901760
    %1354 = vmatpush1.msra.mxu0 %v1353
    %v1355 = vand.u32 %v97, 4294901760
    %1356 = vmatprep.subr.mxu0 %v1355
    %v1357 = vand.u32 %v96, 4294901760
    %1358 = vmatpush1.msra.mxu0 %v1357
    %v1359 = vand.u32 %v99, 4294901760
    %1360 = vmatprep.subr.mxu0 %v1359
    %v1361 = vand.u32 %v98, 4294901760
    %1362 = vmatpush1.msra.mxu0 %v1361
    %v1363 = vand.u32 %v101, 4294901760
    %1364 = vmatprep.subr.mxu0 %v1363
    %v1365 = vand.u32 %v100, 4294901760
    %1366 = vmatpush1.msra.mxu0 %v1365
    %v1367 = vand.u32 %v103, 4294901760
    %1368 = vmatprep.subr.mxu0 %v1367
    %v1369 = vand.u32 %v102, 4294901760
    %1370 = vmatpush1.msra.mxu0 %v1369
    %v1371 = vand.u32 %v105, 4294901760
    %1372 = vmatprep.subr.mxu0 %v1371
    %v1373 = vand.u32 %v104, 4294901760
    %1374 = vmatpush1.msra.mxu0 %v1373
    %v1375 = vand.u32 %v107, 4294901760
    %1376 = vmatprep.subr.mxu0 %v1375
    %v1377 = vand.u32 %v106, 4294901760
    %1378 = vmatpush1.msra.mxu0 %v1377
    %v1379 = vand.u32 %v109, 4294901760
    %1380 = vmatprep.subr.mxu0 %v1379
    %v1381 = vand.u32 %v108, 4294901760
    %1382 = vmatpush1.msra.mxu0 %v1381
    %v1383 = vand.u32 %v111, 4294901760
    %1384 = vmatprep.subr.mxu0 %v1383
    %v1385 = vand.u32 %v110, 4294901760
    %1386 = vmatpush1.msra.mxu0 %v1385
    %v1387 = vand.u32 %v113, 4294901760
    %1388 = vmatprep.subr.mxu0 %v1387
    %v1389 = vand.u32 %v112, 4294901760
    %1390 = vmatpush1.msra.mxu0 %v1389
    %v1391 = vand.u32 %v115, 4294901760
    %1392 = vmatprep.subr.mxu0 %v1391
    %v1393 = vand.u32 %v114, 4294901760
    %1394 = vmatpush1.msra.mxu0 %v1393
    %v1395 = vand.u32 %v117, 4294901760
    %1396 = vmatprep.mubr.f32.mxu0 %v1395
    %v1397 = vand.u32 %v116, 4294901760
    %1398 = vmatmul.mubr.f32.gmra.mrb[0].mxu0 %v1397
    %v1399 = vpop.f32.mrb[0].mxu0
    %v1400 = vadd.f32 %v1263, %v1399
    %v1401 = vpop.f32.mrb[0].mxu0
    %v1402 = vadd.f32 %v1265, %v1401
    %1403 = vdwg.mxu0
    %v1404 = vand.u32 %v53, 4294901760
    %1405 = vmatprep.subr.mxu0 %v1404
    %v1406 = vand.u32 %v52, 4294901760
    %1407 = vmatpush1.msra.mxu0 %v1406
    %v1408 = vand.u32 %v55, 4294901760
    %1409 = vmatprep.subr.mxu0 %v1408
    %v1410 = vand.u32 %v54, 4294901760
    %1411 = vmatpush1.msra.mxu0 %v1410
    %v1412 = vand.u32 %v57, 4294901760
    %1413 = vmatprep.subr.mxu0 %v1412
    %v1414 = vand.u32 %v56, 4294901760
    %1415 = vmatpush1.msra.mxu0 %v1414
    %v1416 = vand.u32 %v59, 4294901760
    %1417 = vmatprep.subr.mxu0 %v1416
    %v1418 = vand.u32 %v58, 4294901760
    %1419 = vmatpush1.msra.mxu0 %v1418
    %v1420 = vand.u32 %v61, 4294901760
    %1421 = vmatprep.subr.mxu0 %v1420
    %v1422 = vand.u32 %v60, 4294901760
    %1423 = vmatpush1.msra.mxu0 %v1422
    %v1424 = vand.u32 %v63, 4294901760
    %1425 = vmatprep.subr.mxu0 %v1424
    %v1426 = vand.u32 %v62, 4294901760
    %1427 = vmatpush1.msra.mxu0 %v1426
    %v1428 = vand.u32 %v65, 4294901760
    %1429 = vmatprep.subr.mxu0 %v1428
    %v1430 = vand.u32 %v64, 4294901760
    %1431 = vmatpush1.msra.mxu0 %v1430
    %v1432 = vand.u32 %v67, 4294901760
    %1433 = vmatprep.subr.mxu0 %v1432
    %v1434 = vand.u32 %v66, 4294901760
    %1435 = vmatpush1.msra.mxu0 %v1434
    %v1436 = vand.u32 %v69, 4294901760
    %1437 = vmatprep.subr.mxu0 %v1436
    %v1438 = vand.u32 %v68, 4294901760
    %1439 = vmatpush1.msra.mxu0 %v1438
    %v1440 = vand.u32 %v71, 4294901760
    %1441 = vmatprep.subr.mxu0 %v1440
    %v1442 = vand.u32 %v70, 4294901760
    %1443 = vmatpush1.msra.mxu0 %v1442
    %v1444 = vand.u32 %v73, 4294901760
    %1445 = vmatprep.subr.mxu0 %v1444
    %v1446 = vand.u32 %v72, 4294901760
    %1447 = vmatpush1.msra.mxu0 %v1446
    %v1448 = vand.u32 %v75, 4294901760
    %1449 = vmatprep.subr.mxu0 %v1448
    %v1450 = vand.u32 %v74, 4294901760
    %1451 = vmatpush1.msra.mxu0 %v1450
    %v1452 = vand.u32 %v77, 4294901760
    %1453 = vmatprep.subr.mxu0 %v1452
    %v1454 = vand.u32 %v76, 4294901760
    %1455 = vmatpush1.msra.mxu0 %v1454
    %v1456 = vand.u32 %v79, 4294901760
    %1457 = vmatprep.subr.mxu0 %v1456
    %v1458 = vand.u32 %v78, 4294901760
    %1459 = vmatpush1.msra.mxu0 %v1458
    %v1460 = vand.u32 %v81, 4294901760
    %1461 = vmatprep.subr.mxu0 %v1460
    %v1462 = vand.u32 %v80, 4294901760
    %1463 = vmatpush1.msra.mxu0 %v1462
    %v1464 = vand.u32 %v83, 4294901760
    %1465 = vmatprep.subr.mxu0 %v1464
    %v1466 = vand.u32 %v82, 4294901760
    %1467 = vmatpush1.msra.mxu0 %v1466
    %v1468 = vand.u32 %v85, 4294901760
    %1469 = vmatprep.subr.mxu0 %v1468
    %v1470 = vand.u32 %v84, 4294901760
    %1471 = vmatpush1.msra.mxu0 %v1470
    %v1472 = vand.u32 %v87, 4294901760
    %1473 = vmatprep.subr.mxu0 %v1472
    %v1474 = vand.u32 %v86, 4294901760
    %1475 = vmatpush1.msra.mxu0 %v1474
    %v1476 = vand.u32 %v89, 4294901760
    %1477 = vmatprep.subr.mxu0 %v1476
    %v1478 = vand.u32 %v88, 4294901760
    %1479 = vmatpush1.msra.mxu0 %v1478
    %v1480 = vand.u32 %v91, 4294901760
    %1481 = vmatprep.subr.mxu0 %v1480
    %v1482 = vand.u32 %v90, 4294901760
    %1483 = vmatpush1.msra.mxu0 %v1482
    %v1484 = vand.u32 %v93, 4294901760
    %1485 = vmatprep.subr.mxu0 %v1484
    %v1486 = vand.u32 %v92, 4294901760
    %1487 = vmatpush1.msra.mxu0 %v1486
    %v1488 = vand.u32 %v95, 4294901760
    %1489 = vmatprep.subr.mxu0 %v1488
    %v1490 = vand.u32 %v94, 4294901760
    %1491 = vmatpush1.msra.mxu0 %v1490
    %v1492 = vand.u32 %v97, 4294901760
    %1493 = vmatprep.subr.mxu0 %v1492
    %v1494 = vand.u32 %v96, 4294901760
    %1495 = vmatpush1.msra.mxu0 %v1494
    %v1496 = vand.u32 %v99, 4294901760
    %1497 = vmatprep.subr.mxu0 %v1496
    %v1498 = vand.u32 %v98, 4294901760
    %1499 = vmatpush1.msra.mxu0 %v1498
    %v1500 = vand.u32 %v101, 4294901760
    %1501 = vmatprep.subr.mxu0 %v1500
    %v1502 = vand.u32 %v100, 4294901760
    %1503 = vmatpush1.msra.mxu0 %v1502
    %v1504 = vand.u32 %v103, 4294901760
    %1505 = vmatprep.subr.mxu0 %v1504
    %v1506 = vand.u32 %v102, 4294901760
    %1507 = vmatpush1.msra.mxu0 %v1506
    %v1508 = vand.u32 %v105, 4294901760
    %1509 = vmatprep.subr.mxu0 %v1508
    %v1510 = vand.u32 %v104, 4294901760
    %1511 = vmatpush1.msra.mxu0 %v1510
    %v1512 = vand.u32 %v107, 4294901760
    %1513 = vmatprep.subr.mxu0 %v1512
    %v1514 = vand.u32 %v106, 4294901760
    %1515 = vmatpush1.msra.mxu0 %v1514
    %v1516 = vand.u32 %v109, 4294901760
    %1517 = vmatprep.subr.mxu0 %v1516
    %v1518 = vand.u32 %v108, 4294901760
    %1519 = vmatpush1.msra.mxu0 %v1518
    %v1520 = vand.u32 %v111, 4294901760
    %1521 = vmatprep.subr.mxu0 %v1520
    %v1522 = vand.u32 %v110, 4294901760
    %1523 = vmatpush1.msra.mxu0 %v1522
    %v1524 = vand.u32 %v113, 4294901760
    %1525 = vmatprep.subr.mxu0 %v1524
    %v1526 = vand.u32 %v112, 4294901760
    %1527 = vmatpush1.msra.mxu0 %v1526
    %v1528 = vand.u32 %v115, 4294901760
    %1529 = vmatprep.subr.mxu0 %v1528
    %v1530 = vand.u32 %v114, 4294901760
    %1531 = vmatpush1.msra.mxu0 %v1530
    %v1532 = vand.u32 %v119, 4294901760
    %v1533 = vsub.f32 %v119, %v1532
    %v1534 = vand.u32 %v1533, 4294901760
    %v1535 = vsub.f32 %v1533, %v1534
    %v1536 = vand.u32 %v1535, 4294901760
    %1537 = vmatprep.mubr.f32.mxu0 %v1536
    %v1538 = vand.u32 %v118, 4294901760
    %v1539 = vsub.f32 %v118, %v1538
    %v1540 = vand.u32 %v1539, 4294901760
    %v1541 = vsub.f32 %v1539, %v1540
    %v1542 = vand.u32 %v1541, 4294901760
    %1543 = vmatmul.mubr.f32.gmra.mrb[0].mxu0 %v1542
    %v1544 = vpop.f32.mrb[0].mxu0
    %v1545 = vadd.f32 0.0, %v1544
    %v1546 = vpop.f32.mrb[0].mxu0
    %v1547 = vadd.f32 0.0, %v1546
    %1548 = vdwg.mxu0
    %v1549 = vand.u32 %v53, 4294901760
    %v1550 = vsub.f32 %v53, %v1549
    %v1551 = vand.u32 %v1550, 4294901760
    %v1552 = vsub.f32 %v1550, %v1551
    %v1553 = vand.u32 %v1552, 4294901760
    %1554 = vmatprep.subr.mxu0 %v1553
    %v1555 = vand.u32 %v52, 4294901760
    %v1556 = vsub.f32 %v52, %v1555
    %v1557 = vand.u32 %v1556, 4294901760
    %v1558 = vsub.f32 %v1556, %v1557
    %v1559 = vand.u32 %v1558, 4294901760
    %1560 = vmatpush1.msra.mxu0 %v1559
    %v1561 = vand.u32 %v55, 4294901760
    %v1562 = vsub.f32 %v55, %v1561
    %v1563 = vand.u32 %v1562, 4294901760
    %v1564 = vsub.f32 %v1562, %v1563
    %v1565 = vand.u32 %v1564, 4294901760
    %1566 = vmatprep.subr.mxu0 %v1565
    %v1567 = vand.u32 %v54, 4294901760
    %v1568 = vsub.f32 %v54, %v1567
    %v1569 = vand.u32 %v1568, 4294901760
    %v1570 = vsub.f32 %v1568, %v1569
    %v1571 = vand.u32 %v1570, 4294901760
    %1572 = vmatpush1.msra.mxu0 %v1571
    %v1573 = vand.u32 %v57, 4294901760
    %v1574 = vsub.f32 %v57, %v1573
    %v1575 = vand.u32 %v1574, 4294901760
    %v1576 = vsub.f32 %v1574, %v1575
    %v1577 = vand.u32 %v1576, 4294901760
    %1578 = vmatprep.subr.mxu0 %v1577
    %v1579 = vand.u32 %v56, 4294901760
    %v1580 = vsub.f32 %v56, %v1579
    %v1581 = vand.u32 %v1580, 4294901760
    %v1582 = vsub.f32 %v1580, %v1581
    %v1583 = vand.u32 %v1582, 4294901760
    %1584 = vmatpush1.msra.mxu0 %v1583
    %v1585 = vand.u32 %v59, 4294901760
    %v1586 = vsub.f32 %v59, %v1585
    %v1587 = vand.u32 %v1586, 4294901760
    %v1588 = vsub.f32 %v1586, %v1587
    %v1589 = vand.u32 %v1588, 4294901760
    %1590 = vmatprep.subr.mxu0 %v1589
    %v1591 = vand.u32 %v58, 4294901760
    %v1592 = vsub.f32 %v58, %v1591
    %v1593 = vand.u32 %v1592, 4294901760
    %v1594 = vsub.f32 %v1592, %v1593
    %v1595 = vand.u32 %v1594, 4294901760
    %1596 = vmatpush1.msra.mxu0 %v1595
    %v1597 = vand.u32 %v61, 4294901760
    %v1598 = vsub.f32 %v61, %v1597
    %v1599 = vand.u32 %v1598, 4294901760
    %v1600 = vsub.f32 %v1598, %v1599
    %v1601 = vand.u32 %v1600, 4294901760
    %1602 = vmatprep.subr.mxu0 %v1601
    %v1603 = vand.u32 %v60, 4294901760
    %v1604 = vsub.f32 %v60, %v1603
    %v1605 = vand.u32 %v1604, 4294901760
    %v1606 = vsub.f32 %v1604, %v1605
    %v1607 = vand.u32 %v1606, 4294901760
    %1608 = vmatpush1.msra.mxu0 %v1607
    %v1609 = vand.u32 %v63, 4294901760
    %v1610 = vsub.f32 %v63, %v1609
    %v1611 = vand.u32 %v1610, 4294901760
    %v1612 = vsub.f32 %v1610, %v1611
    %v1613 = vand.u32 %v1612, 4294901760
    %1614 = vmatprep.subr.mxu0 %v1613
    %v1615 = vand.u32 %v62, 4294901760
    %v1616 = vsub.f32 %v62, %v1615
    %v1617 = vand.u32 %v1616, 4294901760
    %v1618 = vsub.f32 %v1616, %v1617
    %v1619 = vand.u32 %v1618, 4294901760
    %1620 = vmatpush1.msra.mxu0 %v1619
    %v1621 = vand.u32 %v65, 4294901760
    %v1622 = vsub.f32 %v65, %v1621
    %v1623 = vand.u32 %v1622, 4294901760
    %v1624 = vsub.f32 %v1622, %v1623
    %v1625 = vand.u32 %v1624, 4294901760
    %1626 = vmatprep.subr.mxu0 %v1625
    %v1627 = vand.u32 %v64, 4294901760
    %v1628 = vsub.f32 %v64, %v1627
    %v1629 = vand.u32 %v1628, 4294901760
    %v1630 = vsub.f32 %v1628, %v1629
    %v1631 = vand.u32 %v1630, 4294901760
    %1632 = vmatpush1.msra.mxu0 %v1631
    %v1633 = vand.u32 %v67, 4294901760
    %v1634 = vsub.f32 %v67, %v1633
    %v1635 = vand.u32 %v1634, 4294901760
    %v1636 = vsub.f32 %v1634, %v1635
    %v1637 = vand.u32 %v1636, 4294901760
    %1638 = vmatprep.subr.mxu0 %v1637
    %v1639 = vand.u32 %v66, 4294901760
    %v1640 = vsub.f32 %v66, %v1639
    %v1641 = vand.u32 %v1640, 4294901760
    %v1642 = vsub.f32 %v1640, %v1641
    %v1643 = vand.u32 %v1642, 4294901760
    %1644 = vmatpush1.msra.mxu0 %v1643
    %v1645 = vand.u32 %v69, 4294901760
    %v1646 = vsub.f32 %v69, %v1645
    %v1647 = vand.u32 %v1646, 4294901760
    %v1648 = vsub.f32 %v1646, %v1647
    %v1649 = vand.u32 %v1648, 4294901760
    %1650 = vmatprep.subr.mxu0 %v1649
    %v1651 = vand.u32 %v68, 4294901760
    %v1652 = vsub.f32 %v68, %v1651
    %v1653 = vand.u32 %v1652, 4294901760
    %v1654 = vsub.f32 %v1652, %v1653
    %v1655 = vand.u32 %v1654, 4294901760
    %1656 = vmatpush1.msra.mxu0 %v1655
    %v1657 = vand.u32 %v71, 4294901760
    %v1658 = vsub.f32 %v71, %v1657
    %v1659 = vand.u32 %v1658, 4294901760
    %v1660 = vsub.f32 %v1658, %v1659
    %v1661 = vand.u32 %v1660, 4294901760
    %1662 = vmatprep.subr.mxu0 %v1661
    %v1663 = vand.u32 %v70, 4294901760
    %v1664 = vsub.f32 %v70, %v1663
    %v1665 = vand.u32 %v1664, 4294901760
    %v1666 = vsub.f32 %v1664, %v1665
    %v1667 = vand.u32 %v1666, 4294901760
    %1668 = vmatpush1.msra.mxu0 %v1667
    %v1669 = vand.u32 %v73, 4294901760
    %v1670 = vsub.f32 %v73, %v1669
    %v1671 = vand.u32 %v1670, 4294901760
    %v1672 = vsub.f32 %v1670, %v1671
    %v1673 = vand.u32 %v1672, 4294901760
    %1674 = vmatprep.subr.mxu0 %v1673
    %v1675 = vand.u32 %v72, 4294901760
    %v1676 = vsub.f32 %v72, %v1675
    %v1677 = vand.u32 %v1676, 4294901760
    %v1678 = vsub.f32 %v1676, %v1677
    %v1679 = vand.u32 %v1678, 4294901760
    %1680 = vmatpush1.msra.mxu0 %v1679
    %v1681 = vand.u32 %v75, 4294901760
    %v1682 = vsub.f32 %v75, %v1681
    %v1683 = vand.u32 %v1682, 4294901760
    %v1684 = vsub.f32 %v1682, %v1683
    %v1685 = vand.u32 %v1684, 4294901760
    %1686 = vmatprep.subr.mxu0 %v1685
    %v1687 = vand.u32 %v74, 4294901760
    %v1688 = vsub.f32 %v74, %v1687
    %v1689 = vand.u32 %v1688, 4294901760
    %v1690 = vsub.f32 %v1688, %v1689
    %v1691 = vand.u32 %v1690, 4294901760
    %1692 = vmatpush1.msra.mxu0 %v1691
    %v1693 = vand.u32 %v77, 4294901760
    %v1694 = vsub.f32 %v77, %v1693
    %v1695 = vand.u32 %v1694, 4294901760
    %v1696 = vsub.f32 %v1694, %v1695
    %v1697 = vand.u32 %v1696, 4294901760
    %1698 = vmatprep.subr.mxu0 %v1697
    %v1699 = vand.u32 %v76, 4294901760
    %v1700 = vsub.f32 %v76, %v1699
    %v1701 = vand.u32 %v1700, 4294901760
    %v1702 = vsub.f32 %v1700, %v1701
    %v1703 = vand.u32 %v1702, 4294901760
    %1704 = vmatpush1.msra.mxu0 %v1703
    %v1705 = vand.u32 %v79, 4294901760
    %v1706 = vsub.f32 %v79, %v1705
    %v1707 = vand.u32 %v1706, 4294901760
    %v1708 = vsub.f32 %v1706, %v1707
    %v1709 = vand.u32 %v1708, 4294901760
    %1710 = vmatprep.subr.mxu0 %v1709
    %v1711 = vand.u32 %v78, 4294901760
    %v1712 = vsub.f32 %v78, %v1711
    %v1713 = vand.u32 %v1712, 4294901760
    %v1714 = vsub.f32 %v1712, %v1713
    %v1715 = vand.u32 %v1714, 4294901760
    %1716 = vmatpush1.msra.mxu0 %v1715
    %v1717 = vand.u32 %v81, 4294901760
    %v1718 = vsub.f32 %v81, %v1717
    %v1719 = vand.u32 %v1718, 4294901760
    %v1720 = vsub.f32 %v1718, %v1719
    %v1721 = vand.u32 %v1720, 4294901760
    %1722 = vmatprep.subr.mxu0 %v1721
    %v1723 = vand.u32 %v80, 4294901760
    %v1724 = vsub.f32 %v80, %v1723
    %v1725 = vand.u32 %v1724, 4294901760
    %v1726 = vsub.f32 %v1724, %v1725
    %v1727 = vand.u32 %v1726, 4294901760
    %1728 = vmatpush1.msra.mxu0 %v1727
    %v1729 = vand.u32 %v83, 4294901760
    %v1730 = vsub.f32 %v83, %v1729
    %v1731 = vand.u32 %v1730, 4294901760
    %v1732 = vsub.f32 %v1730, %v1731
    %v1733 = vand.u32 %v1732, 4294901760
    %1734 = vmatprep.subr.mxu0 %v1733
    %v1735 = vand.u32 %v82, 4294901760
    %v1736 = vsub.f32 %v82, %v1735
    %v1737 = vand.u32 %v1736, 4294901760
    %v1738 = vsub.f32 %v1736, %v1737
    %v1739 = vand.u32 %v1738, 4294901760
    %1740 = vmatpush1.msra.mxu0 %v1739
    %v1741 = vand.u32 %v85, 4294901760
    %v1742 = vsub.f32 %v85, %v1741
    %v1743 = vand.u32 %v1742, 4294901760
    %v1744 = vsub.f32 %v1742, %v1743
    %v1745 = vand.u32 %v1744, 4294901760
    %1746 = vmatprep.subr.mxu0 %v1745
    %v1747 = vand.u32 %v84, 4294901760
    %v1748 = vsub.f32 %v84, %v1747
    %v1749 = vand.u32 %v1748, 4294901760
    %v1750 = vsub.f32 %v1748, %v1749
    %v1751 = vand.u32 %v1750, 4294901760
    %1752 = vmatpush1.msra.mxu0 %v1751
    %v1753 = vand.u32 %v87, 4294901760
    %v1754 = vsub.f32 %v87, %v1753
    %v1755 = vand.u32 %v1754, 4294901760
    %v1756 = vsub.f32 %v1754, %v1755
    %v1757 = vand.u32 %v1756, 4294901760
    %1758 = vmatprep.subr.mxu0 %v1757
    %v1759 = vand.u32 %v86, 4294901760
    %v1760 = vsub.f32 %v86, %v1759
    %v1761 = vand.u32 %v1760, 4294901760
    %v1762 = vsub.f32 %v1760, %v1761
    %v1763 = vand.u32 %v1762, 4294901760
    %1764 = vmatpush1.msra.mxu0 %v1763
    %v1765 = vand.u32 %v89, 4294901760
    %v1766 = vsub.f32 %v89, %v1765
    %v1767 = vand.u32 %v1766, 4294901760
    %v1768 = vsub.f32 %v1766, %v1767
    %v1769 = vand.u32 %v1768, 4294901760
    %1770 = vmatprep.subr.mxu0 %v1769
    %v1771 = vand.u32 %v88, 4294901760
    %v1772 = vsub.f32 %v88, %v1771
    %v1773 = vand.u32 %v1772, 4294901760
    %v1774 = vsub.f32 %v1772, %v1773
    %v1775 = vand.u32 %v1774, 4294901760
    %1776 = vmatpush1.msra.mxu0 %v1775
    %v1777 = vand.u32 %v91, 4294901760
    %v1778 = vsub.f32 %v91, %v1777
    %v1779 = vand.u32 %v1778, 4294901760
    %v1780 = vsub.f32 %v1778, %v1779
    %v1781 = vand.u32 %v1780, 4294901760
    %1782 = vmatprep.subr.mxu0 %v1781
    %v1783 = vand.u32 %v90, 4294901760
    %v1784 = vsub.f32 %v90, %v1783
    %v1785 = vand.u32 %v1784, 4294901760
    %v1786 = vsub.f32 %v1784, %v1785
    %v1787 = vand.u32 %v1786, 4294901760
    %1788 = vmatpush1.msra.mxu0 %v1787
    %v1789 = vand.u32 %v93, 4294901760
    %v1790 = vsub.f32 %v93, %v1789
    %v1791 = vand.u32 %v1790, 4294901760
    %v1792 = vsub.f32 %v1790, %v1791
    %v1793 = vand.u32 %v1792, 4294901760
    %1794 = vmatprep.subr.mxu0 %v1793
    %v1795 = vand.u32 %v92, 4294901760
    %v1796 = vsub.f32 %v92, %v1795
    %v1797 = vand.u32 %v1796, 4294901760
    %v1798 = vsub.f32 %v1796, %v1797
    %v1799 = vand.u32 %v1798, 4294901760
    %1800 = vmatpush1.msra.mxu0 %v1799
    %v1801 = vand.u32 %v95, 4294901760
    %v1802 = vsub.f32 %v95, %v1801
    %v1803 = vand.u32 %v1802, 4294901760
    %v1804 = vsub.f32 %v1802, %v1803
    %v1805 = vand.u32 %v1804, 4294901760
    %1806 = vmatprep.subr.mxu0 %v1805
    %v1807 = vand.u32 %v94, 4294901760
    %v1808 = vsub.f32 %v94, %v1807
    %v1809 = vand.u32 %v1808, 4294901760
    %v1810 = vsub.f32 %v1808, %v1809
    %v1811 = vand.u32 %v1810, 4294901760
    %1812 = vmatpush1.msra.mxu0 %v1811
    %v1813 = vand.u32 %v97, 4294901760
    %v1814 = vsub.f32 %v97, %v1813
    %v1815 = vand.u32 %v1814, 4294901760
    %v1816 = vsub.f32 %v1814, %v1815
    %v1817 = vand.u32 %v1816, 4294901760
    %1818 = vmatprep.subr.mxu0 %v1817
    %v1819 = vand.u32 %v96, 4294901760
    %v1820 = vsub.f32 %v96, %v1819
    %v1821 = vand.u32 %v1820, 4294901760
    %v1822 = vsub.f32 %v1820, %v1821
    %v1823 = vand.u32 %v1822, 4294901760
    %1824 = vmatpush1.msra.mxu0 %v1823
    %v1825 = vand.u32 %v99, 4294901760
    %v1826 = vsub.f32 %v99, %v1825
    %v1827 = vand.u32 %v1826, 4294901760
    %v1828 = vsub.f32 %v1826, %v1827
    %v1829 = vand.u32 %v1828, 4294901760
    %1830 = vmatprep.subr.mxu0 %v1829
    %v1831 = vand.u32 %v98, 4294901760
    %v1832 = vsub.f32 %v98, %v1831
    %v1833 = vand.u32 %v1832, 4294901760
    %v1834 = vsub.f32 %v1832, %v1833
    %v1835 = vand.u32 %v1834, 4294901760
    %1836 = vmatpush1.msra.mxu0 %v1835
    %v1837 = vand.u32 %v101, 4294901760
    %v1838 = vsub.f32 %v101, %v1837
    %v1839 = vand.u32 %v1838, 4294901760
    %v1840 = vsub.f32 %v1838, %v1839
    %v1841 = vand.u32 %v1840, 4294901760
    %1842 = vmatprep.subr.mxu0 %v1841
    %v1843 = vand.u32 %v100, 4294901760
    %v1844 = vsub.f32 %v100, %v1843
    %v1845 = vand.u32 %v1844, 4294901760
    %v1846 = vsub.f32 %v1844, %v1845
    %v1847 = vand.u32 %v1846, 4294901760
    %1848 = vmatpush1.msra.mxu0 %v1847
    %v1849 = vand.u32 %v103, 4294901760
    %v1850 = vsub.f32 %v103, %v1849
    %v1851 = vand.u32 %v1850, 4294901760
    %v1852 = vsub.f32 %v1850, %v1851
    %v1853 = vand.u32 %v1852, 4294901760
    %1854 = vmatprep.subr.mxu0 %v1853
    %v1855 = vand.u32 %v102, 4294901760
    %v1856 = vsub.f32 %v102, %v1855
    %v1857 = vand.u32 %v1856, 4294901760
    %v1858 = vsub.f32 %v1856, %v1857
    %v1859 = vand.u32 %v1858, 4294901760
    %1860 = vmatpush1.msra.mxu0 %v1859
    %v1861 = vand.u32 %v105, 4294901760
    %v1862 = vsub.f32 %v105, %v1861
    %v1863 = vand.u32 %v1862, 4294901760
    %v1864 = vsub.f32 %v1862, %v1863
    %v1865 = vand.u32 %v1864, 4294901760
    %1866 = vmatprep.subr.mxu0 %v1865
    %v1867 = vand.u32 %v104, 4294901760
    %v1868 = vsub.f32 %v104, %v1867
    %v1869 = vand.u32 %v1868, 4294901760
    %v1870 = vsub.f32 %v1868, %v1869
    %v1871 = vand.u32 %v1870, 4294901760
    %1872 = vmatpush1.msra.mxu0 %v1871
    %v1873 = vand.u32 %v107, 4294901760
    %v1874 = vsub.f32 %v107, %v1873
    %v1875 = vand.u32 %v1874, 4294901760
    %v1876 = vsub.f32 %v1874, %v1875
    %v1877 = vand.u32 %v1876, 4294901760
    %1878 = vmatprep.subr.mxu0 %v1877
    %v1879 = vand.u32 %v106, 4294901760
    %v1880 = vsub.f32 %v106, %v1879
    %v1881 = vand.u32 %v1880, 4294901760
    %v1882 = vsub.f32 %v1880, %v1881
    %v1883 = vand.u32 %v1882, 4294901760
    %1884 = vmatpush1.msra.mxu0 %v1883
    %v1885 = vand.u32 %v109, 4294901760
    %v1886 = vsub.f32 %v109, %v1885
    %v1887 = vand.u32 %v1886, 4294901760
    %v1888 = vsub.f32 %v1886, %v1887
    %v1889 = vand.u32 %v1888, 4294901760
    %1890 = vmatprep.subr.mxu0 %v1889
    %v1891 = vand.u32 %v108, 4294901760
    %v1892 = vsub.f32 %v108, %v1891
    %v1893 = vand.u32 %v1892, 4294901760
    %v1894 = vsub.f32 %v1892, %v1893
    %v1895 = vand.u32 %v1894, 4294901760
    %1896 = vmatpush1.msra.mxu0 %v1895
    %v1897 = vand.u32 %v111, 4294901760
    %v1898 = vsub.f32 %v111, %v1897
    %v1899 = vand.u32 %v1898, 4294901760
    %v1900 = vsub.f32 %v1898, %v1899
    %v1901 = vand.u32 %v1900, 4294901760
    %1902 = vmatprep.subr.mxu0 %v1901
    %v1903 = vand.u32 %v110, 4294901760
    %v1904 = vsub.f32 %v110, %v1903
    %v1905 = vand.u32 %v1904, 4294901760
    %v1906 = vsub.f32 %v1904, %v1905
    %v1907 = vand.u32 %v1906, 4294901760
    %1908 = vmatpush1.msra.mxu0 %v1907
    %v1909 = vand.u32 %v113, 4294901760
    %v1910 = vsub.f32 %v113, %v1909
    %v1911 = vand.u32 %v1910, 4294901760
    %v1912 = vsub.f32 %v1910, %v1911
    %v1913 = vand.u32 %v1912, 4294901760
    %1914 = vmatprep.subr.mxu0 %v1913
    %v1915 = vand.u32 %v112, 4294901760
    %v1916 = vsub.f32 %v112, %v1915
    %v1917 = vand.u32 %v1916, 4294901760
    %v1918 = vsub.f32 %v1916, %v1917
    %v1919 = vand.u32 %v1918, 4294901760
    %1920 = vmatpush1.msra.mxu0 %v1919
    %v1921 = vand.u32 %v115, 4294901760
    %v1922 = vsub.f32 %v115, %v1921
    %v1923 = vand.u32 %v1922, 4294901760
    %v1924 = vsub.f32 %v1922, %v1923
    %v1925 = vand.u32 %v1924, 4294901760
    %1926 = vmatprep.subr.mxu0 %v1925
    %v1927 = vand.u32 %v114, 4294901760
    %v1928 = vsub.f32 %v114, %v1927
    %v1929 = vand.u32 %v1928, 4294901760
    %v1930 = vsub.f32 %v1928, %v1929
    %v1931 = vand.u32 %v1930, 4294901760
    %1932 = vmatpush1.msra.mxu0 %v1931
    %v1933 = vand.u32 %v119, 4294901760
    %1934 = vmatprep.mubr.f32.mxu0 %v1933
    %v1935 = vand.u32 %v118, 4294901760
    %1936 = vmatmul.mubr.f32.gmra.mrb[0].mxu0 %v1935
    %v1937 = vpop.f32.mrb[0].mxu0
    %v1938 = vadd.f32 %v1545, %v1937
    %v1939 = vpop.f32.mrb[0].mxu0
    %v1940 = vadd.f32 %v1547, %v1939
    %1941 = vdwg.mxu0
    %v1942 = vand.u32 %v53, 4294901760
    %v1943 = vsub.f32 %v53, %v1942
    %1944 = vmatprep.subr.mxu0 %v1943
    %v1945 = vand.u32 %v52, 4294901760
    %v1946 = vsub.f32 %v52, %v1945
    %1947 = vmatpush1.msra.mxu0 %v1946
    %v1948 = vand.u32 %v55, 4294901760
    %v1949 = vsub.f32 %v55, %v1948
    %1950 = vmatprep.subr.mxu0 %v1949
    %v1951 = vand.u32 %v54, 4294901760
    %v1952 = vsub.f32 %v54, %v1951
    %1953 = vmatpush1.msra.mxu0 %v1952
    %v1954 = vand.u32 %v57, 4294901760
    %v1955 = vsub.f32 %v57, %v1954
    %1956 = vmatprep.subr.mxu0 %v1955
    %v1957 = vand.u32 %v56, 4294901760
    %v1958 = vsub.f32 %v56, %v1957
    %1959 = vmatpush1.msra.mxu0 %v1958
    %v1960 = vand.u32 %v59, 4294901760
    %v1961 = vsub.f32 %v59, %v1960
    %1962 = vmatprep.subr.mxu0 %v1961
    %v1963 = vand.u32 %v58, 4294901760
    %v1964 = vsub.f32 %v58, %v1963
    %1965 = vmatpush1.msra.mxu0 %v1964
    %v1966 = vand.u32 %v61, 4294901760
    %v1967 = vsub.f32 %v61, %v1966
    %1968 = vmatprep.subr.mxu0 %v1967
    %v1969 = vand.u32 %v60, 4294901760
    %v1970 = vsub.f32 %v60, %v1969
    %1971 = vmatpush1.msra.mxu0 %v1970
    %v1972 = vand.u32 %v63, 4294901760
    %v1973 = vsub.f32 %v63, %v1972
    %1974 = vmatprep.subr.mxu0 %v1973
    %v1975 = vand.u32 %v62, 4294901760
    %v1976 = vsub.f32 %v62, %v1975
    %1977 = vmatpush1.msra.mxu0 %v1976
    %v1978 = vand.u32 %v65, 4294901760
    %v1979 = vsub.f32 %v65, %v1978
    %1980 = vmatprep.subr.mxu0 %v1979
    %v1981 = vand.u32 %v64, 4294901760
    %v1982 = vsub.f32 %v64, %v1981
    %1983 = vmatpush1.msra.mxu0 %v1982
    %v1984 = vand.u32 %v67, 4294901760
    %v1985 = vsub.f32 %v67, %v1984
    %1986 = vmatprep.subr.mxu0 %v1985
    %v1987 = vand.u32 %v66, 4294901760
    %v1988 = vsub.f32 %v66, %v1987
    %1989 = vmatpush1.msra.mxu0 %v1988
    %v1990 = vand.u32 %v69, 4294901760
    %v1991 = vsub.f32 %v69, %v1990
    %1992 = vmatprep.subr.mxu0 %v1991
    %v1993 = vand.u32 %v68, 4294901760
    %v1994 = vsub.f32 %v68, %v1993
    %1995 = vmatpush1.msra.mxu0 %v1994
    %v1996 = vand.u32 %v71, 4294901760
    %v1997 = vsub.f32 %v71, %v1996
    %1998 = vmatprep.subr.mxu0 %v1997
    %v1999 = vand.u32 %v70, 4294901760
    %v2000 = vsub.f32 %v70, %v1999
    %2001 = vmatpush1.msra.mxu0 %v2000
    %v2002 = vand.u32 %v73, 4294901760
    %v2003 = vsub.f32 %v73, %v2002
    %2004 = vmatprep.subr.mxu0 %v2003
    %v2005 = vand.u32 %v72, 4294901760
    %v2006 = vsub.f32 %v72, %v2005
    %2007 = vmatpush1.msra.mxu0 %v2006
    %v2008 = vand.u32 %v75, 4294901760
    %v2009 = vsub.f32 %v75, %v2008
    %2010 = vmatprep.subr.mxu0 %v2009
    %v2011 = vand.u32 %v74, 4294901760
    %v2012 = vsub.f32 %v74, %v2011
    %2013 = vmatpush1.msra.mxu0 %v2012
    %v2014 = vand.u32 %v77, 4294901760
    %v2015 = vsub.f32 %v77, %v2014
    %2016 = vmatprep.subr.mxu0 %v2015
    %v2017 = vand.u32 %v76, 4294901760
    %v2018 = vsub.f32 %v76, %v2017
    %2019 = vmatpush1.msra.mxu0 %v2018
    %v2020 = vand.u32 %v79, 4294901760
    %v2021 = vsub.f32 %v79, %v2020
    %2022 = vmatprep.subr.mxu0 %v2021
    %v2023 = vand.u32 %v78, 4294901760
    %v2024 = vsub.f32 %v78, %v2023
    %2025 = vmatpush1.msra.mxu0 %v2024
    %v2026 = vand.u32 %v81, 4294901760
    %v2027 = vsub.f32 %v81, %v2026
    %2028 = vmatprep.subr.mxu0 %v2027
    %v2029 = vand.u32 %v80, 4294901760
    %v2030 = vsub.f32 %v80, %v2029
    %2031 = vmatpush1.msra.mxu0 %v2030
    %v2032 = vand.u32 %v83, 4294901760
    %v2033 = vsub.f32 %v83, %v2032
    %2034 = vmatprep.subr.mxu0 %v2033
    %v2035 = vand.u32 %v82, 4294901760
    %v2036 = vsub.f32 %v82, %v2035
    %2037 = vmatpush1.msra.mxu0 %v2036
    %v2038 = vand.u32 %v85, 4294901760
    %v2039 = vsub.f32 %v85, %v2038
    %2040 = vmatprep.subr.mxu0 %v2039
    %v2041 = vand.u32 %v84, 4294901760
    %v2042 = vsub.f32 %v84, %v2041
    %2043 = vmatpush1.msra.mxu0 %v2042
    %v2044 = vand.u32 %v87, 4294901760
    %v2045 = vsub.f32 %v87, %v2044
    %2046 = vmatprep.subr.mxu0 %v2045
    %v2047 = vand.u32 %v86, 4294901760
    %v2048 = vsub.f32 %v86, %v2047
    %2049 = vmatpush1.msra.mxu0 %v2048
    %v2050 = vand.u32 %v89, 4294901760
    %v2051 = vsub.f32 %v89, %v2050
    %2052 = vmatprep.subr.mxu0 %v2051
    %v2053 = vand.u32 %v88, 4294901760
    %v2054 = vsub.f32 %v88, %v2053
    %2055 = vmatpush1.msra.mxu0 %v2054
    %v2056 = vand.u32 %v91, 4294901760
    %v2057 = vsub.f32 %v91, %v2056
    %2058 = vmatprep.subr.mxu0 %v2057
    %v2059 = vand.u32 %v90, 4294901760
    %v2060 = vsub.f32 %v90, %v2059
    %2061 = vmatpush1.msra.mxu0 %v2060
    %v2062 = vand.u32 %v93, 4294901760
    %v2063 = vsub.f32 %v93, %v2062
    %2064 = vmatprep.subr.mxu0 %v2063
    %v2065 = vand.u32 %v92, 4294901760
    %v2066 = vsub.f32 %v92, %v2065
    %2067 = vmatpush1.msra.mxu0 %v2066
    %v2068 = vand.u32 %v95, 4294901760
    %v2069 = vsub.f32 %v95, %v2068
    %2070 = vmatprep.subr.mxu0 %v2069
    %v2071 = vand.u32 %v94, 4294901760
    %v2072 = vsub.f32 %v94, %v2071
    %2073 = vmatpush1.msra.mxu0 %v2072
    %v2074 = vand.u32 %v97, 4294901760
    %v2075 = vsub.f32 %v97, %v2074
    %2076 = vmatprep.subr.mxu0 %v2075
    %v2077 = vand.u32 %v96, 4294901760
    %v2078 = vsub.f32 %v96, %v2077
    %2079 = vmatpush1.msra.mxu0 %v2078
    %v2080 = vand.u32 %v99, 4294901760
    %v2081 = vsub.f32 %v99, %v2080
    %2082 = vmatprep.subr.mxu0 %v2081
    %v2083 = vand.u32 %v98, 4294901760
    %v2084 = vsub.f32 %v98, %v2083
    %2085 = vmatpush1.msra.mxu0 %v2084
    %v2086 = vand.u32 %v101, 4294901760
    %v2087 = vsub.f32 %v101, %v2086
    %2088 = vmatprep.subr.mxu0 %v2087
    %v2089 = vand.u32 %v100, 4294901760
    %v2090 = vsub.f32 %v100, %v2089
    %2091 = vmatpush1.msra.mxu0 %v2090
    %v2092 = vand.u32 %v103, 4294901760
    %v2093 = vsub.f32 %v103, %v2092
    %2094 = vmatprep.subr.mxu0 %v2093
    %v2095 = vand.u32 %v102, 4294901760
    %v2096 = vsub.f32 %v102, %v2095
    %2097 = vmatpush1.msra.mxu0 %v2096
    %v2098 = vand.u32 %v105, 4294901760
    %v2099 = vsub.f32 %v105, %v2098
    %2100 = vmatprep.subr.mxu0 %v2099
    %v2101 = vand.u32 %v104, 4294901760
    %v2102 = vsub.f32 %v104, %v2101
    %2103 = vmatpush1.msra.mxu0 %v2102
    %v2104 = vand.u32 %v107, 4294901760
    %v2105 = vsub.f32 %v107, %v2104
    %2106 = vmatprep.subr.mxu0 %v2105
    %v2107 = vand.u32 %v106, 4294901760
    %v2108 = vsub.f32 %v106, %v2107
    %2109 = vmatpush1.msra.mxu0 %v2108
    %v2110 = vand.u32 %v109, 4294901760
    %v2111 = vsub.f32 %v109, %v2110
    %2112 = vmatprep.subr.mxu0 %v2111
    %v2113 = vand.u32 %v108, 4294901760
    %v2114 = vsub.f32 %v108, %v2113
    %2115 = vmatpush1.msra.mxu0 %v2114
    %v2116 = vand.u32 %v111, 4294901760
    %v2117 = vsub.f32 %v111, %v2116
    %2118 = vmatprep.subr.mxu0 %v2117
    %v2119 = vand.u32 %v110, 4294901760
    %v2120 = vsub.f32 %v110, %v2119
    %2121 = vmatpush1.msra.mxu0 %v2120
    %v2122 = vand.u32 %v113, 4294901760
    %v2123 = vsub.f32 %v113, %v2122
    %2124 = vmatprep.subr.mxu0 %v2123
    %v2125 = vand.u32 %v112, 4294901760
    %v2126 = vsub.f32 %v112, %v2125
    %2127 = vmatpush1.msra.mxu0 %v2126
    %v2128 = vand.u32 %v115, 4294901760
    %v2129 = vsub.f32 %v115, %v2128
    %2130 = vmatprep.subr.mxu0 %v2129
    %v2131 = vand.u32 %v114, 4294901760
    %v2132 = vsub.f32 %v114, %v2131
    %2133 = vmatpush1.msra.mxu0 %v2132
    %v2134 = vand.u32 %v119, 4294901760
    %v2135 = vsub.f32 %v119, %v2134
    %2136 = vmatprep.mubr.f32.mxu0 %v2135
    %v2137 = vand.u32 %v118, 4294901760
    %v2138 = vsub.f32 %v118, %v2137
    %2139 = vmatmul.mubr.f32.gmra.mrb[0].mxu0 %v2138
    %v2140 = vpop.f32.mrb[0].mxu0
    %v2141 = vadd.f32 %v1938, %v2140
    %v2142 = vpop.f32.mrb[0].mxu0
    %v2143 = vadd.f32 %v1940, %v2142
    %2144 = vdwg.mxu0
    %v2145 = vand.u32 %v53, 4294901760
    %2146 = vmatprep.subr.mxu0 %v2145
    %v2147 = vand.u32 %v52, 4294901760
    %2148 = vmatpush1.msra.mxu0 %v2147
    %v2149 = vand.u32 %v55, 4294901760
    %2150 = vmatprep.subr.mxu0 %v2149
    %v2151 = vand.u32 %v54, 4294901760
    %2152 = vmatpush1.msra.mxu0 %v2151
    %v2153 = vand.u32 %v57, 4294901760
    %2154 = vmatprep.subr.mxu0 %v2153
    %v2155 = vand.u32 %v56, 4294901760
    %2156 = vmatpush1.msra.mxu0 %v2155
    %v2157 = vand.u32 %v59, 4294901760
    %2158 = vmatprep.subr.mxu0 %v2157
    %v2159 = vand.u32 %v58, 4294901760
    %2160 = vmatpush1.msra.mxu0 %v2159
    %v2161 = vand.u32 %v61, 4294901760
    %2162 = vmatprep.subr.mxu0 %v2161
    %v2163 = vand.u32 %v60, 4294901760
    %2164 = vmatpush1.msra.mxu0 %v2163
    %v2165 = vand.u32 %v63, 4294901760
    %2166 = vmatprep.subr.mxu0 %v2165
    %v2167 = vand.u32 %v62, 4294901760
    %2168 = vmatpush1.msra.mxu0 %v2167
    %v2169 = vand.u32 %v65, 4294901760
    %2170 = vmatprep.subr.mxu0 %v2169
    %v2171 = vand.u32 %v64, 4294901760
    %2172 = vmatpush1.msra.mxu0 %v2171
    %v2173 = vand.u32 %v67, 4294901760
    %2174 = vmatprep.subr.mxu0 %v2173
    %v2175 = vand.u32 %v66, 4294901760
    %2176 = vmatpush1.msra.mxu0 %v2175
    %v2177 = vand.u32 %v69, 4294901760
    %2178 = vmatprep.subr.mxu0 %v2177
    %v2179 = vand.u32 %v68, 4294901760
    %2180 = vmatpush1.msra.mxu0 %v2179
    %v2181 = vand.u32 %v71, 4294901760
    %2182 = vmatprep.subr.mxu0 %v2181
    %v2183 = vand.u32 %v70, 4294901760
    %2184 = vmatpush1.msra.mxu0 %v2183
    %v2185 = vand.u32 %v73, 4294901760
    %2186 = vmatprep.subr.mxu0 %v2185
    %v2187 = vand.u32 %v72, 4294901760
    %2188 = vmatpush1.msra.mxu0 %v2187
    %v2189 = vand.u32 %v75, 4294901760
    %2190 = vmatprep.subr.mxu0 %v2189
    %v2191 = vand.u32 %v74, 4294901760
    %2192 = vmatpush1.msra.mxu0 %v2191
    %v2193 = vand.u32 %v77, 4294901760
    %2194 = vmatprep.subr.mxu0 %v2193
    %v2195 = vand.u32 %v76, 4294901760
    %2196 = vmatpush1.msra.mxu0 %v2195
    %v2197 = vand.u32 %v79, 4294901760
    %2198 = vmatprep.subr.mxu0 %v2197
    %v2199 = vand.u32 %v78, 4294901760
    %2200 = vmatpush1.msra.mxu0 %v2199
    %v2201 = vand.u32 %v81, 4294901760
    %2202 = vmatprep.subr.mxu0 %v2201
    %v2203 = vand.u32 %v80, 4294901760
    %2204 = vmatpush1.msra.mxu0 %v2203
    %v2205 = vand.u32 %v83, 4294901760
    %2206 = vmatprep.subr.mxu0 %v2205
    %v2207 = vand.u32 %v82, 4294901760
    %2208 = vmatpush1.msra.mxu0 %v2207
    %v2209 = vand.u32 %v85, 4294901760
    %2210 = vmatprep.subr.mxu0 %v2209
    %v2211 = vand.u32 %v84, 4294901760
    %2212 = vmatpush1.msra.mxu0 %v2211
    %v2213 = vand.u32 %v87, 4294901760
    %2214 = vmatprep.subr.mxu0 %v2213
    %v2215 = vand.u32 %v86, 4294901760
    %2216 = vmatpush1.msra.mxu0 %v2215
    %v2217 = vand.u32 %v89, 4294901760
    %2218 = vmatprep.subr.mxu0 %v2217
    %v2219 = vand.u32 %v88, 4294901760
    %2220 = vmatpush1.msra.mxu0 %v2219
    %v2221 = vand.u32 %v91, 4294901760
    %2222 = vmatprep.subr.mxu0 %v2221
    %v2223 = vand.u32 %v90, 4294901760
    %2224 = vmatpush1.msra.mxu0 %v2223
    %v2225 = vand.u32 %v93, 4294901760
    %2226 = vmatprep.subr.mxu0 %v2225
    %v2227 = vand.u32 %v92, 4294901760
    %2228 = vmatpush1.msra.mxu0 %v2227
    %v2229 = vand.u32 %v95, 4294901760
    %2230 = vmatprep.subr.mxu0 %v2229
    %v2231 = vand.u32 %v94, 4294901760
    %2232 = vmatpush1.msra.mxu0 %v2231
    %v2233 = vand.u32 %v97, 4294901760
    %2234 = vmatprep.subr.mxu0 %v2233
    %v2235 = vand.u32 %v96, 4294901760
    %2236 = vmatpush1.msra.mxu0 %v2235
    %v2237 = vand.u32 %v99, 4294901760
    %2238 = vmatprep.subr.mxu0 %v2237
    %v2239 = vand.u32 %v98, 4294901760
    %2240 = vmatpush1.msra.mxu0 %v2239
    %v2241 = vand.u32 %v101, 4294901760
    %2242 = vmatprep.subr.mxu0 %v2241
    %v2243 = vand.u32 %v100, 4294901760
    %2244 = vmatpush1.msra.mxu0 %v2243
    %v2245 = vand.u32 %v103, 4294901760
    %2246 = vmatprep.subr.mxu0 %v2245
    %v2247 = vand.u32 %v102, 4294901760
    %2248 = vmatpush1.msra.mxu0 %v2247
    %v2249 = vand.u32 %v105, 4294901760
    %2250 = vmatprep.subr.mxu0 %v2249
    %v2251 = vand.u32 %v104, 4294901760
    %2252 = vmatpush1.msra.mxu0 %v2251
    %v2253 = vand.u32 %v107, 4294901760
    %2254 = vmatprep.subr.mxu0 %v2253
    %v2255 = vand.u32 %v106, 4294901760
    %2256 = vmatpush1.msra.mxu0 %v2255
    %v2257 = vand.u32 %v109, 4294901760
    %2258 = vmatprep.subr.mxu0 %v2257
    %v2259 = vand.u32 %v108, 4294901760
    %2260 = vmatpush1.msra.mxu0 %v2259
    %v2261 = vand.u32 %v111, 4294901760
    %2262 = vmatprep.subr.mxu0 %v2261
    %v2263 = vand.u32 %v110, 4294901760
    %2264 = vmatpush1.msra.mxu0 %v2263
    %v2265 = vand.u32 %v113, 4294901760
    %2266 = vmatprep.subr.mxu0 %v2265
    %v2267 = vand.u32 %v112, 4294901760
    %2268 = vmatpush1.msra.mxu0 %v2267
    %v2269 = vand.u32 %v115, 4294901760
    %2270 = vmatprep.subr.mxu0 %v2269
    %v2271 = vand.u32 %v114, 4294901760
    %2272 = vmatpush1.msra.mxu0 %v2271
    %v2273 = vand.u32 %v119, 4294901760
    %v2274 = vsub.f32 %v119, %v2273
    %v2275 = vand.u32 %v2274, 4294901760
    %2276 = vmatprep.mubr.f32.mxu0 %v2275
    %v2277 = vand.u32 %v118, 4294901760
    %v2278 = vsub.f32 %v118, %v2277
    %v2279 = vand.u32 %v2278, 4294901760
    %2280 = vmatmul.mubr.f32.gmra.mrb[0].mxu0 %v2279
    %v2281 = vpop.f32.mrb[0].mxu0
    %v2282 = vadd.f32 %v2141, %v2281
    %v2283 = vpop.f32.mrb[0].mxu0
    %v2284 = vadd.f32 %v2143, %v2283
    %2285 = vdwg.mxu0
    %v2286 = vand.u32 %v53, 4294901760
    %v2287 = vsub.f32 %v53, %v2286
    %v2288 = vand.u32 %v2287, 4294901760
    %2289 = vmatprep.subr.mxu0 %v2288
    %v2290 = vand.u32 %v52, 4294901760
    %v2291 = vsub.f32 %v52, %v2290
    %v2292 = vand.u32 %v2291, 4294901760
    %2293 = vmatpush1.msra.mxu0 %v2292
    %v2294 = vand.u32 %v55, 4294901760
    %v2295 = vsub.f32 %v55, %v2294
    %v2296 = vand.u32 %v2295, 4294901760
    %2297 = vmatprep.subr.mxu0 %v2296
    %v2298 = vand.u32 %v54, 4294901760
    %v2299 = vsub.f32 %v54, %v2298
    %v2300 = vand.u32 %v2299, 4294901760
    %2301 = vmatpush1.msra.mxu0 %v2300
    %v2302 = vand.u32 %v57, 4294901760
    %v2303 = vsub.f32 %v57, %v2302
    %v2304 = vand.u32 %v2303, 4294901760
    %2305 = vmatprep.subr.mxu0 %v2304
    %v2306 = vand.u32 %v56, 4294901760
    %v2307 = vsub.f32 %v56, %v2306
    %v2308 = vand.u32 %v2307, 4294901760
    %2309 = vmatpush1.msra.mxu0 %v2308
    %v2310 = vand.u32 %v59, 4294901760
    %v2311 = vsub.f32 %v59, %v2310
    %v2312 = vand.u32 %v2311, 4294901760
    %2313 = vmatprep.subr.mxu0 %v2312
    %v2314 = vand.u32 %v58, 4294901760
    %v2315 = vsub.f32 %v58, %v2314
    %v2316 = vand.u32 %v2315, 4294901760
    %2317 = vmatpush1.msra.mxu0 %v2316
    %v2318 = vand.u32 %v61, 4294901760
    %v2319 = vsub.f32 %v61, %v2318
    %v2320 = vand.u32 %v2319, 4294901760
    %2321 = vmatprep.subr.mxu0 %v2320
    %v2322 = vand.u32 %v60, 4294901760
    %v2323 = vsub.f32 %v60, %v2322
    %v2324 = vand.u32 %v2323, 4294901760
    %2325 = vmatpush1.msra.mxu0 %v2324
    %v2326 = vand.u32 %v63, 4294901760
    %v2327 = vsub.f32 %v63, %v2326
    %v2328 = vand.u32 %v2327, 4294901760
    %2329 = vmatprep.subr.mxu0 %v2328
    %v2330 = vand.u32 %v62, 4294901760
    %v2331 = vsub.f32 %v62, %v2330
    %v2332 = vand.u32 %v2331, 4294901760
    %2333 = vmatpush1.msra.mxu0 %v2332
    %v2334 = vand.u32 %v65, 4294901760
    %v2335 = vsub.f32 %v65, %v2334
    %v2336 = vand.u32 %v2335, 4294901760
    %2337 = vmatprep.subr.mxu0 %v2336
    %v2338 = vand.u32 %v64, 4294901760
    %v2339 = vsub.f32 %v64, %v2338
    %v2340 = vand.u32 %v2339, 4294901760
    %2341 = vmatpush1.msra.mxu0 %v2340
    %v2342 = vand.u32 %v67, 4294901760
    %v2343 = vsub.f32 %v67, %v2342
    %v2344 = vand.u32 %v2343, 4294901760
    %2345 = vmatprep.subr.mxu0 %v2344
    %v2346 = vand.u32 %v66, 4294901760
    %v2347 = vsub.f32 %v66, %v2346
    %v2348 = vand.u32 %v2347, 4294901760
    %2349 = vmatpush1.msra.mxu0 %v2348
    %v2350 = vand.u32 %v69, 4294901760
    %v2351 = vsub.f32 %v69, %v2350
    %v2352 = vand.u32 %v2351, 4294901760
    %2353 = vmatprep.subr.mxu0 %v2352
    %v2354 = vand.u32 %v68, 4294901760
    %v2355 = vsub.f32 %v68, %v2354
    %v2356 = vand.u32 %v2355, 4294901760
    %2357 = vmatpush1.msra.mxu0 %v2356
    %v2358 = vand.u32 %v71, 4294901760
    %v2359 = vsub.f32 %v71, %v2358
    %v2360 = vand.u32 %v2359, 4294901760
    %2361 = vmatprep.subr.mxu0 %v2360
    %v2362 = vand.u32 %v70, 4294901760
    %v2363 = vsub.f32 %v70, %v2362
    %v2364 = vand.u32 %v2363, 4294901760
    %2365 = vmatpush1.msra.mxu0 %v2364
    %v2366 = vand.u32 %v73, 4294901760
    %v2367 = vsub.f32 %v73, %v2366
    %v2368 = vand.u32 %v2367, 4294901760
    %2369 = vmatprep.subr.mxu0 %v2368
    %v2370 = vand.u32 %v72, 4294901760
    %v2371 = vsub.f32 %v72, %v2370
    %v2372 = vand.u32 %v2371, 4294901760
    %2373 = vmatpush1.msra.mxu0 %v2372
    %v2374 = vand.u32 %v75, 4294901760
    %v2375 = vsub.f32 %v75, %v2374
    %v2376 = vand.u32 %v2375, 4294901760
    %2377 = vmatprep.subr.mxu0 %v2376
    %v2378 = vand.u32 %v74, 4294901760
    %v2379 = vsub.f32 %v74, %v2378
    %v2380 = vand.u32 %v2379, 4294901760
    %2381 = vmatpush1.msra.mxu0 %v2380
    %v2382 = vand.u32 %v77, 4294901760
    %v2383 = vsub.f32 %v77, %v2382
    %v2384 = vand.u32 %v2383, 4294901760
    %2385 = vmatprep.subr.mxu0 %v2384
    %v2386 = vand.u32 %v76, 4294901760
    %v2387 = vsub.f32 %v76, %v2386
    %v2388 = vand.u32 %v2387, 4294901760
    %2389 = vmatpush1.msra.mxu0 %v2388
    %v2390 = vand.u32 %v79, 4294901760
    %v2391 = vsub.f32 %v79, %v2390
    %v2392 = vand.u32 %v2391, 4294901760
    %2393 = vmatprep.subr.mxu0 %v2392
    %v2394 = vand.u32 %v78, 4294901760
    %v2395 = vsub.f32 %v78, %v2394
    %v2396 = vand.u32 %v2395, 4294901760
    %2397 = vmatpush1.msra.mxu0 %v2396
    %v2398 = vand.u32 %v81, 4294901760
    %v2399 = vsub.f32 %v81, %v2398
    %v2400 = vand.u32 %v2399, 4294901760
    %2401 = vmatprep.subr.mxu0 %v2400
    %v2402 = vand.u32 %v80, 4294901760
    %v2403 = vsub.f32 %v80, %v2402
    %v2404 = vand.u32 %v2403, 4294901760
    %2405 = vmatpush1.msra.mxu0 %v2404
    %v2406 = vand.u32 %v83, 4294901760
    %v2407 = vsub.f32 %v83, %v2406
    %v2408 = vand.u32 %v2407, 4294901760
    %2409 = vmatprep.subr.mxu0 %v2408
    %v2410 = vand.u32 %v82, 4294901760
    %v2411 = vsub.f32 %v82, %v2410
    %v2412 = vand.u32 %v2411, 4294901760
    %2413 = vmatpush1.msra.mxu0 %v2412
    %v2414 = vand.u32 %v85, 4294901760
    %v2415 = vsub.f32 %v85, %v2414
    %v2416 = vand.u32 %v2415, 4294901760
    %2417 = vmatprep.subr.mxu0 %v2416
    %v2418 = vand.u32 %v84, 4294901760
    %v2419 = vsub.f32 %v84, %v2418
    %v2420 = vand.u32 %v2419, 4294901760
    %2421 = vmatpush1.msra.mxu0 %v2420
    %v2422 = vand.u32 %v87, 4294901760
    %v2423 = vsub.f32 %v87, %v2422
    %v2424 = vand.u32 %v2423, 4294901760
    %2425 = vmatprep.subr.mxu0 %v2424
    %v2426 = vand.u32 %v86, 4294901760
    %v2427 = vsub.f32 %v86, %v2426
    %v2428 = vand.u32 %v2427, 4294901760
    %2429 = vmatpush1.msra.mxu0 %v2428
    %v2430 = vand.u32 %v89, 4294901760
    %v2431 = vsub.f32 %v89, %v2430
    %v2432 = vand.u32 %v2431, 4294901760
    %2433 = vmatprep.subr.mxu0 %v2432
    %v2434 = vand.u32 %v88, 4294901760
    %v2435 = vsub.f32 %v88, %v2434
    %v2436 = vand.u32 %v2435, 4294901760
    %2437 = vmatpush1.msra.mxu0 %v2436
    %v2438 = vand.u32 %v91, 4294901760
    %v2439 = vsub.f32 %v91, %v2438
    %v2440 = vand.u32 %v2439, 4294901760
    %2441 = vmatprep.subr.mxu0 %v2440
    %v2442 = vand.u32 %v90, 4294901760
    %v2443 = vsub.f32 %v90, %v2442
    %v2444 = vand.u32 %v2443, 4294901760
    %2445 = vmatpush1.msra.mxu0 %v2444
    %v2446 = vand.u32 %v93, 4294901760
    %v2447 = vsub.f32 %v93, %v2446
    %v2448 = vand.u32 %v2447, 4294901760
    %2449 = vmatprep.subr.mxu0 %v2448
    %v2450 = vand.u32 %v92, 4294901760
    %v2451 = vsub.f32 %v92, %v2450
    %v2452 = vand.u32 %v2451, 4294901760
    %2453 = vmatpush1.msra.mxu0 %v2452
    %v2454 = vand.u32 %v95, 4294901760
    %v2455 = vsub.f32 %v95, %v2454
    %v2456 = vand.u32 %v2455, 4294901760
    %2457 = vmatprep.subr.mxu0 %v2456
    %v2458 = vand.u32 %v94, 4294901760
    %v2459 = vsub.f32 %v94, %v2458
    %v2460 = vand.u32 %v2459, 4294901760
    %2461 = vmatpush1.msra.mxu0 %v2460
    %v2462 = vand.u32 %v97, 4294901760
    %v2463 = vsub.f32 %v97, %v2462
    %v2464 = vand.u32 %v2463, 4294901760
    %2465 = vmatprep.subr.mxu0 %v2464
    %v2466 = vand.u32 %v96, 4294901760
    %v2467 = vsub.f32 %v96, %v2466
    %v2468 = vand.u32 %v2467, 4294901760
    %2469 = vmatpush1.msra.mxu0 %v2468
    %v2470 = vand.u32 %v99, 4294901760
    %v2471 = vsub.f32 %v99, %v2470
    %v2472 = vand.u32 %v2471, 4294901760
    %2473 = vmatprep.subr.mxu0 %v2472
    %v2474 = vand.u32 %v98, 4294901760
    %v2475 = vsub.f32 %v98, %v2474
    %v2476 = vand.u32 %v2475, 4294901760
    %2477 = vmatpush1.msra.mxu0 %v2476
    %v2478 = vand.u32 %v101, 4294901760
    %v2479 = vsub.f32 %v101, %v2478
    %v2480 = vand.u32 %v2479, 4294901760
    %2481 = vmatprep.subr.mxu0 %v2480
    %v2482 = vand.u32 %v100, 4294901760
    %v2483 = vsub.f32 %v100, %v2482
    %v2484 = vand.u32 %v2483, 4294901760
    %2485 = vmatpush1.msra.mxu0 %v2484
    %v2486 = vand.u32 %v103, 4294901760
    %v2487 = vsub.f32 %v103, %v2486
    %v2488 = vand.u32 %v2487, 4294901760
    %2489 = vmatprep.subr.mxu0 %v2488
    %v2490 = vand.u32 %v102, 4294901760
    %v2491 = vsub.f32 %v102, %v2490
    %v2492 = vand.u32 %v2491, 4294901760
    %2493 = vmatpush1.msra.mxu0 %v2492
    %v2494 = vand.u32 %v105, 4294901760
    %v2495 = vsub.f32 %v105, %v2494
    %v2496 = vand.u32 %v2495, 4294901760
    %2497 = vmatprep.subr.mxu0 %v2496
    %v2498 = vand.u32 %v104, 4294901760
    %v2499 = vsub.f32 %v104, %v2498
    %v2500 = vand.u32 %v2499, 4294901760
    %2501 = vmatpush1.msra.mxu0 %v2500
    %v2502 = vand.u32 %v107, 4294901760
    %v2503 = vsub.f32 %v107, %v2502
    %v2504 = vand.u32 %v2503, 4294901760
    %2505 = vmatprep.subr.mxu0 %v2504
    %v2506 = vand.u32 %v106, 4294901760
    %v2507 = vsub.f32 %v106, %v2506
    %v2508 = vand.u32 %v2507, 4294901760
    %2509 = vmatpush1.msra.mxu0 %v2508
    %v2510 = vand.u32 %v109, 4294901760
    %v2511 = vsub.f32 %v109, %v2510
    %v2512 = vand.u32 %v2511, 4294901760
    %2513 = vmatprep.subr.mxu0 %v2512
    %v2514 = vand.u32 %v108, 4294901760
    %v2515 = vsub.f32 %v108, %v2514
    %v2516 = vand.u32 %v2515, 4294901760
    %2517 = vmatpush1.msra.mxu0 %v2516
    %v2518 = vand.u32 %v111, 4294901760
    %v2519 = vsub.f32 %v111, %v2518
    %v2520 = vand.u32 %v2519, 4294901760
    %2521 = vmatprep.subr.mxu0 %v2520
    %v2522 = vand.u32 %v110, 4294901760
    %v2523 = vsub.f32 %v110, %v2522
    %v2524 = vand.u32 %v2523, 4294901760
    %2525 = vmatpush1.msra.mxu0 %v2524
    %v2526 = vand.u32 %v113, 4294901760
    %v2527 = vsub.f32 %v113, %v2526
    %v2528 = vand.u32 %v2527, 4294901760
    %2529 = vmatprep.subr.mxu0 %v2528
    %v2530 = vand.u32 %v112, 4294901760
    %v2531 = vsub.f32 %v112, %v2530
    %v2532 = vand.u32 %v2531, 4294901760
    %2533 = vmatpush1.msra.mxu0 %v2532
    %v2534 = vand.u32 %v115, 4294901760
    %v2535 = vsub.f32 %v115, %v2534
    %v2536 = vand.u32 %v2535, 4294901760
    %2537 = vmatprep.subr.mxu0 %v2536
    %v2538 = vand.u32 %v114, 4294901760
    %v2539 = vsub.f32 %v114, %v2538
    %v2540 = vand.u32 %v2539, 4294901760
    %2541 = vmatpush1.msra.mxu0 %v2540
    %v2542 = vand.u32 %v119, 4294901760
    %2543 = vmatprep.mubr.f32.mxu0 %v2542
    %v2544 = vand.u32 %v118, 4294901760
    %2545 = vmatmul.mubr.f32.gmra.mrb[0].mxu0 %v2544
    %v2546 = vpop.f32.mrb[0].mxu0
    %v2547 = vadd.f32 %v2282, %v2546
    %v2548 = vpop.f32.mrb[0].mxu0
    %v2549 = vadd.f32 %v2284, %v2548
    %2550 = vdwg.mxu0
    %v2551 = vand.u32 %v53, 4294901760
    %2552 = vmatprep.subr.mxu0 %v2551
    %v2553 = vand.u32 %v52, 4294901760
    %2554 = vmatpush1.msra.mxu0 %v2553
    %v2555 = vand.u32 %v55, 4294901760
    %2556 = vmatprep.subr.mxu0 %v2555
    %v2557 = vand.u32 %v54, 4294901760
    %2558 = vmatpush1.msra.mxu0 %v2557
    %v2559 = vand.u32 %v57, 4294901760
    %2560 = vmatprep.subr.mxu0 %v2559
    %v2561 = vand.u32 %v56, 4294901760
    %2562 = vmatpush1.msra.mxu0 %v2561
    %v2563 = vand.u32 %v59, 4294901760
    %2564 = vmatprep.subr.mxu0 %v2563
    %v2565 = vand.u32 %v58, 4294901760
    %2566 = vmatpush1.msra.mxu0 %v2565
    %v2567 = vand.u32 %v61, 4294901760
    %2568 = vmatprep.subr.mxu0 %v2567
    %v2569 = vand.u32 %v60, 4294901760
    %2570 = vmatpush1.msra.mxu0 %v2569
    %v2571 = vand.u32 %v63, 4294901760
    %2572 = vmatprep.subr.mxu0 %v2571
    %v2573 = vand.u32 %v62, 4294901760
    %2574 = vmatpush1.msra.mxu0 %v2573
    %v2575 = vand.u32 %v65, 4294901760
    %2576 = vmatprep.subr.mxu0 %v2575
    %v2577 = vand.u32 %v64, 4294901760
    %2578 = vmatpush1.msra.mxu0 %v2577
    %v2579 = vand.u32 %v67, 4294901760
    %2580 = vmatprep.subr.mxu0 %v2579
    %v2581 = vand.u32 %v66, 4294901760
    %2582 = vmatpush1.msra.mxu0 %v2581
    %v2583 = vand.u32 %v69, 4294901760
    %2584 = vmatprep.subr.mxu0 %v2583
    %v2585 = vand.u32 %v68, 4294901760
    %2586 = vmatpush1.msra.mxu0 %v2585
    %v2587 = vand.u32 %v71, 4294901760
    %2588 = vmatprep.subr.mxu0 %v2587
    %v2589 = vand.u32 %v70, 4294901760
    %2590 = vmatpush1.msra.mxu0 %v2589
    %v2591 = vand.u32 %v73, 4294901760
    %2592 = vmatprep.subr.mxu0 %v2591
    %v2593 = vand.u32 %v72, 4294901760
    %2594 = vmatpush1.msra.mxu0 %v2593
    %v2595 = vand.u32 %v75, 4294901760
    %2596 = vmatprep.subr.mxu0 %v2595
    %v2597 = vand.u32 %v74, 4294901760
    %2598 = vmatpush1.msra.mxu0 %v2597
    %v2599 = vand.u32 %v77, 4294901760
    %2600 = vmatprep.subr.mxu0 %v2599
    %v2601 = vand.u32 %v76, 4294901760
    %2602 = vmatpush1.msra.mxu0 %v2601
    %v2603 = vand.u32 %v79, 4294901760
    %2604 = vmatprep.subr.mxu0 %v2603
    %v2605 = vand.u32 %v78, 4294901760
    %2606 = vmatpush1.msra.mxu0 %v2605
    %v2607 = vand.u32 %v81, 4294901760
    %2608 = vmatprep.subr.mxu0 %v2607
    %v2609 = vand.u32 %v80, 4294901760
    %2610 = vmatpush1.msra.mxu0 %v2609
    %v2611 = vand.u32 %v83, 4294901760
    %2612 = vmatprep.subr.mxu0 %v2611
    %v2613 = vand.u32 %v82, 4294901760
    %2614 = vmatpush1.msra.mxu0 %v2613
    %v2615 = vand.u32 %v85, 4294901760
    %2616 = vmatprep.subr.mxu0 %v2615
    %v2617 = vand.u32 %v84, 4294901760
    %2618 = vmatpush1.msra.mxu0 %v2617
    %v2619 = vand.u32 %v87, 4294901760
    %2620 = vmatprep.subr.mxu0 %v2619
    %v2621 = vand.u32 %v86, 4294901760
    %2622 = vmatpush1.msra.mxu0 %v2621
    %v2623 = vand.u32 %v89, 4294901760
    %2624 = vmatprep.subr.mxu0 %v2623
    %v2625 = vand.u32 %v88, 4294901760
    %2626 = vmatpush1.msra.mxu0 %v2625
    %v2627 = vand.u32 %v91, 4294901760
    %2628 = vmatprep.subr.mxu0 %v2627
    %v2629 = vand.u32 %v90, 4294901760
    %2630 = vmatpush1.msra.mxu0 %v2629
    %v2631 = vand.u32 %v93, 4294901760
    %2632 = vmatprep.subr.mxu0 %v2631
    %v2633 = vand.u32 %v92, 4294901760
    %2634 = vmatpush1.msra.mxu0 %v2633
    %v2635 = vand.u32 %v95, 4294901760
    %2636 = vmatprep.subr.mxu0 %v2635
    %v2637 = vand.u32 %v94, 4294901760
    %2638 = vmatpush1.msra.mxu0 %v2637
    %v2639 = vand.u32 %v97, 4294901760
    %2640 = vmatprep.subr.mxu0 %v2639
    %v2641 = vand.u32 %v96, 4294901760
    %2642 = vmatpush1.msra.mxu0 %v2641
    %v2643 = vand.u32 %v99, 4294901760
    %2644 = vmatprep.subr.mxu0 %v2643
    %v2645 = vand.u32 %v98, 4294901760
    %2646 = vmatpush1.msra.mxu0 %v2645
    %v2647 = vand.u32 %v101, 4294901760
    %2648 = vmatprep.subr.mxu0 %v2647
    %v2649 = vand.u32 %v100, 4294901760
    %2650 = vmatpush1.msra.mxu0 %v2649
    %v2651 = vand.u32 %v103, 4294901760
    %2652 = vmatprep.subr.mxu0 %v2651
    %v2653 = vand.u32 %v102, 4294901760
    %2654 = vmatpush1.msra.mxu0 %v2653
    %v2655 = vand.u32 %v105, 4294901760
    %2656 = vmatprep.subr.mxu0 %v2655
    %v2657 = vand.u32 %v104, 4294901760
    %2658 = vmatpush1.msra.mxu0 %v2657
    %v2659 = vand.u32 %v107, 4294901760
    %2660 = vmatprep.subr.mxu0 %v2659
    %v2661 = vand.u32 %v106, 4294901760
    %2662 = vmatpush1.msra.mxu0 %v2661
    %v2663 = vand.u32 %v109, 4294901760
    %2664 = vmatprep.subr.mxu0 %v2663
    %v2665 = vand.u32 %v108, 4294901760
    %2666 = vmatpush1.msra.mxu0 %v2665
    %v2667 = vand.u32 %v111, 4294901760
    %2668 = vmatprep.subr.mxu0 %v2667
    %v2669 = vand.u32 %v110, 4294901760
    %2670 = vmatpush1.msra.mxu0 %v2669
    %v2671 = vand.u32 %v113, 4294901760
    %2672 = vmatprep.subr.mxu0 %v2671
    %v2673 = vand.u32 %v112, 4294901760
    %2674 = vmatpush1.msra.mxu0 %v2673
    %v2675 = vand.u32 %v115, 4294901760
    %2676 = vmatprep.subr.mxu0 %v2675
    %v2677 = vand.u32 %v114, 4294901760
    %2678 = vmatpush1.msra.mxu0 %v2677
    %v2679 = vand.u32 %v119, 4294901760
    %2680 = vmatprep.mubr.f32.mxu0 %v2679
    %v2681 = vand.u32 %v118, 4294901760
    %2682 = vmatmul.mubr.f32.gmra.mrb[0].mxu0 %v2681
    %v2683 = vpop.f32.mrb[0].mxu0
    %v2684 = vadd.f32 %v2547, %v2683
    %v2685 = vpop.f32.mrb[0].mxu0
    %v2686 = vadd.f32 %v2549, %v2685
    %2687 = vdwg.mxu0
    %v2688 = vmul.f32 %v1400, %v1400
    %v2689 = vmul.f32 %v1402, %v1402
    %v2690 = vmul.f32 %v2684, %v2684
    %v2691 = vmul.f32 %v2686, %v2686
    %v2692 = vmul.f32 %v1400, %v2684
    %v2693 = vmul.f32 %v1402, %v2686
    %v2694 = vmul.f32 %v116, %v118
    %v2695 = vmul.f32 %v117, %v119
    %v2696 = vand.u32 %v53, 4294901760
    %2697 = vmatprep.subr.mxu0 %v2696
    %v2698 = vand.u32 %v52, 4294901760
    %2699 = vmatpush1.msra.mxu0 %v2698
    %v2700 = vand.u32 %v55, 4294901760
    %2701 = vmatprep.subr.mxu0 %v2700
    %v2702 = vand.u32 %v54, 4294901760
    %2703 = vmatpush1.msra.mxu0 %v2702
    %v2704 = vand.u32 %v57, 4294901760
    %2705 = vmatprep.subr.mxu0 %v2704
    %v2706 = vand.u32 %v56, 4294901760
    %2707 = vmatpush1.msra.mxu0 %v2706
    %v2708 = vand.u32 %v59, 4294901760
    %2709 = vmatprep.subr.mxu0 %v2708
    %v2710 = vand.u32 %v58, 4294901760
    %2711 = vmatpush1.msra.mxu0 %v2710
    %v2712 = vand.u32 %v61, 4294901760
    %2713 = vmatprep.subr.mxu0 %v2712
    %v2714 = vand.u32 %v60, 4294901760
    %2715 = vmatpush1.msra.mxu0 %v2714
    %v2716 = vand.u32 %v63, 4294901760
    %2717 = vmatprep.subr.mxu0 %v2716
    %v2718 = vand.u32 %v62, 4294901760
    %2719 = vmatpush1.msra.mxu0 %v2718
    %v2720 = vand.u32 %v65, 4294901760
    %2721 = vmatprep.subr.mxu0 %v2720
    %v2722 = vand.u32 %v64, 4294901760
    %2723 = vmatpush1.msra.mxu0 %v2722
    %v2724 = vand.u32 %v67, 4294901760
    %2725 = vmatprep.subr.mxu0 %v2724
    %v2726 = vand.u32 %v66, 4294901760
    %2727 = vmatpush1.msra.mxu0 %v2726
    %v2728 = vand.u32 %v69, 4294901760
    %2729 = vmatprep.subr.mxu0 %v2728
    %v2730 = vand.u32 %v68, 4294901760
    %2731 = vmatpush1.msra.mxu0 %v2730
    %v2732 = vand.u32 %v71, 4294901760
    %2733 = vmatprep.subr.mxu0 %v2732
    %v2734 = vand.u32 %v70, 4294901760
    %2735 = vmatpush1.msra.mxu0 %v2734
    %v2736 = vand.u32 %v73, 4294901760
    %2737 = vmatprep.subr.mxu0 %v2736
    %v2738 = vand.u32 %v72, 4294901760
    %2739 = vmatpush1.msra.mxu0 %v2738
    %v2740 = vand.u32 %v75, 4294901760
    %2741 = vmatprep.subr.mxu0 %v2740
    %v2742 = vand.u32 %v74, 4294901760
    %2743 = vmatpush1.msra.mxu0 %v2742
    %v2744 = vand.u32 %v77, 4294901760
    %2745 = vmatprep.subr.mxu0 %v2744
    %v2746 = vand.u32 %v76, 4294901760
    %2747 = vmatpush1.msra.mxu0 %v2746
    %v2748 = vand.u32 %v79, 4294901760
    %2749 = vmatprep.subr.mxu0 %v2748
    %v2750 = vand.u32 %v78, 4294901760
    %2751 = vmatpush1.msra.mxu0 %v2750
    %v2752 = vand.u32 %v81, 4294901760
    %2753 = vmatprep.subr.mxu0 %v2752
    %v2754 = vand.u32 %v80, 4294901760
    %2755 = vmatpush1.msra.mxu0 %v2754
    %v2756 = vand.u32 %v83, 4294901760
    %2757 = vmatprep.subr.mxu0 %v2756
    %v2758 = vand.u32 %v82, 4294901760
    %2759 = vmatpush1.msra.mxu0 %v2758
    %v2760 = vand.u32 %v85, 4294901760
    %2761 = vmatprep.subr.mxu0 %v2760
    %v2762 = vand.u32 %v84, 4294901760
    %2763 = vmatpush1.msra.mxu0 %v2762
    %v2764 = vand.u32 %v87, 4294901760
    %2765 = vmatprep.subr.mxu0 %v2764
    %v2766 = vand.u32 %v86, 4294901760
    %2767 = vmatpush1.msra.mxu0 %v2766
    %v2768 = vand.u32 %v89, 4294901760
    %2769 = vmatprep.subr.mxu0 %v2768
    %v2770 = vand.u32 %v88, 4294901760
    %2771 = vmatpush1.msra.mxu0 %v2770
    %v2772 = vand.u32 %v91, 4294901760
    %2773 = vmatprep.subr.mxu0 %v2772
    %v2774 = vand.u32 %v90, 4294901760
    %2775 = vmatpush1.msra.mxu0 %v2774
    %v2776 = vand.u32 %v93, 4294901760
    %2777 = vmatprep.subr.mxu0 %v2776
    %v2778 = vand.u32 %v92, 4294901760
    %2779 = vmatpush1.msra.mxu0 %v2778
    %v2780 = vand.u32 %v95, 4294901760
    %2781 = vmatprep.subr.mxu0 %v2780
    %v2782 = vand.u32 %v94, 4294901760
    %2783 = vmatpush1.msra.mxu0 %v2782
    %v2784 = vand.u32 %v97, 4294901760
    %2785 = vmatprep.subr.mxu0 %v2784
    %v2786 = vand.u32 %v96, 4294901760
    %2787 = vmatpush1.msra.mxu0 %v2786
    %v2788 = vand.u32 %v99, 4294901760
    %2789 = vmatprep.subr.mxu0 %v2788
    %v2790 = vand.u32 %v98, 4294901760
    %2791 = vmatpush1.msra.mxu0 %v2790
    %v2792 = vand.u32 %v101, 4294901760
    %2793 = vmatprep.subr.mxu0 %v2792
    %v2794 = vand.u32 %v100, 4294901760
    %2795 = vmatpush1.msra.mxu0 %v2794
    %v2796 = vand.u32 %v103, 4294901760
    %2797 = vmatprep.subr.mxu0 %v2796
    %v2798 = vand.u32 %v102, 4294901760
    %2799 = vmatpush1.msra.mxu0 %v2798
    %v2800 = vand.u32 %v105, 4294901760
    %2801 = vmatprep.subr.mxu0 %v2800
    %v2802 = vand.u32 %v104, 4294901760
    %2803 = vmatpush1.msra.mxu0 %v2802
    %v2804 = vand.u32 %v107, 4294901760
    %2805 = vmatprep.subr.mxu0 %v2804
    %v2806 = vand.u32 %v106, 4294901760
    %2807 = vmatpush1.msra.mxu0 %v2806
    %v2808 = vand.u32 %v109, 4294901760
    %2809 = vmatprep.subr.mxu0 %v2808
    %v2810 = vand.u32 %v108, 4294901760
    %2811 = vmatpush1.msra.mxu0 %v2810
    %v2812 = vand.u32 %v111, 4294901760
    %2813 = vmatprep.subr.mxu0 %v2812
    %v2814 = vand.u32 %v110, 4294901760
    %2815 = vmatpush1.msra.mxu0 %v2814
    %v2816 = vand.u32 %v113, 4294901760
    %2817 = vmatprep.subr.mxu0 %v2816
    %v2818 = vand.u32 %v112, 4294901760
    %2819 = vmatpush1.msra.mxu0 %v2818
    %v2820 = vand.u32 %v115, 4294901760
    %2821 = vmatprep.subr.mxu0 %v2820
    %v2822 = vand.u32 %v114, 4294901760
    %2823 = vmatpush1.msra.mxu0 %v2822
    %v2824 = vand.u32 %v2695, 4294901760
    %v2825 = vsub.f32 %v2695, %v2824
    %v2826 = vand.u32 %v2825, 4294901760
    %v2827 = vsub.f32 %v2825, %v2826
    %v2828 = vand.u32 %v2827, 4294901760
    %2829 = vmatprep.mubr.f32.mxu0 %v2828
    %v2830 = vand.u32 %v2694, 4294901760
    %v2831 = vsub.f32 %v2694, %v2830
    %v2832 = vand.u32 %v2831, 4294901760
    %v2833 = vsub.f32 %v2831, %v2832
    %v2834 = vand.u32 %v2833, 4294901760
    %2835 = vmatmul.mubr.f32.gmra.mrb[0].mxu0 %v2834
    %v2836 = vpop.f32.mrb[0].mxu0
    %v2837 = vadd.f32 0.0, %v2836
    %v2838 = vpop.f32.mrb[0].mxu0
    %v2839 = vadd.f32 0.0, %v2838
    %2840 = vdwg.mxu0
    %v2841 = vand.u32 %v53, 4294901760
    %v2842 = vsub.f32 %v53, %v2841
    %v2843 = vand.u32 %v2842, 4294901760
    %v2844 = vsub.f32 %v2842, %v2843
    %v2845 = vand.u32 %v2844, 4294901760
    %2846 = vmatprep.subr.mxu0 %v2845
    %v2847 = vand.u32 %v52, 4294901760
    %v2848 = vsub.f32 %v52, %v2847
    %v2849 = vand.u32 %v2848, 4294901760
    %v2850 = vsub.f32 %v2848, %v2849
    %v2851 = vand.u32 %v2850, 4294901760
    %2852 = vmatpush1.msra.mxu0 %v2851
    %v2853 = vand.u32 %v55, 4294901760
    %v2854 = vsub.f32 %v55, %v2853
    %v2855 = vand.u32 %v2854, 4294901760
    %v2856 = vsub.f32 %v2854, %v2855
    %v2857 = vand.u32 %v2856, 4294901760
    %2858 = vmatprep.subr.mxu0 %v2857
    %v2859 = vand.u32 %v54, 4294901760
    %v2860 = vsub.f32 %v54, %v2859
    %v2861 = vand.u32 %v2860, 4294901760
    %v2862 = vsub.f32 %v2860, %v2861
    %v2863 = vand.u32 %v2862, 4294901760
    %2864 = vmatpush1.msra.mxu0 %v2863
    %v2865 = vand.u32 %v57, 4294901760
    %v2866 = vsub.f32 %v57, %v2865
    %v2867 = vand.u32 %v2866, 4294901760
    %v2868 = vsub.f32 %v2866, %v2867
    %v2869 = vand.u32 %v2868, 4294901760
    %2870 = vmatprep.subr.mxu0 %v2869
    %v2871 = vand.u32 %v56, 4294901760
    %v2872 = vsub.f32 %v56, %v2871
    %v2873 = vand.u32 %v2872, 4294901760
    %v2874 = vsub.f32 %v2872, %v2873
    %v2875 = vand.u32 %v2874, 4294901760
    %2876 = vmatpush1.msra.mxu0 %v2875
    %v2877 = vand.u32 %v59, 4294901760
    %v2878 = vsub.f32 %v59, %v2877
    %v2879 = vand.u32 %v2878, 4294901760
    %v2880 = vsub.f32 %v2878, %v2879
    %v2881 = vand.u32 %v2880, 4294901760
    %2882 = vmatprep.subr.mxu0 %v2881
    %v2883 = vand.u32 %v58, 4294901760
    %v2884 = vsub.f32 %v58, %v2883
    %v2885 = vand.u32 %v2884, 4294901760
    %v2886 = vsub.f32 %v2884, %v2885
    %v2887 = vand.u32 %v2886, 4294901760
    %2888 = vmatpush1.msra.mxu0 %v2887
    %v2889 = vand.u32 %v61, 4294901760
    %v2890 = vsub.f32 %v61, %v2889
    %v2891 = vand.u32 %v2890, 4294901760
    %v2892 = vsub.f32 %v2890, %v2891
    %v2893 = vand.u32 %v2892, 4294901760
    %2894 = vmatprep.subr.mxu0 %v2893
    %v2895 = vand.u32 %v60, 4294901760
    %v2896 = vsub.f32 %v60, %v2895
    %v2897 = vand.u32 %v2896, 4294901760
    %v2898 = vsub.f32 %v2896, %v2897
    %v2899 = vand.u32 %v2898, 4294901760
    %2900 = vmatpush1.msra.mxu0 %v2899
    %v2901 = vand.u32 %v63, 4294901760
    %v2902 = vsub.f32 %v63, %v2901
    %v2903 = vand.u32 %v2902, 4294901760
    %v2904 = vsub.f32 %v2902, %v2903
    %v2905 = vand.u32 %v2904, 4294901760
    %2906 = vmatprep.subr.mxu0 %v2905
    %v2907 = vand.u32 %v62, 4294901760
    %v2908 = vsub.f32 %v62, %v2907
    %v2909 = vand.u32 %v2908, 4294901760
    %v2910 = vsub.f32 %v2908, %v2909
    %v2911 = vand.u32 %v2910, 4294901760
    %2912 = vmatpush1.msra.mxu0 %v2911
    %v2913 = vand.u32 %v65, 4294901760
    %v2914 = vsub.f32 %v65, %v2913
    %v2915 = vand.u32 %v2914, 4294901760
    %v2916 = vsub.f32 %v2914, %v2915
    %v2917 = vand.u32 %v2916, 4294901760
    %2918 = vmatprep.subr.mxu0 %v2917
    %v2919 = vand.u32 %v64, 4294901760
    %v2920 = vsub.f32 %v64, %v2919
    %v2921 = vand.u32 %v2920, 4294901760
    %v2922 = vsub.f32 %v2920, %v2921
    %v2923 = vand.u32 %v2922, 4294901760
    %2924 = vmatpush1.msra.mxu0 %v2923
    %v2925 = vand.u32 %v67, 4294901760
    %v2926 = vsub.f32 %v67, %v2925
    %v2927 = vand.u32 %v2926, 4294901760
    %v2928 = vsub.f32 %v2926, %v2927
    %v2929 = vand.u32 %v2928, 4294901760
    %2930 = vmatprep.subr.mxu0 %v2929
    %v2931 = vand.u32 %v66, 4294901760
    %v2932 = vsub.f32 %v66, %v2931
    %v2933 = vand.u32 %v2932, 4294901760
    %v2934 = vsub.f32 %v2932, %v2933
    %v2935 = vand.u32 %v2934, 4294901760
    %2936 = vmatpush1.msra.mxu0 %v2935
    %v2937 = vand.u32 %v69, 4294901760
    %v2938 = vsub.f32 %v69, %v2937
    %v2939 = vand.u32 %v2938, 4294901760
    %v2940 = vsub.f32 %v2938, %v2939
    %v2941 = vand.u32 %v2940, 4294901760
    %2942 = vmatprep.subr.mxu0 %v2941
    %v2943 = vand.u32 %v68, 4294901760
    %v2944 = vsub.f32 %v68, %v2943
    %v2945 = vand.u32 %v2944, 4294901760
    %v2946 = vsub.f32 %v2944, %v2945
    %v2947 = vand.u32 %v2946, 4294901760
    %2948 = vmatpush1.msra.mxu0 %v2947
    %v2949 = vand.u32 %v71, 4294901760
    %v2950 = vsub.f32 %v71, %v2949
    %v2951 = vand.u32 %v2950, 4294901760
    %v2952 = vsub.f32 %v2950, %v2951
    %v2953 = vand.u32 %v2952, 4294901760
    %2954 = vmatprep.subr.mxu0 %v2953
    %v2955 = vand.u32 %v70, 4294901760
    %v2956 = vsub.f32 %v70, %v2955
    %v2957 = vand.u32 %v2956, 4294901760
    %v2958 = vsub.f32 %v2956, %v2957
    %v2959 = vand.u32 %v2958, 4294901760
    %2960 = vmatpush1.msra.mxu0 %v2959
    %v2961 = vand.u32 %v73, 4294901760
    %v2962 = vsub.f32 %v73, %v2961
    %v2963 = vand.u32 %v2962, 4294901760
    %v2964 = vsub.f32 %v2962, %v2963
    %v2965 = vand.u32 %v2964, 4294901760
    %2966 = vmatprep.subr.mxu0 %v2965
    %v2967 = vand.u32 %v72, 4294901760
    %v2968 = vsub.f32 %v72, %v2967
    %v2969 = vand.u32 %v2968, 4294901760
    %v2970 = vsub.f32 %v2968, %v2969
    %v2971 = vand.u32 %v2970, 4294901760
    %2972 = vmatpush1.msra.mxu0 %v2971
    %v2973 = vand.u32 %v75, 4294901760
    %v2974 = vsub.f32 %v75, %v2973
    %v2975 = vand.u32 %v2974, 4294901760
    %v2976 = vsub.f32 %v2974, %v2975
    %v2977 = vand.u32 %v2976, 4294901760
    %2978 = vmatprep.subr.mxu0 %v2977
    %v2979 = vand.u32 %v74, 4294901760
    %v2980 = vsub.f32 %v74, %v2979
    %v2981 = vand.u32 %v2980, 4294901760
    %v2982 = vsub.f32 %v2980, %v2981
    %v2983 = vand.u32 %v2982, 4294901760
    %2984 = vmatpush1.msra.mxu0 %v2983
    %v2985 = vand.u32 %v77, 4294901760
    %v2986 = vsub.f32 %v77, %v2985
    %v2987 = vand.u32 %v2986, 4294901760
    %v2988 = vsub.f32 %v2986, %v2987
    %v2989 = vand.u32 %v2988, 4294901760
    %2990 = vmatprep.subr.mxu0 %v2989
    %v2991 = vand.u32 %v76, 4294901760
    %v2992 = vsub.f32 %v76, %v2991
    %v2993 = vand.u32 %v2992, 4294901760
    %v2994 = vsub.f32 %v2992, %v2993
    %v2995 = vand.u32 %v2994, 4294901760
    %2996 = vmatpush1.msra.mxu0 %v2995
    %v2997 = vand.u32 %v79, 4294901760
    %v2998 = vsub.f32 %v79, %v2997
    %v2999 = vand.u32 %v2998, 4294901760
    %v3000 = vsub.f32 %v2998, %v2999
    %v3001 = vand.u32 %v3000, 4294901760
    %3002 = vmatprep.subr.mxu0 %v3001
    %v3003 = vand.u32 %v78, 4294901760
    %v3004 = vsub.f32 %v78, %v3003
    %v3005 = vand.u32 %v3004, 4294901760
    %v3006 = vsub.f32 %v3004, %v3005
    %v3007 = vand.u32 %v3006, 4294901760
    %3008 = vmatpush1.msra.mxu0 %v3007
    %v3009 = vand.u32 %v81, 4294901760
    %v3010 = vsub.f32 %v81, %v3009
    %v3011 = vand.u32 %v3010, 4294901760
    %v3012 = vsub.f32 %v3010, %v3011
    %v3013 = vand.u32 %v3012, 4294901760
    %3014 = vmatprep.subr.mxu0 %v3013
    %v3015 = vand.u32 %v80, 4294901760
    %v3016 = vsub.f32 %v80, %v3015
    %v3017 = vand.u32 %v3016, 4294901760
    %v3018 = vsub.f32 %v3016, %v3017
    %v3019 = vand.u32 %v3018, 4294901760
    %3020 = vmatpush1.msra.mxu0 %v3019
    %v3021 = vand.u32 %v83, 4294901760
    %v3022 = vsub.f32 %v83, %v3021
    %v3023 = vand.u32 %v3022, 4294901760
    %v3024 = vsub.f32 %v3022, %v3023
    %v3025 = vand.u32 %v3024, 4294901760
    %3026 = vmatprep.subr.mxu0 %v3025
    %v3027 = vand.u32 %v82, 4294901760
    %v3028 = vsub.f32 %v82, %v3027
    %v3029 = vand.u32 %v3028, 4294901760
    %v3030 = vsub.f32 %v3028, %v3029
    %v3031 = vand.u32 %v3030, 4294901760
    %3032 = vmatpush1.msra.mxu0 %v3031
    %v3033 = vand.u32 %v85, 4294901760
    %v3034 = vsub.f32 %v85, %v3033
    %v3035 = vand.u32 %v3034, 4294901760
    %v3036 = vsub.f32 %v3034, %v3035
    %v3037 = vand.u32 %v3036, 4294901760
    %3038 = vmatprep.subr.mxu0 %v3037
    %v3039 = vand.u32 %v84, 4294901760
    %v3040 = vsub.f32 %v84, %v3039
    %v3041 = vand.u32 %v3040, 4294901760
    %v3042 = vsub.f32 %v3040, %v3041
    %v3043 = vand.u32 %v3042, 4294901760
    %3044 = vmatpush1.msra.mxu0 %v3043
    %v3045 = vand.u32 %v87, 4294901760
    %v3046 = vsub.f32 %v87, %v3045
    %v3047 = vand.u32 %v3046, 4294901760
    %v3048 = vsub.f32 %v3046, %v3047
    %v3049 = vand.u32 %v3048, 4294901760
    %3050 = vmatprep.subr.mxu0 %v3049
    %v3051 = vand.u32 %v86, 4294901760
    %v3052 = vsub.f32 %v86, %v3051
    %v3053 = vand.u32 %v3052, 4294901760
    %v3054 = vsub.f32 %v3052, %v3053
    %v3055 = vand.u32 %v3054, 4294901760
    %3056 = vmatpush1.msra.mxu0 %v3055
    %v3057 = vand.u32 %v89, 4294901760
    %v3058 = vsub.f32 %v89, %v3057
    %v3059 = vand.u32 %v3058, 4294901760
    %v3060 = vsub.f32 %v3058, %v3059
    %v3061 = vand.u32 %v3060, 4294901760
    %3062 = vmatprep.subr.mxu0 %v3061
    %v3063 = vand.u32 %v88, 4294901760
    %v3064 = vsub.f32 %v88, %v3063
    %v3065 = vand.u32 %v3064, 4294901760
    %v3066 = vsub.f32 %v3064, %v3065
    %v3067 = vand.u32 %v3066, 4294901760
    %3068 = vmatpush1.msra.mxu0 %v3067
    %v3069 = vand.u32 %v91, 4294901760
    %v3070 = vsub.f32 %v91, %v3069
    %v3071 = vand.u32 %v3070, 4294901760
    %v3072 = vsub.f32 %v3070, %v3071
    %v3073 = vand.u32 %v3072, 4294901760
    %3074 = vmatprep.subr.mxu0 %v3073
    %v3075 = vand.u32 %v90, 4294901760
    %v3076 = vsub.f32 %v90, %v3075
    %v3077 = vand.u32 %v3076, 4294901760
    %v3078 = vsub.f32 %v3076, %v3077
    %v3079 = vand.u32 %v3078, 4294901760
    %3080 = vmatpush1.msra.mxu0 %v3079
    %v3081 = vand.u32 %v93, 4294901760
    %v3082 = vsub.f32 %v93, %v3081
    %v3083 = vand.u32 %v3082, 4294901760
    %v3084 = vsub.f32 %v3082, %v3083
    %v3085 = vand.u32 %v3084, 4294901760
    %3086 = vmatprep.subr.mxu0 %v3085
    %v3087 = vand.u32 %v92, 4294901760
    %v3088 = vsub.f32 %v92, %v3087
    %v3089 = vand.u32 %v3088, 4294901760
    %v3090 = vsub.f32 %v3088, %v3089
    %v3091 = vand.u32 %v3090, 4294901760
    %3092 = vmatpush1.msra.mxu0 %v3091
    %v3093 = vand.u32 %v95, 4294901760
    %v3094 = vsub.f32 %v95, %v3093
    %v3095 = vand.u32 %v3094, 4294901760
    %v3096 = vsub.f32 %v3094, %v3095
    %v3097 = vand.u32 %v3096, 4294901760
    %3098 = vmatprep.subr.mxu0 %v3097
    %v3099 = vand.u32 %v94, 4294901760
    %v3100 = vsub.f32 %v94, %v3099
    %v3101 = vand.u32 %v3100, 4294901760
    %v3102 = vsub.f32 %v3100, %v3101
    %v3103 = vand.u32 %v3102, 4294901760
    %3104 = vmatpush1.msra.mxu0 %v3103
    %v3105 = vand.u32 %v97, 4294901760
    %v3106 = vsub.f32 %v97, %v3105
    %v3107 = vand.u32 %v3106, 4294901760
    %v3108 = vsub.f32 %v3106, %v3107
    %v3109 = vand.u32 %v3108, 4294901760
    %3110 = vmatprep.subr.mxu0 %v3109
    %v3111 = vand.u32 %v96, 4294901760
    %v3112 = vsub.f32 %v96, %v3111
    %v3113 = vand.u32 %v3112, 4294901760
    %v3114 = vsub.f32 %v3112, %v3113
    %v3115 = vand.u32 %v3114, 4294901760
    %3116 = vmatpush1.msra.mxu0 %v3115
    %v3117 = vand.u32 %v99, 4294901760
    %v3118 = vsub.f32 %v99, %v3117
    %v3119 = vand.u32 %v3118, 4294901760
    %v3120 = vsub.f32 %v3118, %v3119
    %v3121 = vand.u32 %v3120, 4294901760
    %3122 = vmatprep.subr.mxu0 %v3121
    %v3123 = vand.u32 %v98, 4294901760
    %v3124 = vsub.f32 %v98, %v3123
    %v3125 = vand.u32 %v3124, 4294901760
    %v3126 = vsub.f32 %v3124, %v3125
    %v3127 = vand.u32 %v3126, 4294901760
    %3128 = vmatpush1.msra.mxu0 %v3127
    %v3129 = vand.u32 %v101, 4294901760
    %v3130 = vsub.f32 %v101, %v3129
    %v3131 = vand.u32 %v3130, 4294901760
    %v3132 = vsub.f32 %v3130, %v3131
    %v3133 = vand.u32 %v3132, 4294901760
    %3134 = vmatprep.subr.mxu0 %v3133
    %v3135 = vand.u32 %v100, 4294901760
    %v3136 = vsub.f32 %v100, %v3135
    %v3137 = vand.u32 %v3136, 4294901760
    %v3138 = vsub.f32 %v3136, %v3137
    %v3139 = vand.u32 %v3138, 4294901760
    %3140 = vmatpush1.msra.mxu0 %v3139
    %v3141 = vand.u32 %v103, 4294901760
    %v3142 = vsub.f32 %v103, %v3141
    %v3143 = vand.u32 %v3142, 4294901760
    %v3144 = vsub.f32 %v3142, %v3143
    %v3145 = vand.u32 %v3144, 4294901760
    %3146 = vmatprep.subr.mxu0 %v3145
    %v3147 = vand.u32 %v102, 4294901760
    %v3148 = vsub.f32 %v102, %v3147
    %v3149 = vand.u32 %v3148, 4294901760
    %v3150 = vsub.f32 %v3148, %v3149
    %v3151 = vand.u32 %v3150, 4294901760
    %3152 = vmatpush1.msra.mxu0 %v3151
    %v3153 = vand.u32 %v105, 4294901760
    %v3154 = vsub.f32 %v105, %v3153
    %v3155 = vand.u32 %v3154, 4294901760
    %v3156 = vsub.f32 %v3154, %v3155
    %v3157 = vand.u32 %v3156, 4294901760
    %3158 = vmatprep.subr.mxu0 %v3157
    %v3159 = vand.u32 %v104, 4294901760
    %v3160 = vsub.f32 %v104, %v3159
    %v3161 = vand.u32 %v3160, 4294901760
    %v3162 = vsub.f32 %v3160, %v3161
    %v3163 = vand.u32 %v3162, 4294901760
    %3164 = vmatpush1.msra.mxu0 %v3163
    %v3165 = vand.u32 %v107, 4294901760
    %v3166 = vsub.f32 %v107, %v3165
    %v3167 = vand.u32 %v3166, 4294901760
    %v3168 = vsub.f32 %v3166, %v3167
    %v3169 = vand.u32 %v3168, 4294901760
    %3170 = vmatprep.subr.mxu0 %v3169
    %v3171 = vand.u32 %v106, 4294901760
    %v3172 = vsub.f32 %v106, %v3171
    %v3173 = vand.u32 %v3172, 4294901760
    %v3174 = vsub.f32 %v3172, %v3173
    %v3175 = vand.u32 %v3174, 4294901760
    %3176 = vmatpush1.msra.mxu0 %v3175
    %v3177 = vand.u32 %v109, 4294901760
    %v3178 = vsub.f32 %v109, %v3177
    %v3179 = vand.u32 %v3178, 4294901760
    %v3180 = vsub.f32 %v3178, %v3179
    %v3181 = vand.u32 %v3180, 4294901760
    %3182 = vmatprep.subr.mxu0 %v3181
    %v3183 = vand.u32 %v108, 4294901760
    %v3184 = vsub.f32 %v108, %v3183
    %v3185 = vand.u32 %v3184, 4294901760
    %v3186 = vsub.f32 %v3184, %v3185
    %v3187 = vand.u32 %v3186, 4294901760
    %3188 = vmatpush1.msra.mxu0 %v3187
    %v3189 = vand.u32 %v111, 4294901760
    %v3190 = vsub.f32 %v111, %v3189
    %v3191 = vand.u32 %v3190, 4294901760
    %v3192 = vsub.f32 %v3190, %v3191
    %v3193 = vand.u32 %v3192, 4294901760
    %3194 = vmatprep.subr.mxu0 %v3193
    %v3195 = vand.u32 %v110, 4294901760
    %v3196 = vsub.f32 %v110, %v3195
    %v3197 = vand.u32 %v3196, 4294901760
    %v3198 = vsub.f32 %v3196, %v3197
    %v3199 = vand.u32 %v3198, 4294901760
    %3200 = vmatpush1.msra.mxu0 %v3199
    %v3201 = vand.u32 %v113, 4294901760
    %v3202 = vsub.f32 %v113, %v3201
    %v3203 = vand.u32 %v3202, 4294901760
    %v3204 = vsub.f32 %v3202, %v3203
    %v3205 = vand.u32 %v3204, 4294901760
    %3206 = vmatprep.subr.mxu0 %v3205
    %v3207 = vand.u32 %v112, 4294901760
    %v3208 = vsub.f32 %v112, %v3207
    %v3209 = vand.u32 %v3208, 4294901760
    %v3210 = vsub.f32 %v3208, %v3209
    %v3211 = vand.u32 %v3210, 4294901760
    %3212 = vmatpush1.msra.mxu0 %v3211
    %v3213 = vand.u32 %v115, 4294901760
    %v3214 = vsub.f32 %v115, %v3213
    %v3215 = vand.u32 %v3214, 4294901760
    %v3216 = vsub.f32 %v3214, %v3215
    %v3217 = vand.u32 %v3216, 4294901760
    %3218 = vmatprep.subr.mxu0 %v3217
    %v3219 = vand.u32 %v114, 4294901760
    %v3220 = vsub.f32 %v114, %v3219
    %v3221 = vand.u32 %v3220, 4294901760
    %v3222 = vsub.f32 %v3220, %v3221
    %v3223 = vand.u32 %v3222, 4294901760
    %3224 = vmatpush1.msra.mxu0 %v3223
    %v3225 = vand.u32 %v2695, 4294901760
    %3226 = vmatprep.mubr.f32.mxu0 %v3225
    %v3227 = vand.u32 %v2694, 4294901760
    %3228 = vmatmul.mubr.f32.gmra.mrb[0].mxu0 %v3227
    %v3229 = vpop.f32.mrb[0].mxu0
    %v3230 = vadd.f32 %v2837, %v3229
    %v3231 = vpop.f32.mrb[0].mxu0
    %v3232 = vadd.f32 %v2839, %v3231
    %3233 = vdwg.mxu0
    %v3234 = vand.u32 %v53, 4294901760
    %v3235 = vsub.f32 %v53, %v3234
    %3236 = vmatprep.subr.mxu0 %v3235
    %v3237 = vand.u32 %v52, 4294901760
    %v3238 = vsub.f32 %v52, %v3237
    %3239 = vmatpush1.msra.mxu0 %v3238
    %v3240 = vand.u32 %v55, 4294901760
    %v3241 = vsub.f32 %v55, %v3240
    %3242 = vmatprep.subr.mxu0 %v3241
    %v3243 = vand.u32 %v54, 4294901760
    %v3244 = vsub.f32 %v54, %v3243
    %3245 = vmatpush1.msra.mxu0 %v3244
    %v3246 = vand.u32 %v57, 4294901760
    %v3247 = vsub.f32 %v57, %v3246
    %3248 = vmatprep.subr.mxu0 %v3247
    %v3249 = vand.u32 %v56, 4294901760
    %v3250 = vsub.f32 %v56, %v3249
    %3251 = vmatpush1.msra.mxu0 %v3250
    %v3252 = vand.u32 %v59, 4294901760
    %v3253 = vsub.f32 %v59, %v3252
    %3254 = vmatprep.subr.mxu0 %v3253
    %v3255 = vand.u32 %v58, 4294901760
    %v3256 = vsub.f32 %v58, %v3255
    %3257 = vmatpush1.msra.mxu0 %v3256
    %v3258 = vand.u32 %v61, 4294901760
    %v3259 = vsub.f32 %v61, %v3258
    %3260 = vmatprep.subr.mxu0 %v3259
    %v3261 = vand.u32 %v60, 4294901760
    %v3262 = vsub.f32 %v60, %v3261
    %3263 = vmatpush1.msra.mxu0 %v3262
    %v3264 = vand.u32 %v63, 4294901760
    %v3265 = vsub.f32 %v63, %v3264
    %3266 = vmatprep.subr.mxu0 %v3265
    %v3267 = vand.u32 %v62, 4294901760
    %v3268 = vsub.f32 %v62, %v3267
    %3269 = vmatpush1.msra.mxu0 %v3268
    %v3270 = vand.u32 %v65, 4294901760
    %v3271 = vsub.f32 %v65, %v3270
    %3272 = vmatprep.subr.mxu0 %v3271
    %v3273 = vand.u32 %v64, 4294901760
    %v3274 = vsub.f32 %v64, %v3273
    %3275 = vmatpush1.msra.mxu0 %v3274
    %v3276 = vand.u32 %v67, 4294901760
    %v3277 = vsub.f32 %v67, %v3276
    %3278 = vmatprep.subr.mxu0 %v3277
    %v3279 = vand.u32 %v66, 4294901760
    %v3280 = vsub.f32 %v66, %v3279
    %3281 = vmatpush1.msra.mxu0 %v3280
    %v3282 = vand.u32 %v69, 4294901760
    %v3283 = vsub.f32 %v69, %v3282
    %3284 = vmatprep.subr.mxu0 %v3283
    %v3285 = vand.u32 %v68, 4294901760
    %v3286 = vsub.f32 %v68, %v3285
    %3287 = vmatpush1.msra.mxu0 %v3286
    %v3288 = vand.u32 %v71, 4294901760
    %v3289 = vsub.f32 %v71, %v3288
    %3290 = vmatprep.subr.mxu0 %v3289
    %v3291 = vand.u32 %v70, 4294901760
    %v3292 = vsub.f32 %v70, %v3291
    %3293 = vmatpush1.msra.mxu0 %v3292
    %v3294 = vand.u32 %v73, 4294901760
    %v3295 = vsub.f32 %v73, %v3294
    %3296 = vmatprep.subr.mxu0 %v3295
    %v3297 = vand.u32 %v72, 4294901760
    %v3298 = vsub.f32 %v72, %v3297
    %3299 = vmatpush1.msra.mxu0 %v3298
    %v3300 = vand.u32 %v75, 4294901760
    %v3301 = vsub.f32 %v75, %v3300
    %3302 = vmatprep.subr.mxu0 %v3301
    %v3303 = vand.u32 %v74, 4294901760
    %v3304 = vsub.f32 %v74, %v3303
    %3305 = vmatpush1.msra.mxu0 %v3304
    %v3306 = vand.u32 %v77, 4294901760
    %v3307 = vsub.f32 %v77, %v3306
    %3308 = vmatprep.subr.mxu0 %v3307
    %v3309 = vand.u32 %v76, 4294901760
    %v3310 = vsub.f32 %v76, %v3309
    %3311 = vmatpush1.msra.mxu0 %v3310
    %v3312 = vand.u32 %v79, 4294901760
    %v3313 = vsub.f32 %v79, %v3312
    %3314 = vmatprep.subr.mxu0 %v3313
    %v3315 = vand.u32 %v78, 4294901760
    %v3316 = vsub.f32 %v78, %v3315
    %3317 = vmatpush1.msra.mxu0 %v3316
    %v3318 = vand.u32 %v81, 4294901760
    %v3319 = vsub.f32 %v81, %v3318
    %3320 = vmatprep.subr.mxu0 %v3319
    %v3321 = vand.u32 %v80, 4294901760
    %v3322 = vsub.f32 %v80, %v3321
    %3323 = vmatpush1.msra.mxu0 %v3322
    %v3324 = vand.u32 %v83, 4294901760
    %v3325 = vsub.f32 %v83, %v3324
    %3326 = vmatprep.subr.mxu0 %v3325
    %v3327 = vand.u32 %v82, 4294901760
    %v3328 = vsub.f32 %v82, %v3327
    %3329 = vmatpush1.msra.mxu0 %v3328
    %v3330 = vand.u32 %v85, 4294901760
    %v3331 = vsub.f32 %v85, %v3330
    %3332 = vmatprep.subr.mxu0 %v3331
    %v3333 = vand.u32 %v84, 4294901760
    %v3334 = vsub.f32 %v84, %v3333
    %3335 = vmatpush1.msra.mxu0 %v3334
    %v3336 = vand.u32 %v87, 4294901760
    %v3337 = vsub.f32 %v87, %v3336
    %3338 = vmatprep.subr.mxu0 %v3337
    %v3339 = vand.u32 %v86, 4294901760
    %v3340 = vsub.f32 %v86, %v3339
    %3341 = vmatpush1.msra.mxu0 %v3340
    %v3342 = vand.u32 %v89, 4294901760
    %v3343 = vsub.f32 %v89, %v3342
    %3344 = vmatprep.subr.mxu0 %v3343
    %v3345 = vand.u32 %v88, 4294901760
    %v3346 = vsub.f32 %v88, %v3345
    %3347 = vmatpush1.msra.mxu0 %v3346
    %v3348 = vand.u32 %v91, 4294901760
    %v3349 = vsub.f32 %v91, %v3348
    %3350 = vmatprep.subr.mxu0 %v3349
    %v3351 = vand.u32 %v90, 4294901760
    %v3352 = vsub.f32 %v90, %v3351
    %3353 = vmatpush1.msra.mxu0 %v3352
    %v3354 = vand.u32 %v93, 4294901760
    %v3355 = vsub.f32 %v93, %v3354
    %3356 = vmatprep.subr.mxu0 %v3355
    %v3357 = vand.u32 %v92, 4294901760
    %v3358 = vsub.f32 %v92, %v3357
    %3359 = vmatpush1.msra.mxu0 %v3358
    %v3360 = vand.u32 %v95, 4294901760
    %v3361 = vsub.f32 %v95, %v3360
    %3362 = vmatprep.subr.mxu0 %v3361
    %v3363 = vand.u32 %v94, 4294901760
    %v3364 = vsub.f32 %v94, %v3363
    %3365 = vmatpush1.msra.mxu0 %v3364
    %v3366 = vand.u32 %v97, 4294901760
    %v3367 = vsub.f32 %v97, %v3366
    %3368 = vmatprep.subr.mxu0 %v3367
    %v3369 = vand.u32 %v96, 4294901760
    %v3370 = vsub.f32 %v96, %v3369
    %3371 = vmatpush1.msra.mxu0 %v3370
    %v3372 = vand.u32 %v99, 4294901760
    %v3373 = vsub.f32 %v99, %v3372
    %3374 = vmatprep.subr.mxu0 %v3373
    %v3375 = vand.u32 %v98, 4294901760
    %v3376 = vsub.f32 %v98, %v3375
    %3377 = vmatpush1.msra.mxu0 %v3376
    %v3378 = vand.u32 %v101, 4294901760
    %v3379 = vsub.f32 %v101, %v3378
    %3380 = vmatprep.subr.mxu0 %v3379
    %v3381 = vand.u32 %v100, 4294901760
    %v3382 = vsub.f32 %v100, %v3381
    %3383 = vmatpush1.msra.mxu0 %v3382
    %v3384 = vand.u32 %v103, 4294901760
    %v3385 = vsub.f32 %v103, %v3384
    %3386 = vmatprep.subr.mxu0 %v3385
    %v3387 = vand.u32 %v102, 4294901760
    %v3388 = vsub.f32 %v102, %v3387
    %3389 = vmatpush1.msra.mxu0 %v3388
    %v3390 = vand.u32 %v105, 4294901760
    %v3391 = vsub.f32 %v105, %v3390
    %3392 = vmatprep.subr.mxu0 %v3391
    %v3393 = vand.u32 %v104, 4294901760
    %v3394 = vsub.f32 %v104, %v3393
    %3395 = vmatpush1.msra.mxu0 %v3394
    %v3396 = vand.u32 %v107, 4294901760
    %v3397 = vsub.f32 %v107, %v3396
    %3398 = vmatprep.subr.mxu0 %v3397
    %v3399 = vand.u32 %v106, 4294901760
    %v3400 = vsub.f32 %v106, %v3399
    %3401 = vmatpush1.msra.mxu0 %v3400
    %v3402 = vand.u32 %v109, 4294901760
    %v3403 = vsub.f32 %v109, %v3402
    %3404 = vmatprep.subr.mxu0 %v3403
    %v3405 = vand.u32 %v108, 4294901760
    %v3406 = vsub.f32 %v108, %v3405
    %3407 = vmatpush1.msra.mxu0 %v3406
    %v3408 = vand.u32 %v111, 4294901760
    %v3409 = vsub.f32 %v111, %v3408
    %3410 = vmatprep.subr.mxu0 %v3409
    %v3411 = vand.u32 %v110, 4294901760
    %v3412 = vsub.f32 %v110, %v3411
    %3413 = vmatpush1.msra.mxu0 %v3412
    %v3414 = vand.u32 %v113, 4294901760
    %v3415 = vsub.f32 %v113, %v3414
    %3416 = vmatprep.subr.mxu0 %v3415
    %v3417 = vand.u32 %v112, 4294901760
    %v3418 = vsub.f32 %v112, %v3417
    %3419 = vmatpush1.msra.mxu0 %v3418
    %v3420 = vand.u32 %v115, 4294901760
    %v3421 = vsub.f32 %v115, %v3420
    %3422 = vmatprep.subr.mxu0 %v3421
    %v3423 = vand.u32 %v114, 4294901760
    %v3424 = vsub.f32 %v114, %v3423
    %3425 = vmatpush1.msra.mxu0 %v3424
    %v3426 = vand.u32 %v2695, 4294901760
    %v3427 = vsub.f32 %v2695, %v3426
    %3428 = vmatprep.mubr.f32.mxu0 %v3427
    %v3429 = vand.u32 %v2694, 4294901760
    %v3430 = vsub.f32 %v2694, %v3429
    %3431 = vmatmul.mubr.f32.gmra.mrb[0].mxu0 %v3430
    %v3432 = vpop.f32.mrb[0].mxu0
    %v3433 = vadd.f32 %v3230, %v3432
    %v3434 = vpop.f32.mrb[0].mxu0
    %v3435 = vadd.f32 %v3232, %v3434
    %3436 = vdwg.mxu0
    %v3437 = vand.u32 %v53, 4294901760
    %3438 = vmatprep.subr.mxu0 %v3437
    %v3439 = vand.u32 %v52, 4294901760
    %3440 = vmatpush1.msra.mxu0 %v3439
    %v3441 = vand.u32 %v55, 4294901760
    %3442 = vmatprep.subr.mxu0 %v3441
    %v3443 = vand.u32 %v54, 4294901760
    %3444 = vmatpush1.msra.mxu0 %v3443
    %v3445 = vand.u32 %v57, 4294901760
    %3446 = vmatprep.subr.mxu0 %v3445
    %v3447 = vand.u32 %v56, 4294901760
    %3448 = vmatpush1.msra.mxu0 %v3447
    %v3449 = vand.u32 %v59, 4294901760
    %3450 = vmatprep.subr.mxu0 %v3449
    %v3451 = vand.u32 %v58, 4294901760
    %3452 = vmatpush1.msra.mxu0 %v3451
    %v3453 = vand.u32 %v61, 4294901760
    %3454 = vmatprep.subr.mxu0 %v3453
    %v3455 = vand.u32 %v60, 4294901760
    %3456 = vmatpush1.msra.mxu0 %v3455
    %v3457 = vand.u32 %v63, 4294901760
    %3458 = vmatprep.subr.mxu0 %v3457
    %v3459 = vand.u32 %v62, 4294901760
    %3460 = vmatpush1.msra.mxu0 %v3459
    %v3461 = vand.u32 %v65, 4294901760
    %3462 = vmatprep.subr.mxu0 %v3461
    %v3463 = vand.u32 %v64, 4294901760
    %3464 = vmatpush1.msra.mxu0 %v3463
    %v3465 = vand.u32 %v67, 4294901760
    %3466 = vmatprep.subr.mxu0 %v3465
    %v3467 = vand.u32 %v66, 4294901760
    %3468 = vmatpush1.msra.mxu0 %v3467
    %v3469 = vand.u32 %v69, 4294901760
    %3470 = vmatprep.subr.mxu0 %v3469
    %v3471 = vand.u32 %v68, 4294901760
    %3472 = vmatpush1.msra.mxu0 %v3471
    %v3473 = vand.u32 %v71, 4294901760
    %3474 = vmatprep.subr.mxu0 %v3473
    %v3475 = vand.u32 %v70, 4294901760
    %3476 = vmatpush1.msra.mxu0 %v3475
    %v3477 = vand.u32 %v73, 4294901760
    %3478 = vmatprep.subr.mxu0 %v3477
    %v3479 = vand.u32 %v72, 4294901760
    %3480 = vmatpush1.msra.mxu0 %v3479
    %v3481 = vand.u32 %v75, 4294901760
    %3482 = vmatprep.subr.mxu0 %v3481
    %v3483 = vand.u32 %v74, 4294901760
    %3484 = vmatpush1.msra.mxu0 %v3483
    %v3485 = vand.u32 %v77, 4294901760
    %3486 = vmatprep.subr.mxu0 %v3485
    %v3487 = vand.u32 %v76, 4294901760
    %3488 = vmatpush1.msra.mxu0 %v3487
    %v3489 = vand.u32 %v79, 4294901760
    %3490 = vmatprep.subr.mxu0 %v3489
    %v3491 = vand.u32 %v78, 4294901760
    %3492 = vmatpush1.msra.mxu0 %v3491
    %v3493 = vand.u32 %v81, 4294901760
    %3494 = vmatprep.subr.mxu0 %v3493
    %v3495 = vand.u32 %v80, 4294901760
    %3496 = vmatpush1.msra.mxu0 %v3495
    %v3497 = vand.u32 %v83, 4294901760
    %3498 = vmatprep.subr.mxu0 %v3497
    %v3499 = vand.u32 %v82, 4294901760
    %3500 = vmatpush1.msra.mxu0 %v3499
    %v3501 = vand.u32 %v85, 4294901760
    %3502 = vmatprep.subr.mxu0 %v3501
    %v3503 = vand.u32 %v84, 4294901760
    %3504 = vmatpush1.msra.mxu0 %v3503
    %v3505 = vand.u32 %v87, 4294901760
    %3506 = vmatprep.subr.mxu0 %v3505
    %v3507 = vand.u32 %v86, 4294901760
    %3508 = vmatpush1.msra.mxu0 %v3507
    %v3509 = vand.u32 %v89, 4294901760
    %3510 = vmatprep.subr.mxu0 %v3509
    %v3511 = vand.u32 %v88, 4294901760
    %3512 = vmatpush1.msra.mxu0 %v3511
    %v3513 = vand.u32 %v91, 4294901760
    %3514 = vmatprep.subr.mxu0 %v3513
    %v3515 = vand.u32 %v90, 4294901760
    %3516 = vmatpush1.msra.mxu0 %v3515
    %v3517 = vand.u32 %v93, 4294901760
    %3518 = vmatprep.subr.mxu0 %v3517
    %v3519 = vand.u32 %v92, 4294901760
    %3520 = vmatpush1.msra.mxu0 %v3519
    %v3521 = vand.u32 %v95, 4294901760
    %3522 = vmatprep.subr.mxu0 %v3521
    %v3523 = vand.u32 %v94, 4294901760
    %3524 = vmatpush1.msra.mxu0 %v3523
    %v3525 = vand.u32 %v97, 4294901760
    %3526 = vmatprep.subr.mxu0 %v3525
    %v3527 = vand.u32 %v96, 4294901760
    %3528 = vmatpush1.msra.mxu0 %v3527
    %v3529 = vand.u32 %v99, 4294901760
    %3530 = vmatprep.subr.mxu0 %v3529
    %v3531 = vand.u32 %v98, 4294901760
    %3532 = vmatpush1.msra.mxu0 %v3531
    %v3533 = vand.u32 %v101, 4294901760
    %3534 = vmatprep.subr.mxu0 %v3533
    %v3535 = vand.u32 %v100, 4294901760
    %3536 = vmatpush1.msra.mxu0 %v3535
    %v3537 = vand.u32 %v103, 4294901760
    %3538 = vmatprep.subr.mxu0 %v3537
    %v3539 = vand.u32 %v102, 4294901760
    %3540 = vmatpush1.msra.mxu0 %v3539
    %v3541 = vand.u32 %v105, 4294901760
    %3542 = vmatprep.subr.mxu0 %v3541
    %v3543 = vand.u32 %v104, 4294901760
    %3544 = vmatpush1.msra.mxu0 %v3543
    %v3545 = vand.u32 %v107, 4294901760
    %3546 = vmatprep.subr.mxu0 %v3545
    %v3547 = vand.u32 %v106, 4294901760
    %3548 = vmatpush1.msra.mxu0 %v3547
    %v3549 = vand.u32 %v109, 4294901760
    %3550 = vmatprep.subr.mxu0 %v3549
    %v3551 = vand.u32 %v108, 4294901760
    %3552 = vmatpush1.msra.mxu0 %v3551
    %v3553 = vand.u32 %v111, 4294901760
    %3554 = vmatprep.subr.mxu0 %v3553
    %v3555 = vand.u32 %v110, 4294901760
    %3556 = vmatpush1.msra.mxu0 %v3555
    %v3557 = vand.u32 %v113, 4294901760
    %3558 = vmatprep.subr.mxu0 %v3557
    %v3559 = vand.u32 %v112, 4294901760
    %3560 = vmatpush1.msra.mxu0 %v3559
    %v3561 = vand.u32 %v115, 4294901760
    %3562 = vmatprep.subr.mxu0 %v3561
    %v3563 = vand.u32 %v114, 4294901760
    %3564 = vmatpush1.msra.mxu0 %v3563
    %v3565 = vand.u32 %v2695, 4294901760
    %v3566 = vsub.f32 %v2695, %v3565
    %v3567 = vand.u32 %v3566, 4294901760
    %3568 = vmatprep.mubr.f32.mxu0 %v3567
    %v3569 = vand.u32 %v2694, 4294901760
    %v3570 = vsub.f32 %v2694, %v3569
    %v3571 = vand.u32 %v3570, 4294901760
    %3572 = vmatmul.mubr.f32.gmra.mrb[0].mxu0 %v3571
    %v3573 = vpop.f32.mrb[0].mxu0
    %v3574 = vadd.f32 %v3433, %v3573
    %v3575 = vpop.f32.mrb[0].mxu0
    %v3576 = vadd.f32 %v3435, %v3575
    %3577 = vdwg.mxu0
    %v3578 = vand.u32 %v53, 4294901760
    %v3579 = vsub.f32 %v53, %v3578
    %v3580 = vand.u32 %v3579, 4294901760
    %3581 = vmatprep.subr.mxu0 %v3580
    %v3582 = vand.u32 %v52, 4294901760
    %v3583 = vsub.f32 %v52, %v3582
    %v3584 = vand.u32 %v3583, 4294901760
    %3585 = vmatpush1.msra.mxu0 %v3584
    %v3586 = vand.u32 %v55, 4294901760
    %v3587 = vsub.f32 %v55, %v3586
    %v3588 = vand.u32 %v3587, 4294901760
    %3589 = vmatprep.subr.mxu0 %v3588
    %v3590 = vand.u32 %v54, 4294901760
    %v3591 = vsub.f32 %v54, %v3590
    %v3592 = vand.u32 %v3591, 4294901760
    %3593 = vmatpush1.msra.mxu0 %v3592
    %v3594 = vand.u32 %v57, 4294901760
    %v3595 = vsub.f32 %v57, %v3594
    %v3596 = vand.u32 %v3595, 4294901760
    %3597 = vmatprep.subr.mxu0 %v3596
    %v3598 = vand.u32 %v56, 4294901760
    %v3599 = vsub.f32 %v56, %v3598
    %v3600 = vand.u32 %v3599, 4294901760
    %3601 = vmatpush1.msra.mxu0 %v3600
    %v3602 = vand.u32 %v59, 4294901760
    %v3603 = vsub.f32 %v59, %v3602
    %v3604 = vand.u32 %v3603, 4294901760
    %3605 = vmatprep.subr.mxu0 %v3604
    %v3606 = vand.u32 %v58, 4294901760
    %v3607 = vsub.f32 %v58, %v3606
    %v3608 = vand.u32 %v3607, 4294901760
    %3609 = vmatpush1.msra.mxu0 %v3608
    %v3610 = vand.u32 %v61, 4294901760
    %v3611 = vsub.f32 %v61, %v3610
    %v3612 = vand.u32 %v3611, 4294901760
    %3613 = vmatprep.subr.mxu0 %v3612
    %v3614 = vand.u32 %v60, 4294901760
    %v3615 = vsub.f32 %v60, %v3614
    %v3616 = vand.u32 %v3615, 4294901760
    %3617 = vmatpush1.msra.mxu0 %v3616
    %v3618 = vand.u32 %v63, 4294901760
    %v3619 = vsub.f32 %v63, %v3618
    %v3620 = vand.u32 %v3619, 4294901760
    %3621 = vmatprep.subr.mxu0 %v3620
    %v3622 = vand.u32 %v62, 4294901760
    %v3623 = vsub.f32 %v62, %v3622
    %v3624 = vand.u32 %v3623, 4294901760
    %3625 = vmatpush1.msra.mxu0 %v3624
    %v3626 = vand.u32 %v65, 4294901760
    %v3627 = vsub.f32 %v65, %v3626
    %v3628 = vand.u32 %v3627, 4294901760
    %3629 = vmatprep.subr.mxu0 %v3628
    %v3630 = vand.u32 %v64, 4294901760
    %v3631 = vsub.f32 %v64, %v3630
    %v3632 = vand.u32 %v3631, 4294901760
    %3633 = vmatpush1.msra.mxu0 %v3632
    %v3634 = vand.u32 %v67, 4294901760
    %v3635 = vsub.f32 %v67, %v3634
    %v3636 = vand.u32 %v3635, 4294901760
    %3637 = vmatprep.subr.mxu0 %v3636
    %v3638 = vand.u32 %v66, 4294901760
    %v3639 = vsub.f32 %v66, %v3638
    %v3640 = vand.u32 %v3639, 4294901760
    %3641 = vmatpush1.msra.mxu0 %v3640
    %v3642 = vand.u32 %v69, 4294901760
    %v3643 = vsub.f32 %v69, %v3642
    %v3644 = vand.u32 %v3643, 4294901760
    %3645 = vmatprep.subr.mxu0 %v3644
    %v3646 = vand.u32 %v68, 4294901760
    %v3647 = vsub.f32 %v68, %v3646
    %v3648 = vand.u32 %v3647, 4294901760
    %3649 = vmatpush1.msra.mxu0 %v3648
    %v3650 = vand.u32 %v71, 4294901760
    %v3651 = vsub.f32 %v71, %v3650
    %v3652 = vand.u32 %v3651, 4294901760
    %3653 = vmatprep.subr.mxu0 %v3652
    %v3654 = vand.u32 %v70, 4294901760
    %v3655 = vsub.f32 %v70, %v3654
    %v3656 = vand.u32 %v3655, 4294901760
    %3657 = vmatpush1.msra.mxu0 %v3656
    %v3658 = vand.u32 %v73, 4294901760
    %v3659 = vsub.f32 %v73, %v3658
    %v3660 = vand.u32 %v3659, 4294901760
    %3661 = vmatprep.subr.mxu0 %v3660
    %v3662 = vand.u32 %v72, 4294901760
    %v3663 = vsub.f32 %v72, %v3662
    %v3664 = vand.u32 %v3663, 4294901760
    %3665 = vmatpush1.msra.mxu0 %v3664
    %v3666 = vand.u32 %v75, 4294901760
    %v3667 = vsub.f32 %v75, %v3666
    %v3668 = vand.u32 %v3667, 4294901760
    %3669 = vmatprep.subr.mxu0 %v3668
    %v3670 = vand.u32 %v74, 4294901760
    %v3671 = vsub.f32 %v74, %v3670
    %v3672 = vand.u32 %v3671, 4294901760
    %3673 = vmatpush1.msra.mxu0 %v3672
    %v3674 = vand.u32 %v77, 4294901760
    %v3675 = vsub.f32 %v77, %v3674
    %v3676 = vand.u32 %v3675, 4294901760
    %3677 = vmatprep.subr.mxu0 %v3676
    %v3678 = vand.u32 %v76, 4294901760
    %v3679 = vsub.f32 %v76, %v3678
    %v3680 = vand.u32 %v3679, 4294901760
    %3681 = vmatpush1.msra.mxu0 %v3680
    %v3682 = vand.u32 %v79, 4294901760
    %v3683 = vsub.f32 %v79, %v3682
    %v3684 = vand.u32 %v3683, 4294901760
    %3685 = vmatprep.subr.mxu0 %v3684
    %v3686 = vand.u32 %v78, 4294901760
    %v3687 = vsub.f32 %v78, %v3686
    %v3688 = vand.u32 %v3687, 4294901760
    %3689 = vmatpush1.msra.mxu0 %v3688
    %v3690 = vand.u32 %v81, 4294901760
    %v3691 = vsub.f32 %v81, %v3690
    %v3692 = vand.u32 %v3691, 4294901760
    %3693 = vmatprep.subr.mxu0 %v3692
    %v3694 = vand.u32 %v80, 4294901760
    %v3695 = vsub.f32 %v80, %v3694
    %v3696 = vand.u32 %v3695, 4294901760
    %3697 = vmatpush1.msra.mxu0 %v3696
    %v3698 = vand.u32 %v83, 4294901760
    %v3699 = vsub.f32 %v83, %v3698
    %v3700 = vand.u32 %v3699, 4294901760
    %3701 = vmatprep.subr.mxu0 %v3700
    %v3702 = vand.u32 %v82, 4294901760
    %v3703 = vsub.f32 %v82, %v3702
    %v3704 = vand.u32 %v3703, 4294901760
    %3705 = vmatpush1.msra.mxu0 %v3704
    %v3706 = vand.u32 %v85, 4294901760
    %v3707 = vsub.f32 %v85, %v3706
    %v3708 = vand.u32 %v3707, 4294901760
    %3709 = vmatprep.subr.mxu0 %v3708
    %v3710 = vand.u32 %v84, 4294901760
    %v3711 = vsub.f32 %v84, %v3710
    %v3712 = vand.u32 %v3711, 4294901760
    %3713 = vmatpush1.msra.mxu0 %v3712
    %v3714 = vand.u32 %v87, 4294901760
    %v3715 = vsub.f32 %v87, %v3714
    %v3716 = vand.u32 %v3715, 4294901760
    %3717 = vmatprep.subr.mxu0 %v3716
    %v3718 = vand.u32 %v86, 4294901760
    %v3719 = vsub.f32 %v86, %v3718
    %v3720 = vand.u32 %v3719, 4294901760
    %3721 = vmatpush1.msra.mxu0 %v3720
    %v3722 = vand.u32 %v89, 4294901760
    %v3723 = vsub.f32 %v89, %v3722
    %v3724 = vand.u32 %v3723, 4294901760
    %3725 = vmatprep.subr.mxu0 %v3724
    %v3726 = vand.u32 %v88, 4294901760
    %v3727 = vsub.f32 %v88, %v3726
    %v3728 = vand.u32 %v3727, 4294901760
    %3729 = vmatpush1.msra.mxu0 %v3728
    %v3730 = vand.u32 %v91, 4294901760
    %v3731 = vsub.f32 %v91, %v3730
    %v3732 = vand.u32 %v3731, 4294901760
    %3733 = vmatprep.subr.mxu0 %v3732
    %v3734 = vand.u32 %v90, 4294901760
    %v3735 = vsub.f32 %v90, %v3734
    %v3736 = vand.u32 %v3735, 4294901760
    %3737 = vmatpush1.msra.mxu0 %v3736
    %v3738 = vand.u32 %v93, 4294901760
    %v3739 = vsub.f32 %v93, %v3738
    %v3740 = vand.u32 %v3739, 4294901760
    %3741 = vmatprep.subr.mxu0 %v3740
    %v3742 = vand.u32 %v92, 4294901760
    %v3743 = vsub.f32 %v92, %v3742
    %v3744 = vand.u32 %v3743, 4294901760
    %3745 = vmatpush1.msra.mxu0 %v3744
    %v3746 = vand.u32 %v95, 4294901760
    %v3747 = vsub.f32 %v95, %v3746
    %v3748 = vand.u32 %v3747, 4294901760
    %3749 = vmatprep.subr.mxu0 %v3748
    %v3750 = vand.u32 %v94, 4294901760
    %v3751 = vsub.f32 %v94, %v3750
    %v3752 = vand.u32 %v3751, 4294901760
    %3753 = vmatpush1.msra.mxu0 %v3752
    %v3754 = vand.u32 %v97, 4294901760
    %v3755 = vsub.f32 %v97, %v3754
    %v3756 = vand.u32 %v3755, 4294901760
    %3757 = vmatprep.subr.mxu0 %v3756
    %v3758 = vand.u32 %v96, 4294901760
    %v3759 = vsub.f32 %v96, %v3758
    %v3760 = vand.u32 %v3759, 4294901760
    %3761 = vmatpush1.msra.mxu0 %v3760
    %v3762 = vand.u32 %v99, 4294901760
    %v3763 = vsub.f32 %v99, %v3762
    %v3764 = vand.u32 %v3763, 4294901760
    %3765 = vmatprep.subr.mxu0 %v3764
    %v3766 = vand.u32 %v98, 4294901760
    %v3767 = vsub.f32 %v98, %v3766
    %v3768 = vand.u32 %v3767, 4294901760
    %3769 = vmatpush1.msra.mxu0 %v3768
    %v3770 = vand.u32 %v101, 4294901760
    %v3771 = vsub.f32 %v101, %v3770
    %v3772 = vand.u32 %v3771, 4294901760
    %3773 = vmatprep.subr.mxu0 %v3772
    %v3774 = vand.u32 %v100, 4294901760
    %v3775 = vsub.f32 %v100, %v3774
    %v3776 = vand.u32 %v3775, 4294901760
    %3777 = vmatpush1.msra.mxu0 %v3776
    %v3778 = vand.u32 %v103, 4294901760
    %v3779 = vsub.f32 %v103, %v3778
    %v3780 = vand.u32 %v3779, 4294901760
    %3781 = vmatprep.subr.mxu0 %v3780
    %v3782 = vand.u32 %v102, 4294901760
    %v3783 = vsub.f32 %v102, %v3782
    %v3784 = vand.u32 %v3783, 4294901760
    %3785 = vmatpush1.msra.mxu0 %v3784
    %v3786 = vand.u32 %v105, 4294901760
    %v3787 = vsub.f32 %v105, %v3786
    %v3788 = vand.u32 %v3787, 4294901760
    %3789 = vmatprep.subr.mxu0 %v3788
    %v3790 = vand.u32 %v104, 4294901760
    %v3791 = vsub.f32 %v104, %v3790
    %v3792 = vand.u32 %v3791, 4294901760
    %3793 = vmatpush1.msra.mxu0 %v3792
    %v3794 = vand.u32 %v107, 4294901760
    %v3795 = vsub.f32 %v107, %v3794
    %v3796 = vand.u32 %v3795, 4294901760
    %3797 = vmatprep.subr.mxu0 %v3796
    %v3798 = vand.u32 %v106, 4294901760
    %v3799 = vsub.f32 %v106, %v3798
    %v3800 = vand.u32 %v3799, 4294901760
    %3801 = vmatpush1.msra.mxu0 %v3800
    %v3802 = vand.u32 %v109, 4294901760
    %v3803 = vsub.f32 %v109, %v3802
    %v3804 = vand.u32 %v3803, 4294901760
    %3805 = vmatprep.subr.mxu0 %v3804
    %v3806 = vand.u32 %v108, 4294901760
    %v3807 = vsub.f32 %v108, %v3806
    %v3808 = vand.u32 %v3807, 4294901760
    %3809 = vmatpush1.msra.mxu0 %v3808
    %v3810 = vand.u32 %v111, 4294901760
    %v3811 = vsub.f32 %v111, %v3810
    %v3812 = vand.u32 %v3811, 4294901760
    %3813 = vmatprep.subr.mxu0 %v3812
    %v3814 = vand.u32 %v110, 4294901760
    %v3815 = vsub.f32 %v110, %v3814
    %v3816 = vand.u32 %v3815, 4294901760
    %3817 = vmatpush1.msra.mxu0 %v3816
    %v3818 = vand.u32 %v113, 4294901760
    %v3819 = vsub.f32 %v113, %v3818
    %v3820 = vand.u32 %v3819, 4294901760
    %3821 = vmatprep.subr.mxu0 %v3820
    %v3822 = vand.u32 %v112, 4294901760
    %v3823 = vsub.f32 %v112, %v3822
    %v3824 = vand.u32 %v3823, 4294901760
    %3825 = vmatpush1.msra.mxu0 %v3824
    %v3826 = vand.u32 %v115, 4294901760
    %v3827 = vsub.f32 %v115, %v3826
    %v3828 = vand.u32 %v3827, 4294901760
    %3829 = vmatprep.subr.mxu0 %v3828
    %v3830 = vand.u32 %v114, 4294901760
    %v3831 = vsub.f32 %v114, %v3830
    %v3832 = vand.u32 %v3831, 4294901760
    %3833 = vmatpush1.msra.mxu0 %v3832
    %v3834 = vand.u32 %v2695, 4294901760
    %3835 = vmatprep.mubr.f32.mxu0 %v3834
    %v3836 = vand.u32 %v2694, 4294901760
    %3837 = vmatmul.mubr.f32.gmra.mrb[0].mxu0 %v3836
    %v3838 = vpop.f32.mrb[0].mxu0
    %v3839 = vadd.f32 %v3574, %v3838
    %v3840 = vpop.f32.mrb[0].mxu0
    %v3841 = vadd.f32 %v3576, %v3840
    %3842 = vdwg.mxu0
    %v3843 = vand.u32 %v53, 4294901760
    %3844 = vmatprep.subr.mxu0 %v3843
    %v3845 = vand.u32 %v52, 4294901760
    %3846 = vmatpush1.msra.mxu0 %v3845
    %v3847 = vand.u32 %v55, 4294901760
    %3848 = vmatprep.subr.mxu0 %v3847
    %v3849 = vand.u32 %v54, 4294901760
    %3850 = vmatpush1.msra.mxu0 %v3849
    %v3851 = vand.u32 %v57, 4294901760
    %3852 = vmatprep.subr.mxu0 %v3851
    %v3853 = vand.u32 %v56, 4294901760
    %3854 = vmatpush1.msra.mxu0 %v3853
    %v3855 = vand.u32 %v59, 4294901760
    %3856 = vmatprep.subr.mxu0 %v3855
    %v3857 = vand.u32 %v58, 4294901760
    %3858 = vmatpush1.msra.mxu0 %v3857
    %v3859 = vand.u32 %v61, 4294901760
    %3860 = vmatprep.subr.mxu0 %v3859
    %v3861 = vand.u32 %v60, 4294901760
    %3862 = vmatpush1.msra.mxu0 %v3861
    %v3863 = vand.u32 %v63, 4294901760
    %3864 = vmatprep.subr.mxu0 %v3863
    %v3865 = vand.u32 %v62, 4294901760
    %3866 = vmatpush1.msra.mxu0 %v3865
    %v3867 = vand.u32 %v65, 4294901760
    %3868 = vmatprep.subr.mxu0 %v3867
    %v3869 = vand.u32 %v64, 4294901760
    %3870 = vmatpush1.msra.mxu0 %v3869
    %v3871 = vand.u32 %v67, 4294901760
    %3872 = vmatprep.subr.mxu0 %v3871
    %v3873 = vand.u32 %v66, 4294901760
    %3874 = vmatpush1.msra.mxu0 %v3873
    %v3875 = vand.u32 %v69, 4294901760
    %3876 = vmatprep.subr.mxu0 %v3875
    %v3877 = vand.u32 %v68, 4294901760
    %3878 = vmatpush1.msra.mxu0 %v3877
    %v3879 = vand.u32 %v71, 4294901760
    %3880 = vmatprep.subr.mxu0 %v3879
    %v3881 = vand.u32 %v70, 4294901760
    %3882 = vmatpush1.msra.mxu0 %v3881
    %v3883 = vand.u32 %v73, 4294901760
    %3884 = vmatprep.subr.mxu0 %v3883
    %v3885 = vand.u32 %v72, 4294901760
    %3886 = vmatpush1.msra.mxu0 %v3885
    %v3887 = vand.u32 %v75, 4294901760
    %3888 = vmatprep.subr.mxu0 %v3887
    %v3889 = vand.u32 %v74, 4294901760
    %3890 = vmatpush1.msra.mxu0 %v3889
    %v3891 = vand.u32 %v77, 4294901760
    %3892 = vmatprep.subr.mxu0 %v3891
    %v3893 = vand.u32 %v76, 4294901760
    %3894 = vmatpush1.msra.mxu0 %v3893
    %v3895 = vand.u32 %v79, 4294901760
    %3896 = vmatprep.subr.mxu0 %v3895
    %v3897 = vand.u32 %v78, 4294901760
    %3898 = vmatpush1.msra.mxu0 %v3897
    %v3899 = vand.u32 %v81, 4294901760
    %3900 = vmatprep.subr.mxu0 %v3899
    %v3901 = vand.u32 %v80, 4294901760
    %3902 = vmatpush1.msra.mxu0 %v3901
    %v3903 = vand.u32 %v83, 4294901760
    %3904 = vmatprep.subr.mxu0 %v3903
    %v3905 = vand.u32 %v82, 4294901760
    %3906 = vmatpush1.msra.mxu0 %v3905
    %v3907 = vand.u32 %v85, 4294901760
    %3908 = vmatprep.subr.mxu0 %v3907
    %v3909 = vand.u32 %v84, 4294901760
    %3910 = vmatpush1.msra.mxu0 %v3909
    %v3911 = vand.u32 %v87, 4294901760
    %3912 = vmatprep.subr.mxu0 %v3911
    %v3913 = vand.u32 %v86, 4294901760
    %3914 = vmatpush1.msra.mxu0 %v3913
    %v3915 = vand.u32 %v89, 4294901760
    %3916 = vmatprep.subr.mxu0 %v3915
    %v3917 = vand.u32 %v88, 4294901760
    %3918 = vmatpush1.msra.mxu0 %v3917
    %v3919 = vand.u32 %v91, 4294901760
    %3920 = vmatprep.subr.mxu0 %v3919
    %v3921 = vand.u32 %v90, 4294901760
    %3922 = vmatpush1.msra.mxu0 %v3921
    %v3923 = vand.u32 %v93, 4294901760
    %3924 = vmatprep.subr.mxu0 %v3923
    %v3925 = vand.u32 %v92, 4294901760
    %3926 = vmatpush1.msra.mxu0 %v3925
    %v3927 = vand.u32 %v95, 4294901760
    %3928 = vmatprep.subr.mxu0 %v3927
    %v3929 = vand.u32 %v94, 4294901760
    %3930 = vmatpush1.msra.mxu0 %v3929
    %v3931 = vand.u32 %v97, 4294901760
    %3932 = vmatprep.subr.mxu0 %v3931
    %v3933 = vand.u32 %v96, 4294901760
    %3934 = vmatpush1.msra.mxu0 %v3933
    %v3935 = vand.u32 %v99, 4294901760
    %3936 = vmatprep.subr.mxu0 %v3935
    %v3937 = vand.u32 %v98, 4294901760
    %3938 = vmatpush1.msra.mxu0 %v3937
    %v3939 = vand.u32 %v101, 4294901760
    %3940 = vmatprep.subr.mxu0 %v3939
    %v3941 = vand.u32 %v100, 4294901760
    %3942 = vmatpush1.msra.mxu0 %v3941
    %v3943 = vand.u32 %v103, 4294901760
    %3944 = vmatprep.subr.mxu0 %v3943
    %v3945 = vand.u32 %v102, 4294901760
    %3946 = vmatpush1.msra.mxu0 %v3945
    %v3947 = vand.u32 %v105, 4294901760
    %3948 = vmatprep.subr.mxu0 %v3947
    %v3949 = vand.u32 %v104, 4294901760
    %3950 = vmatpush1.msra.mxu0 %v3949
    %v3951 = vand.u32 %v107, 4294901760
    %3952 = vmatprep.subr.mxu0 %v3951
    %v3953 = vand.u32 %v106, 4294901760
    %3954 = vmatpush1.msra.mxu0 %v3953
    %v3955 = vand.u32 %v109, 4294901760
    %3956 = vmatprep.subr.mxu0 %v3955
    %v3957 = vand.u32 %v108, 4294901760
    %3958 = vmatpush1.msra.mxu0 %v3957
    %v3959 = vand.u32 %v111, 4294901760
    %3960 = vmatprep.subr.mxu0 %v3959
    %v3961 = vand.u32 %v110, 4294901760
    %3962 = vmatpush1.msra.mxu0 %v3961
    %v3963 = vand.u32 %v113, 4294901760
    %3964 = vmatprep.subr.mxu0 %v3963
    %v3965 = vand.u32 %v112, 4294901760
    %3966 = vmatpush1.msra.mxu0 %v3965
    %v3967 = vand.u32 %v115, 4294901760
    %3968 = vmatprep.subr.mxu0 %v3967
    %v3969 = vand.u32 %v114, 4294901760
    %3970 = vmatpush1.msra.mxu0 %v3969
    %v3971 = vand.u32 %v2695, 4294901760
    %3972 = vmatprep.mubr.f32.mxu0 %v3971
    %v3973 = vand.u32 %v2694, 4294901760
    %3974 = vmatmul.mubr.f32.gmra.mrb[0].mxu0 %v3973
    %v3975 = vpop.f32.mrb[0].mxu0
    %v3976 = vadd.f32 %v3839, %v3975
    %v3977 = vpop.f32.mrb[0].mxu0
    %v3978 = vadd.f32 %v3841, %v3977
    %3979 = vdwg.mxu0
    %v3980 = vsub.f32 %v3976, %v2692
    %v3981 = vsub.f32 %v3978, %v2693
    %v3982 = vmul.f32 %v2692, 2.0
    %v3983 = vmul.f32 %v2693, 2.0
    %v3984 = vadd.f32 %v3982, 0.0001
    %v3985 = vadd.f32 %v3983, 0.0001
    %v3986 = vmul.f32 %v3980, 2.0
    %v3987 = vmul.f32 %v3981, 2.0
    %v3988 = vadd.f32 %v3986, 0.0009
    %v3989 = vadd.f32 %v3987, 0.0009
    %v3990 = vmul.f32 %v3984, %v3988
    %v3991 = vmul.f32 %v3985, %v3989
    %v3992 = vmul.f32 %v116, %v116
    %v3993 = vmul.f32 %v117, %v117
    %v3994 = vand.u32 %v53, 4294901760
    %3995 = vmatprep.subr.mxu0 %v3994
    %v3996 = vand.u32 %v52, 4294901760
    %3997 = vmatpush1.msra.mxu0 %v3996
    %v3998 = vand.u32 %v55, 4294901760
    %3999 = vmatprep.subr.mxu0 %v3998
    %v4000 = vand.u32 %v54, 4294901760
    %4001 = vmatpush1.msra.mxu0 %v4000
    %v4002 = vand.u32 %v57, 4294901760
    %4003 = vmatprep.subr.mxu0 %v4002
    %v4004 = vand.u32 %v56, 4294901760
    %4005 = vmatpush1.msra.mxu0 %v4004
    %v4006 = vand.u32 %v59, 4294901760
    %4007 = vmatprep.subr.mxu0 %v4006
    %v4008 = vand.u32 %v58, 4294901760
    %4009 = vmatpush1.msra.mxu0 %v4008
    %v4010 = vand.u32 %v61, 4294901760
    %4011 = vmatprep.subr.mxu0 %v4010
    %v4012 = vand.u32 %v60, 4294901760
    %4013 = vmatpush1.msra.mxu0 %v4012
    %v4014 = vand.u32 %v63, 4294901760
    %4015 = vmatprep.subr.mxu0 %v4014
    %v4016 = vand.u32 %v62, 4294901760
    %4017 = vmatpush1.msra.mxu0 %v4016
    %v4018 = vand.u32 %v65, 4294901760
    %4019 = vmatprep.subr.mxu0 %v4018
    %v4020 = vand.u32 %v64, 4294901760
    %4021 = vmatpush1.msra.mxu0 %v4020
    %v4022 = vand.u32 %v67, 4294901760
    %4023 = vmatprep.subr.mxu0 %v4022
    %v4024 = vand.u32 %v66, 4294901760
    %4025 = vmatpush1.msra.mxu0 %v4024
    %v4026 = vand.u32 %v69, 4294901760
    %4027 = vmatprep.subr.mxu0 %v4026
    %v4028 = vand.u32 %v68, 4294901760
    %4029 = vmatpush1.msra.mxu0 %v4028
    %v4030 = vand.u32 %v71, 4294901760
    %4031 = vmatprep.subr.mxu0 %v4030
    %v4032 = vand.u32 %v70, 4294901760
    %4033 = vmatpush1.msra.mxu0 %v4032
    %v4034 = vand.u32 %v73, 4294901760
    %4035 = vmatprep.subr.mxu0 %v4034
    %v4036 = vand.u32 %v72, 4294901760
    %4037 = vmatpush1.msra.mxu0 %v4036
    %v4038 = vand.u32 %v75, 4294901760
    %4039 = vmatprep.subr.mxu0 %v4038
    %v4040 = vand.u32 %v74, 4294901760
    %4041 = vmatpush1.msra.mxu0 %v4040
    %v4042 = vand.u32 %v77, 4294901760
    %4043 = vmatprep.subr.mxu0 %v4042
    %v4044 = vand.u32 %v76, 4294901760
    %4045 = vmatpush1.msra.mxu0 %v4044
    %v4046 = vand.u32 %v79, 4294901760
    %4047 = vmatprep.subr.mxu0 %v4046
    %v4048 = vand.u32 %v78, 4294901760
    %4049 = vmatpush1.msra.mxu0 %v4048
    %v4050 = vand.u32 %v81, 4294901760
    %4051 = vmatprep.subr.mxu0 %v4050
    %v4052 = vand.u32 %v80, 4294901760
    %4053 = vmatpush1.msra.mxu0 %v4052
    %v4054 = vand.u32 %v83, 4294901760
    %4055 = vmatprep.subr.mxu0 %v4054
    %v4056 = vand.u32 %v82, 4294901760
    %4057 = vmatpush1.msra.mxu0 %v4056
    %v4058 = vand.u32 %v85, 4294901760
    %4059 = vmatprep.subr.mxu0 %v4058
    %v4060 = vand.u32 %v84, 4294901760
    %4061 = vmatpush1.msra.mxu0 %v4060
    %v4062 = vand.u32 %v87, 4294901760
    %4063 = vmatprep.subr.mxu0 %v4062
    %v4064 = vand.u32 %v86, 4294901760
    %4065 = vmatpush1.msra.mxu0 %v4064
    %v4066 = vand.u32 %v89, 4294901760
    %4067 = vmatprep.subr.mxu0 %v4066
    %v4068 = vand.u32 %v88, 4294901760
    %4069 = vmatpush1.msra.mxu0 %v4068
    %v4070 = vand.u32 %v91, 4294901760
    %4071 = vmatprep.subr.mxu0 %v4070
    %v4072 = vand.u32 %v90, 4294901760
    %4073 = vmatpush1.msra.mxu0 %v4072
    %v4074 = vand.u32 %v93, 4294901760
    %4075 = vmatprep.subr.mxu0 %v4074
    %v4076 = vand.u32 %v92, 4294901760
    %4077 = vmatpush1.msra.mxu0 %v4076
    %v4078 = vand.u32 %v95, 4294901760
    %4079 = vmatprep.subr.mxu0 %v4078
    %v4080 = vand.u32 %v94, 4294901760
    %4081 = vmatpush1.msra.mxu0 %v4080
    %v4082 = vand.u32 %v97, 4294901760
    %4083 = vmatprep.subr.mxu0 %v4082
    %v4084 = vand.u32 %v96, 4294901760
    %4085 = vmatpush1.msra.mxu0 %v4084
    %v4086 = vand.u32 %v99, 4294901760
    %4087 = vmatprep.subr.mxu0 %v4086
    %v4088 = vand.u32 %v98, 4294901760
    %4089 = vmatpush1.msra.mxu0 %v4088
    %v4090 = vand.u32 %v101, 4294901760
    %4091 = vmatprep.subr.mxu0 %v4090
    %v4092 = vand.u32 %v100, 4294901760
    %4093 = vmatpush1.msra.mxu0 %v4092
    %v4094 = vand.u32 %v103, 4294901760
    %4095 = vmatprep.subr.mxu0 %v4094
    %v4096 = vand.u32 %v102, 4294901760
    %4097 = vmatpush1.msra.mxu0 %v4096
    %v4098 = vand.u32 %v105, 4294901760
    %4099 = vmatprep.subr.mxu0 %v4098
    %v4100 = vand.u32 %v104, 4294901760
    %4101 = vmatpush1.msra.mxu0 %v4100
    %v4102 = vand.u32 %v107, 4294901760
    %4103 = vmatprep.subr.mxu0 %v4102
    %v4104 = vand.u32 %v106, 4294901760
    %4105 = vmatpush1.msra.mxu0 %v4104
    %v4106 = vand.u32 %v109, 4294901760
    %4107 = vmatprep.subr.mxu0 %v4106
    %v4108 = vand.u32 %v108, 4294901760
    %4109 = vmatpush1.msra.mxu0 %v4108
    %v4110 = vand.u32 %v111, 4294901760
    %4111 = vmatprep.subr.mxu0 %v4110
    %v4112 = vand.u32 %v110, 4294901760
    %4113 = vmatpush1.msra.mxu0 %v4112
    %v4114 = vand.u32 %v113, 4294901760
    %4115 = vmatprep.subr.mxu0 %v4114
    %v4116 = vand.u32 %v112, 4294901760
    %4117 = vmatpush1.msra.mxu0 %v4116
    %v4118 = vand.u32 %v115, 4294901760
    %4119 = vmatprep.subr.mxu0 %v4118
    %v4120 = vand.u32 %v114, 4294901760
    %4121 = vmatpush1.msra.mxu0 %v4120
    %v4122 = vand.u32 %v3993, 4294901760
    %v4123 = vsub.f32 %v3993, %v4122
    %v4124 = vand.u32 %v4123, 4294901760
    %v4125 = vsub.f32 %v4123, %v4124
    %v4126 = vand.u32 %v4125, 4294901760
    %4127 = vmatprep.mubr.f32.mxu0 %v4126
    %v4128 = vand.u32 %v3992, 4294901760
    %v4129 = vsub.f32 %v3992, %v4128
    %v4130 = vand.u32 %v4129, 4294901760
    %v4131 = vsub.f32 %v4129, %v4130
    %v4132 = vand.u32 %v4131, 4294901760
    %4133 = vmatmul.mubr.f32.gmra.mrb[0].mxu0 %v4132
    %v4134 = vpop.f32.mrb[0].mxu0
    %v4135 = vadd.f32 0.0, %v4134
    %v4136 = vpop.f32.mrb[0].mxu0
    %v4137 = vadd.f32 0.0, %v4136
    %4138 = vdwg.mxu0
    %v4139 = vand.u32 %v53, 4294901760
    %v4140 = vsub.f32 %v53, %v4139
    %v4141 = vand.u32 %v4140, 4294901760
    %v4142 = vsub.f32 %v4140, %v4141
    %v4143 = vand.u32 %v4142, 4294901760
    %4144 = vmatprep.subr.mxu0 %v4143
    %v4145 = vand.u32 %v52, 4294901760
    %v4146 = vsub.f32 %v52, %v4145
    %v4147 = vand.u32 %v4146, 4294901760
    %v4148 = vsub.f32 %v4146, %v4147
    %v4149 = vand.u32 %v4148, 4294901760
    %4150 = vmatpush1.msra.mxu0 %v4149
    %v4151 = vand.u32 %v55, 4294901760
    %v4152 = vsub.f32 %v55, %v4151
    %v4153 = vand.u32 %v4152, 4294901760
    %v4154 = vsub.f32 %v4152, %v4153
    %v4155 = vand.u32 %v4154, 4294901760
    %4156 = vmatprep.subr.mxu0 %v4155
    %v4157 = vand.u32 %v54, 4294901760
    %v4158 = vsub.f32 %v54, %v4157
    %v4159 = vand.u32 %v4158, 4294901760
    %v4160 = vsub.f32 %v4158, %v4159
    %v4161 = vand.u32 %v4160, 4294901760
    %4162 = vmatpush1.msra.mxu0 %v4161
    %v4163 = vand.u32 %v57, 4294901760
    %v4164 = vsub.f32 %v57, %v4163
    %v4165 = vand.u32 %v4164, 4294901760
    %v4166 = vsub.f32 %v4164, %v4165
    %v4167 = vand.u32 %v4166, 4294901760
    %4168 = vmatprep.subr.mxu0 %v4167
    %v4169 = vand.u32 %v56, 4294901760
    %v4170 = vsub.f32 %v56, %v4169
    %v4171 = vand.u32 %v4170, 4294901760
    %v4172 = vsub.f32 %v4170, %v4171
    %v4173 = vand.u32 %v4172, 4294901760
    %4174 = vmatpush1.msra.mxu0 %v4173
    %v4175 = vand.u32 %v59, 4294901760
    %v4176 = vsub.f32 %v59, %v4175
    %v4177 = vand.u32 %v4176, 4294901760
    %v4178 = vsub.f32 %v4176, %v4177
    %v4179 = vand.u32 %v4178, 4294901760
    %4180 = vmatprep.subr.mxu0 %v4179
    %v4181 = vand.u32 %v58, 4294901760
    %v4182 = vsub.f32 %v58, %v4181
    %v4183 = vand.u32 %v4182, 4294901760
    %v4184 = vsub.f32 %v4182, %v4183
    %v4185 = vand.u32 %v4184, 4294901760
    %4186 = vmatpush1.msra.mxu0 %v4185
    %v4187 = vand.u32 %v61, 4294901760
    %v4188 = vsub.f32 %v61, %v4187
    %v4189 = vand.u32 %v4188, 4294901760
    %v4190 = vsub.f32 %v4188, %v4189
    %v4191 = vand.u32 %v4190, 4294901760
    %4192 = vmatprep.subr.mxu0 %v4191
    %v4193 = vand.u32 %v60, 4294901760
    %v4194 = vsub.f32 %v60, %v4193
    %v4195 = vand.u32 %v4194, 4294901760
    %v4196 = vsub.f32 %v4194, %v4195
    %v4197 = vand.u32 %v4196, 4294901760
    %4198 = vmatpush1.msra.mxu0 %v4197
    %v4199 = vand.u32 %v63, 4294901760
    %v4200 = vsub.f32 %v63, %v4199
    %v4201 = vand.u32 %v4200, 4294901760
    %v4202 = vsub.f32 %v4200, %v4201
    %v4203 = vand.u32 %v4202, 4294901760
    %4204 = vmatprep.subr.mxu0 %v4203
    %v4205 = vand.u32 %v62, 4294901760
    %v4206 = vsub.f32 %v62, %v4205
    %v4207 = vand.u32 %v4206, 4294901760
    %v4208 = vsub.f32 %v4206, %v4207
    %v4209 = vand.u32 %v4208, 4294901760
    %4210 = vmatpush1.msra.mxu0 %v4209
    %v4211 = vand.u32 %v65, 4294901760
    %v4212 = vsub.f32 %v65, %v4211
    %v4213 = vand.u32 %v4212, 4294901760
    %v4214 = vsub.f32 %v4212, %v4213
    %v4215 = vand.u32 %v4214, 4294901760
    %4216 = vmatprep.subr.mxu0 %v4215
    %v4217 = vand.u32 %v64, 4294901760
    %v4218 = vsub.f32 %v64, %v4217
    %v4219 = vand.u32 %v4218, 4294901760
    %v4220 = vsub.f32 %v4218, %v4219
    %v4221 = vand.u32 %v4220, 4294901760
    %4222 = vmatpush1.msra.mxu0 %v4221
    %v4223 = vand.u32 %v67, 4294901760
    %v4224 = vsub.f32 %v67, %v4223
    %v4225 = vand.u32 %v4224, 4294901760
    %v4226 = vsub.f32 %v4224, %v4225
    %v4227 = vand.u32 %v4226, 4294901760
    %4228 = vmatprep.subr.mxu0 %v4227
    %v4229 = vand.u32 %v66, 4294901760
    %v4230 = vsub.f32 %v66, %v4229
    %v4231 = vand.u32 %v4230, 4294901760
    %v4232 = vsub.f32 %v4230, %v4231
    %v4233 = vand.u32 %v4232, 4294901760
    %4234 = vmatpush1.msra.mxu0 %v4233
    %v4235 = vand.u32 %v69, 4294901760
    %v4236 = vsub.f32 %v69, %v4235
    %v4237 = vand.u32 %v4236, 4294901760
    %v4238 = vsub.f32 %v4236, %v4237
    %v4239 = vand.u32 %v4238, 4294901760
    %4240 = vmatprep.subr.mxu0 %v4239
    %v4241 = vand.u32 %v68, 4294901760
    %v4242 = vsub.f32 %v68, %v4241
    %v4243 = vand.u32 %v4242, 4294901760
    %v4244 = vsub.f32 %v4242, %v4243
    %v4245 = vand.u32 %v4244, 4294901760
    %4246 = vmatpush1.msra.mxu0 %v4245
    %v4247 = vand.u32 %v71, 4294901760
    %v4248 = vsub.f32 %v71, %v4247
    %v4249 = vand.u32 %v4248, 4294901760
    %v4250 = vsub.f32 %v4248, %v4249
    %v4251 = vand.u32 %v4250, 4294901760
    %4252 = vmatprep.subr.mxu0 %v4251
    %v4253 = vand.u32 %v70, 4294901760
    %v4254 = vsub.f32 %v70, %v4253
    %v4255 = vand.u32 %v4254, 4294901760
    %v4256 = vsub.f32 %v4254, %v4255
    %v4257 = vand.u32 %v4256, 4294901760
    %4258 = vmatpush1.msra.mxu0 %v4257
    %v4259 = vand.u32 %v73, 4294901760
    %v4260 = vsub.f32 %v73, %v4259
    %v4261 = vand.u32 %v4260, 4294901760
    %v4262 = vsub.f32 %v4260, %v4261
    %v4263 = vand.u32 %v4262, 4294901760
    %4264 = vmatprep.subr.mxu0 %v4263
    %v4265 = vand.u32 %v72, 4294901760
    %v4266 = vsub.f32 %v72, %v4265
    %v4267 = vand.u32 %v4266, 4294901760
    %v4268 = vsub.f32 %v4266, %v4267
    %v4269 = vand.u32 %v4268, 4294901760
    %4270 = vmatpush1.msra.mxu0 %v4269
    %v4271 = vand.u32 %v75, 4294901760
    %v4272 = vsub.f32 %v75, %v4271
    %v4273 = vand.u32 %v4272, 4294901760
    %v4274 = vsub.f32 %v4272, %v4273
    %v4275 = vand.u32 %v4274, 4294901760
    %4276 = vmatprep.subr.mxu0 %v4275
    %v4277 = vand.u32 %v74, 4294901760
    %v4278 = vsub.f32 %v74, %v4277
    %v4279 = vand.u32 %v4278, 4294901760
    %v4280 = vsub.f32 %v4278, %v4279
    %v4281 = vand.u32 %v4280, 4294901760
    %4282 = vmatpush1.msra.mxu0 %v4281
    %v4283 = vand.u32 %v77, 4294901760
    %v4284 = vsub.f32 %v77, %v4283
    %v4285 = vand.u32 %v4284, 4294901760
    %v4286 = vsub.f32 %v4284, %v4285
    %v4287 = vand.u32 %v4286, 4294901760
    %4288 = vmatprep.subr.mxu0 %v4287
    %v4289 = vand.u32 %v76, 4294901760
    %v4290 = vsub.f32 %v76, %v4289
    %v4291 = vand.u32 %v4290, 4294901760
    %v4292 = vsub.f32 %v4290, %v4291
    %v4293 = vand.u32 %v4292, 4294901760
    %4294 = vmatpush1.msra.mxu0 %v4293
    %v4295 = vand.u32 %v79, 4294901760
    %v4296 = vsub.f32 %v79, %v4295
    %v4297 = vand.u32 %v4296, 4294901760
    %v4298 = vsub.f32 %v4296, %v4297
    %v4299 = vand.u32 %v4298, 4294901760
    %4300 = vmatprep.subr.mxu0 %v4299
    %v4301 = vand.u32 %v78, 4294901760
    %v4302 = vsub.f32 %v78, %v4301
    %v4303 = vand.u32 %v4302, 4294901760
    %v4304 = vsub.f32 %v4302, %v4303
    %v4305 = vand.u32 %v4304, 4294901760
    %4306 = vmatpush1.msra.mxu0 %v4305
    %v4307 = vand.u32 %v81, 4294901760
    %v4308 = vsub.f32 %v81, %v4307
    %v4309 = vand.u32 %v4308, 4294901760
    %v4310 = vsub.f32 %v4308, %v4309
    %v4311 = vand.u32 %v4310, 4294901760
    %4312 = vmatprep.subr.mxu0 %v4311
    %v4313 = vand.u32 %v80, 4294901760
    %v4314 = vsub.f32 %v80, %v4313
    %v4315 = vand.u32 %v4314, 4294901760
    %v4316 = vsub.f32 %v4314, %v4315
    %v4317 = vand.u32 %v4316, 4294901760
    %4318 = vmatpush1.msra.mxu0 %v4317
    %v4319 = vand.u32 %v83, 4294901760
    %v4320 = vsub.f32 %v83, %v4319
    %v4321 = vand.u32 %v4320, 4294901760
    %v4322 = vsub.f32 %v4320, %v4321
    %v4323 = vand.u32 %v4322, 4294901760
    %4324 = vmatprep.subr.mxu0 %v4323
    %v4325 = vand.u32 %v82, 4294901760
    %v4326 = vsub.f32 %v82, %v4325
    %v4327 = vand.u32 %v4326, 4294901760
    %v4328 = vsub.f32 %v4326, %v4327
    %v4329 = vand.u32 %v4328, 4294901760
    %4330 = vmatpush1.msra.mxu0 %v4329
    %v4331 = vand.u32 %v85, 4294901760
    %v4332 = vsub.f32 %v85, %v4331
    %v4333 = vand.u32 %v4332, 4294901760
    %v4334 = vsub.f32 %v4332, %v4333
    %v4335 = vand.u32 %v4334, 4294901760
    %4336 = vmatprep.subr.mxu0 %v4335
    %v4337 = vand.u32 %v84, 4294901760
    %v4338 = vsub.f32 %v84, %v4337
    %v4339 = vand.u32 %v4338, 4294901760
    %v4340 = vsub.f32 %v4338, %v4339
    %v4341 = vand.u32 %v4340, 4294901760
    %4342 = vmatpush1.msra.mxu0 %v4341
    %v4343 = vand.u32 %v87, 4294901760
    %v4344 = vsub.f32 %v87, %v4343
    %v4345 = vand.u32 %v4344, 4294901760
    %v4346 = vsub.f32 %v4344, %v4345
    %v4347 = vand.u32 %v4346, 4294901760
    %4348 = vmatprep.subr.mxu0 %v4347
    %v4349 = vand.u32 %v86, 4294901760
    %v4350 = vsub.f32 %v86, %v4349
    %v4351 = vand.u32 %v4350, 4294901760
    %v4352 = vsub.f32 %v4350, %v4351
    %v4353 = vand.u32 %v4352, 4294901760
    %4354 = vmatpush1.msra.mxu0 %v4353
    %v4355 = vand.u32 %v89, 4294901760
    %v4356 = vsub.f32 %v89, %v4355
    %v4357 = vand.u32 %v4356, 4294901760
    %v4358 = vsub.f32 %v4356, %v4357
    %v4359 = vand.u32 %v4358, 4294901760
    %4360 = vmatprep.subr.mxu0 %v4359
    %v4361 = vand.u32 %v88, 4294901760
    %v4362 = vsub.f32 %v88, %v4361
    %v4363 = vand.u32 %v4362, 4294901760
    %v4364 = vsub.f32 %v4362, %v4363
    %v4365 = vand.u32 %v4364, 4294901760
    %4366 = vmatpush1.msra.mxu0 %v4365
    %v4367 = vand.u32 %v91, 4294901760
    %v4368 = vsub.f32 %v91, %v4367
    %v4369 = vand.u32 %v4368, 4294901760
    %v4370 = vsub.f32 %v4368, %v4369
    %v4371 = vand.u32 %v4370, 4294901760
    %4372 = vmatprep.subr.mxu0 %v4371
    %v4373 = vand.u32 %v90, 4294901760
    %v4374 = vsub.f32 %v90, %v4373
    %v4375 = vand.u32 %v4374, 4294901760
    %v4376 = vsub.f32 %v4374, %v4375
    %v4377 = vand.u32 %v4376, 4294901760
    %4378 = vmatpush1.msra.mxu0 %v4377
    %v4379 = vand.u32 %v93, 4294901760
    %v4380 = vsub.f32 %v93, %v4379
    %v4381 = vand.u32 %v4380, 4294901760
    %v4382 = vsub.f32 %v4380, %v4381
    %v4383 = vand.u32 %v4382, 4294901760
    %4384 = vmatprep.subr.mxu0 %v4383
    %v4385 = vand.u32 %v92, 4294901760
    %v4386 = vsub.f32 %v92, %v4385
    %v4387 = vand.u32 %v4386, 4294901760
    %v4388 = vsub.f32 %v4386, %v4387
    %v4389 = vand.u32 %v4388, 4294901760
    %4390 = vmatpush1.msra.mxu0 %v4389
    %v4391 = vand.u32 %v95, 4294901760
    %v4392 = vsub.f32 %v95, %v4391
    %v4393 = vand.u32 %v4392, 4294901760
    %v4394 = vsub.f32 %v4392, %v4393
    %v4395 = vand.u32 %v4394, 4294901760
    %4396 = vmatprep.subr.mxu0 %v4395
    %v4397 = vand.u32 %v94, 4294901760
    %v4398 = vsub.f32 %v94, %v4397
    %v4399 = vand.u32 %v4398, 4294901760
    %v4400 = vsub.f32 %v4398, %v4399
    %v4401 = vand.u32 %v4400, 4294901760
    %4402 = vmatpush1.msra.mxu0 %v4401
    %v4403 = vand.u32 %v97, 4294901760
    %v4404 = vsub.f32 %v97, %v4403
    %v4405 = vand.u32 %v4404, 4294901760
    %v4406 = vsub.f32 %v4404, %v4405
    %v4407 = vand.u32 %v4406, 4294901760
    %4408 = vmatprep.subr.mxu0 %v4407
    %v4409 = vand.u32 %v96, 4294901760
    %v4410 = vsub.f32 %v96, %v4409
    %v4411 = vand.u32 %v4410, 4294901760
    %v4412 = vsub.f32 %v4410, %v4411
    %v4413 = vand.u32 %v4412, 4294901760
    %4414 = vmatpush1.msra.mxu0 %v4413
    %v4415 = vand.u32 %v99, 4294901760
    %v4416 = vsub.f32 %v99, %v4415
    %v4417 = vand.u32 %v4416, 4294901760
    %v4418 = vsub.f32 %v4416, %v4417
    %v4419 = vand.u32 %v4418, 4294901760
    %4420 = vmatprep.subr.mxu0 %v4419
    %v4421 = vand.u32 %v98, 4294901760
    %v4422 = vsub.f32 %v98, %v4421
    %v4423 = vand.u32 %v4422, 4294901760
    %v4424 = vsub.f32 %v4422, %v4423
    %v4425 = vand.u32 %v4424, 4294901760
    %4426 = vmatpush1.msra.mxu0 %v4425
    %v4427 = vand.u32 %v101, 4294901760
    %v4428 = vsub.f32 %v101, %v4427
    %v4429 = vand.u32 %v4428, 4294901760
    %v4430 = vsub.f32 %v4428, %v4429
    %v4431 = vand.u32 %v4430, 4294901760
    %4432 = vmatprep.subr.mxu0 %v4431
    %v4433 = vand.u32 %v100, 4294901760
    %v4434 = vsub.f32 %v100, %v4433
    %v4435 = vand.u32 %v4434, 4294901760
    %v4436 = vsub.f32 %v4434, %v4435
    %v4437 = vand.u32 %v4436, 4294901760
    %4438 = vmatpush1.msra.mxu0 %v4437
    %v4439 = vand.u32 %v103, 4294901760
    %v4440 = vsub.f32 %v103, %v4439
    %v4441 = vand.u32 %v4440, 4294901760
    %v4442 = vsub.f32 %v4440, %v4441
    %v4443 = vand.u32 %v4442, 4294901760
    %4444 = vmatprep.subr.mxu0 %v4443
    %v4445 = vand.u32 %v102, 4294901760
    %v4446 = vsub.f32 %v102, %v4445
    %v4447 = vand.u32 %v4446, 4294901760
    %v4448 = vsub.f32 %v4446, %v4447
    %v4449 = vand.u32 %v4448, 4294901760
    %4450 = vmatpush1.msra.mxu0 %v4449
    %v4451 = vand.u32 %v105, 4294901760
    %v4452 = vsub.f32 %v105, %v4451
    %v4453 = vand.u32 %v4452, 4294901760
    %v4454 = vsub.f32 %v4452, %v4453
    %v4455 = vand.u32 %v4454, 4294901760
    %4456 = vmatprep.subr.mxu0 %v4455
    %v4457 = vand.u32 %v104, 4294901760
    %v4458 = vsub.f32 %v104, %v4457
    %v4459 = vand.u32 %v4458, 4294901760
    %v4460 = vsub.f32 %v4458, %v4459
    %v4461 = vand.u32 %v4460, 4294901760
    %4462 = vmatpush1.msra.mxu0 %v4461
    %v4463 = vand.u32 %v107, 4294901760
    %v4464 = vsub.f32 %v107, %v4463
    %v4465 = vand.u32 %v4464, 4294901760
    %v4466 = vsub.f32 %v4464, %v4465
    %v4467 = vand.u32 %v4466, 4294901760
    %4468 = vmatprep.subr.mxu0 %v4467
    %v4469 = vand.u32 %v106, 4294901760
    %v4470 = vsub.f32 %v106, %v4469
    %v4471 = vand.u32 %v4470, 4294901760
    %v4472 = vsub.f32 %v4470, %v4471
    %v4473 = vand.u32 %v4472, 4294901760
    %4474 = vmatpush1.msra.mxu0 %v4473
    %v4475 = vand.u32 %v109, 4294901760
    %v4476 = vsub.f32 %v109, %v4475
    %v4477 = vand.u32 %v4476, 4294901760
    %v4478 = vsub.f32 %v4476, %v4477
    %v4479 = vand.u32 %v4478, 4294901760
    %4480 = vmatprep.subr.mxu0 %v4479
    %v4481 = vand.u32 %v108, 4294901760
    %v4482 = vsub.f32 %v108, %v4481
    %v4483 = vand.u32 %v4482, 4294901760
    %v4484 = vsub.f32 %v4482, %v4483
    %v4485 = vand.u32 %v4484, 4294901760
    %4486 = vmatpush1.msra.mxu0 %v4485
    %v4487 = vand.u32 %v111, 4294901760
    %v4488 = vsub.f32 %v111, %v4487
    %v4489 = vand.u32 %v4488, 4294901760
    %v4490 = vsub.f32 %v4488, %v4489
    %v4491 = vand.u32 %v4490, 4294901760
    %4492 = vmatprep.subr.mxu0 %v4491
    %v4493 = vand.u32 %v110, 4294901760
    %v4494 = vsub.f32 %v110, %v4493
    %v4495 = vand.u32 %v4494, 4294901760
    %v4496 = vsub.f32 %v4494, %v4495
    %v4497 = vand.u32 %v4496, 4294901760
    %4498 = vmatpush1.msra.mxu0 %v4497
    %v4499 = vand.u32 %v113, 4294901760
    %v4500 = vsub.f32 %v113, %v4499
    %v4501 = vand.u32 %v4500, 4294901760
    %v4502 = vsub.f32 %v4500, %v4501
    %v4503 = vand.u32 %v4502, 4294901760
    %4504 = vmatprep.subr.mxu0 %v4503
    %v4505 = vand.u32 %v112, 4294901760
    %v4506 = vsub.f32 %v112, %v4505
    %v4507 = vand.u32 %v4506, 4294901760
    %v4508 = vsub.f32 %v4506, %v4507
    %v4509 = vand.u32 %v4508, 4294901760
    %4510 = vmatpush1.msra.mxu0 %v4509
    %v4511 = vand.u32 %v115, 4294901760
    %v4512 = vsub.f32 %v115, %v4511
    %v4513 = vand.u32 %v4512, 4294901760
    %v4514 = vsub.f32 %v4512, %v4513
    %v4515 = vand.u32 %v4514, 4294901760
    %4516 = vmatprep.subr.mxu0 %v4515
    %v4517 = vand.u32 %v114, 4294901760
    %v4518 = vsub.f32 %v114, %v4517
    %v4519 = vand.u32 %v4518, 4294901760
    %v4520 = vsub.f32 %v4518, %v4519
    %v4521 = vand.u32 %v4520, 4294901760
    %4522 = vmatpush1.msra.mxu0 %v4521
    %v4523 = vand.u32 %v3993, 4294901760
    %4524 = vmatprep.mubr.f32.mxu0 %v4523
    %v4525 = vand.u32 %v3992, 4294901760
    %4526 = vmatmul.mubr.f32.gmra.mrb[0].mxu0 %v4525
    %v4527 = vpop.f32.mrb[0].mxu0
    %v4528 = vadd.f32 %v4135, %v4527
    %v4529 = vpop.f32.mrb[0].mxu0
    %v4530 = vadd.f32 %v4137, %v4529
    %4531 = vdwg.mxu0
    %v4532 = vand.u32 %v53, 4294901760
    %v4533 = vsub.f32 %v53, %v4532
    %4534 = vmatprep.subr.mxu0 %v4533
    %v4535 = vand.u32 %v52, 4294901760
    %v4536 = vsub.f32 %v52, %v4535
    %4537 = vmatpush1.msra.mxu0 %v4536
    %v4538 = vand.u32 %v55, 4294901760
    %v4539 = vsub.f32 %v55, %v4538
    %4540 = vmatprep.subr.mxu0 %v4539
    %v4541 = vand.u32 %v54, 4294901760
    %v4542 = vsub.f32 %v54, %v4541
    %4543 = vmatpush1.msra.mxu0 %v4542
    %v4544 = vand.u32 %v57, 4294901760
    %v4545 = vsub.f32 %v57, %v4544
    %4546 = vmatprep.subr.mxu0 %v4545
    %v4547 = vand.u32 %v56, 4294901760
    %v4548 = vsub.f32 %v56, %v4547
    %4549 = vmatpush1.msra.mxu0 %v4548
    %v4550 = vand.u32 %v59, 4294901760
    %v4551 = vsub.f32 %v59, %v4550
    %4552 = vmatprep.subr.mxu0 %v4551
    %v4553 = vand.u32 %v58, 4294901760
    %v4554 = vsub.f32 %v58, %v4553
    %4555 = vmatpush1.msra.mxu0 %v4554
    %v4556 = vand.u32 %v61, 4294901760
    %v4557 = vsub.f32 %v61, %v4556
    %4558 = vmatprep.subr.mxu0 %v4557
    %v4559 = vand.u32 %v60, 4294901760
    %v4560 = vsub.f32 %v60, %v4559
    %4561 = vmatpush1.msra.mxu0 %v4560
    %v4562 = vand.u32 %v63, 4294901760
    %v4563 = vsub.f32 %v63, %v4562
    %4564 = vmatprep.subr.mxu0 %v4563
    %v4565 = vand.u32 %v62, 4294901760
    %v4566 = vsub.f32 %v62, %v4565
    %4567 = vmatpush1.msra.mxu0 %v4566
    %v4568 = vand.u32 %v65, 4294901760
    %v4569 = vsub.f32 %v65, %v4568
    %4570 = vmatprep.subr.mxu0 %v4569
    %v4571 = vand.u32 %v64, 4294901760
    %v4572 = vsub.f32 %v64, %v4571
    %4573 = vmatpush1.msra.mxu0 %v4572
    %v4574 = vand.u32 %v67, 4294901760
    %v4575 = vsub.f32 %v67, %v4574
    %4576 = vmatprep.subr.mxu0 %v4575
    %v4577 = vand.u32 %v66, 4294901760
    %v4578 = vsub.f32 %v66, %v4577
    %4579 = vmatpush1.msra.mxu0 %v4578
    %v4580 = vand.u32 %v69, 4294901760
    %v4581 = vsub.f32 %v69, %v4580
    %4582 = vmatprep.subr.mxu0 %v4581
    %v4583 = vand.u32 %v68, 4294901760
    %v4584 = vsub.f32 %v68, %v4583
    %4585 = vmatpush1.msra.mxu0 %v4584
    %v4586 = vand.u32 %v71, 4294901760
    %v4587 = vsub.f32 %v71, %v4586
    %4588 = vmatprep.subr.mxu0 %v4587
    %v4589 = vand.u32 %v70, 4294901760
    %v4590 = vsub.f32 %v70, %v4589
    %4591 = vmatpush1.msra.mxu0 %v4590
    %v4592 = vand.u32 %v73, 4294901760
    %v4593 = vsub.f32 %v73, %v4592
    %4594 = vmatprep.subr.mxu0 %v4593
    %v4595 = vand.u32 %v72, 4294901760
    %v4596 = vsub.f32 %v72, %v4595
    %4597 = vmatpush1.msra.mxu0 %v4596
    %v4598 = vand.u32 %v75, 4294901760
    %v4599 = vsub.f32 %v75, %v4598
    %4600 = vmatprep.subr.mxu0 %v4599
    %v4601 = vand.u32 %v74, 4294901760
    %v4602 = vsub.f32 %v74, %v4601
    %4603 = vmatpush1.msra.mxu0 %v4602
    %v4604 = vand.u32 %v77, 4294901760
    %v4605 = vsub.f32 %v77, %v4604
    %4606 = vmatprep.subr.mxu0 %v4605
    %v4607 = vand.u32 %v76, 4294901760
    %v4608 = vsub.f32 %v76, %v4607
    %4609 = vmatpush1.msra.mxu0 %v4608
    %v4610 = vand.u32 %v79, 4294901760
    %v4611 = vsub.f32 %v79, %v4610
    %4612 = vmatprep.subr.mxu0 %v4611
    %v4613 = vand.u32 %v78, 4294901760
    %v4614 = vsub.f32 %v78, %v4613
    %4615 = vmatpush1.msra.mxu0 %v4614
    %v4616 = vand.u32 %v81, 4294901760
    %v4617 = vsub.f32 %v81, %v4616
    %4618 = vmatprep.subr.mxu0 %v4617
    %v4619 = vand.u32 %v80, 4294901760
    %v4620 = vsub.f32 %v80, %v4619
    %4621 = vmatpush1.msra.mxu0 %v4620
    %v4622 = vand.u32 %v83, 4294901760
    %v4623 = vsub.f32 %v83, %v4622
    %4624 = vmatprep.subr.mxu0 %v4623
    %v4625 = vand.u32 %v82, 4294901760
    %v4626 = vsub.f32 %v82, %v4625
    %4627 = vmatpush1.msra.mxu0 %v4626
    %v4628 = vand.u32 %v85, 4294901760
    %v4629 = vsub.f32 %v85, %v4628
    %4630 = vmatprep.subr.mxu0 %v4629
    %v4631 = vand.u32 %v84, 4294901760
    %v4632 = vsub.f32 %v84, %v4631
    %4633 = vmatpush1.msra.mxu0 %v4632
    %v4634 = vand.u32 %v87, 4294901760
    %v4635 = vsub.f32 %v87, %v4634
    %4636 = vmatprep.subr.mxu0 %v4635
    %v4637 = vand.u32 %v86, 4294901760
    %v4638 = vsub.f32 %v86, %v4637
    %4639 = vmatpush1.msra.mxu0 %v4638
    %v4640 = vand.u32 %v89, 4294901760
    %v4641 = vsub.f32 %v89, %v4640
    %4642 = vmatprep.subr.mxu0 %v4641
    %v4643 = vand.u32 %v88, 4294901760
    %v4644 = vsub.f32 %v88, %v4643
    %4645 = vmatpush1.msra.mxu0 %v4644
    %v4646 = vand.u32 %v91, 4294901760
    %v4647 = vsub.f32 %v91, %v4646
    %4648 = vmatprep.subr.mxu0 %v4647
    %v4649 = vand.u32 %v90, 4294901760
    %v4650 = vsub.f32 %v90, %v4649
    %4651 = vmatpush1.msra.mxu0 %v4650
    %v4652 = vand.u32 %v93, 4294901760
    %v4653 = vsub.f32 %v93, %v4652
    %4654 = vmatprep.subr.mxu0 %v4653
    %v4655 = vand.u32 %v92, 4294901760
    %v4656 = vsub.f32 %v92, %v4655
    %4657 = vmatpush1.msra.mxu0 %v4656
    %v4658 = vand.u32 %v95, 4294901760
    %v4659 = vsub.f32 %v95, %v4658
    %4660 = vmatprep.subr.mxu0 %v4659
    %v4661 = vand.u32 %v94, 4294901760
    %v4662 = vsub.f32 %v94, %v4661
    %4663 = vmatpush1.msra.mxu0 %v4662
    %v4664 = vand.u32 %v97, 4294901760
    %v4665 = vsub.f32 %v97, %v4664
    %4666 = vmatprep.subr.mxu0 %v4665
    %v4667 = vand.u32 %v96, 4294901760
    %v4668 = vsub.f32 %v96, %v4667
    %4669 = vmatpush1.msra.mxu0 %v4668
    %v4670 = vand.u32 %v99, 4294901760
    %v4671 = vsub.f32 %v99, %v4670
    %4672 = vmatprep.subr.mxu0 %v4671
    %v4673 = vand.u32 %v98, 4294901760
    %v4674 = vsub.f32 %v98, %v4673
    %4675 = vmatpush1.msra.mxu0 %v4674
    %v4676 = vand.u32 %v101, 4294901760
    %v4677 = vsub.f32 %v101, %v4676
    %4678 = vmatprep.subr.mxu0 %v4677
    %v4679 = vand.u32 %v100, 4294901760
    %v4680 = vsub.f32 %v100, %v4679
    %4681 = vmatpush1.msra.mxu0 %v4680
    %v4682 = vand.u32 %v103, 4294901760
    %v4683 = vsub.f32 %v103, %v4682
    %4684 = vmatprep.subr.mxu0 %v4683
    %v4685 = vand.u32 %v102, 4294901760
    %v4686 = vsub.f32 %v102, %v4685
    %4687 = vmatpush1.msra.mxu0 %v4686
    %v4688 = vand.u32 %v105, 4294901760
    %v4689 = vsub.f32 %v105, %v4688
    %4690 = vmatprep.subr.mxu0 %v4689
    %v4691 = vand.u32 %v104, 4294901760
    %v4692 = vsub.f32 %v104, %v4691
    %4693 = vmatpush1.msra.mxu0 %v4692
    %v4694 = vand.u32 %v107, 4294901760
    %v4695 = vsub.f32 %v107, %v4694
    %4696 = vmatprep.subr.mxu0 %v4695
    %v4697 = vand.u32 %v106, 4294901760
    %v4698 = vsub.f32 %v106, %v4697
    %4699 = vmatpush1.msra.mxu0 %v4698
    %v4700 = vand.u32 %v109, 4294901760
    %v4701 = vsub.f32 %v109, %v4700
    %4702 = vmatprep.subr.mxu0 %v4701
    %v4703 = vand.u32 %v108, 4294901760
    %v4704 = vsub.f32 %v108, %v4703
    %4705 = vmatpush1.msra.mxu0 %v4704
    %v4706 = vand.u32 %v111, 4294901760
    %v4707 = vsub.f32 %v111, %v4706
    %4708 = vmatprep.subr.mxu0 %v4707
    %v4709 = vand.u32 %v110, 4294901760
    %v4710 = vsub.f32 %v110, %v4709
    %4711 = vmatpush1.msra.mxu0 %v4710
    %v4712 = vand.u32 %v113, 4294901760
    %v4713 = vsub.f32 %v113, %v4712
    %4714 = vmatprep.subr.mxu0 %v4713
    %v4715 = vand.u32 %v112, 4294901760
    %v4716 = vsub.f32 %v112, %v4715
    %4717 = vmatpush1.msra.mxu0 %v4716
    %v4718 = vand.u32 %v115, 4294901760
    %v4719 = vsub.f32 %v115, %v4718
    %4720 = vmatprep.subr.mxu0 %v4719
    %v4721 = vand.u32 %v114, 4294901760
    %v4722 = vsub.f32 %v114, %v4721
    %4723 = vmatpush1.msra.mxu0 %v4722
    %v4724 = vand.u32 %v3993, 4294901760
    %v4725 = vsub.f32 %v3993, %v4724
    %4726 = vmatprep.mubr.f32.mxu0 %v4725
    %v4727 = vand.u32 %v3992, 4294901760
    %v4728 = vsub.f32 %v3992, %v4727
    %4729 = vmatmul.mubr.f32.gmra.mrb[0].mxu0 %v4728
    %v4730 = vpop.f32.mrb[0].mxu0
    %v4731 = vadd.f32 %v4528, %v4730
    %v4732 = vpop.f32.mrb[0].mxu0
    %v4733 = vadd.f32 %v4530, %v4732
    %4734 = vdwg.mxu0
    %v4735 = vand.u32 %v53, 4294901760
    %4736 = vmatprep.subr.mxu0 %v4735
    %v4737 = vand.u32 %v52, 4294901760
    %4738 = vmatpush1.msra.mxu0 %v4737
    %v4739 = vand.u32 %v55, 4294901760
    %4740 = vmatprep.subr.mxu0 %v4739
    %v4741 = vand.u32 %v54, 4294901760
    %4742 = vmatpush1.msra.mxu0 %v4741
    %v4743 = vand.u32 %v57, 4294901760
    %4744 = vmatprep.subr.mxu0 %v4743
    %v4745 = vand.u32 %v56, 4294901760
    %4746 = vmatpush1.msra.mxu0 %v4745
    %v4747 = vand.u32 %v59, 4294901760
    %4748 = vmatprep.subr.mxu0 %v4747
    %v4749 = vand.u32 %v58, 4294901760
    %4750 = vmatpush1.msra.mxu0 %v4749
    %v4751 = vand.u32 %v61, 4294901760
    %4752 = vmatprep.subr.mxu0 %v4751
    %v4753 = vand.u32 %v60, 4294901760
    %4754 = vmatpush1.msra.mxu0 %v4753
    %v4755 = vand.u32 %v63, 4294901760
    %4756 = vmatprep.subr.mxu0 %v4755
    %v4757 = vand.u32 %v62, 4294901760
    %4758 = vmatpush1.msra.mxu0 %v4757
    %v4759 = vand.u32 %v65, 4294901760
    %4760 = vmatprep.subr.mxu0 %v4759
    %v4761 = vand.u32 %v64, 4294901760
    %4762 = vmatpush1.msra.mxu0 %v4761
    %v4763 = vand.u32 %v67, 4294901760
    %4764 = vmatprep.subr.mxu0 %v4763
    %v4765 = vand.u32 %v66, 4294901760
    %4766 = vmatpush1.msra.mxu0 %v4765
    %v4767 = vand.u32 %v69, 4294901760
    %4768 = vmatprep.subr.mxu0 %v4767
    %v4769 = vand.u32 %v68, 4294901760
    %4770 = vmatpush1.msra.mxu0 %v4769
    %v4771 = vand.u32 %v71, 4294901760
    %4772 = vmatprep.subr.mxu0 %v4771
    %v4773 = vand.u32 %v70, 4294901760
    %4774 = vmatpush1.msra.mxu0 %v4773
    %v4775 = vand.u32 %v73, 4294901760
    %4776 = vmatprep.subr.mxu0 %v4775
    %v4777 = vand.u32 %v72, 4294901760
    %4778 = vmatpush1.msra.mxu0 %v4777
    %v4779 = vand.u32 %v75, 4294901760
    %4780 = vmatprep.subr.mxu0 %v4779
    %v4781 = vand.u32 %v74, 4294901760
    %4782 = vmatpush1.msra.mxu0 %v4781
    %v4783 = vand.u32 %v77, 4294901760
    %4784 = vmatprep.subr.mxu0 %v4783
    %v4785 = vand.u32 %v76, 4294901760
    %4786 = vmatpush1.msra.mxu0 %v4785
    %v4787 = vand.u32 %v79, 4294901760
    %4788 = vmatprep.subr.mxu0 %v4787
    %v4789 = vand.u32 %v78, 4294901760
    %4790 = vmatpush1.msra.mxu0 %v4789
    %v4791 = vand.u32 %v81, 4294901760
    %4792 = vmatprep.subr.mxu0 %v4791
    %v4793 = vand.u32 %v80, 4294901760
    %4794 = vmatpush1.msra.mxu0 %v4793
    %v4795 = vand.u32 %v83, 4294901760
    %4796 = vmatprep.subr.mxu0 %v4795
    %v4797 = vand.u32 %v82, 4294901760
    %4798 = vmatpush1.msra.mxu0 %v4797
    %v4799 = vand.u32 %v85, 4294901760
    %4800 = vmatprep.subr.mxu0 %v4799
    %v4801 = vand.u32 %v84, 4294901760
    %4802 = vmatpush1.msra.mxu0 %v4801
    %v4803 = vand.u32 %v87, 4294901760
    %4804 = vmatprep.subr.mxu0 %v4803
    %v4805 = vand.u32 %v86, 4294901760
    %4806 = vmatpush1.msra.mxu0 %v4805
    %v4807 = vand.u32 %v89, 4294901760
    %4808 = vmatprep.subr.mxu0 %v4807
    %v4809 = vand.u32 %v88, 4294901760
    %4810 = vmatpush1.msra.mxu0 %v4809
    %v4811 = vand.u32 %v91, 4294901760
    %4812 = vmatprep.subr.mxu0 %v4811
    %v4813 = vand.u32 %v90, 4294901760
    %4814 = vmatpush1.msra.mxu0 %v4813
    %v4815 = vand.u32 %v93, 4294901760
    %4816 = vmatprep.subr.mxu0 %v4815
    %v4817 = vand.u32 %v92, 4294901760
    %4818 = vmatpush1.msra.mxu0 %v4817
    %v4819 = vand.u32 %v95, 4294901760
    %4820 = vmatprep.subr.mxu0 %v4819
    %v4821 = vand.u32 %v94, 4294901760
    %4822 = vmatpush1.msra.mxu0 %v4821
    %v4823 = vand.u32 %v97, 4294901760
    %4824 = vmatprep.subr.mxu0 %v4823
    %v4825 = vand.u32 %v96, 4294901760
    %4826 = vmatpush1.msra.mxu0 %v4825
    %v4827 = vand.u32 %v99, 4294901760
    %4828 = vmatprep.subr.mxu0 %v4827
    %v4829 = vand.u32 %v98, 4294901760
    %4830 = vmatpush1.msra.mxu0 %v4829
    %v4831 = vand.u32 %v101, 4294901760
    %4832 = vmatprep.subr.mxu0 %v4831
    %v4833 = vand.u32 %v100, 4294901760
    %4834 = vmatpush1.msra.mxu0 %v4833
    %v4835 = vand.u32 %v103, 4294901760
    %4836 = vmatprep.subr.mxu0 %v4835
    %v4837 = vand.u32 %v102, 4294901760
    %4838 = vmatpush1.msra.mxu0 %v4837
    %v4839 = vand.u32 %v105, 4294901760
    %4840 = vmatprep.subr.mxu0 %v4839
    %v4841 = vand.u32 %v104, 4294901760
    %4842 = vmatpush1.msra.mxu0 %v4841
    %v4843 = vand.u32 %v107, 4294901760
    %4844 = vmatprep.subr.mxu0 %v4843
    %v4845 = vand.u32 %v106, 4294901760
    %4846 = vmatpush1.msra.mxu0 %v4845
    %v4847 = vand.u32 %v109, 4294901760
    %4848 = vmatprep.subr.mxu0 %v4847
    %v4849 = vand.u32 %v108, 4294901760
    %4850 = vmatpush1.msra.mxu0 %v4849
    %v4851 = vand.u32 %v111, 4294901760
    %4852 = vmatprep.subr.mxu0 %v4851
    %v4853 = vand.u32 %v110, 4294901760
    %4854 = vmatpush1.msra.mxu0 %v4853
    %v4855 = vand.u32 %v113, 4294901760
    %4856 = vmatprep.subr.mxu0 %v4855
    %v4857 = vand.u32 %v112, 4294901760
    %4858 = vmatpush1.msra.mxu0 %v4857
    %v4859 = vand.u32 %v115, 4294901760
    %4860 = vmatprep.subr.mxu0 %v4859
    %v4861 = vand.u32 %v114, 4294901760
    %4862 = vmatpush1.msra.mxu0 %v4861
    %v4863 = vand.u32 %v3993, 4294901760
    %v4864 = vsub.f32 %v3993, %v4863
    %v4865 = vand.u32 %v4864, 4294901760
    %4866 = vmatprep.mubr.f32.mxu0 %v4865
    %v4867 = vand.u32 %v3992, 4294901760
    %v4868 = vsub.f32 %v3992, %v4867
    %v4869 = vand.u32 %v4868, 4294901760
    %4870 = vmatmul.mubr.f32.gmra.mrb[0].mxu0 %v4869
    %v4871 = vpop.f32.mrb[0].mxu0
    %v4872 = vadd.f32 %v4731, %v4871
    %v4873 = vpop.f32.mrb[0].mxu0
    %v4874 = vadd.f32 %v4733, %v4873
    %4875 = vdwg.mxu0
    %v4876 = vand.u32 %v53, 4294901760
    %v4877 = vsub.f32 %v53, %v4876
    %v4878 = vand.u32 %v4877, 4294901760
    %4879 = vmatprep.subr.mxu0 %v4878
    %v4880 = vand.u32 %v52, 4294901760
    %v4881 = vsub.f32 %v52, %v4880
    %v4882 = vand.u32 %v4881, 4294901760
    %4883 = vmatpush1.msra.mxu0 %v4882
    %v4884 = vand.u32 %v55, 4294901760
    %v4885 = vsub.f32 %v55, %v4884
    %v4886 = vand.u32 %v4885, 4294901760
    %4887 = vmatprep.subr.mxu0 %v4886
    %v4888 = vand.u32 %v54, 4294901760
    %v4889 = vsub.f32 %v54, %v4888
    %v4890 = vand.u32 %v4889, 4294901760
    %4891 = vmatpush1.msra.mxu0 %v4890
    %v4892 = vand.u32 %v57, 4294901760
    %v4893 = vsub.f32 %v57, %v4892
    %v4894 = vand.u32 %v4893, 4294901760
    %4895 = vmatprep.subr.mxu0 %v4894
    %v4896 = vand.u32 %v56, 4294901760
    %v4897 = vsub.f32 %v56, %v4896
    %v4898 = vand.u32 %v4897, 4294901760
    %4899 = vmatpush1.msra.mxu0 %v4898
    %v4900 = vand.u32 %v59, 4294901760
    %v4901 = vsub.f32 %v59, %v4900
    %v4902 = vand.u32 %v4901, 4294901760
    %4903 = vmatprep.subr.mxu0 %v4902
    %v4904 = vand.u32 %v58, 4294901760
    %v4905 = vsub.f32 %v58, %v4904
    %v4906 = vand.u32 %v4905, 4294901760
    %4907 = vmatpush1.msra.mxu0 %v4906
    %v4908 = vand.u32 %v61, 4294901760
    %v4909 = vsub.f32 %v61, %v4908
    %v4910 = vand.u32 %v4909, 4294901760
    %4911 = vmatprep.subr.mxu0 %v4910
    %v4912 = vand.u32 %v60, 4294901760
    %v4913 = vsub.f32 %v60, %v4912
    %v4914 = vand.u32 %v4913, 4294901760
    %4915 = vmatpush1.msra.mxu0 %v4914
    %v4916 = vand.u32 %v63, 4294901760
    %v4917 = vsub.f32 %v63, %v4916
    %v4918 = vand.u32 %v4917, 4294901760
    %4919 = vmatprep.subr.mxu0 %v4918
    %v4920 = vand.u32 %v62, 4294901760
    %v4921 = vsub.f32 %v62, %v4920
    %v4922 = vand.u32 %v4921, 4294901760
    %4923 = vmatpush1.msra.mxu0 %v4922
    %v4924 = vand.u32 %v65, 4294901760
    %v4925 = vsub.f32 %v65, %v4924
    %v4926 = vand.u32 %v4925, 4294901760
    %4927 = vmatprep.subr.mxu0 %v4926
    %v4928 = vand.u32 %v64, 4294901760
    %v4929 = vsub.f32 %v64, %v4928
    %v4930 = vand.u32 %v4929, 4294901760
    %4931 = vmatpush1.msra.mxu0 %v4930
    %v4932 = vand.u32 %v67, 4294901760
    %v4933 = vsub.f32 %v67, %v4932
    %v4934 = vand.u32 %v4933, 4294901760
    %4935 = vmatprep.subr.mxu0 %v4934
    %v4936 = vand.u32 %v66, 4294901760
    %v4937 = vsub.f32 %v66, %v4936
    %v4938 = vand.u32 %v4937, 4294901760
    %4939 = vmatpush1.msra.mxu0 %v4938
    %v4940 = vand.u32 %v69, 4294901760
    %v4941 = vsub.f32 %v69, %v4940
    %v4942 = vand.u32 %v4941, 4294901760
    %4943 = vmatprep.subr.mxu0 %v4942
    %v4944 = vand.u32 %v68, 4294901760
    %v4945 = vsub.f32 %v68, %v4944
    %v4946 = vand.u32 %v4945, 4294901760
    %4947 = vmatpush1.msra.mxu0 %v4946
    %v4948 = vand.u32 %v71, 4294901760
    %v4949 = vsub.f32 %v71, %v4948
    %v4950 = vand.u32 %v4949, 4294901760
    %4951 = vmatprep.subr.mxu0 %v4950
    %v4952 = vand.u32 %v70, 4294901760
    %v4953 = vsub.f32 %v70, %v4952
    %v4954 = vand.u32 %v4953, 4294901760
    %4955 = vmatpush1.msra.mxu0 %v4954
    %v4956 = vand.u32 %v73, 4294901760
    %v4957 = vsub.f32 %v73, %v4956
    %v4958 = vand.u32 %v4957, 4294901760
    %4959 = vmatprep.subr.mxu0 %v4958
    %v4960 = vand.u32 %v72, 4294901760
    %v4961 = vsub.f32 %v72, %v4960
    %v4962 = vand.u32 %v4961, 4294901760
    %4963 = vmatpush1.msra.mxu0 %v4962
    %v4964 = vand.u32 %v75, 4294901760
    %v4965 = vsub.f32 %v75, %v4964
    %v4966 = vand.u32 %v4965, 4294901760
    %4967 = vmatprep.subr.mxu0 %v4966
    %v4968 = vand.u32 %v74, 4294901760
    %v4969 = vsub.f32 %v74, %v4968
    %v4970 = vand.u32 %v4969, 4294901760
    %4971 = vmatpush1.msra.mxu0 %v4970
    %v4972 = vand.u32 %v77, 4294901760
    %v4973 = vsub.f32 %v77, %v4972
    %v4974 = vand.u32 %v4973, 4294901760
    %4975 = vmatprep.subr.mxu0 %v4974
    %v4976 = vand.u32 %v76, 4294901760
    %v4977 = vsub.f32 %v76, %v4976
    %v4978 = vand.u32 %v4977, 4294901760
    %4979 = vmatpush1.msra.mxu0 %v4978
    %v4980 = vand.u32 %v79, 4294901760
    %v4981 = vsub.f32 %v79, %v4980
    %v4982 = vand.u32 %v4981, 4294901760
    %4983 = vmatprep.subr.mxu0 %v4982
    %v4984 = vand.u32 %v78, 4294901760
    %v4985 = vsub.f32 %v78, %v4984
    %v4986 = vand.u32 %v4985, 4294901760
    %4987 = vmatpush1.msra.mxu0 %v4986
    %v4988 = vand.u32 %v81, 4294901760
    %v4989 = vsub.f32 %v81, %v4988
    %v4990 = vand.u32 %v4989, 4294901760
    %4991 = vmatprep.subr.mxu0 %v4990
    %v4992 = vand.u32 %v80, 4294901760
    %v4993 = vsub.f32 %v80, %v4992
    %v4994 = vand.u32 %v4993, 4294901760
    %4995 = vmatpush1.msra.mxu0 %v4994
    %v4996 = vand.u32 %v83, 4294901760
    %v4997 = vsub.f32 %v83, %v4996
    %v4998 = vand.u32 %v4997, 4294901760
    %4999 = vmatprep.subr.mxu0 %v4998
    %v5000 = vand.u32 %v82, 4294901760
    %v5001 = vsub.f32 %v82, %v5000
    %v5002 = vand.u32 %v5001, 4294901760
    %5003 = vmatpush1.msra.mxu0 %v5002
    %v5004 = vand.u32 %v85, 4294901760
    %v5005 = vsub.f32 %v85, %v5004
    %v5006 = vand.u32 %v5005, 4294901760
    %5007 = vmatprep.subr.mxu0 %v5006
    %v5008 = vand.u32 %v84, 4294901760
    %v5009 = vsub.f32 %v84, %v5008
    %v5010 = vand.u32 %v5009, 4294901760
    %5011 = vmatpush1.msra.mxu0 %v5010
    %v5012 = vand.u32 %v87, 4294901760
    %v5013 = vsub.f32 %v87, %v5012
    %v5014 = vand.u32 %v5013, 4294901760
    %5015 = vmatprep.subr.mxu0 %v5014
    %v5016 = vand.u32 %v86, 4294901760
    %v5017 = vsub.f32 %v86, %v5016
    %v5018 = vand.u32 %v5017, 4294901760
    %5019 = vmatpush1.msra.mxu0 %v5018
    %v5020 = vand.u32 %v89, 4294901760
    %v5021 = vsub.f32 %v89, %v5020
    %v5022 = vand.u32 %v5021, 4294901760
    %5023 = vmatprep.subr.mxu0 %v5022
    %v5024 = vand.u32 %v88, 4294901760
    %v5025 = vsub.f32 %v88, %v5024
    %v5026 = vand.u32 %v5025, 4294901760
    %5027 = vmatpush1.msra.mxu0 %v5026
    %v5028 = vand.u32 %v91, 4294901760
    %v5029 = vsub.f32 %v91, %v5028
    %v5030 = vand.u32 %v5029, 4294901760
    %5031 = vmatprep.subr.mxu0 %v5030
    %v5032 = vand.u32 %v90, 4294901760
    %v5033 = vsub.f32 %v90, %v5032
    %v5034 = vand.u32 %v5033, 4294901760
    %5035 = vmatpush1.msra.mxu0 %v5034
    %v5036 = vand.u32 %v93, 4294901760
    %v5037 = vsub.f32 %v93, %v5036
    %v5038 = vand.u32 %v5037, 4294901760
    %5039 = vmatprep.subr.mxu0 %v5038
    %v5040 = vand.u32 %v92, 4294901760
    %v5041 = vsub.f32 %v92, %v5040
    %v5042 = vand.u32 %v5041, 4294901760
    %5043 = vmatpush1.msra.mxu0 %v5042
    %v5044 = vand.u32 %v95, 4294901760
    %v5045 = vsub.f32 %v95, %v5044
    %v5046 = vand.u32 %v5045, 4294901760
    %5047 = vmatprep.subr.mxu0 %v5046
    %v5048 = vand.u32 %v94, 4294901760
    %v5049 = vsub.f32 %v94, %v5048
    %v5050 = vand.u32 %v5049, 4294901760
    %5051 = vmatpush1.msra.mxu0 %v5050
    %v5052 = vand.u32 %v97, 4294901760
    %v5053 = vsub.f32 %v97, %v5052
    %v5054 = vand.u32 %v5053, 4294901760
    %5055 = vmatprep.subr.mxu0 %v5054
    %v5056 = vand.u32 %v96, 4294901760
    %v5057 = vsub.f32 %v96, %v5056
    %v5058 = vand.u32 %v5057, 4294901760
    %5059 = vmatpush1.msra.mxu0 %v5058
    %v5060 = vand.u32 %v99, 4294901760
    %v5061 = vsub.f32 %v99, %v5060
    %v5062 = vand.u32 %v5061, 4294901760
    %5063 = vmatprep.subr.mxu0 %v5062
    %v5064 = vand.u32 %v98, 4294901760
    %v5065 = vsub.f32 %v98, %v5064
    %v5066 = vand.u32 %v5065, 4294901760
    %5067 = vmatpush1.msra.mxu0 %v5066
    %v5068 = vand.u32 %v101, 4294901760
    %v5069 = vsub.f32 %v101, %v5068
    %v5070 = vand.u32 %v5069, 4294901760
    %5071 = vmatprep.subr.mxu0 %v5070
    %v5072 = vand.u32 %v100, 4294901760
    %v5073 = vsub.f32 %v100, %v5072
    %v5074 = vand.u32 %v5073, 4294901760
    %5075 = vmatpush1.msra.mxu0 %v5074
    %v5076 = vand.u32 %v103, 4294901760
    %v5077 = vsub.f32 %v103, %v5076
    %v5078 = vand.u32 %v5077, 4294901760
    %5079 = vmatprep.subr.mxu0 %v5078
    %v5080 = vand.u32 %v102, 4294901760
    %v5081 = vsub.f32 %v102, %v5080
    %v5082 = vand.u32 %v5081, 4294901760
    %5083 = vmatpush1.msra.mxu0 %v5082
    %v5084 = vand.u32 %v105, 4294901760
    %v5085 = vsub.f32 %v105, %v5084
    %v5086 = vand.u32 %v5085, 4294901760
    %5087 = vmatprep.subr.mxu0 %v5086
    %v5088 = vand.u32 %v104, 4294901760
    %v5089 = vsub.f32 %v104, %v5088
    %v5090 = vand.u32 %v5089, 4294901760
    %5091 = vmatpush1.msra.mxu0 %v5090
    %v5092 = vand.u32 %v107, 4294901760
    %v5093 = vsub.f32 %v107, %v5092
    %v5094 = vand.u32 %v5093, 4294901760
    %5095 = vmatprep.subr.mxu0 %v5094
    %v5096 = vand.u32 %v106, 4294901760
    %v5097 = vsub.f32 %v106, %v5096
    %v5098 = vand.u32 %v5097, 4294901760
    %5099 = vmatpush1.msra.mxu0 %v5098
    %v5100 = vand.u32 %v109, 4294901760
    %v5101 = vsub.f32 %v109, %v5100
    %v5102 = vand.u32 %v5101, 4294901760
    %5103 = vmatprep.subr.mxu0 %v5102
    %v5104 = vand.u32 %v108, 4294901760
    %v5105 = vsub.f32 %v108, %v5104
    %v5106 = vand.u32 %v5105, 4294901760
    %5107 = vmatpush1.msra.mxu0 %v5106
    %v5108 = vand.u32 %v111, 4294901760
    %v5109 = vsub.f32 %v111, %v5108
    %v5110 = vand.u32 %v5109, 4294901760
    %5111 = vmatprep.subr.mxu0 %v5110
    %v5112 = vand.u32 %v110, 4294901760
    %v5113 = vsub.f32 %v110, %v5112
    %v5114 = vand.u32 %v5113, 4294901760
    %5115 = vmatpush1.msra.mxu0 %v5114
    %v5116 = vand.u32 %v113, 4294901760
    %v5117 = vsub.f32 %v113, %v5116
    %v5118 = vand.u32 %v5117, 4294901760
    %5119 = vmatprep.subr.mxu0 %v5118
    %v5120 = vand.u32 %v112, 4294901760
    %v5121 = vsub.f32 %v112, %v5120
    %v5122 = vand.u32 %v5121, 4294901760
    %5123 = vmatpush1.msra.mxu0 %v5122
    %v5124 = vand.u32 %v115, 4294901760
    %v5125 = vsub.f32 %v115, %v5124
    %v5126 = vand.u32 %v5125, 4294901760
    %5127 = vmatprep.subr.mxu0 %v5126
    %v5128 = vand.u32 %v114, 4294901760
    %v5129 = vsub.f32 %v114, %v5128
    %v5130 = vand.u32 %v5129, 4294901760
    %5131 = vmatpush1.msra.mxu0 %v5130
    %v5132 = vand.u32 %v3993, 4294901760
    %5133 = vmatprep.mubr.f32.mxu0 %v5132
    %v5134 = vand.u32 %v3992, 4294901760
    %5135 = vmatmul.mubr.f32.gmra.mrb[0].mxu0 %v5134
    %v5136 = vpop.f32.mrb[0].mxu0
    %v5137 = vadd.f32 %v4872, %v5136
    %v5138 = vpop.f32.mrb[0].mxu0
    %v5139 = vadd.f32 %v4874, %v5138
    %5140 = vdwg.mxu0
    %v5141 = vand.u32 %v53, 4294901760
    %5142 = vmatprep.subr.mxu0 %v5141
    %v5143 = vand.u32 %v52, 4294901760
    %5144 = vmatpush1.msra.mxu0 %v5143
    %v5145 = vand.u32 %v55, 4294901760
    %5146 = vmatprep.subr.mxu0 %v5145
    %v5147 = vand.u32 %v54, 4294901760
    %5148 = vmatpush1.msra.mxu0 %v5147
    %v5149 = vand.u32 %v57, 4294901760
    %5150 = vmatprep.subr.mxu0 %v5149
    %v5151 = vand.u32 %v56, 4294901760
    %5152 = vmatpush1.msra.mxu0 %v5151
    %v5153 = vand.u32 %v59, 4294901760
    %5154 = vmatprep.subr.mxu0 %v5153
    %v5155 = vand.u32 %v58, 4294901760
    %5156 = vmatpush1.msra.mxu0 %v5155
    %v5157 = vand.u32 %v61, 4294901760
    %5158 = vmatprep.subr.mxu0 %v5157
    %v5159 = vand.u32 %v60, 4294901760
    %5160 = vmatpush1.msra.mxu0 %v5159
    %v5161 = vand.u32 %v63, 4294901760
    %5162 = vmatprep.subr.mxu0 %v5161
    %v5163 = vand.u32 %v62, 4294901760
    %5164 = vmatpush1.msra.mxu0 %v5163
    %v5165 = vand.u32 %v65, 4294901760
    %5166 = vmatprep.subr.mxu0 %v5165
    %v5167 = vand.u32 %v64, 4294901760
    %5168 = vmatpush1.msra.mxu0 %v5167
    %v5169 = vand.u32 %v67, 4294901760
    %5170 = vmatprep.subr.mxu0 %v5169
    %v5171 = vand.u32 %v66, 4294901760
    %5172 = vmatpush1.msra.mxu0 %v5171
    %v5173 = vand.u32 %v69, 4294901760
    %5174 = vmatprep.subr.mxu0 %v5173
    %v5175 = vand.u32 %v68, 4294901760
    %5176 = vmatpush1.msra.mxu0 %v5175
    %v5177 = vand.u32 %v71, 4294901760
    %5178 = vmatprep.subr.mxu0 %v5177
    %v5179 = vand.u32 %v70, 4294901760
    %5180 = vmatpush1.msra.mxu0 %v5179
    %v5181 = vand.u32 %v73, 4294901760
    %5182 = vmatprep.subr.mxu0 %v5181
    %v5183 = vand.u32 %v72, 4294901760
    %5184 = vmatpush1.msra.mxu0 %v5183
    %v5185 = vand.u32 %v75, 4294901760
    %5186 = vmatprep.subr.mxu0 %v5185
    %v5187 = vand.u32 %v74, 4294901760
    %5188 = vmatpush1.msra.mxu0 %v5187
    %v5189 = vand.u32 %v77, 4294901760
    %5190 = vmatprep.subr.mxu0 %v5189
    %v5191 = vand.u32 %v76, 4294901760
    %5192 = vmatpush1.msra.mxu0 %v5191
    %v5193 = vand.u32 %v79, 4294901760
    %5194 = vmatprep.subr.mxu0 %v5193
    %v5195 = vand.u32 %v78, 4294901760
    %5196 = vmatpush1.msra.mxu0 %v5195
    %v5197 = vand.u32 %v81, 4294901760
    %5198 = vmatprep.subr.mxu0 %v5197
    %v5199 = vand.u32 %v80, 4294901760
    %5200 = vmatpush1.msra.mxu0 %v5199
    %v5201 = vand.u32 %v83, 4294901760
    %5202 = vmatprep.subr.mxu0 %v5201
    %v5203 = vand.u32 %v82, 4294901760
    %5204 = vmatpush1.msra.mxu0 %v5203
    %v5205 = vand.u32 %v85, 4294901760
    %5206 = vmatprep.subr.mxu0 %v5205
    %v5207 = vand.u32 %v84, 4294901760
    %5208 = vmatpush1.msra.mxu0 %v5207
    %v5209 = vand.u32 %v87, 4294901760
    %5210 = vmatprep.subr.mxu0 %v5209
    %v5211 = vand.u32 %v86, 4294901760
    %5212 = vmatpush1.msra.mxu0 %v5211
    %v5213 = vand.u32 %v89, 4294901760
    %5214 = vmatprep.subr.mxu0 %v5213
    %v5215 = vand.u32 %v88, 4294901760
    %5216 = vmatpush1.msra.mxu0 %v5215
    %v5217 = vand.u32 %v91, 4294901760
    %5218 = vmatprep.subr.mxu0 %v5217
    %v5219 = vand.u32 %v90, 4294901760
    %5220 = vmatpush1.msra.mxu0 %v5219
    %v5221 = vand.u32 %v93, 4294901760
    %5222 = vmatprep.subr.mxu0 %v5221
    %v5223 = vand.u32 %v92, 4294901760
    %5224 = vmatpush1.msra.mxu0 %v5223
    %v5225 = vand.u32 %v95, 4294901760
    %5226 = vmatprep.subr.mxu0 %v5225
    %v5227 = vand.u32 %v94, 4294901760
    %5228 = vmatpush1.msra.mxu0 %v5227
    %v5229 = vand.u32 %v97, 4294901760
    %5230 = vmatprep.subr.mxu0 %v5229
    %v5231 = vand.u32 %v96, 4294901760
    %5232 = vmatpush1.msra.mxu0 %v5231
    %v5233 = vand.u32 %v99, 4294901760
    %5234 = vmatprep.subr.mxu0 %v5233
    %v5235 = vand.u32 %v98, 4294901760
    %5236 = vmatpush1.msra.mxu0 %v5235
    %v5237 = vand.u32 %v101, 4294901760
    %5238 = vmatprep.subr.mxu0 %v5237
    %v5239 = vand.u32 %v100, 4294901760
    %5240 = vmatpush1.msra.mxu0 %v5239
    %v5241 = vand.u32 %v103, 4294901760
    %5242 = vmatprep.subr.mxu0 %v5241
    %v5243 = vand.u32 %v102, 4294901760
    %5244 = vmatpush1.msra.mxu0 %v5243
    %v5245 = vand.u32 %v105, 4294901760
    %5246 = vmatprep.subr.mxu0 %v5245
    %v5247 = vand.u32 %v104, 4294901760
    %5248 = vmatpush1.msra.mxu0 %v5247
    %v5249 = vand.u32 %v107, 4294901760
    %5250 = vmatprep.subr.mxu0 %v5249
    %v5251 = vand.u32 %v106, 4294901760
    %5252 = vmatpush1.msra.mxu0 %v5251
    %v5253 = vand.u32 %v109, 4294901760
    %5254 = vmatprep.subr.mxu0 %v5253
    %v5255 = vand.u32 %v108, 4294901760
    %5256 = vmatpush1.msra.mxu0 %v5255
    %v5257 = vand.u32 %v111, 4294901760
    %5258 = vmatprep.subr.mxu0 %v5257
    %v5259 = vand.u32 %v110, 4294901760
    %5260 = vmatpush1.msra.mxu0 %v5259
    %v5261 = vand.u32 %v113, 4294901760
    %5262 = vmatprep.subr.mxu0 %v5261
    %v5263 = vand.u32 %v112, 4294901760
    %5264 = vmatpush1.msra.mxu0 %v5263
    %v5265 = vand.u32 %v115, 4294901760
    %5266 = vmatprep.subr.mxu0 %v5265
    %v5267 = vand.u32 %v114, 4294901760
    %5268 = vmatpush1.msra.mxu0 %v5267
    %v5269 = vand.u32 %v3993, 4294901760
    %5270 = vmatprep.mubr.f32.mxu0 %v5269
    %v5271 = vand.u32 %v3992, 4294901760
    %5272 = vmatmul.mubr.f32.gmra.mrb[0].mxu0 %v5271
    %v5273 = vpop.f32.mrb[0].mxu0
    %v5274 = vadd.f32 %v5137, %v5273
    %v5275 = vpop.f32.mrb[0].mxu0
    %v5276 = vadd.f32 %v5139, %v5275
    %5277 = vdwg.mxu0
    %v5278 = vsub.f32 %v5274, %v2688
    %v5279 = vsub.f32 %v5276, %v2689
    %v5280 = vmul.f32 %v118, %v118
    %v5281 = vmul.f32 %v119, %v119
    %v5282 = vand.u32 %v53, 4294901760
    %5283 = vmatprep.subr.mxu0 %v5282
    %v5284 = vand.u32 %v52, 4294901760
    %5285 = vmatpush1.msra.mxu0 %v5284
    %v5286 = vand.u32 %v55, 4294901760
    %5287 = vmatprep.subr.mxu0 %v5286
    %v5288 = vand.u32 %v54, 4294901760
    %5289 = vmatpush1.msra.mxu0 %v5288
    %v5290 = vand.u32 %v57, 4294901760
    %5291 = vmatprep.subr.mxu0 %v5290
    %v5292 = vand.u32 %v56, 4294901760
    %5293 = vmatpush1.msra.mxu0 %v5292
    %v5294 = vand.u32 %v59, 4294901760
    %5295 = vmatprep.subr.mxu0 %v5294
    %v5296 = vand.u32 %v58, 4294901760
    %5297 = vmatpush1.msra.mxu0 %v5296
    %v5298 = vand.u32 %v61, 4294901760
    %5299 = vmatprep.subr.mxu0 %v5298
    %v5300 = vand.u32 %v60, 4294901760
    %5301 = vmatpush1.msra.mxu0 %v5300
    %v5302 = vand.u32 %v63, 4294901760
    %5303 = vmatprep.subr.mxu0 %v5302
    %v5304 = vand.u32 %v62, 4294901760
    %5305 = vmatpush1.msra.mxu0 %v5304
    %v5306 = vand.u32 %v65, 4294901760
    %5307 = vmatprep.subr.mxu0 %v5306
    %v5308 = vand.u32 %v64, 4294901760
    %5309 = vmatpush1.msra.mxu0 %v5308
    %v5310 = vand.u32 %v67, 4294901760
    %5311 = vmatprep.subr.mxu0 %v5310
    %v5312 = vand.u32 %v66, 4294901760
    %5313 = vmatpush1.msra.mxu0 %v5312
    %v5314 = vand.u32 %v69, 4294901760
    %5315 = vmatprep.subr.mxu0 %v5314
    %v5316 = vand.u32 %v68, 4294901760
    %5317 = vmatpush1.msra.mxu0 %v5316
    %v5318 = vand.u32 %v71, 4294901760
    %5319 = vmatprep.subr.mxu0 %v5318
    %v5320 = vand.u32 %v70, 4294901760
    %5321 = vmatpush1.msra.mxu0 %v5320
    %v5322 = vand.u32 %v73, 4294901760
    %5323 = vmatprep.subr.mxu0 %v5322
    %v5324 = vand.u32 %v72, 4294901760
    %5325 = vmatpush1.msra.mxu0 %v5324
    %v5326 = vand.u32 %v75, 4294901760
    %5327 = vmatprep.subr.mxu0 %v5326
    %v5328 = vand.u32 %v74, 4294901760
    %5329 = vmatpush1.msra.mxu0 %v5328
    %v5330 = vand.u32 %v77, 4294901760
    %5331 = vmatprep.subr.mxu0 %v5330
    %v5332 = vand.u32 %v76, 4294901760
    %5333 = vmatpush1.msra.mxu0 %v5332
    %v5334 = vand.u32 %v79, 4294901760
    %5335 = vmatprep.subr.mxu0 %v5334
    %v5336 = vand.u32 %v78, 4294901760
    %5337 = vmatpush1.msra.mxu0 %v5336
    %v5338 = vand.u32 %v81, 4294901760
    %5339 = vmatprep.subr.mxu0 %v5338
    %v5340 = vand.u32 %v80, 4294901760
    %5341 = vmatpush1.msra.mxu0 %v5340
    %v5342 = vand.u32 %v83, 4294901760
    %5343 = vmatprep.subr.mxu0 %v5342
    %v5344 = vand.u32 %v82, 4294901760
    %5345 = vmatpush1.msra.mxu0 %v5344
    %v5346 = vand.u32 %v85, 4294901760
    %5347 = vmatprep.subr.mxu0 %v5346
    %v5348 = vand.u32 %v84, 4294901760
    %5349 = vmatpush1.msra.mxu0 %v5348
    %v5350 = vand.u32 %v87, 4294901760
    %5351 = vmatprep.subr.mxu0 %v5350
    %v5352 = vand.u32 %v86, 4294901760
    %5353 = vmatpush1.msra.mxu0 %v5352
    %v5354 = vand.u32 %v89, 4294901760
    %5355 = vmatprep.subr.mxu0 %v5354
    %v5356 = vand.u32 %v88, 4294901760
    %5357 = vmatpush1.msra.mxu0 %v5356
    %v5358 = vand.u32 %v91, 4294901760
    %5359 = vmatprep.subr.mxu0 %v5358
    %v5360 = vand.u32 %v90, 4294901760
    %5361 = vmatpush1.msra.mxu0 %v5360
    %v5362 = vand.u32 %v93, 4294901760
    %5363 = vmatprep.subr.mxu0 %v5362
    %v5364 = vand.u32 %v92, 4294901760
    %5365 = vmatpush1.msra.mxu0 %v5364
    %v5366 = vand.u32 %v95, 4294901760
    %5367 = vmatprep.subr.mxu0 %v5366
    %v5368 = vand.u32 %v94, 4294901760
    %5369 = vmatpush1.msra.mxu0 %v5368
    %v5370 = vand.u32 %v97, 4294901760
    %5371 = vmatprep.subr.mxu0 %v5370
    %v5372 = vand.u32 %v96, 4294901760
    %5373 = vmatpush1.msra.mxu0 %v5372
    %v5374 = vand.u32 %v99, 4294901760
    %5375 = vmatprep.subr.mxu0 %v5374
    %v5376 = vand.u32 %v98, 4294901760
    %5377 = vmatpush1.msra.mxu0 %v5376
    %v5378 = vand.u32 %v101, 4294901760
    %5379 = vmatprep.subr.mxu0 %v5378
    %v5380 = vand.u32 %v100, 4294901760
    %5381 = vmatpush1.msra.mxu0 %v5380
    %v5382 = vand.u32 %v103, 4294901760
    %5383 = vmatprep.subr.mxu0 %v5382
    %v5384 = vand.u32 %v102, 4294901760
    %5385 = vmatpush1.msra.mxu0 %v5384
    %v5386 = vand.u32 %v105, 4294901760
    %5387 = vmatprep.subr.mxu0 %v5386
    %v5388 = vand.u32 %v104, 4294901760
    %5389 = vmatpush1.msra.mxu0 %v5388
    %v5390 = vand.u32 %v107, 4294901760
    %5391 = vmatprep.subr.mxu0 %v5390
    %v5392 = vand.u32 %v106, 4294901760
    %5393 = vmatpush1.msra.mxu0 %v5392
    %v5394 = vand.u32 %v109, 4294901760
    %5395 = vmatprep.subr.mxu0 %v5394
    %v5396 = vand.u32 %v108, 4294901760
    %5397 = vmatpush1.msra.mxu0 %v5396
    %v5398 = vand.u32 %v111, 4294901760
    %5399 = vmatprep.subr.mxu0 %v5398
    %v5400 = vand.u32 %v110, 4294901760
    %5401 = vmatpush1.msra.mxu0 %v5400
    %v5402 = vand.u32 %v113, 4294901760
    %5403 = vmatprep.subr.mxu0 %v5402
    %v5404 = vand.u32 %v112, 4294901760
    %5405 = vmatpush1.msra.mxu0 %v5404
    %v5406 = vand.u32 %v115, 4294901760
    %5407 = vmatprep.subr.mxu0 %v5406
    %v5408 = vand.u32 %v114, 4294901760
    %5409 = vmatpush1.msra.mxu0 %v5408
    %v5410 = vand.u32 %v5281, 4294901760
    %v5411 = vsub.f32 %v5281, %v5410
    %v5412 = vand.u32 %v5411, 4294901760
    %v5413 = vsub.f32 %v5411, %v5412
    %v5414 = vand.u32 %v5413, 4294901760
    %5415 = vmatprep.mubr.f32.mxu0 %v5414
    %v5416 = vand.u32 %v5280, 4294901760
    %v5417 = vsub.f32 %v5280, %v5416
    %v5418 = vand.u32 %v5417, 4294901760
    %v5419 = vsub.f32 %v5417, %v5418
    %v5420 = vand.u32 %v5419, 4294901760
    %5421 = vmatmul.mubr.f32.gmra.mrb[0].mxu0 %v5420
    %v5422 = vpop.f32.mrb[0].mxu0
    %v5423 = vadd.f32 0.0, %v5422
    %v5424 = vpop.f32.mrb[0].mxu0
    %v5425 = vadd.f32 0.0, %v5424
    %5426 = vdwg.mxu0
    %v5427 = vand.u32 %v53, 4294901760
    %v5428 = vsub.f32 %v53, %v5427
    %v5429 = vand.u32 %v5428, 4294901760
    %v5430 = vsub.f32 %v5428, %v5429
    %v5431 = vand.u32 %v5430, 4294901760
    %5432 = vmatprep.subr.mxu0 %v5431
    %v5433 = vand.u32 %v52, 4294901760
    %v5434 = vsub.f32 %v52, %v5433
    %v5435 = vand.u32 %v5434, 4294901760
    %v5436 = vsub.f32 %v5434, %v5435
    %v5437 = vand.u32 %v5436, 4294901760
    %5438 = vmatpush1.msra.mxu0 %v5437
    %v5439 = vand.u32 %v55, 4294901760
    %v5440 = vsub.f32 %v55, %v5439
    %v5441 = vand.u32 %v5440, 4294901760
    %v5442 = vsub.f32 %v5440, %v5441
    %v5443 = vand.u32 %v5442, 4294901760
    %5444 = vmatprep.subr.mxu0 %v5443
    %v5445 = vand.u32 %v54, 4294901760
    %v5446 = vsub.f32 %v54, %v5445
    %v5447 = vand.u32 %v5446, 4294901760
    %v5448 = vsub.f32 %v5446, %v5447
    %v5449 = vand.u32 %v5448, 4294901760
    %5450 = vmatpush1.msra.mxu0 %v5449
    %v5451 = vand.u32 %v57, 4294901760
    %v5452 = vsub.f32 %v57, %v5451
    %v5453 = vand.u32 %v5452, 4294901760
    %v5454 = vsub.f32 %v5452, %v5453
    %v5455 = vand.u32 %v5454, 4294901760
    %5456 = vmatprep.subr.mxu0 %v5455
    %v5457 = vand.u32 %v56, 4294901760
    %v5458 = vsub.f32 %v56, %v5457
    %v5459 = vand.u32 %v5458, 4294901760
    %v5460 = vsub.f32 %v5458, %v5459
    %v5461 = vand.u32 %v5460, 4294901760
    %5462 = vmatpush1.msra.mxu0 %v5461
    %v5463 = vand.u32 %v59, 4294901760
    %v5464 = vsub.f32 %v59, %v5463
    %v5465 = vand.u32 %v5464, 4294901760
    %v5466 = vsub.f32 %v5464, %v5465
    %v5467 = vand.u32 %v5466, 4294901760
    %5468 = vmatprep.subr.mxu0 %v5467
    %v5469 = vand.u32 %v58, 4294901760
    %v5470 = vsub.f32 %v58, %v5469
    %v5471 = vand.u32 %v5470, 4294901760
    %v5472 = vsub.f32 %v5470, %v5471
    %v5473 = vand.u32 %v5472, 4294901760
    %5474 = vmatpush1.msra.mxu0 %v5473
    %v5475 = vand.u32 %v61, 4294901760
    %v5476 = vsub.f32 %v61, %v5475
    %v5477 = vand.u32 %v5476, 4294901760
    %v5478 = vsub.f32 %v5476, %v5477
    %v5479 = vand.u32 %v5478, 4294901760
    %5480 = vmatprep.subr.mxu0 %v5479
    %v5481 = vand.u32 %v60, 4294901760
    %v5482 = vsub.f32 %v60, %v5481
    %v5483 = vand.u32 %v5482, 4294901760
    %v5484 = vsub.f32 %v5482, %v5483
    %v5485 = vand.u32 %v5484, 4294901760
    %5486 = vmatpush1.msra.mxu0 %v5485
    %v5487 = vand.u32 %v63, 4294901760
    %v5488 = vsub.f32 %v63, %v5487
    %v5489 = vand.u32 %v5488, 4294901760
    %v5490 = vsub.f32 %v5488, %v5489
    %v5491 = vand.u32 %v5490, 4294901760
    %5492 = vmatprep.subr.mxu0 %v5491
    %v5493 = vand.u32 %v62, 4294901760
    %v5494 = vsub.f32 %v62, %v5493
    %v5495 = vand.u32 %v5494, 4294901760
    %v5496 = vsub.f32 %v5494, %v5495
    %v5497 = vand.u32 %v5496, 4294901760
    %5498 = vmatpush1.msra.mxu0 %v5497
    %v5499 = vand.u32 %v65, 4294901760
    %v5500 = vsub.f32 %v65, %v5499
    %v5501 = vand.u32 %v5500, 4294901760
    %v5502 = vsub.f32 %v5500, %v5501
    %v5503 = vand.u32 %v5502, 4294901760
    %5504 = vmatprep.subr.mxu0 %v5503
    %v5505 = vand.u32 %v64, 4294901760
    %v5506 = vsub.f32 %v64, %v5505
    %v5507 = vand.u32 %v5506, 4294901760
    %v5508 = vsub.f32 %v5506, %v5507
    %v5509 = vand.u32 %v5508, 4294901760
    %5510 = vmatpush1.msra.mxu0 %v5509
    %v5511 = vand.u32 %v67, 4294901760
    %v5512 = vsub.f32 %v67, %v5511
    %v5513 = vand.u32 %v5512, 4294901760
    %v5514 = vsub.f32 %v5512, %v5513
    %v5515 = vand.u32 %v5514, 4294901760
    %5516 = vmatprep.subr.mxu0 %v5515
    %v5517 = vand.u32 %v66, 4294901760
    %v5518 = vsub.f32 %v66, %v5517
    %v5519 = vand.u32 %v5518, 4294901760
    %v5520 = vsub.f32 %v5518, %v5519
    %v5521 = vand.u32 %v5520, 4294901760
    %5522 = vmatpush1.msra.mxu0 %v5521
    %v5523 = vand.u32 %v69, 4294901760
    %v5524 = vsub.f32 %v69, %v5523
    %v5525 = vand.u32 %v5524, 4294901760
    %v5526 = vsub.f32 %v5524, %v5525
    %v5527 = vand.u32 %v5526, 4294901760
    %5528 = vmatprep.subr.mxu0 %v5527
    %v5529 = vand.u32 %v68, 4294901760
    %v5530 = vsub.f32 %v68, %v5529
    %v5531 = vand.u32 %v5530, 4294901760
    %v5532 = vsub.f32 %v5530, %v5531
    %v5533 = vand.u32 %v5532, 4294901760
    %5534 = vmatpush1.msra.mxu0 %v5533
    %v5535 = vand.u32 %v71, 4294901760
    %v5536 = vsub.f32 %v71, %v5535
    %v5537 = vand.u32 %v5536, 4294901760
    %v5538 = vsub.f32 %v5536, %v5537
    %v5539 = vand.u32 %v5538, 4294901760
    %5540 = vmatprep.subr.mxu0 %v5539
    %v5541 = vand.u32 %v70, 4294901760
    %v5542 = vsub.f32 %v70, %v5541
    %v5543 = vand.u32 %v5542, 4294901760
    %v5544 = vsub.f32 %v5542, %v5543
    %v5545 = vand.u32 %v5544, 4294901760
    %5546 = vmatpush1.msra.mxu0 %v5545
    %v5547 = vand.u32 %v73, 4294901760
    %v5548 = vsub.f32 %v73, %v5547
    %v5549 = vand.u32 %v5548, 4294901760
    %v5550 = vsub.f32 %v5548, %v5549
    %v5551 = vand.u32 %v5550, 4294901760
    %5552 = vmatprep.subr.mxu0 %v5551
    %v5553 = vand.u32 %v72, 4294901760
    %v5554 = vsub.f32 %v72, %v5553
    %v5555 = vand.u32 %v5554, 4294901760
    %v5556 = vsub.f32 %v5554, %v5555
    %v5557 = vand.u32 %v5556, 4294901760
    %5558 = vmatpush1.msra.mxu0 %v5557
    %v5559 = vand.u32 %v75, 4294901760
    %v5560 = vsub.f32 %v75, %v5559
    %v5561 = vand.u32 %v5560, 4294901760
    %v5562 = vsub.f32 %v5560, %v5561
    %v5563 = vand.u32 %v5562, 4294901760
    %5564 = vmatprep.subr.mxu0 %v5563
    %v5565 = vand.u32 %v74, 4294901760
    %v5566 = vsub.f32 %v74, %v5565
    %v5567 = vand.u32 %v5566, 4294901760
    %v5568 = vsub.f32 %v5566, %v5567
    %v5569 = vand.u32 %v5568, 4294901760
    %5570 = vmatpush1.msra.mxu0 %v5569
    %v5571 = vand.u32 %v77, 4294901760
    %v5572 = vsub.f32 %v77, %v5571
    %v5573 = vand.u32 %v5572, 4294901760
    %v5574 = vsub.f32 %v5572, %v5573
    %v5575 = vand.u32 %v5574, 4294901760
    %5576 = vmatprep.subr.mxu0 %v5575
    %v5577 = vand.u32 %v76, 4294901760
    %v5578 = vsub.f32 %v76, %v5577
    %v5579 = vand.u32 %v5578, 4294901760
    %v5580 = vsub.f32 %v5578, %v5579
    %v5581 = vand.u32 %v5580, 4294901760
    %5582 = vmatpush1.msra.mxu0 %v5581
    %v5583 = vand.u32 %v79, 4294901760
    %v5584 = vsub.f32 %v79, %v5583
    %v5585 = vand.u32 %v5584, 4294901760
    %v5586 = vsub.f32 %v5584, %v5585
    %v5587 = vand.u32 %v5586, 4294901760
    %5588 = vmatprep.subr.mxu0 %v5587
    %v5589 = vand.u32 %v78, 4294901760
    %v5590 = vsub.f32 %v78, %v5589
    %v5591 = vand.u32 %v5590, 4294901760
    %v5592 = vsub.f32 %v5590, %v5591
    %v5593 = vand.u32 %v5592, 4294901760
    %5594 = vmatpush1.msra.mxu0 %v5593
    %v5595 = vand.u32 %v81, 4294901760
    %v5596 = vsub.f32 %v81, %v5595
    %v5597 = vand.u32 %v5596, 4294901760
    %v5598 = vsub.f32 %v5596, %v5597
    %v5599 = vand.u32 %v5598, 4294901760
    %5600 = vmatprep.subr.mxu0 %v5599
    %v5601 = vand.u32 %v80, 4294901760
    %v5602 = vsub.f32 %v80, %v5601
    %v5603 = vand.u32 %v5602, 4294901760
    %v5604 = vsub.f32 %v5602, %v5603
    %v5605 = vand.u32 %v5604, 4294901760
    %5606 = vmatpush1.msra.mxu0 %v5605
    %v5607 = vand.u32 %v83, 4294901760
    %v5608 = vsub.f32 %v83, %v5607
    %v5609 = vand.u32 %v5608, 4294901760
    %v5610 = vsub.f32 %v5608, %v5609
    %v5611 = vand.u32 %v5610, 4294901760
    %5612 = vmatprep.subr.mxu0 %v5611
    %v5613 = vand.u32 %v82, 4294901760
    %v5614 = vsub.f32 %v82, %v5613
    %v5615 = vand.u32 %v5614, 4294901760
    %v5616 = vsub.f32 %v5614, %v5615
    %v5617 = vand.u32 %v5616, 4294901760
    %5618 = vmatpush1.msra.mxu0 %v5617
    %v5619 = vand.u32 %v85, 4294901760
    %v5620 = vsub.f32 %v85, %v5619
    %v5621 = vand.u32 %v5620, 4294901760
    %v5622 = vsub.f32 %v5620, %v5621
    %v5623 = vand.u32 %v5622, 4294901760
    %5624 = vmatprep.subr.mxu0 %v5623
    %v5625 = vand.u32 %v84, 4294901760
    %v5626 = vsub.f32 %v84, %v5625
    %v5627 = vand.u32 %v5626, 4294901760
    %v5628 = vsub.f32 %v5626, %v5627
    %v5629 = vand.u32 %v5628, 4294901760
    %5630 = vmatpush1.msra.mxu0 %v5629
    %v5631 = vand.u32 %v87, 4294901760
    %v5632 = vsub.f32 %v87, %v5631
    %v5633 = vand.u32 %v5632, 4294901760
    %v5634 = vsub.f32 %v5632, %v5633
    %v5635 = vand.u32 %v5634, 4294901760
    %5636 = vmatprep.subr.mxu0 %v5635
    %v5637 = vand.u32 %v86, 4294901760
    %v5638 = vsub.f32 %v86, %v5637
    %v5639 = vand.u32 %v5638, 4294901760
    %v5640 = vsub.f32 %v5638, %v5639
    %v5641 = vand.u32 %v5640, 4294901760
    %5642 = vmatpush1.msra.mxu0 %v5641
    %v5643 = vand.u32 %v89, 4294901760
    %v5644 = vsub.f32 %v89, %v5643
    %v5645 = vand.u32 %v5644, 4294901760
    %v5646 = vsub.f32 %v5644, %v5645
    %v5647 = vand.u32 %v5646, 4294901760
    %5648 = vmatprep.subr.mxu0 %v5647
    %v5649 = vand.u32 %v88, 4294901760
    %v5650 = vsub.f32 %v88, %v5649
    %v5651 = vand.u32 %v5650, 4294901760
    %v5652 = vsub.f32 %v5650, %v5651
    %v5653 = vand.u32 %v5652, 4294901760
    %5654 = vmatpush1.msra.mxu0 %v5653
    %v5655 = vand.u32 %v91, 4294901760
    %v5656 = vsub.f32 %v91, %v5655
    %v5657 = vand.u32 %v5656, 4294901760
    %v5658 = vsub.f32 %v5656, %v5657
    %v5659 = vand.u32 %v5658, 4294901760
    %5660 = vmatprep.subr.mxu0 %v5659
    %v5661 = vand.u32 %v90, 4294901760
    %v5662 = vsub.f32 %v90, %v5661
    %v5663 = vand.u32 %v5662, 4294901760
    %v5664 = vsub.f32 %v5662, %v5663
    %v5665 = vand.u32 %v5664, 4294901760
    %5666 = vmatpush1.msra.mxu0 %v5665
    %v5667 = vand.u32 %v93, 4294901760
    %v5668 = vsub.f32 %v93, %v5667
    %v5669 = vand.u32 %v5668, 4294901760
    %v5670 = vsub.f32 %v5668, %v5669
    %v5671 = vand.u32 %v5670, 4294901760
    %5672 = vmatprep.subr.mxu0 %v5671
    %v5673 = vand.u32 %v92, 4294901760
    %v5674 = vsub.f32 %v92, %v5673
    %v5675 = vand.u32 %v5674, 4294901760
    %v5676 = vsub.f32 %v5674, %v5675
    %v5677 = vand.u32 %v5676, 4294901760
    %5678 = vmatpush1.msra.mxu0 %v5677
    %v5679 = vand.u32 %v95, 4294901760
    %v5680 = vsub.f32 %v95, %v5679
    %v5681 = vand.u32 %v5680, 4294901760
    %v5682 = vsub.f32 %v5680, %v5681
    %v5683 = vand.u32 %v5682, 4294901760
    %5684 = vmatprep.subr.mxu0 %v5683
    %v5685 = vand.u32 %v94, 4294901760
    %v5686 = vsub.f32 %v94, %v5685
    %v5687 = vand.u32 %v5686, 4294901760
    %v5688 = vsub.f32 %v5686, %v5687
    %v5689 = vand.u32 %v5688, 4294901760
    %5690 = vmatpush1.msra.mxu0 %v5689
    %v5691 = vand.u32 %v97, 4294901760
    %v5692 = vsub.f32 %v97, %v5691
    %v5693 = vand.u32 %v5692, 4294901760
    %v5694 = vsub.f32 %v5692, %v5693
    %v5695 = vand.u32 %v5694, 4294901760
    %5696 = vmatprep.subr.mxu0 %v5695
    %v5697 = vand.u32 %v96, 4294901760
    %v5698 = vsub.f32 %v96, %v5697
    %v5699 = vand.u32 %v5698, 4294901760
    %v5700 = vsub.f32 %v5698, %v5699
    %v5701 = vand.u32 %v5700, 4294901760
    %5702 = vmatpush1.msra.mxu0 %v5701
    %v5703 = vand.u32 %v99, 4294901760
    %v5704 = vsub.f32 %v99, %v5703
    %v5705 = vand.u32 %v5704, 4294901760
    %v5706 = vsub.f32 %v5704, %v5705
    %v5707 = vand.u32 %v5706, 4294901760
    %5708 = vmatprep.subr.mxu0 %v5707
    %v5709 = vand.u32 %v98, 4294901760
    %v5710 = vsub.f32 %v98, %v5709
    %v5711 = vand.u32 %v5710, 4294901760
    %v5712 = vsub.f32 %v5710, %v5711
    %v5713 = vand.u32 %v5712, 4294901760
    %5714 = vmatpush1.msra.mxu0 %v5713
    %v5715 = vand.u32 %v101, 4294901760
    %v5716 = vsub.f32 %v101, %v5715
    %v5717 = vand.u32 %v5716, 4294901760
    %v5718 = vsub.f32 %v5716, %v5717
    %v5719 = vand.u32 %v5718, 4294901760
    %5720 = vmatprep.subr.mxu0 %v5719
    %v5721 = vand.u32 %v100, 4294901760
    %v5722 = vsub.f32 %v100, %v5721
    %v5723 = vand.u32 %v5722, 4294901760
    %v5724 = vsub.f32 %v5722, %v5723
    %v5725 = vand.u32 %v5724, 4294901760
    %5726 = vmatpush1.msra.mxu0 %v5725
    %v5727 = vand.u32 %v103, 4294901760
    %v5728 = vsub.f32 %v103, %v5727
    %v5729 = vand.u32 %v5728, 4294901760
    %v5730 = vsub.f32 %v5728, %v5729
    %v5731 = vand.u32 %v5730, 4294901760
    %5732 = vmatprep.subr.mxu0 %v5731
    %v5733 = vand.u32 %v102, 4294901760
    %v5734 = vsub.f32 %v102, %v5733
    %v5735 = vand.u32 %v5734, 4294901760
    %v5736 = vsub.f32 %v5734, %v5735
    %v5737 = vand.u32 %v5736, 4294901760
    %5738 = vmatpush1.msra.mxu0 %v5737
    %v5739 = vand.u32 %v105, 4294901760
    %v5740 = vsub.f32 %v105, %v5739
    %v5741 = vand.u32 %v5740, 4294901760
    %v5742 = vsub.f32 %v5740, %v5741
    %v5743 = vand.u32 %v5742, 4294901760
    %5744 = vmatprep.subr.mxu0 %v5743
    %v5745 = vand.u32 %v104, 4294901760
    %v5746 = vsub.f32 %v104, %v5745
    %v5747 = vand.u32 %v5746, 4294901760
    %v5748 = vsub.f32 %v5746, %v5747
    %v5749 = vand.u32 %v5748, 4294901760
    %5750 = vmatpush1.msra.mxu0 %v5749
    %v5751 = vand.u32 %v107, 4294901760
    %v5752 = vsub.f32 %v107, %v5751
    %v5753 = vand.u32 %v5752, 4294901760
    %v5754 = vsub.f32 %v5752, %v5753
    %v5755 = vand.u32 %v5754, 4294901760
    %5756 = vmatprep.subr.mxu0 %v5755
    %v5757 = vand.u32 %v106, 4294901760
    %v5758 = vsub.f32 %v106, %v5757
    %v5759 = vand.u32 %v5758, 4294901760
    %v5760 = vsub.f32 %v5758, %v5759
    %v5761 = vand.u32 %v5760, 4294901760
    %5762 = vmatpush1.msra.mxu0 %v5761
    %v5763 = vand.u32 %v109, 4294901760
    %v5764 = vsub.f32 %v109, %v5763
    %v5765 = vand.u32 %v5764, 4294901760
    %v5766 = vsub.f32 %v5764, %v5765
    %v5767 = vand.u32 %v5766, 4294901760
    %5768 = vmatprep.subr.mxu0 %v5767
    %v5769 = vand.u32 %v108, 4294901760
    %v5770 = vsub.f32 %v108, %v5769
    %v5771 = vand.u32 %v5770, 4294901760
    %v5772 = vsub.f32 %v5770, %v5771
    %v5773 = vand.u32 %v5772, 4294901760
    %5774 = vmatpush1.msra.mxu0 %v5773
    %v5775 = vand.u32 %v111, 4294901760
    %v5776 = vsub.f32 %v111, %v5775
    %v5777 = vand.u32 %v5776, 4294901760
    %v5778 = vsub.f32 %v5776, %v5777
    %v5779 = vand.u32 %v5778, 4294901760
    %5780 = vmatprep.subr.mxu0 %v5779
    %v5781 = vand.u32 %v110, 4294901760
    %v5782 = vsub.f32 %v110, %v5781
    %v5783 = vand.u32 %v5782, 4294901760
    %v5784 = vsub.f32 %v5782, %v5783
    %v5785 = vand.u32 %v5784, 4294901760
    %5786 = vmatpush1.msra.mxu0 %v5785
    %v5787 = vand.u32 %v113, 4294901760
    %v5788 = vsub.f32 %v113, %v5787
    %v5789 = vand.u32 %v5788, 4294901760
    %v5790 = vsub.f32 %v5788, %v5789
    %v5791 = vand.u32 %v5790, 4294901760
    %5792 = vmatprep.subr.mxu0 %v5791
    %v5793 = vand.u32 %v112, 4294901760
    %v5794 = vsub.f32 %v112, %v5793
    %v5795 = vand.u32 %v5794, 4294901760
    %v5796 = vsub.f32 %v5794, %v5795
    %v5797 = vand.u32 %v5796, 4294901760
    %5798 = vmatpush1.msra.mxu0 %v5797
    %v5799 = vand.u32 %v115, 4294901760
    %v5800 = vsub.f32 %v115, %v5799
    %v5801 = vand.u32 %v5800, 4294901760
    %v5802 = vsub.f32 %v5800, %v5801
    %v5803 = vand.u32 %v5802, 4294901760
    %5804 = vmatprep.subr.mxu0 %v5803
    %v5805 = vand.u32 %v114, 4294901760
    %v5806 = vsub.f32 %v114, %v5805
    %v5807 = vand.u32 %v5806, 4294901760
    %v5808 = vsub.f32 %v5806, %v5807
    %v5809 = vand.u32 %v5808, 4294901760
    %5810 = vmatpush1.msra.mxu0 %v5809
    %v5811 = vand.u32 %v5281, 4294901760
    %5812 = vmatprep.mubr.f32.mxu0 %v5811
    %v5813 = vand.u32 %v5280, 4294901760
    %5814 = vmatmul.mubr.f32.gmra.mrb[0].mxu0 %v5813
    %v5815 = vpop.f32.mrb[0].mxu0
    %v5816 = vadd.f32 %v5423, %v5815
    %v5817 = vpop.f32.mrb[0].mxu0
    %v5818 = vadd.f32 %v5425, %v5817
    %5819 = vdwg.mxu0
    %v5820 = vand.u32 %v53, 4294901760
    %v5821 = vsub.f32 %v53, %v5820
    %5822 = vmatprep.subr.mxu0 %v5821
    %v5823 = vand.u32 %v52, 4294901760
    %v5824 = vsub.f32 %v52, %v5823
    %5825 = vmatpush1.msra.mxu0 %v5824
    %v5826 = vand.u32 %v55, 4294901760
    %v5827 = vsub.f32 %v55, %v5826
    %5828 = vmatprep.subr.mxu0 %v5827
    %v5829 = vand.u32 %v54, 4294901760
    %v5830 = vsub.f32 %v54, %v5829
    %5831 = vmatpush1.msra.mxu0 %v5830
    %v5832 = vand.u32 %v57, 4294901760
    %v5833 = vsub.f32 %v57, %v5832
    %5834 = vmatprep.subr.mxu0 %v5833
    %v5835 = vand.u32 %v56, 4294901760
    %v5836 = vsub.f32 %v56, %v5835
    %5837 = vmatpush1.msra.mxu0 %v5836
    %v5838 = vand.u32 %v59, 4294901760
    %v5839 = vsub.f32 %v59, %v5838
    %5840 = vmatprep.subr.mxu0 %v5839
    %v5841 = vand.u32 %v58, 4294901760
    %v5842 = vsub.f32 %v58, %v5841
    %5843 = vmatpush1.msra.mxu0 %v5842
    %v5844 = vand.u32 %v61, 4294901760
    %v5845 = vsub.f32 %v61, %v5844
    %5846 = vmatprep.subr.mxu0 %v5845
    %v5847 = vand.u32 %v60, 4294901760
    %v5848 = vsub.f32 %v60, %v5847
    %5849 = vmatpush1.msra.mxu0 %v5848
    %v5850 = vand.u32 %v63, 4294901760
    %v5851 = vsub.f32 %v63, %v5850
    %5852 = vmatprep.subr.mxu0 %v5851
    %v5853 = vand.u32 %v62, 4294901760
    %v5854 = vsub.f32 %v62, %v5853
    %5855 = vmatpush1.msra.mxu0 %v5854
    %v5856 = vand.u32 %v65, 4294901760
    %v5857 = vsub.f32 %v65, %v5856
    %5858 = vmatprep.subr.mxu0 %v5857
    %v5859 = vand.u32 %v64, 4294901760
    %v5860 = vsub.f32 %v64, %v5859
    %5861 = vmatpush1.msra.mxu0 %v5860
    %v5862 = vand.u32 %v67, 4294901760
    %v5863 = vsub.f32 %v67, %v5862
    %5864 = vmatprep.subr.mxu0 %v5863
    %v5865 = vand.u32 %v66, 4294901760
    %v5866 = vsub.f32 %v66, %v5865
    %5867 = vmatpush1.msra.mxu0 %v5866
    %v5868 = vand.u32 %v69, 4294901760
    %v5869 = vsub.f32 %v69, %v5868
    %5870 = vmatprep.subr.mxu0 %v5869
    %v5871 = vand.u32 %v68, 4294901760
    %v5872 = vsub.f32 %v68, %v5871
    %5873 = vmatpush1.msra.mxu0 %v5872
    %v5874 = vand.u32 %v71, 4294901760
    %v5875 = vsub.f32 %v71, %v5874
    %5876 = vmatprep.subr.mxu0 %v5875
    %v5877 = vand.u32 %v70, 4294901760
    %v5878 = vsub.f32 %v70, %v5877
    %5879 = vmatpush1.msra.mxu0 %v5878
    %v5880 = vand.u32 %v73, 4294901760
    %v5881 = vsub.f32 %v73, %v5880
    %5882 = vmatprep.subr.mxu0 %v5881
    %v5883 = vand.u32 %v72, 4294901760
    %v5884 = vsub.f32 %v72, %v5883
    %5885 = vmatpush1.msra.mxu0 %v5884
    %v5886 = vand.u32 %v75, 4294901760
    %v5887 = vsub.f32 %v75, %v5886
    %5888 = vmatprep.subr.mxu0 %v5887
    %v5889 = vand.u32 %v74, 4294901760
    %v5890 = vsub.f32 %v74, %v5889
    %5891 = vmatpush1.msra.mxu0 %v5890
    %v5892 = vand.u32 %v77, 4294901760
    %v5893 = vsub.f32 %v77, %v5892
    %5894 = vmatprep.subr.mxu0 %v5893
    %v5895 = vand.u32 %v76, 4294901760
    %v5896 = vsub.f32 %v76, %v5895
    %5897 = vmatpush1.msra.mxu0 %v5896
    %v5898 = vand.u32 %v79, 4294901760
    %v5899 = vsub.f32 %v79, %v5898
    %5900 = vmatprep.subr.mxu0 %v5899
    %v5901 = vand.u32 %v78, 4294901760
    %v5902 = vsub.f32 %v78, %v5901
    %5903 = vmatpush1.msra.mxu0 %v5902
    %v5904 = vand.u32 %v81, 4294901760
    %v5905 = vsub.f32 %v81, %v5904
    %5906 = vmatprep.subr.mxu0 %v5905
    %v5907 = vand.u32 %v80, 4294901760
    %v5908 = vsub.f32 %v80, %v5907
    %5909 = vmatpush1.msra.mxu0 %v5908
    %v5910 = vand.u32 %v83, 4294901760
    %v5911 = vsub.f32 %v83, %v5910
    %5912 = vmatprep.subr.mxu0 %v5911
    %v5913 = vand.u32 %v82, 4294901760
    %v5914 = vsub.f32 %v82, %v5913
    %5915 = vmatpush1.msra.mxu0 %v5914
    %v5916 = vand.u32 %v85, 4294901760
    %v5917 = vsub.f32 %v85, %v5916
    %5918 = vmatprep.subr.mxu0 %v5917
    %v5919 = vand.u32 %v84, 4294901760
    %v5920 = vsub.f32 %v84, %v5919
    %5921 = vmatpush1.msra.mxu0 %v5920
    %v5922 = vand.u32 %v87, 4294901760
    %v5923 = vsub.f32 %v87, %v5922
    %5924 = vmatprep.subr.mxu0 %v5923
    %v5925 = vand.u32 %v86, 4294901760
    %v5926 = vsub.f32 %v86, %v5925
    %5927 = vmatpush1.msra.mxu0 %v5926
    %v5928 = vand.u32 %v89, 4294901760
    %v5929 = vsub.f32 %v89, %v5928
    %5930 = vmatprep.subr.mxu0 %v5929
    %v5931 = vand.u32 %v88, 4294901760
    %v5932 = vsub.f32 %v88, %v5931
    %5933 = vmatpush1.msra.mxu0 %v5932
    %v5934 = vand.u32 %v91, 4294901760
    %v5935 = vsub.f32 %v91, %v5934
    %5936 = vmatprep.subr.mxu0 %v5935
    %v5937 = vand.u32 %v90, 4294901760
    %v5938 = vsub.f32 %v90, %v5937
    %5939 = vmatpush1.msra.mxu0 %v5938
    %v5940 = vand.u32 %v93, 4294901760
    %v5941 = vsub.f32 %v93, %v5940
    %5942 = vmatprep.subr.mxu0 %v5941
    %v5943 = vand.u32 %v92, 4294901760
    %v5944 = vsub.f32 %v92, %v5943
    %5945 = vmatpush1.msra.mxu0 %v5944
    %v5946 = vand.u32 %v95, 4294901760
    %v5947 = vsub.f32 %v95, %v5946
    %5948 = vmatprep.subr.mxu0 %v5947
    %v5949 = vand.u32 %v94, 4294901760
    %v5950 = vsub.f32 %v94, %v5949
    %5951 = vmatpush1.msra.mxu0 %v5950
    %v5952 = vand.u32 %v97, 4294901760
    %v5953 = vsub.f32 %v97, %v5952
    %5954 = vmatprep.subr.mxu0 %v5953
    %v5955 = vand.u32 %v96, 4294901760
    %v5956 = vsub.f32 %v96, %v5955
    %5957 = vmatpush1.msra.mxu0 %v5956
    %v5958 = vand.u32 %v99, 4294901760
    %v5959 = vsub.f32 %v99, %v5958
    %5960 = vmatprep.subr.mxu0 %v5959
    %v5961 = vand.u32 %v98, 4294901760
    %v5962 = vsub.f32 %v98, %v5961
    %5963 = vmatpush1.msra.mxu0 %v5962
    %v5964 = vand.u32 %v101, 4294901760
    %v5965 = vsub.f32 %v101, %v5964
    %5966 = vmatprep.subr.mxu0 %v5965
    %v5967 = vand.u32 %v100, 4294901760
    %v5968 = vsub.f32 %v100, %v5967
    %5969 = vmatpush1.msra.mxu0 %v5968
    %v5970 = vand.u32 %v103, 4294901760
    %v5971 = vsub.f32 %v103, %v5970
    %5972 = vmatprep.subr.mxu0 %v5971
    %v5973 = vand.u32 %v102, 4294901760
    %v5974 = vsub.f32 %v102, %v5973
    %5975 = vmatpush1.msra.mxu0 %v5974
    %v5976 = vand.u32 %v105, 4294901760
    %v5977 = vsub.f32 %v105, %v5976
    %5978 = vmatprep.subr.mxu0 %v5977
    %v5979 = vand.u32 %v104, 4294901760
    %v5980 = vsub.f32 %v104, %v5979
    %5981 = vmatpush1.msra.mxu0 %v5980
    %v5982 = vand.u32 %v107, 4294901760
    %v5983 = vsub.f32 %v107, %v5982
    %5984 = vmatprep.subr.mxu0 %v5983
    %v5985 = vand.u32 %v106, 4294901760
    %v5986 = vsub.f32 %v106, %v5985
    %5987 = vmatpush1.msra.mxu0 %v5986
    %v5988 = vand.u32 %v109, 4294901760
    %v5989 = vsub.f32 %v109, %v5988
    %5990 = vmatprep.subr.mxu0 %v5989
    %v5991 = vand.u32 %v108, 4294901760
    %v5992 = vsub.f32 %v108, %v5991
    %5993 = vmatpush1.msra.mxu0 %v5992
    %v5994 = vand.u32 %v111, 4294901760
    %v5995 = vsub.f32 %v111, %v5994
    %5996 = vmatprep.subr.mxu0 %v5995
    %v5997 = vand.u32 %v110, 4294901760
    %v5998 = vsub.f32 %v110, %v5997
    %5999 = vmatpush1.msra.mxu0 %v5998
    %v6000 = vand.u32 %v113, 4294901760
    %v6001 = vsub.f32 %v113, %v6000
    %6002 = vmatprep.subr.mxu0 %v6001
    %v6003 = vand.u32 %v112, 4294901760
    %v6004 = vsub.f32 %v112, %v6003
    %6005 = vmatpush1.msra.mxu0 %v6004
    %v6006 = vand.u32 %v115, 4294901760
    %v6007 = vsub.f32 %v115, %v6006
    %6008 = vmatprep.subr.mxu0 %v6007
    %v6009 = vand.u32 %v114, 4294901760
    %v6010 = vsub.f32 %v114, %v6009
    %6011 = vmatpush1.msra.mxu0 %v6010
    %v6012 = vand.u32 %v5281, 4294901760
    %v6013 = vsub.f32 %v5281, %v6012
    %6014 = vmatprep.mubr.f32.mxu0 %v6013
    %v6015 = vand.u32 %v5280, 4294901760
    %v6016 = vsub.f32 %v5280, %v6015
    %6017 = vmatmul.mubr.f32.gmra.mrb[0].mxu0 %v6016
    %v6018 = vpop.f32.mrb[0].mxu0
    %v6019 = vadd.f32 %v5816, %v6018
    %v6020 = vpop.f32.mrb[0].mxu0
    %v6021 = vadd.f32 %v5818, %v6020
    %6022 = vdwg.mxu0
    %v6023 = vand.u32 %v53, 4294901760
    %6024 = vmatprep.subr.mxu0 %v6023
    %v6025 = vand.u32 %v52, 4294901760
    %6026 = vmatpush1.msra.mxu0 %v6025
    %v6027 = vand.u32 %v55, 4294901760
    %6028 = vmatprep.subr.mxu0 %v6027
    %v6029 = vand.u32 %v54, 4294901760
    %6030 = vmatpush1.msra.mxu0 %v6029
    %v6031 = vand.u32 %v57, 4294901760
    %6032 = vmatprep.subr.mxu0 %v6031
    %v6033 = vand.u32 %v56, 4294901760
    %6034 = vmatpush1.msra.mxu0 %v6033
    %v6035 = vand.u32 %v59, 4294901760
    %6036 = vmatprep.subr.mxu0 %v6035
    %v6037 = vand.u32 %v58, 4294901760
    %6038 = vmatpush1.msra.mxu0 %v6037
    %v6039 = vand.u32 %v61, 4294901760
    %6040 = vmatprep.subr.mxu0 %v6039
    %v6041 = vand.u32 %v60, 4294901760
    %6042 = vmatpush1.msra.mxu0 %v6041
    %v6043 = vand.u32 %v63, 4294901760
    %6044 = vmatprep.subr.mxu0 %v6043
    %v6045 = vand.u32 %v62, 4294901760
    %6046 = vmatpush1.msra.mxu0 %v6045
    %v6047 = vand.u32 %v65, 4294901760
    %6048 = vmatprep.subr.mxu0 %v6047
    %v6049 = vand.u32 %v64, 4294901760
    %6050 = vmatpush1.msra.mxu0 %v6049
    %v6051 = vand.u32 %v67, 4294901760
    %6052 = vmatprep.subr.mxu0 %v6051
    %v6053 = vand.u32 %v66, 4294901760
    %6054 = vmatpush1.msra.mxu0 %v6053
    %v6055 = vand.u32 %v69, 4294901760
    %6056 = vmatprep.subr.mxu0 %v6055
    %v6057 = vand.u32 %v68, 4294901760
    %6058 = vmatpush1.msra.mxu0 %v6057
    %v6059 = vand.u32 %v71, 4294901760
    %6060 = vmatprep.subr.mxu0 %v6059
    %v6061 = vand.u32 %v70, 4294901760
    %6062 = vmatpush1.msra.mxu0 %v6061
    %v6063 = vand.u32 %v73, 4294901760
    %6064 = vmatprep.subr.mxu0 %v6063
    %v6065 = vand.u32 %v72, 4294901760
    %6066 = vmatpush1.msra.mxu0 %v6065
    %v6067 = vand.u32 %v75, 4294901760
    %6068 = vmatprep.subr.mxu0 %v6067
    %v6069 = vand.u32 %v74, 4294901760
    %6070 = vmatpush1.msra.mxu0 %v6069
    %v6071 = vand.u32 %v77, 4294901760
    %6072 = vmatprep.subr.mxu0 %v6071
    %v6073 = vand.u32 %v76, 4294901760
    %6074 = vmatpush1.msra.mxu0 %v6073
    %v6075 = vand.u32 %v79, 4294901760
    %6076 = vmatprep.subr.mxu0 %v6075
    %v6077 = vand.u32 %v78, 4294901760
    %6078 = vmatpush1.msra.mxu0 %v6077
    %v6079 = vand.u32 %v81, 4294901760
    %6080 = vmatprep.subr.mxu0 %v6079
    %v6081 = vand.u32 %v80, 4294901760
    %6082 = vmatpush1.msra.mxu0 %v6081
    %v6083 = vand.u32 %v83, 4294901760
    %6084 = vmatprep.subr.mxu0 %v6083
    %v6085 = vand.u32 %v82, 4294901760
    %6086 = vmatpush1.msra.mxu0 %v6085
    %v6087 = vand.u32 %v85, 4294901760
    %6088 = vmatprep.subr.mxu0 %v6087
    %v6089 = vand.u32 %v84, 4294901760
    %6090 = vmatpush1.msra.mxu0 %v6089
    %v6091 = vand.u32 %v87, 4294901760
    %6092 = vmatprep.subr.mxu0 %v6091
    %v6093 = vand.u32 %v86, 4294901760
    %6094 = vmatpush1.msra.mxu0 %v6093
    %v6095 = vand.u32 %v89, 4294901760
    %6096 = vmatprep.subr.mxu0 %v6095
    %v6097 = vand.u32 %v88, 4294901760
    %6098 = vmatpush1.msra.mxu0 %v6097
    %v6099 = vand.u32 %v91, 4294901760
    %6100 = vmatprep.subr.mxu0 %v6099
    %v6101 = vand.u32 %v90, 4294901760
    %6102 = vmatpush1.msra.mxu0 %v6101
    %v6103 = vand.u32 %v93, 4294901760
    %6104 = vmatprep.subr.mxu0 %v6103
    %v6105 = vand.u32 %v92, 4294901760
    %6106 = vmatpush1.msra.mxu0 %v6105
    %v6107 = vand.u32 %v95, 4294901760
    %6108 = vmatprep.subr.mxu0 %v6107
    %v6109 = vand.u32 %v94, 4294901760
    %6110 = vmatpush1.msra.mxu0 %v6109
    %v6111 = vand.u32 %v97, 4294901760
    %6112 = vmatprep.subr.mxu0 %v6111
    %v6113 = vand.u32 %v96, 4294901760
    %6114 = vmatpush1.msra.mxu0 %v6113
    %v6115 = vand.u32 %v99, 4294901760
    %6116 = vmatprep.subr.mxu0 %v6115
    %v6117 = vand.u32 %v98, 4294901760
    %6118 = vmatpush1.msra.mxu0 %v6117
    %v6119 = vand.u32 %v101, 4294901760
    %6120 = vmatprep.subr.mxu0 %v6119
    %v6121 = vand.u32 %v100, 4294901760
    %6122 = vmatpush1.msra.mxu0 %v6121
    %v6123 = vand.u32 %v103, 4294901760
    %6124 = vmatprep.subr.mxu0 %v6123
    %v6125 = vand.u32 %v102, 4294901760
    %6126 = vmatpush1.msra.mxu0 %v6125
    %v6127 = vand.u32 %v105, 4294901760
    %6128 = vmatprep.subr.mxu0 %v6127
    %v6129 = vand.u32 %v104, 4294901760
    %6130 = vmatpush1.msra.mxu0 %v6129
    %v6131 = vand.u32 %v107, 4294901760
    %6132 = vmatprep.subr.mxu0 %v6131
    %v6133 = vand.u32 %v106, 4294901760
    %6134 = vmatpush1.msra.mxu0 %v6133
    %v6135 = vand.u32 %v109, 4294901760
    %6136 = vmatprep.subr.mxu0 %v6135
    %v6137 = vand.u32 %v108, 4294901760
    %6138 = vmatpush1.msra.mxu0 %v6137
    %v6139 = vand.u32 %v111, 4294901760
    %6140 = vmatprep.subr.mxu0 %v6139
    %v6141 = vand.u32 %v110, 4294901760
    %6142 = vmatpush1.msra.mxu0 %v6141
    %v6143 = vand.u32 %v113, 4294901760
    %6144 = vmatprep.subr.mxu0 %v6143
    %v6145 = vand.u32 %v112, 4294901760
    %6146 = vmatpush1.msra.mxu0 %v6145
    %v6147 = vand.u32 %v115, 4294901760
    %6148 = vmatprep.subr.mxu0 %v6147
    %v6149 = vand.u32 %v114, 4294901760
    %6150 = vmatpush1.msra.mxu0 %v6149
    %v6151 = vand.u32 %v5281, 4294901760
    %v6152 = vsub.f32 %v5281, %v6151
    %v6153 = vand.u32 %v6152, 4294901760
    %6154 = vmatprep.mubr.f32.mxu0 %v6153
    %v6155 = vand.u32 %v5280, 4294901760
    %v6156 = vsub.f32 %v5280, %v6155
    %v6157 = vand.u32 %v6156, 4294901760
    %6158 = vmatmul.mubr.f32.gmra.mrb[0].mxu0 %v6157
    %v6159 = vpop.f32.mrb[0].mxu0
    %v6160 = vadd.f32 %v6019, %v6159
    %v6161 = vpop.f32.mrb[0].mxu0
    %v6162 = vadd.f32 %v6021, %v6161
    %6163 = vdwg.mxu0
    %v6164 = vand.u32 %v53, 4294901760
    %v6165 = vsub.f32 %v53, %v6164
    %v6166 = vand.u32 %v6165, 4294901760
    %6167 = vmatprep.subr.mxu0 %v6166
    %v6168 = vand.u32 %v52, 4294901760
    %v6169 = vsub.f32 %v52, %v6168
    %v6170 = vand.u32 %v6169, 4294901760
    %6171 = vmatpush1.msra.mxu0 %v6170
    %v6172 = vand.u32 %v55, 4294901760
    %v6173 = vsub.f32 %v55, %v6172
    %v6174 = vand.u32 %v6173, 4294901760
    %6175 = vmatprep.subr.mxu0 %v6174
    %v6176 = vand.u32 %v54, 4294901760
    %v6177 = vsub.f32 %v54, %v6176
    %v6178 = vand.u32 %v6177, 4294901760
    %6179 = vmatpush1.msra.mxu0 %v6178
    %v6180 = vand.u32 %v57, 4294901760
    %v6181 = vsub.f32 %v57, %v6180
    %v6182 = vand.u32 %v6181, 4294901760
    %6183 = vmatprep.subr.mxu0 %v6182
    %v6184 = vand.u32 %v56, 4294901760
    %v6185 = vsub.f32 %v56, %v6184
    %v6186 = vand.u32 %v6185, 4294901760
    %6187 = vmatpush1.msra.mxu0 %v6186
    %v6188 = vand.u32 %v59, 4294901760
    %v6189 = vsub.f32 %v59, %v6188
    %v6190 = vand.u32 %v6189, 4294901760
    %6191 = vmatprep.subr.mxu0 %v6190
    %v6192 = vand.u32 %v58, 4294901760
    %v6193 = vsub.f32 %v58, %v6192
    %v6194 = vand.u32 %v6193, 4294901760
    %6195 = vmatpush1.msra.mxu0 %v6194
    %v6196 = vand.u32 %v61, 4294901760
    %v6197 = vsub.f32 %v61, %v6196
    %v6198 = vand.u32 %v6197, 4294901760
    %6199 = vmatprep.subr.mxu0 %v6198
    %v6200 = vand.u32 %v60, 4294901760
    %v6201 = vsub.f32 %v60, %v6200
    %v6202 = vand.u32 %v6201, 4294901760
    %6203 = vmatpush1.msra.mxu0 %v6202
    %v6204 = vand.u32 %v63, 4294901760
    %v6205 = vsub.f32 %v63, %v6204
    %v6206 = vand.u32 %v6205, 4294901760
    %6207 = vmatprep.subr.mxu0 %v6206
    %v6208 = vand.u32 %v62, 4294901760
    %v6209 = vsub.f32 %v62, %v6208
    %v6210 = vand.u32 %v6209, 4294901760
    %6211 = vmatpush1.msra.mxu0 %v6210
    %v6212 = vand.u32 %v65, 4294901760
    %v6213 = vsub.f32 %v65, %v6212
    %v6214 = vand.u32 %v6213, 4294901760
    %6215 = vmatprep.subr.mxu0 %v6214
    %v6216 = vand.u32 %v64, 4294901760
    %v6217 = vsub.f32 %v64, %v6216
    %v6218 = vand.u32 %v6217, 4294901760
    %6219 = vmatpush1.msra.mxu0 %v6218
    %v6220 = vand.u32 %v67, 4294901760
    %v6221 = vsub.f32 %v67, %v6220
    %v6222 = vand.u32 %v6221, 4294901760
    %6223 = vmatprep.subr.mxu0 %v6222
    %v6224 = vand.u32 %v66, 4294901760
    %v6225 = vsub.f32 %v66, %v6224
    %v6226 = vand.u32 %v6225, 4294901760
    %6227 = vmatpush1.msra.mxu0 %v6226
    %v6228 = vand.u32 %v69, 4294901760
    %v6229 = vsub.f32 %v69, %v6228
    %v6230 = vand.u32 %v6229, 4294901760
    %6231 = vmatprep.subr.mxu0 %v6230
    %v6232 = vand.u32 %v68, 4294901760
    %v6233 = vsub.f32 %v68, %v6232
    %v6234 = vand.u32 %v6233, 4294901760
    %6235 = vmatpush1.msra.mxu0 %v6234
    %v6236 = vand.u32 %v71, 4294901760
    %v6237 = vsub.f32 %v71, %v6236
    %v6238 = vand.u32 %v6237, 4294901760
    %6239 = vmatprep.subr.mxu0 %v6238
    %v6240 = vand.u32 %v70, 4294901760
    %v6241 = vsub.f32 %v70, %v6240
    %v6242 = vand.u32 %v6241, 4294901760
    %6243 = vmatpush1.msra.mxu0 %v6242
    %v6244 = vand.u32 %v73, 4294901760
    %v6245 = vsub.f32 %v73, %v6244
    %v6246 = vand.u32 %v6245, 4294901760
    %6247 = vmatprep.subr.mxu0 %v6246
    %v6248 = vand.u32 %v72, 4294901760
    %v6249 = vsub.f32 %v72, %v6248
    %v6250 = vand.u32 %v6249, 4294901760
    %6251 = vmatpush1.msra.mxu0 %v6250
    %v6252 = vand.u32 %v75, 4294901760
    %v6253 = vsub.f32 %v75, %v6252
    %v6254 = vand.u32 %v6253, 4294901760
    %6255 = vmatprep.subr.mxu0 %v6254
    %v6256 = vand.u32 %v74, 4294901760
    %v6257 = vsub.f32 %v74, %v6256
    %v6258 = vand.u32 %v6257, 4294901760
    %6259 = vmatpush1.msra.mxu0 %v6258
    %v6260 = vand.u32 %v77, 4294901760
    %v6261 = vsub.f32 %v77, %v6260
    %v6262 = vand.u32 %v6261, 4294901760
    %6263 = vmatprep.subr.mxu0 %v6262
    %v6264 = vand.u32 %v76, 4294901760
    %v6265 = vsub.f32 %v76, %v6264
    %v6266 = vand.u32 %v6265, 4294901760
    %6267 = vmatpush1.msra.mxu0 %v6266
    %v6268 = vand.u32 %v79, 4294901760
    %v6269 = vsub.f32 %v79, %v6268
    %v6270 = vand.u32 %v6269, 4294901760
    %6271 = vmatprep.subr.mxu0 %v6270
    %v6272 = vand.u32 %v78, 4294901760
    %v6273 = vsub.f32 %v78, %v6272
    %v6274 = vand.u32 %v6273, 4294901760
    %6275 = vmatpush1.msra.mxu0 %v6274
    %v6276 = vand.u32 %v81, 4294901760
    %v6277 = vsub.f32 %v81, %v6276
    %v6278 = vand.u32 %v6277, 4294901760
    %6279 = vmatprep.subr.mxu0 %v6278
    %v6280 = vand.u32 %v80, 4294901760
    %v6281 = vsub.f32 %v80, %v6280
    %v6282 = vand.u32 %v6281, 4294901760
    %6283 = vmatpush1.msra.mxu0 %v6282
    %v6284 = vand.u32 %v83, 4294901760
    %v6285 = vsub.f32 %v83, %v6284
    %v6286 = vand.u32 %v6285, 4294901760
    %6287 = vmatprep.subr.mxu0 %v6286
    %v6288 = vand.u32 %v82, 4294901760
    %v6289 = vsub.f32 %v82, %v6288
    %v6290 = vand.u32 %v6289, 4294901760
    %6291 = vmatpush1.msra.mxu0 %v6290
    %v6292 = vand.u32 %v85, 4294901760
    %v6293 = vsub.f32 %v85, %v6292
    %v6294 = vand.u32 %v6293, 4294901760
    %6295 = vmatprep.subr.mxu0 %v6294
    %v6296 = vand.u32 %v84, 4294901760
    %v6297 = vsub.f32 %v84, %v6296
    %v6298 = vand.u32 %v6297, 4294901760
    %6299 = vmatpush1.msra.mxu0 %v6298
    %v6300 = vand.u32 %v87, 4294901760
    %v6301 = vsub.f32 %v87, %v6300
    %v6302 = vand.u32 %v6301, 4294901760
    %6303 = vmatprep.subr.mxu0 %v6302
    %v6304 = vand.u32 %v86, 4294901760
    %v6305 = vsub.f32 %v86, %v6304
    %v6306 = vand.u32 %v6305, 4294901760
    %6307 = vmatpush1.msra.mxu0 %v6306
    %v6308 = vand.u32 %v89, 4294901760
    %v6309 = vsub.f32 %v89, %v6308
    %v6310 = vand.u32 %v6309, 4294901760
    %6311 = vmatprep.subr.mxu0 %v6310
    %v6312 = vand.u32 %v88, 4294901760
    %v6313 = vsub.f32 %v88, %v6312
    %v6314 = vand.u32 %v6313, 4294901760
    %6315 = vmatpush1.msra.mxu0 %v6314
    %v6316 = vand.u32 %v91, 4294901760
    %v6317 = vsub.f32 %v91, %v6316
    %v6318 = vand.u32 %v6317, 4294901760
    %6319 = vmatprep.subr.mxu0 %v6318
    %v6320 = vand.u32 %v90, 4294901760
    %v6321 = vsub.f32 %v90, %v6320
    %v6322 = vand.u32 %v6321, 4294901760
    %6323 = vmatpush1.msra.mxu0 %v6322
    %v6324 = vand.u32 %v93, 4294901760
    %v6325 = vsub.f32 %v93, %v6324
    %v6326 = vand.u32 %v6325, 4294901760
    %6327 = vmatprep.subr.mxu0 %v6326
    %v6328 = vand.u32 %v92, 4294901760
    %v6329 = vsub.f32 %v92, %v6328
    %v6330 = vand.u32 %v6329, 4294901760
    %6331 = vmatpush1.msra.mxu0 %v6330
    %v6332 = vand.u32 %v95, 4294901760
    %v6333 = vsub.f32 %v95, %v6332
    %v6334 = vand.u32 %v6333, 4294901760
    %6335 = vmatprep.subr.mxu0 %v6334
    %v6336 = vand.u32 %v94, 4294901760
    %v6337 = vsub.f32 %v94, %v6336
    %v6338 = vand.u32 %v6337, 4294901760
    %6339 = vmatpush1.msra.mxu0 %v6338
    %v6340 = vand.u32 %v97, 4294901760
    %v6341 = vsub.f32 %v97, %v6340
    %v6342 = vand.u32 %v6341, 4294901760
    %6343 = vmatprep.subr.mxu0 %v6342
    %v6344 = vand.u32 %v96, 4294901760
    %v6345 = vsub.f32 %v96, %v6344
    %v6346 = vand.u32 %v6345, 4294901760
    %6347 = vmatpush1.msra.mxu0 %v6346
    %v6348 = vand.u32 %v99, 4294901760
    %v6349 = vsub.f32 %v99, %v6348
    %v6350 = vand.u32 %v6349, 4294901760
    %6351 = vmatprep.subr.mxu0 %v6350
    %v6352 = vand.u32 %v98, 4294901760
    %v6353 = vsub.f32 %v98, %v6352
    %v6354 = vand.u32 %v6353, 4294901760
    %6355 = vmatpush1.msra.mxu0 %v6354
    %v6356 = vand.u32 %v101, 4294901760
    %v6357 = vsub.f32 %v101, %v6356
    %v6358 = vand.u32 %v6357, 4294901760
    %6359 = vmatprep.subr.mxu0 %v6358
    %v6360 = vand.u32 %v100, 4294901760
    %v6361 = vsub.f32 %v100, %v6360
    %v6362 = vand.u32 %v6361, 4294901760
    %6363 = vmatpush1.msra.mxu0 %v6362
    %v6364 = vand.u32 %v103, 4294901760
    %v6365 = vsub.f32 %v103, %v6364
    %v6366 = vand.u32 %v6365, 4294901760
    %6367 = vmatprep.subr.mxu0 %v6366
    %v6368 = vand.u32 %v102, 4294901760
    %v6369 = vsub.f32 %v102, %v6368
    %v6370 = vand.u32 %v6369, 4294901760
    %6371 = vmatpush1.msra.mxu0 %v6370
    %v6372 = vand.u32 %v105, 4294901760
    %v6373 = vsub.f32 %v105, %v6372
    %v6374 = vand.u32 %v6373, 4294901760
    %6375 = vmatprep.subr.mxu0 %v6374
    %v6376 = vand.u32 %v104, 4294901760
    %v6377 = vsub.f32 %v104, %v6376
    %v6378 = vand.u32 %v6377, 4294901760
    %6379 = vmatpush1.msra.mxu0 %v6378
    %v6380 = vand.u32 %v107, 4294901760
    %v6381 = vsub.f32 %v107, %v6380
    %v6382 = vand.u32 %v6381, 4294901760
    %6383 = vmatprep.subr.mxu0 %v6382
    %v6384 = vand.u32 %v106, 4294901760
    %v6385 = vsub.f32 %v106, %v6384
    %v6386 = vand.u32 %v6385, 4294901760
    %6387 = vmatpush1.msra.mxu0 %v6386
    %v6388 = vand.u32 %v109, 4294901760
    %v6389 = vsub.f32 %v109, %v6388
    %v6390 = vand.u32 %v6389, 4294901760
    %6391 = vmatprep.subr.mxu0 %v6390
    %v6392 = vand.u32 %v108, 4294901760
    %v6393 = vsub.f32 %v108, %v6392
    %v6394 = vand.u32 %v6393, 4294901760
    %6395 = vmatpush1.msra.mxu0 %v6394
    %v6396 = vand.u32 %v111, 4294901760
    %v6397 = vsub.f32 %v111, %v6396
    %v6398 = vand.u32 %v6397, 4294901760
    %6399 = vmatprep.subr.mxu0 %v6398
    %v6400 = vand.u32 %v110, 4294901760
    %v6401 = vsub.f32 %v110, %v6400
    %v6402 = vand.u32 %v6401, 4294901760
    %6403 = vmatpush1.msra.mxu0 %v6402
    %v6404 = vand.u32 %v113, 4294901760
    %v6405 = vsub.f32 %v113, %v6404
    %v6406 = vand.u32 %v6405, 4294901760
    %6407 = vmatprep.subr.mxu0 %v6406
    %v6408 = vand.u32 %v112, 4294901760
    %v6409 = vsub.f32 %v112, %v6408
    %v6410 = vand.u32 %v6409, 4294901760
    %6411 = vmatpush1.msra.mxu0 %v6410
    %v6412 = vand.u32 %v115, 4294901760
    %v6413 = vsub.f32 %v115, %v6412
    %v6414 = vand.u32 %v6413, 4294901760
    %6415 = vmatprep.subr.mxu0 %v6414
    %v6416 = vand.u32 %v114, 4294901760
    %v6417 = vsub.f32 %v114, %v6416
    %v6418 = vand.u32 %v6417, 4294901760
    %6419 = vmatpush1.msra.mxu0 %v6418
    %v6420 = vand.u32 %v5281, 4294901760
    %6421 = vmatprep.mubr.f32.mxu0 %v6420
    %v6422 = vand.u32 %v5280, 4294901760
    %6423 = vmatmul.mubr.f32.gmra.mrb[0].mxu0 %v6422
    %v6424 = vpop.f32.mrb[0].mxu0
    %v6425 = vadd.f32 %v6160, %v6424
    %v6426 = vpop.f32.mrb[0].mxu0
    %v6427 = vadd.f32 %v6162, %v6426
    %6428 = vdwg.mxu0
    %v6429 = vand.u32 %v53, 4294901760
    %6430 = vmatprep.subr.mxu0 %v6429
    %v6431 = vand.u32 %v52, 4294901760
    %6432 = vmatpush1.msra.mxu0 %v6431
    %v6433 = vand.u32 %v55, 4294901760
    %6434 = vmatprep.subr.mxu0 %v6433
    %v6435 = vand.u32 %v54, 4294901760
    %6436 = vmatpush1.msra.mxu0 %v6435
    %v6437 = vand.u32 %v57, 4294901760
    %6438 = vmatprep.subr.mxu0 %v6437
    %v6439 = vand.u32 %v56, 4294901760
    %6440 = vmatpush1.msra.mxu0 %v6439
    %v6441 = vand.u32 %v59, 4294901760
    %6442 = vmatprep.subr.mxu0 %v6441
    %v6443 = vand.u32 %v58, 4294901760
    %6444 = vmatpush1.msra.mxu0 %v6443
    %v6445 = vand.u32 %v61, 4294901760
    %6446 = vmatprep.subr.mxu0 %v6445
    %v6447 = vand.u32 %v60, 4294901760
    %6448 = vmatpush1.msra.mxu0 %v6447
    %v6449 = vand.u32 %v63, 4294901760
    %6450 = vmatprep.subr.mxu0 %v6449
    %v6451 = vand.u32 %v62, 4294901760
    %6452 = vmatpush1.msra.mxu0 %v6451
    %v6453 = vand.u32 %v65, 4294901760
    %6454 = vmatprep.subr.mxu0 %v6453
    %v6455 = vand.u32 %v64, 4294901760
    %6456 = vmatpush1.msra.mxu0 %v6455
    %v6457 = vand.u32 %v67, 4294901760
    %6458 = vmatprep.subr.mxu0 %v6457
    %v6459 = vand.u32 %v66, 4294901760
    %6460 = vmatpush1.msra.mxu0 %v6459
    %v6461 = vand.u32 %v69, 4294901760
    %6462 = vmatprep.subr.mxu0 %v6461
    %v6463 = vand.u32 %v68, 4294901760
    %6464 = vmatpush1.msra.mxu0 %v6463
    %v6465 = vand.u32 %v71, 4294901760
    %6466 = vmatprep.subr.mxu0 %v6465
    %v6467 = vand.u32 %v70, 4294901760
    %6468 = vmatpush1.msra.mxu0 %v6467
    %v6469 = vand.u32 %v73, 4294901760
    %6470 = vmatprep.subr.mxu0 %v6469
    %v6471 = vand.u32 %v72, 4294901760
    %6472 = vmatpush1.msra.mxu0 %v6471
    %v6473 = vand.u32 %v75, 4294901760
    %6474 = vmatprep.subr.mxu0 %v6473
    %v6475 = vand.u32 %v74, 4294901760
    %6476 = vmatpush1.msra.mxu0 %v6475
    %v6477 = vand.u32 %v77, 4294901760
    %6478 = vmatprep.subr.mxu0 %v6477
    %v6479 = vand.u32 %v76, 4294901760
    %6480 = vmatpush1.msra.mxu0 %v6479
    %v6481 = vand.u32 %v79, 4294901760
    %6482 = vmatprep.subr.mxu0 %v6481
    %v6483 = vand.u32 %v78, 4294901760
    %6484 = vmatpush1.msra.mxu0 %v6483
    %v6485 = vand.u32 %v81, 4294901760
    %6486 = vmatprep.subr.mxu0 %v6485
    %v6487 = vand.u32 %v80, 4294901760
    %6488 = vmatpush1.msra.mxu0 %v6487
    %v6489 = vand.u32 %v83, 4294901760
    %6490 = vmatprep.subr.mxu0 %v6489
    %v6491 = vand.u32 %v82, 4294901760
    %6492 = vmatpush1.msra.mxu0 %v6491
    %v6493 = vand.u32 %v85, 4294901760
    %6494 = vmatprep.subr.mxu0 %v6493
    %v6495 = vand.u32 %v84, 4294901760
    %6496 = vmatpush1.msra.mxu0 %v6495
    %v6497 = vand.u32 %v87, 4294901760
    %6498 = vmatprep.subr.mxu0 %v6497
    %v6499 = vand.u32 %v86, 4294901760
    %6500 = vmatpush1.msra.mxu0 %v6499
    %v6501 = vand.u32 %v89, 4294901760
    %6502 = vmatprep.subr.mxu0 %v6501
    %v6503 = vand.u32 %v88, 4294901760
    %6504 = vmatpush1.msra.mxu0 %v6503
    %v6505 = vand.u32 %v91, 4294901760
    %6506 = vmatprep.subr.mxu0 %v6505
    %v6507 = vand.u32 %v90, 4294901760
    %6508 = vmatpush1.msra.mxu0 %v6507
    %v6509 = vand.u32 %v93, 4294901760
    %6510 = vmatprep.subr.mxu0 %v6509
    %v6511 = vand.u32 %v92, 4294901760
    %6512 = vmatpush1.msra.mxu0 %v6511
    %v6513 = vand.u32 %v95, 4294901760
    %6514 = vmatprep.subr.mxu0 %v6513
    %v6515 = vand.u32 %v94, 4294901760
    %6516 = vmatpush1.msra.mxu0 %v6515
    %v6517 = vand.u32 %v97, 4294901760
    %6518 = vmatprep.subr.mxu0 %v6517
    %v6519 = vand.u32 %v96, 4294901760
    %6520 = vmatpush1.msra.mxu0 %v6519
    %v6521 = vand.u32 %v99, 4294901760
    %6522 = vmatprep.subr.mxu0 %v6521
    %v6523 = vand.u32 %v98, 4294901760
    %6524 = vmatpush1.msra.mxu0 %v6523
    %v6525 = vand.u32 %v101, 4294901760
    %6526 = vmatprep.subr.mxu0 %v6525
    %v6527 = vand.u32 %v100, 4294901760
    %6528 = vmatpush1.msra.mxu0 %v6527
    %v6529 = vand.u32 %v103, 4294901760
    %6530 = vmatprep.subr.mxu0 %v6529
    %v6531 = vand.u32 %v102, 4294901760
    %6532 = vmatpush1.msra.mxu0 %v6531
    %v6533 = vand.u32 %v105, 4294901760
    %6534 = vmatprep.subr.mxu0 %v6533
    %v6535 = vand.u32 %v104, 4294901760
    %6536 = vmatpush1.msra.mxu0 %v6535
    %v6537 = vand.u32 %v107, 4294901760
    %6538 = vmatprep.subr.mxu0 %v6537
    %v6539 = vand.u32 %v106, 4294901760
    %6540 = vmatpush1.msra.mxu0 %v6539
    %v6541 = vand.u32 %v109, 4294901760
    %6542 = vmatprep.subr.mxu0 %v6541
    %v6543 = vand.u32 %v108, 4294901760
    %6544 = vmatpush1.msra.mxu0 %v6543
    %v6545 = vand.u32 %v111, 4294901760
    %6546 = vmatprep.subr.mxu0 %v6545
    %v6547 = vand.u32 %v110, 4294901760
    %6548 = vmatpush1.msra.mxu0 %v6547
    %v6549 = vand.u32 %v113, 4294901760
    %6550 = vmatprep.subr.mxu0 %v6549
    %v6551 = vand.u32 %v112, 4294901760
    %6552 = vmatpush1.msra.mxu0 %v6551
    %v6553 = vand.u32 %v115, 4294901760
    %6554 = vmatprep.subr.mxu0 %v6553
    %v6555 = vand.u32 %v114, 4294901760
    %6556 = vmatpush1.msra.mxu0 %v6555
    %v6557 = vand.u32 %v5281, 4294901760
    %6558 = vmatprep.mubr.f32.mxu0 %v6557
    %v6559 = vand.u32 %v5280, 4294901760
    %6560 = vmatmul.mubr.f32.gmra.mrb[0].mxu0 %v6559
    %v6561 = vpop.f32.mrb[0].mxu0
    %v6562 = vadd.f32 %v6425, %v6561
    %v6563 = vpop.f32.mrb[0].mxu0
    %v6564 = vadd.f32 %v6427, %v6563
    %6565 = vdwg.mxu0
    %v6566 = vsub.f32 %v6562, %v2690
    %v6567 = vsub.f32 %v6564, %v2691
    %v6568 = vadd.f32 %v2688, %v2690
    %v6569 = vadd.f32 %v2689, %v2691
    %v6570 = vadd.f32 %v6568, 0.0001
    %v6571 = vadd.f32 %v6569, 0.0001
    %v6572 = vadd.f32 %v5278, %v6566
    %v6573 = vadd.f32 %v5279, %v6567
    %v6574 = vadd.f32 %v6572, 0.0009
    %v6575 = vadd.f32 %v6573, 0.0009
    %v6576 = vmul.f32 %v6570, %v6574
    %v6577 = vmul.f32 %v6571, %v6575
    %v6578 = vrcp.pop %v6576
    %v6579 = vrcp.pop %v6577
    %v6580 = vmul.f32 %v6576, %v6578
    %v6581 = vmul.f32 %v6577, %v6579
    %v6582 = vsub.f32 2.0, %v6580
    %v6583 = vsub.f32 2.0, %v6581
    %v6584 = vmul.f32 %v6578, %v6582
    %v6585 = vmul.f32 %v6579, %v6583
    %v6586 = vmul.f32 %v6576, %v6584
    %v6587 = vmul.f32 %v6577, %v6585
    %v6588 = vsub.f32 2.0, %v6586
    %v6589 = vsub.f32 2.0, %v6587
    %v6590 = vmul.f32 %v6584, %v6588
    %v6591 = vmul.f32 %v6585, %v6589
    %v6592 = vmul.f32 %v3990, %v6590
    %v6593 = vmul.f32 %v3991, %v6591
    %v6594 = vsub.f32 1.0, %v6592
    %v6595 = vsub.f32 1.0, %v6593
    %v6596 = vmax.f32 %v6594, 0.0
    %v6597 = vmax.f32 %v6595, 0.0
    %v6598 = vmin.f32 %v6596, 1.0
    %v6599 = vmin.f32 %v6597, 1.0
    %v6600 = vmul.f32 %v6598, 0.5
    %v6601 = vmul.f32 %v6599, 0.5
    %v6602 = vsub.f32 1.0, %v6600
    %v6603 = vsub.f32 1.0, %v6601
    %v6604 = vmul.f32 %v6602, 0.5
    %v6605 = vmul.f32 %v6603, 0.5
    %6606 = vst [vmem:[#allocation8] sm:$0xff] %v6604
    %6607 = vst [vmem:[#allocation8 + $0x8] sm:$0xff] %v6605
    // Predicated region
    $region26: #{tpu_custom_call.1} parent=1 // pred_check
      _
    $region27: #{tpu_custom_call.1} parent=1 // pred_check_branch
      %6609 = sbr.rel (0) target = $region29
    $region28: #{tpu_custom_call.1} parent=1 // pred_region
      %s6611 = ssub.s32 256, 256
      %6612 = vsyncadd [#allocation4], %s6611
      %s6614 = sshll.u32 [#allocation8], 4
      %s6615 = int_to_ptr.vmem [resolvable:$true] %s6614
      %6617 = dma.vmem_to_hbm [thread:$0]  %s6615, 256, %s3, [#allocation4]
    $region29: #{tpu_custom_call.1} parent=1 // pred_fallthru
      _
    // Predicated region
    $region30: #{tpu_custom_call.1} parent=1 // pred_check
      _
    $region31: #{tpu_custom_call.1} parent=1 // pred_check_branch
      %6619 = sbr.rel (0) target = $region33
    $region32: #{tpu_custom_call.1} parent=1 // pred_region
      %6620 = dma.done [#allocation4], 256
    $region33: #{tpu_custom_call.1} parent=1 // pred_fallthru
      _
    %6621 = vsyncpa [#allocation3], 1
    %6622 = vsyncpa [#allocation6], 1
    %6623 = vsyncpa [#allocation4], 1

</llo_original>
